<compile_context>
chip_gen: v7x
topology: tpu7x:2x2x1
jax: 0.10.0
libtpu: 0.0.40
codegen_flags: <defaults>
</compile_context>

<pallas_src>
import functools

import numpy as np
import jax
import jax.numpy as jnp
from jax.experimental import pallas as pl
from jax.experimental.pallas import tpu as pltpu

RESIZE_VALUE = 512.0   # `resize_value` in the PyTorch script
NEG_SLOPE = 0.01       # nn.LeakyReLU default negative_slope
BN_EPS = 1e-5          # nn.BatchNorm1d default eps

_VMEM = pl.BlockSpec(memory_space=pltpu.MemorySpace.VMEM)

# Packed bias vector: name -> (128-aligned lane offset, width the kernel reads).
_BIAS = {
    "bc1": (0, 16),    "bc2": (128, 32),    "bc3": (256, 128),
    "bb1": (384, 256), "bb2": (640, 64),    "bb3": (768, 128),
    "b1": (896, 256),  "gamma": (1152, 256), "beta": (1408, 256),
    "b2": (1664, 128), "b3": (1792, 64),    "b4": (1920, 128),
}
_BIAS_LANES = 2048

# Row offsets inside the stacked bf16 weight slabs (by output lane width).
_W128 = {"wc3": 0, "wb3": 800, "w2": 864, "w4": 1120}    # (1184, 128)
_W64 = {"wb2": 0, "w3": 256}                              # (384, 64)
_W256 = {"wb1": 0, "w1a": 768, "w1b": 896}                # (1024, 256)


def _lrelu(x):
    # leaky_relu(x) == max(x, 0.01*x) for slope in (0, 1)
    return jnp.maximum(x, NEG_SLOPE * x)


# --------------------------- fused Pallas kernel -----------------------------

def _bxfinder_kernel(p1_ref, bert_ref, wc1_ref, wc2_ref, w128_ref, w64_ref, w256_ref,
                     bias_ref, out_ref, x1_s, y2_s, x2p_s):
    dot = functools.partial(jnp.dot, preferred_element_type=jnp.float32)
    bf16 = jnp.bfloat16
    bsz = bert_ref.shape[0]
    R = bsz * 196                  # flat conv1/conv2 rows: (b, i, j), 14-wide, 14-tall

    def bias(name):
        off, width = _BIAS[name]
        return bias_ref[:, off:off + width]

    # ---- conv1 (3x3, 1->16) + LeakyReLU: one dot on the host-built im2col ----------------
    y1 = _lrelu(dot(p1_ref[...], wc1_ref[...]) + bias("bc1"))            # (R, 16) f32
    x1_s[0:R, :] = y1.astype(bf16)
    x1_s[R:, :] = jnp.zeros((x1_s.shape[0] - R, 16), bf16)               # finite pad rows

    # ---- conv2 (3x3, 16->32): 9-term K-split accumulation (no im2col concat) -------------
    # output flat row o = 196b + 14*oi + oj; source row for tap (di,dj) is o + 14*di + dj.
    y2_s[...] = dot(x1_s[0:R, :], wc2_ref[0:16, :])
    for o in range(1, 9):
        sh = (o // 3) * 14 + (o % 3)
        y2_s[...] += dot(x1_s[sh:sh + R, :], wc2_ref[o * 16:(o + 1) * 16, :])

    # ---- MaxPool2d(2,2) + bias + LeakyReLU on the VPU (no selector matmuls) --------------
    # pooled[b,u,v] = max over (p,q) of y2[196b + 14(2u+p) + (2v+q)]; for fixed (v,p,q) the
    # rows form one stride-28 gather over k = 7b+u.  The result is stored lane-packed as
    # x2p_s[7b+u, v*32+c] so conv3 can contract (dj, ci) along the lane dimension.
    bc2 = bias("bc2")
    for v in range(6):
        blk = y2_s[pl.ds(2 * v, 7 * bsz, stride=28), :]
        blk = jnp.maximum(blk, y2_s[pl.ds(2 * v + 1, 7 * bsz, stride=28), :])
        blk = jnp.maximum(blk, y2_s[pl.ds(2 * v + 14, 7 * bsz, stride=28), :])
        blk = jnp.maximum(blk, y2_s[pl.ds(2 * v + 15, 7 * bsz, stride=28), :])
        x2p_s[:, v * 32:(v + 1) * 32] = _lrelu(blk + bc2).astype(bf16)

    # ---- conv3 (5x5, 32->124) + MaxPool(2,2) + LeakyReLU: only the 4 surviving positions -
    # candidate rows r = 7b + oi (oi in {0,1}); 5 row-band dots per pool column phase oj.
    M3 = 7 * (bsz - 1) + 2
    acc0 = jnp.zeros((M3, 128), jnp.float32)
    acc1 = jnp.zeros((M3, 128), jnp.float32)
    for di in range(5):
        xv = x2p_s[di:di + M3, :]                                        # (M3, 192) bf16
        band = w128_ref[_W128["wc3"] + di * 160:_W128["wc3"] + (di + 1) * 160, :]
        acc0 = acc0 + dot(xv[:, 0:160], band)                            # oj = 0
        acc1 = acc1 + dot(xv[:, 32:192], band)                           # oj = 1
    m = jnp.maximum(acc0, acc1)                                          # max over oj
    feat = jnp.concatenate(
        [jnp.maximum(m[7 * b:7 * b + 1, :], m[7 * b + 1:7 * b + 2, :]) for b in range(bsz)],
        axis=0)                                                          # max over oi
    feat = _lrelu(feat + bias("bc3"))          # (bsz, 128); lanes 124..127 stay exactly 0

    # ---- bert_compressor: 768 -> 256 -> 64 -> 4 (zero-padded to 128), LeakyReLU each -----
    h = _lrelu(dot(bert_ref[...],
                   w256_ref[_W256["wb1"]:_W256["wb1"] + 768, :]) + bias("bb1"))
    h = _lrelu(dot(h.astype(bf16),
                   w64_ref[_W64["wb2"]:_W64["wb2"] + 256, :]) + bias("bb2"))
    h = _lrelu(dot(h.astype(bf16),
                   w128_ref[_W128["wb3"]:_W128["wb3"] + 64, :]) + bias("bb3"))

    # ---- lin1: cat(feat, bert_comp) @ W1 (split halves) + BatchNorm1d + LeakyReLU --------
    z = (dot(feat.astype(bf16), w256_ref[_W256["w1a"]:_W256["w1a"] + 128, :])
         + dot(h.astype(bf16), w256_ref[_W256["w1b"]:_W256["w1b"] + 128, :])
         + bias("b1"))                                                   # (bsz, 256) f32
    # TODO(synk): BatchNorm1d uses training-mode batch statistics (fresh module in .train());
    # the running-stat buffer update is a training side effect and is not replicated here.
    mu = jnp.mean(z, axis=0, keepdims=True)
    var = jnp.mean((z - mu) * (z - mu), axis=0, keepdims=True)
    z = (z - mu) * jax.lax.rsqrt(var + BN_EPS)
    z = _lrelu(z * bias("gamma") + bias("beta"))

    # ---- lin2: 256 -> 128 -> 64 -> 4 (padded to 128 lanes), scaled by resize_value -------
    z = _lrelu(dot(z.astype(bf16), w128_ref[_W128["w2"]:_W128["w2"] + 256, :]) + bias("b2"))
    z = _lrelu(dot(z.astype(bf16), w64_ref[_W64["w3"]:_W64["w3"] + 128, :]) + bias("b3"))
    out_ref[...] = (dot(z.astype(bf16), w128_ref[_W128["w4"]:_W128["w4"] + 64, :])
                    + bias("b4")) * RESIZE_VALUE


# --------------------------- params ------------------------------------------

def init_params(key):
    ks = jax.random.split(key, 20)
    it = iter(ks)

    def lin(fan_in, fan_out):
        return jax.random.normal(next(it), (fan_in, fan_out), jnp.float32) / np.sqrt(float(fan_in))

    def vec(n):
        return jax.random.normal(next(it), (1, n), jnp.float32) * 0.01

    def pad_cols(w, n):
        return jnp.pad(w, ((0, 0), (0, n - w.shape[1])))

    def pad_rows(w, n):
        return jnp.pad(w, ((0, n - w.shape[0]), (0, 0)))

    # conv weights in im2col layout (row index = (di*k + dj)*Cin + ci); zero-padded as noted
    wc1, bc1 = pad_rows(lin(9, 16), 16), vec(16)          # K 9 -> 16 zero rows
    wc2, bc2 = lin(144, 32), vec(32)
    wc3, bc3 = pad_cols(lin(800, 124), 128), vec(124)     # Cout 124 -> 128 zero cols
    wb1, bb1 = lin(768, 256), vec(256)
    wb2, bb2 = lin(256, 64), vec(64)
    wb3, bb3 = pad_cols(lin(64, 4), 128), vec(4)
    w1, b1 = lin(128, 256), vec(256)
    w2, b2 = lin(256, 128), vec(128)
    w3, b3 = lin(128, 64), vec(64)
    w4, b4 = pad_cols(lin(64, 4), 128), vec(4)

    # lin1 split halves: rows 0..123 act on conv features, rows 124..127 on bert_comp;
    # both are zero-padded to 128 rows matching the zero-padded feat / bert_comp lanes.
    w1a = pad_rows(w1[:124], 128)
    w1b = pad_rows(w1[124:128], 128)

    params = {
        "wc1": wc1.astype(jnp.bfloat16),
        "wc2": wc2.astype(jnp.bfloat16),
        "w128": jnp.concatenate([wc3, wb3, w2, w4], axis=0).astype(jnp.bfloat16),   # (1184,128)
        "w64": jnp.concatenate([wb2, w3], axis=0).astype(jnp.bfloat16),             # (384,64)
        "w256": jnp.concatenate([wb1, w1a, w1b], axis=0).astype(jnp.bfloat16),      # (1024,256)
    }

    packed = jnp.zeros((1, _BIAS_LANES), jnp.float32)
    for name, val in dict(bc1=bc1, bc2=bc2, bc3=bc3, bb1=bb1, bb2=bb2, bb3=bb3, b1=b1,
                          gamma=jnp.ones((1, 256), jnp.float32),
                          beta=jnp.zeros((1, 256), jnp.float32),
                          b2=b2, b3=b3, b4=b4).items():
        off, _ = _BIAS[name]
        packed = packed.at[:, off:off + val.shape[1]].set(val)
    params["bias"] = packed
    return params


# --------------------------- forward wrapper ---------------------------------

def bxfinder_forward(params, image, bert_emb):
    # image: (B, 1, H, W) NCHW with H=W=16 (so conv3's pooled feature map is 1x1 = 124
    # features, as Linear(124 + 4, 256) requires).
    x = image[:, 0, :, :].astype(jnp.float32)
    bsz = x.shape[0]

    # conv1 im2col depends only on the raw image -> cheap plain-JAX glue.  Rows ordered
    # (b, i, j), tap axis zero-padded 9 -> 16, cast to bf16 for the MXU.
    taps = [x[:, i:i + 14, j:j + 14] for i in range(3) for j in range(3)]
    p1 = jnp.stack(taps, axis=-1)                                   # (B, 14, 14, 9)
    p1 = jnp.pad(p1, ((0, 0), (0, 0), (0, 0), (0, 7)))
    p1 = p1.reshape(bsz * 196, 16).astype(jnp.bfloat16)

    args = (p1, bert_emb.astype(jnp.bfloat16),
            params["wc1"], params["wc2"], params["w128"], params["w64"], params["w256"],
            params["bias"])

    out = pl.pallas_call(
        _bxfinder_kernel,
        out_shape=jax.ShapeDtypeStruct((bsz, 128), jnp.float32),
        in_specs=[_VMEM] * len(args),
        out_specs=_VMEM,
        scratch_shapes=[
            pltpu.VMEM((bsz * 196 + 32, 16), jnp.bfloat16),   # conv1 out, flat + 32 pad rows
            pltpu.VMEM((bsz * 196, 32), jnp.float32),         # conv2 pre-pool accumulator
            pltpu.VMEM((bsz * 7, 192), jnp.bfloat16),         # pooled conv2, lane-packed
        ],
    )(*args)
    return out[:, :4]                                            # drop zero padding lanes


if __name__ == "__main__":
    key = jax.random.PRNGKey(0)
    kp, ki, kb = jax.random.split(key, 3)
    params = init_params(kp)
    image = jax.random.normal(ki, (2, 1, 16, 16), jnp.float32)
    bert_emb = jax.random.normal(kb, (2, 768), jnp.float32)

    out = jax.jit(bxfinder_forward)(params, image, bert_emb)
    out = jax.block_until_ready(out)
    assert out.shape == (2, 4) and out.dtype == jnp.float32
    assert bool(jnp.all(jnp.isfinite(out)))
    print("KERNEL_OK")
</pallas_src>

<mosaic_0001>
module attributes {stable_mosaic.version = 11 : i64} {
  func.func @_bxfinder_kernel(%arg0: memref<392x16xbf16, #tpu.memory_space<vmem>>, %arg1: memref<2x768xbf16, #tpu.memory_space<vmem>>, %arg2: memref<16x16xbf16, #tpu.memory_space<vmem>>, %arg3: memref<144x32xbf16, #tpu.memory_space<vmem>>, %arg4: memref<1184x128xbf16, #tpu.memory_space<vmem>>, %arg5: memref<384x64xbf16, #tpu.memory_space<vmem>>, %arg6: memref<1024x256xbf16, #tpu.memory_space<vmem>>, %arg7: memref<1x2048xf32, #tpu.memory_space<vmem>>, %arg8: memref<2x128xf32, #tpu.memory_space<vmem>>, %arg9: memref<424x16xbf16, #tpu.memory_space<vmem>>, %arg10: memref<392x32xf32, #tpu.memory_space<vmem>>, %arg11: memref<14x192xbf16, #tpu.memory_space<vmem>>) attributes {dimension_semantics = [], scalar_prefetch = 0 : i64, scratch_operands = 3 : i64, tpu.core_type = #tpu.core_type<tc>} {
    %c0 = arith.constant 0 : index
    %c0_0 = arith.constant 0 : index
    %0 = vector.load %arg0[%c0, %c0_0] : memref<392x16xbf16, #tpu.memory_space<vmem>>, vector<392x16xbf16>
    %c0_1 = arith.constant 0 : index
    %c0_2 = arith.constant 0 : index
    %1 = vector.load %arg2[%c0_1, %c0_2] : memref<16x16xbf16, #tpu.memory_space<vmem>>, vector<16x16xbf16>
    %cst = arith.constant dense<0.000000e+00> : vector<392x16xf32>
    %2 = tpu.matmul %0, %1, %cst {dimension_numbers = #tpu.dot_dimension_numbers<[1], [0], [0], [1], [0, 0, 1, 1], [], []>} : vector<392x16xbf16>, vector<16x16xbf16>, vector<392x16xf32> -> vector<392x16xf32>
    %c0_3 = arith.constant 0 : index
    %c0_4 = arith.constant 0 : index
    %3 = vector.load %arg7[%c0_3, %c0_4] : memref<1x2048xf32, #tpu.memory_space<vmem>>, vector<1x16xf32>
    %4 = vector.broadcast %3 : vector<1x16xf32> to vector<392x16xf32>
    %5 = arith.addf %2, %4 : vector<392x16xf32>
    %cst_5 = arith.constant 0.00999999977 : f32
    %6 = vector.broadcast %cst_5 : f32 to vector<392x16xf32>
    %7 = arith.mulf %6, %5 : vector<392x16xf32>
    %8 = arith.maximumf %5, %7 : vector<392x16xf32>
    %9 = arith.truncf %8 : vector<392x16xf32> to vector<392x16xbf16>
    %c0_6 = arith.constant 0 : index
    %c0_7 = arith.constant 0 : index
    %10 = vector.load %arg9[%c0_6, %c0_7] : memref<424x16xbf16, #tpu.memory_space<vmem>>, vector<392x16xbf16>
    tpu.vector_store %arg9[%c0_6, %c0_7], %9 {strides = array<i32>} : memref<424x16xbf16, #tpu.memory_space<vmem>>, vector<392x16xbf16>,
    %cst_8 = arith.constant 0.000000e+00 : bf16
    %11 = vector.broadcast %cst_8 : bf16 to vector<32x16xbf16>
    %c392 = arith.constant 392 : index
    %c0_9 = arith.constant 0 : index
    %12 = vector.load %arg9[%c392, %c0_9] : memref<424x16xbf16, #tpu.memory_space<vmem>>, vector<32x16xbf16>
    tpu.vector_store %arg9[%c392, %c0_9], %11 {strides = array<i32>} : memref<424x16xbf16, #tpu.memory_space<vmem>>, vector<32x16xbf16>,
    %c0_10 = arith.constant 0 : index
    %c0_11 = arith.constant 0 : index
    %13 = vector.load %arg9[%c0_10, %c0_11] : memref<424x16xbf16, #tpu.memory_space<vmem>>, vector<392x16xbf16>
    %c0_12 = arith.constant 0 : index
    %c0_13 = arith.constant 0 : index
    %14 = vector.load %arg3[%c0_12, %c0_13] : memref<144x32xbf16, #tpu.memory_space<vmem>>, vector<16x32xbf16>
    %cst_14 = arith.constant dense<0.000000e+00> : vector<392x32xf32>
    %15 = tpu.matmul %13, %14, %cst_14 {dimension_numbers = #tpu.dot_dimension_numbers<[1], [0], [0], [1], [0, 0, 1, 1], [], []>} : vector<392x16xbf16>, vector<16x32xbf16>, vector<392x32xf32> -> vector<392x32xf32>
    %c0_15 = arith.constant 0 : index
    %c0_16 = arith.constant 0 : index
    %16 = vector.load %arg10[%c0_15, %c0_16] : memref<392x32xf32, #tpu.memory_space<vmem>>, vector<392x32xf32>
    tpu.vector_store %arg10[%c0_15, %c0_16], %15 {strides = array<i32>} : memref<392x32xf32, #tpu.memory_space<vmem>>, vector<392x32xf32>,
    %c0_17 = arith.constant 0 : index
    %c0_18 = arith.constant 0 : index
    %17 = vector.load %arg10[%c0_17, %c0_18] : memref<392x32xf32, #tpu.memory_space<vmem>>, vector<392x32xf32>
    %c1 = arith.constant 1 : index
    %c0_19 = arith.constant 0 : index
    %18 = vector.load %arg9[%c1, %c0_19] : memref<424x16xbf16, #tpu.memory_space<vmem>>, vector<392x16xbf16>
    %c16 = arith.constant 16 : index
    %c0_20 = arith.constant 0 : index
    %19 = vector.load %arg3[%c16, %c0_20] : memref<144x32xbf16, #tpu.memory_space<vmem>>, vector<16x32xbf16>
    %cst_21 = arith.constant dense<0.000000e+00> : vector<392x32xf32>
    %20 = tpu.matmul %18, %19, %cst_21 {dimension_numbers = #tpu.dot_dimension_numbers<[1], [0], [0], [1], [0, 0, 1, 1], [], []>} : vector<392x16xbf16>, vector<16x32xbf16>, vector<392x32xf32> -> vector<392x32xf32>
    %21 = arith.addf %17, %20 : vector<392x32xf32>
    %c0_22 = arith.constant 0 : index
    %c0_23 = arith.constant 0 : index
    %22 = vector.load %arg10[%c0_22, %c0_23] : memref<392x32xf32, #tpu.memory_space<vmem>>, vector<392x32xf32>
    tpu.vector_store %arg10[%c0_22, %c0_23], %21 {strides = array<i32>} : memref<392x32xf32, #tpu.memory_space<vmem>>, vector<392x32xf32>,
    %c0_24 = arith.constant 0 : index
    %c0_25 = arith.constant 0 : index
    %23 = vector.load %arg10[%c0_24, %c0_25] : memref<392x32xf32, #tpu.memory_space<vmem>>, vector<392x32xf32>
    %c2 = arith.constant 2 : index
    %c0_26 = arith.constant 0 : index
    %24 = vector.load %arg9[%c2, %c0_26] : memref<424x16xbf16, #tpu.memory_space<vmem>>, vector<392x16xbf16>
    %c32 = arith.constant 32 : index
    %c0_27 = arith.constant 0 : index
    %25 = vector.load %arg3[%c32, %c0_27] : memref<144x32xbf16, #tpu.memory_space<vmem>>, vector<16x32xbf16>
    %cst_28 = arith.constant dense<0.000000e+00> : vector<392x32xf32>
    %26 = tpu.matmul %24, %25, %cst_28 {dimension_numbers = #tpu.dot_dimension_numbers<[1], [0], [0], [1], [0, 0, 1, 1], [], []>} : vector<392x16xbf16>, vector<16x32xbf16>, vector<392x32xf32> -> vector<392x32xf32>
    %27 = arith.addf %23, %26 : vector<392x32xf32>
    %c0_29 = arith.constant 0 : index
    %c0_30 = arith.constant 0 : index
    %28 = vector.load %arg10[%c0_29, %c0_30] : memref<392x32xf32, #tpu.memory_space<vmem>>, vector<392x32xf32>
    tpu.vector_store %arg10[%c0_29, %c0_30], %27 {strides = array<i32>} : memref<392x32xf32, #tpu.memory_space<vmem>>, vector<392x32xf32>,
    %c0_31 = arith.constant 0 : index
    %c0_32 = arith.constant 0 : index
    %29 = vector.load %arg10[%c0_31, %c0_32] : memref<392x32xf32, #tpu.memory_space<vmem>>, vector<392x32xf32>
    %c14 = arith.constant 14 : index
    %c0_33 = arith.constant 0 : index
    %30 = vector.load %arg9[%c14, %c0_33] : memref<424x16xbf16, #tpu.memory_space<vmem>>, vector<392x16xbf16>
    %c48 = arith.constant 48 : index
    %c0_34 = arith.constant 0 : index
    %31 = vector.load %arg3[%c48, %c0_34] : memref<144x32xbf16, #tpu.memory_space<vmem>>, vector<16x32xbf16>
    %cst_35 = arith.constant dense<0.000000e+00> : vector<392x32xf32>
    %32 = tpu.matmul %30, %31, %cst_35 {dimension_numbers = #tpu.dot_dimension_numbers<[1], [0], [0], [1], [0, 0, 1, 1], [], []>} : vector<392x16xbf16>, vector<16x32xbf16>, vector<392x32xf32> -> vector<392x32xf32>
    %33 = arith.addf %29, %32 : vector<392x32xf32>
    %c0_36 = arith.constant 0 : index
    %c0_37 = arith.constant 0 : index
    %34 = vector.load %arg10[%c0_36, %c0_37] : memref<392x32xf32, #tpu.memory_space<vmem>>, vector<392x32xf32>
    tpu.vector_store %arg10[%c0_36, %c0_37], %33 {strides = array<i32>} : memref<392x32xf32, #tpu.memory_space<vmem>>, vector<392x32xf32>,
    %c0_38 = arith.constant 0 : index
    %c0_39 = arith.constant 0 : index
    %35 = vector.load %arg10[%c0_38, %c0_39] : memref<392x32xf32, #tpu.memory_space<vmem>>, vector<392x32xf32>
    %c15 = arith.constant 15 : index
    %c0_40 = arith.constant 0 : index
    %36 = vector.load %arg9[%c15, %c0_40] : memref<424x16xbf16, #tpu.memory_space<vmem>>, vector<392x16xbf16>
    %c64 = arith.constant 64 : index
    %c0_41 = arith.constant 0 : index
    %37 = vector.load %arg3[%c64, %c0_41] : memref<144x32xbf16, #tpu.memory_space<vmem>>, vector<16x32xbf16>
    %cst_42 = arith.constant dense<0.000000e+00> : vector<392x32xf32>
    %38 = tpu.matmul %36, %37, %cst_42 {dimension_numbers = #tpu.dot_dimension_numbers<[1], [0], [0], [1], [0, 0, 1, 1], [], []>} : vector<392x16xbf16>, vector<16x32xbf16>, vector<392x32xf32> -> vector<392x32xf32>
    %39 = arith.addf %35, %38 : vector<392x32xf32>
    %c0_43 = arith.constant 0 : index
    %c0_44 = arith.constant 0 : index
    %40 = vector.load %arg10[%c0_43, %c0_44] : memref<392x32xf32, #tpu.memory_space<vmem>>, vector<392x32xf32>
    tpu.vector_store %arg10[%c0_43, %c0_44], %39 {strides = array<i32>} : memref<392x32xf32, #tpu.memory_space<vmem>>, vector<392x32xf32>,
    %c0_45 = arith.constant 0 : index
    %c0_46 = arith.constant 0 : index
    %41 = vector.load %arg10[%c0_45, %c0_46] : memref<392x32xf32, #tpu.memory_space<vmem>>, vector<392x32xf32>
    %c16_47 = arith.constant 16 : index
    %c0_48 = arith.constant 0 : index
    %42 = vector.load %arg9[%c16_47, %c0_48] : memref<424x16xbf16, #tpu.memory_space<vmem>>, vector<392x16xbf16>
    %c80 = arith.constant 80 : index
    %c0_49 = arith.constant 0 : index
    %43 = vector.load %arg3[%c80, %c0_49] : memref<144x32xbf16, #tpu.memory_space<vmem>>, vector<16x32xbf16>
    %cst_50 = arith.constant dense<0.000000e+00> : vector<392x32xf32>
    %44 = tpu.matmul %42, %43, %cst_50 {dimension_numbers = #tpu.dot_dimension_numbers<[1], [0], [0], [1], [0, 0, 1, 1], [], []>} : vector<392x16xbf16>, vector<16x32xbf16>, vector<392x32xf32> -> vector<392x32xf32>
    %45 = arith.addf %41, %44 : vector<392x32xf32>
    %c0_51 = arith.constant 0 : index
    %c0_52 = arith.constant 0 : index
    %46 = vector.load %arg10[%c0_51, %c0_52] : memref<392x32xf32, #tpu.memory_space<vmem>>, vector<392x32xf32>
    tpu.vector_store %arg10[%c0_51, %c0_52], %45 {strides = array<i32>} : memref<392x32xf32, #tpu.memory_space<vmem>>, vector<392x32xf32>,
    %c0_53 = arith.constant 0 : index
    %c0_54 = arith.constant 0 : index
    %47 = vector.load %arg10[%c0_53, %c0_54] : memref<392x32xf32, #tpu.memory_space<vmem>>, vector<392x32xf32>
    %c28 = arith.constant 28 : index
    %c0_55 = arith.constant 0 : index
    %48 = vector.load %arg9[%c28, %c0_55] : memref<424x16xbf16, #tpu.memory_space<vmem>>, vector<392x16xbf16>
    %c96 = arith.constant 96 : index
    %c0_56 = arith.constant 0 : index
    %49 = vector.load %arg3[%c96, %c0_56] : memref<144x32xbf16, #tpu.memory_space<vmem>>, vector<16x32xbf16>
    %cst_57 = arith.constant dense<0.000000e+00> : vector<392x32xf32>
    %50 = tpu.matmul %48, %49, %cst_57 {dimension_numbers = #tpu.dot_dimension_numbers<[1], [0], [0], [1], [0, 0, 1, 1], [], []>} : vector<392x16xbf16>, vector<16x32xbf16>, vector<392x32xf32> -> vector<392x32xf32>
    %51 = arith.addf %47, %50 : vector<392x32xf32>
    %c0_58 = arith.constant 0 : index
    %c0_59 = arith.constant 0 : index
    %52 = vector.load %arg10[%c0_58, %c0_59] : memref<392x32xf32, #tpu.memory_space<vmem>>, vector<392x32xf32>
    tpu.vector_store %arg10[%c0_58, %c0_59], %51 {strides = array<i32>} : memref<392x32xf32, #tpu.memory_space<vmem>>, vector<392x32xf32>,
    %c0_60 = arith.constant 0 : index
    %c0_61 = arith.constant 0 : index
    %53 = vector.load %arg10[%c0_60, %c0_61] : memref<392x32xf32, #tpu.memory_space<vmem>>, vector<392x32xf32>
    %c29 = arith.constant 29 : index
    %c0_62 = arith.constant 0 : index
    %54 = vector.load %arg9[%c29, %c0_62] : memref<424x16xbf16, #tpu.memory_space<vmem>>, vector<392x16xbf16>
    %c112 = arith.constant 112 : index
    %c0_63 = arith.constant 0 : index
    %55 = vector.load %arg3[%c112, %c0_63] : memref<144x32xbf16, #tpu.memory_space<vmem>>, vector<16x32xbf16>
    %cst_64 = arith.constant dense<0.000000e+00> : vector<392x32xf32>
    %56 = tpu.matmul %54, %55, %cst_64 {dimension_numbers = #tpu.dot_dimension_numbers<[1], [0], [0], [1], [0, 0, 1, 1], [], []>} : vector<392x16xbf16>, vector<16x32xbf16>, vector<392x32xf32> -> vector<392x32xf32>
    %57 = arith.addf %53, %56 : vector<392x32xf32>
    %c0_65 = arith.constant 0 : index
    %c0_66 = arith.constant 0 : index
    %58 = vector.load %arg10[%c0_65, %c0_66] : memref<392x32xf32, #tpu.memory_space<vmem>>, vector<392x32xf32>
    tpu.vector_store %arg10[%c0_65, %c0_66], %57 {strides = array<i32>} : memref<392x32xf32, #tpu.memory_space<vmem>>, vector<392x32xf32>,
    %c0_67 = arith.constant 0 : index
    %c0_68 = arith.constant 0 : index
    %59 = vector.load %arg10[%c0_67, %c0_68] : memref<392x32xf32, #tpu.memory_space<vmem>>, vector<392x32xf32>
    %c30 = arith.constant 30 : index
    %c0_69 = arith.constant 0 : index
    %60 = vector.load %arg9[%c30, %c0_69] : memref<424x16xbf16, #tpu.memory_space<vmem>>, vector<392x16xbf16>
    %c128 = arith.constant 128 : index
    %c0_70 = arith.constant 0 : index
    %61 = vector.load %arg3[%c128, %c0_70] : memref<144x32xbf16, #tpu.memory_space<vmem>>, vector<16x32xbf16>
    %cst_71 = arith.constant dense<0.000000e+00> : vector<392x32xf32>
    %62 = tpu.matmul %60, %61, %cst_71 {dimension_numbers = #tpu.dot_dimension_numbers<[1], [0], [0], [1], [0, 0, 1, 1], [], []>} : vector<392x16xbf16>, vector<16x32xbf16>, vector<392x32xf32> -> vector<392x32xf32>
    %63 = arith.addf %59, %62 : vector<392x32xf32>
    %c0_72 = arith.constant 0 : index
    %c0_73 = arith.constant 0 : index
    %64 = vector.load %arg10[%c0_72, %c0_73] : memref<392x32xf32, #tpu.memory_space<vmem>>, vector<392x32xf32>
    tpu.vector_store %arg10[%c0_72, %c0_73], %63 {strides = array<i32>} : memref<392x32xf32, #tpu.memory_space<vmem>>, vector<392x32xf32>,
    %c0_74 = arith.constant 0 : index
    %c128_75 = arith.constant 128 : index
    %65 = vector.load %arg7[%c0_74, %c128_75] : memref<1x2048xf32, #tpu.memory_space<vmem>>, vector<1x32xf32>
    %c0_76 = arith.constant 0 : index
    %c0_77 = arith.constant 0 : index
    %66 = tpu.strided_load %arg10[%c0_76, %c0_77] {strides = array<i32: 28, 1>} : memref<392x32xf32, #tpu.memory_space<vmem>>, vector<14x32xf32>
    %c1_78 = arith.constant 1 : index
    %c0_79 = arith.constant 0 : index
    %67 = tpu.strided_load %arg10[%c1_78, %c0_79] {strides = array<i32: 28, 1>} : memref<392x32xf32, #tpu.memory_space<vmem>>, vector<14x32xf32>
    %68 = arith.maximumf %66, %67 : vector<14x32xf32>
    %c14_80 = arith.constant 14 : index
    %c0_81 = arith.constant 0 : index
    %69 = tpu.strided_load %arg10[%c14_80, %c0_81] {strides = array<i32: 28, 1>} : memref<392x32xf32, #tpu.memory_space<vmem>>, vector<14x32xf32>
    %70 = arith.maximumf %68, %69 : vector<14x32xf32>
    %c15_82 = arith.constant 15 : index
    %c0_83 = arith.constant 0 : index
    %71 = tpu.strided_load %arg10[%c15_82, %c0_83] {strides = array<i32: 28, 1>} : memref<392x32xf32, #tpu.memory_space<vmem>>, vector<14x32xf32>
    %72 = arith.maximumf %70, %71 : vector<14x32xf32>
    %73 = vector.broadcast %65 : vector<1x32xf32> to vector<14x32xf32>
    %74 = arith.addf %72, %73 : vector<14x32xf32>
    %cst_84 = arith.constant 0.00999999977 : f32
    %75 = vector.broadcast %cst_84 : f32 to vector<14x32xf32>
    %76 = arith.mulf %75, %74 : vector<14x32xf32>
    %77 = arith.maximumf %74, %76 : vector<14x32xf32>
    %78 = arith.truncf %77 : vector<14x32xf32> to vector<14x32xbf16>
    %c0_85 = arith.constant 0 : index
    %c0_86 = arith.constant 0 : index
    %79 = vector.load %arg11[%c0_85, %c0_86] : memref<14x192xbf16, #tpu.memory_space<vmem>>, vector<14x32xbf16>
    tpu.vector_store %arg11[%c0_85, %c0_86], %78 {strides = array<i32>} : memref<14x192xbf16, #tpu.memory_space<vmem>>, vector<14x32xbf16>,
    %c2_87 = arith.constant 2 : index
    %c0_88 = arith.constant 0 : index
    %80 = tpu.strided_load %arg10[%c2_87, %c0_88] {strides = array<i32: 28, 1>} : memref<392x32xf32, #tpu.memory_space<vmem>>, vector<14x32xf32>
    %c3 = arith.constant 3 : index
    %c0_89 = arith.constant 0 : index
    %81 = tpu.strided_load %arg10[%c3, %c0_89] {strides = array<i32: 28, 1>} : memref<392x32xf32, #tpu.memory_space<vmem>>, vector<14x32xf32>
    %82 = arith.maximumf %80, %81 : vector<14x32xf32>
    %c16_90 = arith.constant 16 : index
    %c0_91 = arith.constant 0 : index
    %83 = tpu.strided_load %arg10[%c16_90, %c0_91] {strides = array<i32: 28, 1>} : memref<392x32xf32, #tpu.memory_space<vmem>>, vector<14x32xf32>
    %84 = arith.maximumf %82, %83 : vector<14x32xf32>
    %c17 = arith.constant 17 : index
    %c0_92 = arith.constant 0 : index
    %85 = tpu.strided_load %arg10[%c17, %c0_92] {strides = array<i32: 28, 1>} : memref<392x32xf32, #tpu.memory_space<vmem>>, vector<14x32xf32>
    %86 = arith.maximumf %84, %85 : vector<14x32xf32>
    %87 = vector.broadcast %65 : vector<1x32xf32> to vector<14x32xf32>
    %88 = arith.addf %86, %87 : vector<14x32xf32>
    %cst_93 = arith.constant 0.00999999977 : f32
    %89 = vector.broadcast %cst_93 : f32 to vector<14x32xf32>
    %90 = arith.mulf %89, %88 : vector<14x32xf32>
    %91 = arith.maximumf %88, %90 : vector<14x32xf32>
    %92 = arith.truncf %91 : vector<14x32xf32> to vector<14x32xbf16>
    %c0_94 = arith.constant 0 : index
    %c32_95 = arith.constant 32 : index
    %93 = vector.load %arg11[%c0_94, %c32_95] : memref<14x192xbf16, #tpu.memory_space<vmem>>, vector<14x32xbf16>
    tpu.vector_store %arg11[%c0_94, %c32_95], %92 {strides = array<i32>} : memref<14x192xbf16, #tpu.memory_space<vmem>>, vector<14x32xbf16>,
    %c4 = arith.constant 4 : index
    %c0_96 = arith.constant 0 : index
    %94 = tpu.strided_load %arg10[%c4, %c0_96] {strides = array<i32: 28, 1>} : memref<392x32xf32, #tpu.memory_space<vmem>>, vector<14x32xf32>
    %c5 = arith.constant 5 : index
    %c0_97 = arith.constant 0 : index
    %95 = tpu.strided_load %arg10[%c5, %c0_97] {strides = array<i32: 28, 1>} : memref<392x32xf32, #tpu.memory_space<vmem>>, vector<14x32xf32>
    %96 = arith.maximumf %94, %95 : vector<14x32xf32>
    %c18 = arith.constant 18 : index
    %c0_98 = arith.constant 0 : index
    %97 = tpu.strided_load %arg10[%c18, %c0_98] {strides = array<i32: 28, 1>} : memref<392x32xf32, #tpu.memory_space<vmem>>, vector<14x32xf32>
    %98 = arith.maximumf %96, %97 : vector<14x32xf32>
    %c19 = arith.constant 19 : index
    %c0_99 = arith.constant 0 : index
    %99 = tpu.strided_load %arg10[%c19, %c0_99] {strides = array<i32: 28, 1>} : memref<392x32xf32, #tpu.memory_space<vmem>>, vector<14x32xf32>
    %100 = arith.maximumf %98, %99 : vector<14x32xf32>
    %101 = vector.broadcast %65 : vector<1x32xf32> to vector<14x32xf32>
    %102 = arith.addf %100, %101 : vector<14x32xf32>
    %cst_100 = arith.constant 0.00999999977 : f32
    %103 = vector.broadcast %cst_100 : f32 to vector<14x32xf32>
    %104 = arith.mulf %103, %102 : vector<14x32xf32>
    %105 = arith.maximumf %102, %104 : vector<14x32xf32>
    %106 = arith.truncf %105 : vector<14x32xf32> to vector<14x32xbf16>
    %c0_101 = arith.constant 0 : index
    %c64_102 = arith.constant 64 : index
    %107 = vector.load %arg11[%c0_101, %c64_102] : memref<14x192xbf16, #tpu.memory_space<vmem>>, vector<14x32xbf16>
    tpu.vector_store %arg11[%c0_101, %c64_102], %106 {strides = array<i32>} : memref<14x192xbf16, #tpu.memory_space<vmem>>, vector<14x32xbf16>,
    %c6 = arith.constant 6 : index
    %c0_103 = arith.constant 0 : index
    %108 = tpu.strided_load %arg10[%c6, %c0_103] {strides = array<i32: 28, 1>} : memref<392x32xf32, #tpu.memory_space<vmem>>, vector<14x32xf32>
    %c7 = arith.constant 7 : index
    %c0_104 = arith.constant 0 : index
    %109 = tpu.strided_load %arg10[%c7, %c0_104] {strides = array<i32: 28, 1>} : memref<392x32xf32, #tpu.memory_space<vmem>>, vector<14x32xf32>
    %110 = arith.maximumf %108, %109 : vector<14x32xf32>
    %c20 = arith.constant 20 : index
    %c0_105 = arith.constant 0 : index
    %111 = tpu.strided_load %arg10[%c20, %c0_105] {strides = array<i32: 28, 1>} : memref<392x32xf32, #tpu.memory_space<vmem>>, vector<14x32xf32>
    %112 = arith.maximumf %110, %111 : vector<14x32xf32>
    %c21 = arith.constant 21 : index
    %c0_106 = arith.constant 0 : index
    %113 = tpu.strided_load %arg10[%c21, %c0_106] {strides = array<i32: 28, 1>} : memref<392x32xf32, #tpu.memory_space<vmem>>, vector<14x32xf32>
    %114 = arith.maximumf %112, %113 : vector<14x32xf32>
    %115 = vector.broadcast %65 : vector<1x32xf32> to vector<14x32xf32>
    %116 = arith.addf %114, %115 : vector<14x32xf32>
    %cst_107 = arith.constant 0.00999999977 : f32
    %117 = vector.broadcast %cst_107 : f32 to vector<14x32xf32>
    %118 = arith.mulf %117, %116 : vector<14x32xf32>
    %119 = arith.maximumf %116, %118 : vector<14x32xf32>
    %120 = arith.truncf %119 : vector<14x32xf32> to vector<14x32xbf16>
    %c0_108 = arith.constant 0 : index
    %c96_109 = arith.constant 96 : index
    %121 = vector.load %arg11[%c0_108, %c96_109] : memref<14x192xbf16, #tpu.memory_space<vmem>>, vector<14x32xbf16>
    tpu.vector_store %arg11[%c0_108, %c96_109], %120 {strides = array<i32>} : memref<14x192xbf16, #tpu.memory_space<vmem>>, vector<14x32xbf16>,
    %c8 = arith.constant 8 : index
    %c0_110 = arith.constant 0 : index
    %122 = tpu.strided_load %arg10[%c8, %c0_110] {strides = array<i32: 28, 1>} : memref<392x32xf32, #tpu.memory_space<vmem>>, vector<14x32xf32>
    %c9 = arith.constant 9 : index
    %c0_111 = arith.constant 0 : index
    %123 = tpu.strided_load %arg10[%c9, %c0_111] {strides = array<i32: 28, 1>} : memref<392x32xf32, #tpu.memory_space<vmem>>, vector<14x32xf32>
    %124 = arith.maximumf %122, %123 : vector<14x32xf32>
    %c22 = arith.constant 22 : index
    %c0_112 = arith.constant 0 : index
    %125 = tpu.strided_load %arg10[%c22, %c0_112] {strides = array<i32: 28, 1>} : memref<392x32xf32, #tpu.memory_space<vmem>>, vector<14x32xf32>
    %126 = arith.maximumf %124, %125 : vector<14x32xf32>
    %c23 = arith.constant 23 : index
    %c0_113 = arith.constant 0 : index
    %127 = tpu.strided_load %arg10[%c23, %c0_113] {strides = array<i32: 28, 1>} : memref<392x32xf32, #tpu.memory_space<vmem>>, vector<14x32xf32>
    %128 = arith.maximumf %126, %127 : vector<14x32xf32>
    %129 = vector.broadcast %65 : vector<1x32xf32> to vector<14x32xf32>
    %130 = arith.addf %128, %129 : vector<14x32xf32>
    %cst_114 = arith.constant 0.00999999977 : f32
    %131 = vector.broadcast %cst_114 : f32 to vector<14x32xf32>
    %132 = arith.mulf %131, %130 : vector<14x32xf32>
    %133 = arith.maximumf %130, %132 : vector<14x32xf32>
    %134 = arith.truncf %133 : vector<14x32xf32> to vector<14x32xbf16>
    %c0_115 = arith.constant 0 : index
    %c128_116 = arith.constant 128 : index
    %135 = vector.load %arg11[%c0_115, %c128_116] : memref<14x192xbf16, #tpu.memory_space<vmem>>, vector<14x32xbf16>
    tpu.vector_store %arg11[%c0_115, %c128_116], %134 {strides = array<i32>} : memref<14x192xbf16, #tpu.memory_space<vmem>>, vector<14x32xbf16>,
    %c10 = arith.constant 10 : index
    %c0_117 = arith.constant 0 : index
    %136 = tpu.strided_load %arg10[%c10, %c0_117] {strides = array<i32: 28, 1>} : memref<392x32xf32, #tpu.memory_space<vmem>>, vector<14x32xf32>
    %c11 = arith.constant 11 : index
    %c0_118 = arith.constant 0 : index
    %137 = tpu.strided_load %arg10[%c11, %c0_118] {strides = array<i32: 28, 1>} : memref<392x32xf32, #tpu.memory_space<vmem>>, vector<14x32xf32>
    %138 = arith.maximumf %136, %137 : vector<14x32xf32>
    %c24 = arith.constant 24 : index
    %c0_119 = arith.constant 0 : index
    %139 = tpu.strided_load %arg10[%c24, %c0_119] {strides = array<i32: 28, 1>} : memref<392x32xf32, #tpu.memory_space<vmem>>, vector<14x32xf32>
    %140 = arith.maximumf %138, %139 : vector<14x32xf32>
    %c25 = arith.constant 25 : index
    %c0_120 = arith.constant 0 : index
    %141 = tpu.strided_load %arg10[%c25, %c0_120] {strides = array<i32: 28, 1>} : memref<392x32xf32, #tpu.memory_space<vmem>>, vector<14x32xf32>
    %142 = arith.maximumf %140, %141 : vector<14x32xf32>
    %143 = vector.broadcast %65 : vector<1x32xf32> to vector<14x32xf32>
    %144 = arith.addf %142, %143 : vector<14x32xf32>
    %cst_121 = arith.constant 0.00999999977 : f32
    %145 = vector.broadcast %cst_121 : f32 to vector<14x32xf32>
    %146 = arith.mulf %145, %144 : vector<14x32xf32>
    %147 = arith.maximumf %144, %146 : vector<14x32xf32>
    %148 = arith.truncf %147 : vector<14x32xf32> to vector<14x32xbf16>
    %c0_122 = arith.constant 0 : index
    %c160 = arith.constant 160 : index
    %149 = vector.load %arg11[%c0_122, %c160] : memref<14x192xbf16, #tpu.memory_space<vmem>>, vector<14x32xbf16>
    tpu.vector_store %arg11[%c0_122, %c160], %148 {strides = array<i32>} : memref<14x192xbf16, #tpu.memory_space<vmem>>, vector<14x32xbf16>,
    %cst_123 = arith.constant 0.000000e+00 : f32
    %150 = vector.broadcast %cst_123 : f32 to vector<9x128xf32>
    %cst_124 = arith.constant 0.000000e+00 : f32
    %151 = vector.broadcast %cst_124 : f32 to vector<9x128xf32>
    %c0_125 = arith.constant 0 : index
    %c0_126 = arith.constant 0 : index
    %152 = vector.load %arg11[%c0_125, %c0_126] : memref<14x192xbf16, #tpu.memory_space<vmem>>, vector<9x192xbf16>
    %c0_127 = arith.constant 0 : index
    %c0_128 = arith.constant 0 : index
    %153 = vector.load %arg4[%c0_127, %c0_128] : memref<1184x128xbf16, #tpu.memory_space<vmem>>, vector<160x128xbf16>
    %154 = vector.extract_strided_slice %152 {offsets = [0, 0], sizes = [9, 160], strides = [1, 1]} : vector<9x192xbf16> to vector<9x160xbf16>
    %cst_129 = arith.constant dense<0.000000e+00> : vector<9x128xf32>
    %155 = tpu.matmul %154, %153, %cst_129 {dimension_numbers = #tpu.dot_dimension_numbers<[1], [0], [0], [1], [0, 0, 1, 1], [], []>} : vector<9x160xbf16>, vector<160x128xbf16>, vector<9x128xf32> -> vector<9x128xf32>
    %156 = arith.addf %150, %155 : vector<9x128xf32>
    %157 = vector.extract_strided_slice %152 {offsets = [0, 32], sizes = [9, 160], strides = [1, 1]} : vector<9x192xbf16> to vector<9x160xbf16>
    %cst_130 = arith.constant dense<0.000000e+00> : vector<9x128xf32>
    %158 = tpu.matmul %157, %153, %cst_130 {dimension_numbers = #tpu.dot_dimension_numbers<[1], [0], [0], [1], [0, 0, 1, 1], [], []>} : vector<9x160xbf16>, vector<160x128xbf16>, vector<9x128xf32> -> vector<9x128xf32>
    %159 = arith.addf %151, %158 : vector<9x128xf32>
    %c1_131 = arith.constant 1 : index
    %c0_132 = arith.constant 0 : index
    %160 = vector.load %arg11[%c1_131, %c0_132] : memref<14x192xbf16, #tpu.memory_space<vmem>>, vector<9x192xbf16>
    %c160_133 = arith.constant 160 : index
    %c0_134 = arith.constant 0 : index
    %161 = vector.load %arg4[%c160_133, %c0_134] : memref<1184x128xbf16, #tpu.memory_space<vmem>>, vector<160x128xbf16>
    %162 = vector.extract_strided_slice %160 {offsets = [0, 0], sizes = [9, 160], strides = [1, 1]} : vector<9x192xbf16> to vector<9x160xbf16>
    %cst_135 = arith.constant dense<0.000000e+00> : vector<9x128xf32>
    %163 = tpu.matmul %162, %161, %cst_135 {dimension_numbers = #tpu.dot_dimension_numbers<[1], [0], [0], [1], [0, 0, 1, 1], [], []>} : vector<9x160xbf16>, vector<160x128xbf16>, vector<9x128xf32> -> vector<9x128xf32>
    %164 = arith.addf %156, %163 : vector<9x128xf32>
    %165 = vector.extract_strided_slice %160 {offsets = [0, 32], sizes = [9, 160], strides = [1, 1]} : vector<9x192xbf16> to vector<9x160xbf16>
    %cst_136 = arith.constant dense<0.000000e+00> : vector<9x128xf32>
    %166 = tpu.matmul %165, %161, %cst_136 {dimension_numbers = #tpu.dot_dimension_numbers<[1], [0], [0], [1], [0, 0, 1, 1], [], []>} : vector<9x160xbf16>, vector<160x128xbf16>, vector<9x128xf32> -> vector<9x128xf32>
    %167 = arith.addf %159, %166 : vector<9x128xf32>
    %c2_137 = arith.constant 2 : index
    %c0_138 = arith.constant 0 : index
    %168 = vector.load %arg11[%c2_137, %c0_138] : memref<14x192xbf16, #tpu.memory_space<vmem>>, vector<9x192xbf16>
    %c320 = arith.constant 320 : index
    %c0_139 = arith.constant 0 : index
    %169 = vector.load %arg4[%c320, %c0_139] : memref<1184x128xbf16, #tpu.memory_space<vmem>>, vector<160x128xbf16>
    %170 = vector.extract_strided_slice %168 {offsets = [0, 0], sizes = [9, 160], strides = [1, 1]} : vector<9x192xbf16> to vector<9x160xbf16>
    %cst_140 = arith.constant dense<0.000000e+00> : vector<9x128xf32>
    %171 = tpu.matmul %170, %169, %cst_140 {dimension_numbers = #tpu.dot_dimension_numbers<[1], [0], [0], [1], [0, 0, 1, 1], [], []>} : vector<9x160xbf16>, vector<160x128xbf16>, vector<9x128xf32> -> vector<9x128xf32>
    %172 = arith.addf %164, %171 : vector<9x128xf32>
    %173 = vector.extract_strided_slice %168 {offsets = [0, 32], sizes = [9, 160], strides = [1, 1]} : vector<9x192xbf16> to vector<9x160xbf16>
    %cst_141 = arith.constant dense<0.000000e+00> : vector<9x128xf32>
    %174 = tpu.matmul %173, %169, %cst_141 {dimension_numbers = #tpu.dot_dimension_numbers<[1], [0], [0], [1], [0, 0, 1, 1], [], []>} : vector<9x160xbf16>, vector<160x128xbf16>, vector<9x128xf32> -> vector<9x128xf32>
    %175 = arith.addf %167, %174 : vector<9x128xf32>
    %c3_142 = arith.constant 3 : index
    %c0_143 = arith.constant 0 : index
    %176 = vector.load %arg11[%c3_142, %c0_143] : memref<14x192xbf16, #tpu.memory_space<vmem>>, vector<9x192xbf16>
    %c480 = arith.constant 480 : index
    %c0_144 = arith.constant 0 : index
    %177 = vector.load %arg4[%c480, %c0_144] : memref<1184x128xbf16, #tpu.memory_space<vmem>>, vector<160x128xbf16>
    %178 = vector.extract_strided_slice %176 {offsets = [0, 0], sizes = [9, 160], strides = [1, 1]} : vector<9x192xbf16> to vector<9x160xbf16>
    %cst_145 = arith.constant dense<0.000000e+00> : vector<9x128xf32>
    %179 = tpu.matmul %178, %177, %cst_145 {dimension_numbers = #tpu.dot_dimension_numbers<[1], [0], [0], [1], [0, 0, 1, 1], [], []>} : vector<9x160xbf16>, vector<160x128xbf16>, vector<9x128xf32> -> vector<9x128xf32>
    %180 = arith.addf %172, %179 : vector<9x128xf32>
    %181 = vector.extract_strided_slice %176 {offsets = [0, 32], sizes = [9, 160], strides = [1, 1]} : vector<9x192xbf16> to vector<9x160xbf16>
    %cst_146 = arith.constant dense<0.000000e+00> : vector<9x128xf32>
    %182 = tpu.matmul %181, %177, %cst_146 {dimension_numbers = #tpu.dot_dimension_numbers<[1], [0], [0], [1], [0, 0, 1, 1], [], []>} : vector<9x160xbf16>, vector<160x128xbf16>, vector<9x128xf32> -> vector<9x128xf32>
    %183 = arith.addf %175, %182 : vector<9x128xf32>
    %c4_147 = arith.constant 4 : index
    %c0_148 = arith.constant 0 : index
    %184 = vector.load %arg11[%c4_147, %c0_148] : memref<14x192xbf16, #tpu.memory_space<vmem>>, vector<9x192xbf16>
    %c640 = arith.constant 640 : index
    %c0_149 = arith.constant 0 : index
    %185 = vector.load %arg4[%c640, %c0_149] : memref<1184x128xbf16, #tpu.memory_space<vmem>>, vector<160x128xbf16>
    %186 = vector.extract_strided_slice %184 {offsets = [0, 0], sizes = [9, 160], strides = [1, 1]} : vector<9x192xbf16> to vector<9x160xbf16>
    %cst_150 = arith.constant dense<0.000000e+00> : vector<9x128xf32>
    %187 = tpu.matmul %186, %185, %cst_150 {dimension_numbers = #tpu.dot_dimension_numbers<[1], [0], [0], [1], [0, 0, 1, 1], [], []>} : vector<9x160xbf16>, vector<160x128xbf16>, vector<9x128xf32> -> vector<9x128xf32>
    %188 = arith.addf %180, %187 : vector<9x128xf32>
    %189 = vector.extract_strided_slice %184 {offsets = [0, 32], sizes = [9, 160], strides = [1, 1]} : vector<9x192xbf16> to vector<9x160xbf16>
    %cst_151 = arith.constant dense<0.000000e+00> : vector<9x128xf32>
    %190 = tpu.matmul %189, %185, %cst_151 {dimension_numbers = #tpu.dot_dimension_numbers<[1], [0], [0], [1], [0, 0, 1, 1], [], []>} : vector<9x160xbf16>, vector<160x128xbf16>, vector<9x128xf32> -> vector<9x128xf32>
    %191 = arith.addf %183, %190 : vector<9x128xf32>
    %192 = arith.maximumf %188, %191 : vector<9x128xf32>
    %193 = vector.extract_strided_slice %192 {offsets = [0, 0], sizes = [1, 128], strides = [1, 1]} : vector<9x128xf32> to vector<1x128xf32>
    %194 = vector.extract_strided_slice %192 {offsets = [1, 0], sizes = [1, 128], strides = [1, 1]} : vector<9x128xf32> to vector<1x128xf32>
    %195 = arith.maximumf %193, %194 : vector<1x128xf32>
    %196 = vector.extract_strided_slice %192 {offsets = [7, 0], sizes = [1, 128], strides = [1, 1]} : vector<9x128xf32> to vector<1x128xf32>
    %197 = vector.extract_strided_slice %192 {offsets = [8, 0], sizes = [1, 128], strides = [1, 1]} : vector<9x128xf32> to vector<1x128xf32>
    %198 = arith.maximumf %196, %197 : vector<1x128xf32>
    %199 = tpu.concatenate %195, %198 in 0 : vector<1x128xf32>, vector<1x128xf32> -> vector<2x128xf32>
    %c0_152 = arith.constant 0 : index
    %c256 = arith.constant 256 : index
    %200 = vector.load %arg7[%c0_152, %c256] : memref<1x2048xf32, #tpu.memory_space<vmem>>, vector<1x128xf32>
    %201 = vector.broadcast %200 : vector<1x128xf32> to vector<2x128xf32>
    %202 = arith.addf %199, %201 : vector<2x128xf32>
    %cst_153 = arith.constant 0.00999999977 : f32
    %203 = vector.broadcast %cst_153 : f32 to vector<2x128xf32>
    %204 = arith.mulf %203, %202 : vector<2x128xf32>
    %205 = arith.maximumf %202, %204 : vector<2x128xf32>
    %c0_154 = arith.constant 0 : index
    %c0_155 = arith.constant 0 : index
    %206 = vector.load %arg1[%c0_154, %c0_155] : memref<2x768xbf16, #tpu.memory_space<vmem>>, vector<2x768xbf16>
    %c0_156 = arith.constant 0 : index
    %c0_157 = arith.constant 0 : index
    %207 = vector.load %arg6[%c0_156, %c0_157] : memref<1024x256xbf16, #tpu.memory_space<vmem>>, vector<768x256xbf16>
    %cst_158 = arith.constant dense<0.000000e+00> : vector<2x256xf32>
    %208 = tpu.matmul %206, %207, %cst_158 {dimension_numbers = #tpu.dot_dimension_numbers<[1], [0], [0], [1], [0, 0, 1, 1], [], []>} : vector<2x768xbf16>, vector<768x256xbf16>, vector<2x256xf32> -> vector<2x256xf32>
    %c0_159 = arith.constant 0 : index
    %c384 = arith.constant 384 : index
    %209 = vector.load %arg7[%c0_159, %c384] : memref<1x2048xf32, #tpu.memory_space<vmem>>, vector<1x256xf32>
    %210 = vector.broadcast %209 : vector<1x256xf32> to vector<2x256xf32>
    %211 = arith.addf %208, %210 : vector<2x256xf32>
    %cst_160 = arith.constant 0.00999999977 : f32
    %212 = vector.broadcast %cst_160 : f32 to vector<2x256xf32>
    %213 = arith.mulf %212, %211 : vector<2x256xf32>
    %214 = arith.maximumf %211, %213 : vector<2x256xf32>
    %215 = arith.truncf %214 : vector<2x256xf32> to vector<2x256xbf16>
    %c0_161 = arith.constant 0 : index
    %c0_162 = arith.constant 0 : index
    %216 = vector.load %arg5[%c0_161, %c0_162] : memref<384x64xbf16, #tpu.memory_space<vmem>>, vector<256x64xbf16>
    %cst_163 = arith.constant dense<0.000000e+00> : vector<2x64xf32>
    %217 = tpu.matmul %215, %216, %cst_163 {dimension_numbers = #tpu.dot_dimension_numbers<[1], [0], [0], [1], [0, 0, 1, 1], [], []>} : vector<2x256xbf16>, vector<256x64xbf16>, vector<2x64xf32> -> vector<2x64xf32>
    %c0_164 = arith.constant 0 : index
    %c640_165 = arith.constant 640 : index
    %218 = vector.load %arg7[%c0_164, %c640_165] : memref<1x2048xf32, #tpu.memory_space<vmem>>, vector<1x64xf32>
    %219 = vector.broadcast %218 : vector<1x64xf32> to vector<2x64xf32>
    %220 = arith.addf %217, %219 : vector<2x64xf32>
    %cst_166 = arith.constant 0.00999999977 : f32
    %221 = vector.broadcast %cst_166 : f32 to vector<2x64xf32>
    %222 = arith.mulf %221, %220 : vector<2x64xf32>
    %223 = arith.maximumf %220, %222 : vector<2x64xf32>
    %224 = arith.truncf %223 : vector<2x64xf32> to vector<2x64xbf16>
    %c800 = arith.constant 800 : index
    %c0_167 = arith.constant 0 : index
    %225 = vector.load %arg4[%c800, %c0_167] : memref<1184x128xbf16, #tpu.memory_space<vmem>>, vector<64x128xbf16>
    %cst_168 = arith.constant dense<0.000000e+00> : vector<2x128xf32>
    %226 = tpu.matmul %224, %225, %cst_168 {dimension_numbers = #tpu.dot_dimension_numbers<[1], [0], [0], [1], [0, 0, 1, 1], [], []>} : vector<2x64xbf16>, vector<64x128xbf16>, vector<2x128xf32> -> vector<2x128xf32>
    %c0_169 = arith.constant 0 : index
    %c768 = arith.constant 768 : index
    %227 = vector.load %arg7[%c0_169, %c768] : memref<1x2048xf32, #tpu.memory_space<vmem>>, vector<1x128xf32>
    %228 = vector.broadcast %227 : vector<1x128xf32> to vector<2x128xf32>
    %229 = arith.addf %226, %228 : vector<2x128xf32>
    %cst_170 = arith.constant 0.00999999977 : f32
    %230 = vector.broadcast %cst_170 : f32 to vector<2x128xf32>
    %231 = arith.mulf %230, %229 : vector<2x128xf32>
    %232 = arith.maximumf %229, %231 : vector<2x128xf32>
    %233 = arith.truncf %205 : vector<2x128xf32> to vector<2x128xbf16>
    %c768_171 = arith.constant 768 : index
    %c0_172 = arith.constant 0 : index
    %234 = vector.load %arg6[%c768_171, %c0_172] : memref<1024x256xbf16, #tpu.memory_space<vmem>>, vector<128x256xbf16>
    %cst_173 = arith.constant dense<0.000000e+00> : vector<2x256xf32>
    %235 = tpu.matmul %233, %234, %cst_173 {dimension_numbers = #tpu.dot_dimension_numbers<[1], [0], [0], [1], [0, 0, 1, 1], [], []>} : vector<2x128xbf16>, vector<128x256xbf16>, vector<2x256xf32> -> vector<2x256xf32>
    %236 = arith.truncf %232 : vector<2x128xf32> to vector<2x128xbf16>
    %c896 = arith.constant 896 : index
    %c0_174 = arith.constant 0 : index
    %237 = vector.load %arg6[%c896, %c0_174] : memref<1024x256xbf16, #tpu.memory_space<vmem>>, vector<128x256xbf16>
    %cst_175 = arith.constant dense<0.000000e+00> : vector<2x256xf32>
    %238 = tpu.matmul %236, %237, %cst_175 {dimension_numbers = #tpu.dot_dimension_numbers<[1], [0], [0], [1], [0, 0, 1, 1], [], []>} : vector<2x128xbf16>, vector<128x256xbf16>, vector<2x256xf32> -> vector<2x256xf32>
    %239 = arith.addf %235, %238 : vector<2x256xf32>
    %c0_176 = arith.constant 0 : index
    %c896_177 = arith.constant 896 : index
    %240 = vector.load %arg7[%c0_176, %c896_177] : memref<1x2048xf32, #tpu.memory_space<vmem>>, vector<1x256xf32>
    %241 = vector.broadcast %240 : vector<1x256xf32> to vector<2x256xf32>
    %242 = arith.addf %239, %241 : vector<2x256xf32>
    %cst_178 = arith.constant dense<0.000000e+00> : vector<256xf32>
    %243 = vector.multi_reduction <add>, %242, %cst_178 [0] : vector<2x256xf32> to vector<256xf32>
    %244 = vector.shape_cast %243 : vector<256xf32> to vector<1x256xf32>
    %cst_179 = arith.constant 2.000000e+00 : f32
    %245 = vector.broadcast %cst_179 : f32 to vector<1x256xf32>
    %246 = arith.divf %244, %245 : vector<1x256xf32>
    %247 = vector.broadcast %246 : vector<1x256xf32> to vector<2x256xf32>
    %248 = arith.subf %242, %247 : vector<2x256xf32>
    %249 = vector.broadcast %246 : vector<1x256xf32> to vector<2x256xf32>
    %250 = arith.subf %242, %249 : vector<2x256xf32>
    %251 = arith.mulf %248, %250 : vector<2x256xf32>
    %cst_180 = arith.constant dense<0.000000e+00> : vector<256xf32>
    %252 = vector.multi_reduction <add>, %251, %cst_180 [0] : vector<2x256xf32> to vector<256xf32>
    %253 = vector.shape_cast %252 : vector<256xf32> to vector<1x256xf32>
    %cst_181 = arith.constant 2.000000e+00 : f32
    %254 = vector.broadcast %cst_181 : f32 to vector<1x256xf32>
    %255 = arith.divf %253, %254 : vector<1x256xf32>
    %256 = vector.broadcast %246 : vector<1x256xf32> to vector<2x256xf32>
    %257 = arith.subf %242, %256 : vector<2x256xf32>
    %cst_182 = arith.constant 9.99999974E-6 : f32
    %258 = vector.broadcast %cst_182 : f32 to vector<1x256xf32>
    %259 = arith.addf %255, %258 : vector<1x256xf32>
    %260 = math.rsqrt %259 : vector<1x256xf32>
    %261 = vector.broadcast %260 : vector<1x256xf32> to vector<2x256xf32>
    %262 = arith.mulf %257, %261 : vector<2x256xf32>
    %c0_183 = arith.constant 0 : index
    %c1152 = arith.constant 1152 : index
    %263 = vector.load %arg7[%c0_183, %c1152] : memref<1x2048xf32, #tpu.memory_space<vmem>>, vector<1x256xf32>
    %264 = vector.broadcast %263 : vector<1x256xf32> to vector<2x256xf32>
    %265 = arith.mulf %262, %264 : vector<2x256xf32>
    %c0_184 = arith.constant 0 : index
    %c1408 = arith.constant 1408 : index
    %266 = vector.load %arg7[%c0_184, %c1408] : memref<1x2048xf32, #tpu.memory_space<vmem>>, vector<1x256xf32>
    %267 = vector.broadcast %266 : vector<1x256xf32> to vector<2x256xf32>
    %268 = arith.addf %265, %267 : vector<2x256xf32>
    %cst_185 = arith.constant 0.00999999977 : f32
    %269 = vector.broadcast %cst_185 : f32 to vector<2x256xf32>
    %270 = arith.mulf %269, %268 : vector<2x256xf32>
    %271 = arith.maximumf %268, %270 : vector<2x256xf32>
    %272 = arith.truncf %271 : vector<2x256xf32> to vector<2x256xbf16>
    %c864 = arith.constant 864 : index
    %c0_186 = arith.constant 0 : index
    %273 = vector.load %arg4[%c864, %c0_186] : memref<1184x128xbf16, #tpu.memory_space<vmem>>, vector<256x128xbf16>
    %cst_187 = arith.constant dense<0.000000e+00> : vector<2x128xf32>
    %274 = tpu.matmul %272, %273, %cst_187 {dimension_numbers = #tpu.dot_dimension_numbers<[1], [0], [0], [1], [0, 0, 1, 1], [], []>} : vector<2x256xbf16>, vector<256x128xbf16>, vector<2x128xf32> -> vector<2x128xf32>
    %c0_188 = arith.constant 0 : index
    %c1664 = arith.constant 1664 : index
    %275 = vector.load %arg7[%c0_188, %c1664] : memref<1x2048xf32, #tpu.memory_space<vmem>>, vector<1x128xf32>
    %276 = vector.broadcast %275 : vector<1x128xf32> to vector<2x128xf32>
    %277 = arith.addf %274, %276 : vector<2x128xf32>
    %cst_189 = arith.constant 0.00999999977 : f32
    %278 = vector.broadcast %cst_189 : f32 to vector<2x128xf32>
    %279 = arith.mulf %278, %277 : vector<2x128xf32>
    %280 = arith.maximumf %277, %279 : vector<2x128xf32>
    %281 = arith.truncf %280 : vector<2x128xf32> to vector<2x128xbf16>
    %c256_190 = arith.constant 256 : index
    %c0_191 = arith.constant 0 : index
    %282 = vector.load %arg5[%c256_190, %c0_191] : memref<384x64xbf16, #tpu.memory_space<vmem>>, vector<128x64xbf16>
    %cst_192 = arith.constant dense<0.000000e+00> : vector<2x64xf32>
    %283 = tpu.matmul %281, %282, %cst_192 {dimension_numbers = #tpu.dot_dimension_numbers<[1], [0], [0], [1], [0, 0, 1, 1], [], []>} : vector<2x128xbf16>, vector<128x64xbf16>, vector<2x64xf32> -> vector<2x64xf32>
    %c0_193 = arith.constant 0 : index
    %c1792 = arith.constant 1792 : index
    %284 = vector.load %arg7[%c0_193, %c1792] : memref<1x2048xf32, #tpu.memory_space<vmem>>, vector<1x64xf32>
    %285 = vector.broadcast %284 : vector<1x64xf32> to vector<2x64xf32>
    %286 = arith.addf %283, %285 : vector<2x64xf32>
    %cst_194 = arith.constant 0.00999999977 : f32
    %287 = vector.broadcast %cst_194 : f32 to vector<2x64xf32>
    %288 = arith.mulf %287, %286 : vector<2x64xf32>
    %289 = arith.maximumf %286, %288 : vector<2x64xf32>
    %290 = arith.truncf %289 : vector<2x64xf32> to vector<2x64xbf16>
    %c1120 = arith.constant 1120 : index
    %c0_195 = arith.constant 0 : index
    %291 = vector.load %arg4[%c1120, %c0_195] : memref<1184x128xbf16, #tpu.memory_space<vmem>>, vector<64x128xbf16>
    %cst_196 = arith.constant dense<0.000000e+00> : vector<2x128xf32>
    %292 = tpu.matmul %290, %291, %cst_196 {dimension_numbers = #tpu.dot_dimension_numbers<[1], [0], [0], [1], [0, 0, 1, 1], [], []>} : vector<2x64xbf16>, vector<64x128xbf16>, vector<2x128xf32> -> vector<2x128xf32>
    %c0_197 = arith.constant 0 : index
    %c1920 = arith.constant 1920 : index
    %293 = vector.load %arg7[%c0_197, %c1920] : memref<1x2048xf32, #tpu.memory_space<vmem>>, vector<1x128xf32>
    %294 = vector.broadcast %293 : vector<1x128xf32> to vector<2x128xf32>
    %295 = arith.addf %292, %294 : vector<2x128xf32>
    %cst_198 = arith.constant 5.120000e+02 : f32
    %296 = vector.broadcast %cst_198 : f32 to vector<2x128xf32>
    %297 = arith.mulf %295, %296 : vector<2x128xf32>
    %c0_199 = arith.constant 0 : index
    %c0_200 = arith.constant 0 : index
    %298 = vector.load %arg8[%c0_199, %c0_200] : memref<2x128xf32, #tpu.memory_space<vmem>>, vector<2x128xf32>
    tpu.vector_store %arg8[%c0_199, %c0_200], %297 {strides = array<i32>} : memref<2x128xf32, #tpu.memory_space<vmem>>, vector<2x128xf32>,
    return
  }
}

</mosaic_0001>

<llo_original>
// kernel: bxfinder_forward.1
$region0: #{bxfinder_forward.1}
  #allocation0 [shape = 'u32[]', space=smem, size = 0x4, offset = 0x4, fixed_abs, tag = 'smem constant byte address 0x4 - core index']
  #allocation1 [shape = 'u32[144,128]{1,0:T(1,128)}', space=vmem, size = 0x12000, scoped, tag = 'internal scratch']
  #allocation2 [shape = 'bf16[424,16]{1,0:T(8,128)(2,1)}', space=vmem, size = 0x1a800, scoped, tag = 'scratch operand']
  #allocation3 [shape = 'f32[392,32]{1,0:T(8,128)}', space=vmem, size = 0x31000, scoped, tag = 'scratch operand']
  #allocation4 [shape = 'bf16[14,192]{1,0:T(8,128)(2,1)}', space=vmem, size = 0x2000, scoped, tag = 'scratch operand']
  %s0 = inlined_call_operand.vmem [shape: bf16[392,16], index: 0, kind: input, shape index: {}]
  %s1 = inlined_call_operand.vmem [shape: bf16[2,768], index: 1, kind: input, shape index: {}]
  %s2 = inlined_call_operand.hbm [shape: bf16[16,16], index: 2, kind: input, shape index: {}]
  %s3 = inlined_call_operand.vmem [shape: bf16[144,32], index: 3, kind: input, shape index: {}]
  %s4 = inlined_call_operand.vmem [shape: bf16[1184,128], index: 4, kind: input, shape index: {}]
  %s5 = inlined_call_operand.vmem [shape: bf16[384,64], index: 5, kind: input, shape index: {}]
  %s6 = inlined_call_operand.vmem [shape: bf16[1024,256], index: 6, kind: input, shape index: {}]
  %s7 = inlined_call_operand.vmem [shape: f32[1,2048], index: 7, kind: input, shape index: {}]
  %s8 = inlined_call_operand.hbm [shape: f32[2,128], index: 8, kind: output, shape index: {}]
  %s9 = sld [smem:[#allocation0]]
  $region46: #{bxfinder_forward.1} parent=0
    _
  %s11 = ssub.s32 1, %s9
  %s12 = scalar_select 0, %s11, %s9
  $region1: #{bxfinder_forward.1} parent=0
    #allocation5 [shape = 'u8[4096]{0}', space=vmem, size = 0x1000, scoped, tag = 'input window, operand 2, single buffered']
    #allocation6 [shape = 's32[1]{0}', space=sflag, size = 0x4, scoped, tag = 'scoped memory for bxfinder_forward.1']
    #allocation7 [shape = 's32[1]{0}', space=sflag, size = 0x4, scoped, tag = 'scoped memory for bxfinder_forward.1']
    #allocation8 [shape = 'u8[1024]{0}', space=vmem, size = 0x400, scoped, tag = 'output window, operand 0, single buffered']
    %13 = vsyncpa [#allocation6], 0
    %14 = vsyncpa [#allocation7], 0
    // Predicated region
    $region2: #{bxfinder_forward.1} parent=1 // pred_check
      _
    $region3: #{bxfinder_forward.1} parent=1 // pred_check_branch
      %16 = sbr.rel (0) target = $region5
    $region4: #{bxfinder_forward.1} parent=1 // pred_region
      _
    $region5: #{bxfinder_forward.1} parent=1 // pred_fallthru
      _
    // Predicated region
    $region6: #{bxfinder_forward.1} parent=1 // pred_check
      _
    $region7: #{bxfinder_forward.1} parent=1 // pred_check_branch
      %18 = sbr.rel (0) target = $region9
    $region8: #{bxfinder_forward.1} parent=1 // pred_region
      _
    $region9: #{bxfinder_forward.1} parent=1 // pred_fallthru
      _
    // Predicated region
    $region10: #{bxfinder_forward.1} parent=1 // pred_check
      _
    $region11: #{bxfinder_forward.1} parent=1 // pred_check_branch
      %20 = sbr.rel (0) target = $region13
    $region12: #{bxfinder_forward.1} parent=1 // pred_region
      %s22 = ssub.s32 128, 128
      %23 = vsyncadd [#allocation6], %s22
      %s24 = sshll.u32 [#allocation5], 4
      %s25 = int_to_ptr.vmem [resolvable:$true] %s24
      %30 = dma.hbm_to_vmem [thread:$0]  %s2, 128, %s25, [#allocation6], 64, 64, 4
    $region13: #{bxfinder_forward.1} parent=1 // pred_fallthru
      _
    // Predicated region
    $region14: #{bxfinder_forward.1} parent=1 // pred_check
      _
    $region15: #{bxfinder_forward.1} parent=1 // pred_check_branch
      %32 = sbr.rel (0) target = $region17
    $region16: #{bxfinder_forward.1} parent=1 // pred_region
      _
    $region17: #{bxfinder_forward.1} parent=1 // pred_fallthru
      _
    // Predicated region
    $region18: #{bxfinder_forward.1} parent=1 // pred_check
      _
    $region19: #{bxfinder_forward.1} parent=1 // pred_check_branch
      %34 = sbr.rel (0) target = $region21
    $region20: #{bxfinder_forward.1} parent=1 // pred_region
      _
    $region21: #{bxfinder_forward.1} parent=1 // pred_fallthru
      _
    // Predicated region
    $region22: #{bxfinder_forward.1} parent=1 // pred_check
      _
    $region23: #{bxfinder_forward.1} parent=1 // pred_check_branch
      %36 = sbr.rel (0) target = $region25
    $region24: #{bxfinder_forward.1} parent=1 // pred_region
      _
    $region25: #{bxfinder_forward.1} parent=1 // pred_fallthru
      _
    // Predicated region
    $region26: #{bxfinder_forward.1} parent=1 // pred_check
      _
    $region27: #{bxfinder_forward.1} parent=1 // pred_check_branch
      %38 = sbr.rel (0) target = $region29
    $region28: #{bxfinder_forward.1} parent=1 // pred_region
      _
    $region29: #{bxfinder_forward.1} parent=1 // pred_fallthru
      _
    // Predicated region
    $region30: #{bxfinder_forward.1} parent=1 // pred_check
      _
    $region31: #{bxfinder_forward.1} parent=1 // pred_check_branch
      %40 = sbr.rel (0) target = $region33
    $region32: #{bxfinder_forward.1} parent=1 // pred_region
      _
    $region33: #{bxfinder_forward.1} parent=1 // pred_fallthru
      _
    // Predicated region
    $region34: #{bxfinder_forward.1} parent=1 // pred_check
      _
    $region35: #{bxfinder_forward.1} parent=1 // pred_check_branch
      %42 = sbr.rel (0) target = $region37
    $region36: #{bxfinder_forward.1} parent=1 // pred_region
      %43 = dma.done [#allocation6], 128
    $region37: #{bxfinder_forward.1} parent=1 // pred_fallthru
      _
    %v45 = vld [vmem:[%s0] sm:$0xf]
    %v46 = vld [vmem:[%s0 + $0x4] sm:$0xf]
    %v47 = vld [vmem:[%s0 + $0x8] sm:$0xf]
    %v48 = vld [vmem:[%s0 + $0xc] sm:$0xf]
    %v49 = vld [vmem:[%s0 + $0x10] sm:$0xf]
    %v50 = vld [vmem:[%s0 + $0x14] sm:$0xf]
    %v51 = vld [vmem:[%s0 + $0x18] sm:$0xf]
    %v52 = vld [vmem:[%s0 + $0x1c] sm:$0xf]
    %v53 = vld [vmem:[%s0 + $0x20] sm:$0xf]
    %v54 = vld [vmem:[%s0 + $0x24] sm:$0xf]
    %v55 = vld [vmem:[%s0 + $0x28] sm:$0xf]
    %v56 = vld [vmem:[%s0 + $0x2c] sm:$0xf]
    %v57 = vld [vmem:[%s0 + $0x30] sm:$0xf]
    %v58 = vld [vmem:[%s0 + $0x34] sm:$0xf]
    %v59 = vld [vmem:[%s0 + $0x38] sm:$0xf]
    %v60 = vld [vmem:[%s0 + $0x3c] sm:$0xf]
    %v61 = vld [vmem:[%s0 + $0x40] sm:$0xf]
    %v62 = vld [vmem:[%s0 + $0x44] sm:$0xf]
    %v63 = vld [vmem:[%s0 + $0x48] sm:$0xf]
    %v64 = vld [vmem:[%s0 + $0x4c] sm:$0xf]
    %v65 = vld [vmem:[%s0 + $0x50] sm:$0xf]
    %v66 = vld [vmem:[%s0 + $0x54] sm:$0xf]
    %v67 = vld [vmem:[%s0 + $0x58] sm:$0xf]
    %v68 = vld [vmem:[%s0 + $0x5c] sm:$0xf]
    %v69 = vld [vmem:[%s0 + $0x60] sm:$0xf]
    %v70 = vld [vmem:[%s0 + $0x64] sm:$0xf]
    %v71 = vld [vmem:[%s0 + $0x68] sm:$0xf]
    %v72 = vld [vmem:[%s0 + $0x6c] sm:$0xf]
    %v73 = vld [vmem:[%s0 + $0x70] sm:$0xf]
    %v74 = vld [vmem:[%s0 + $0x74] sm:$0xf]
    %v75 = vld [vmem:[%s0 + $0x78] sm:$0xf]
    %v76 = vld [vmem:[%s0 + $0x7c] sm:$0xf]
    %v77 = vld [vmem:[%s0 + $0x80] sm:$0xf]
    %v78 = vld [vmem:[%s0 + $0x84] sm:$0xf]
    %v79 = vld [vmem:[%s0 + $0x88] sm:$0xf]
    %v80 = vld [vmem:[%s0 + $0x8c] sm:$0xf]
    %v81 = vld [vmem:[%s0 + $0x90] sm:$0xf]
    %v82 = vld [vmem:[%s0 + $0x94] sm:$0xf]
    %v83 = vld [vmem:[%s0 + $0x98] sm:$0xf]
    %v84 = vld [vmem:[%s0 + $0x9c] sm:$0xf]
    %v85 = vld [vmem:[%s0 + $0xa0] sm:$0xf]
    %v86 = vld [vmem:[%s0 + $0xa4] sm:$0xf]
    %v87 = vld [vmem:[%s0 + $0xa8] sm:$0xf]
    %v88 = vld [vmem:[%s0 + $0xac] sm:$0xf]
    %v89 = vld [vmem:[%s0 + $0xb0] sm:$0xf]
    %v90 = vld [vmem:[%s0 + $0xb4] sm:$0xf]
    %v91 = vld [vmem:[%s0 + $0xb8] sm:$0xf]
    %v92 = vld [vmem:[%s0 + $0xbc] sm:$0xf]
    %v93 = vld [vmem:[%s0 + $0xc0] sm:$0xf]
    %v94 = vld [vmem:[#allocation5] sm:$0xf]
    %v95 = vld [vmem:[#allocation5 + $0x4] sm:$0xf]
    %v96 = vld [vmem:[%s7] sm:$0x1]
    %v98 = vlaneseq
    %v99 = vshrl.u32 %v98, 7
    %v100 = vsub.s32 0, %v99
    %v101 = vrot.slane %v96, %v100
    %v152 = vunpack.c.l.b16 %v45
    %v153 = vunpack.c.l.b16 %v46
    %v154 = vunpack.c.l.b16 %v47
    %v155 = vunpack.c.l.b16 %v48
    %v156 = vunpack.c.l.b16 %v49
    %v157 = vunpack.c.l.b16 %v50
    %v158 = vunpack.c.l.b16 %v51
    %v159 = vunpack.c.l.b16 %v52
    %v160 = vunpack.c.l.b16 %v53
    %v161 = vunpack.c.l.b16 %v54
    %v162 = vunpack.c.l.b16 %v55
    %v163 = vunpack.c.l.b16 %v56
    %v164 = vunpack.c.l.b16 %v57
    %v165 = vunpack.c.l.b16 %v58
    %v166 = vunpack.c.l.b16 %v59
    %v167 = vunpack.c.l.b16 %v60
    %v168 = vunpack.c.l.b16 %v61
    %v169 = vunpack.c.l.b16 %v62
    %v170 = vunpack.c.l.b16 %v63
    %v171 = vunpack.c.l.b16 %v64
    %v172 = vunpack.c.l.b16 %v65
    %v173 = vunpack.c.l.b16 %v66
    %v174 = vunpack.c.l.b16 %v67
    %v175 = vunpack.c.l.b16 %v68
    %v176 = vunpack.c.l.b16 %v69
    %v177 = vunpack.c.l.b16 %v70
    %v178 = vunpack.c.l.b16 %v71
    %v179 = vunpack.c.l.b16 %v72
    %v180 = vunpack.c.l.b16 %v73
    %v181 = vunpack.c.l.b16 %v74
    %v182 = vunpack.c.l.b16 %v75
    %v183 = vunpack.c.l.b16 %v76
    %v184 = vunpack.c.l.b16 %v77
    %v185 = vunpack.c.l.b16 %v78
    %v186 = vunpack.c.l.b16 %v79
    %v187 = vunpack.c.l.b16 %v80
    %v188 = vunpack.c.l.b16 %v81
    %v189 = vunpack.c.l.b16 %v82
    %v190 = vunpack.c.l.b16 %v83
    %v191 = vunpack.c.l.b16 %v84
    %v192 = vunpack.c.l.b16 %v85
    %v193 = vunpack.c.l.b16 %v86
    %v194 = vunpack.c.l.b16 %v87
    %v195 = vunpack.c.l.b16 %v88
    %v196 = vunpack.c.l.b16 %v89
    %v197 = vunpack.c.l.b16 %v90
    %v198 = vunpack.c.l.b16 %v91
    %v199 = vunpack.c.l.b16 %v92
    %v200 = vunpack.c.l.b16 %v93
    %v201 = vpack.c.b16 %v153, %v152
    %v202 = vpack.c.b16 %v155, %v154
    %v203 = vpack.c.b16 %v157, %v156
    %v204 = vpack.c.b16 %v159, %v158
    %v205 = vpack.c.b16 %v161, %v160
    %v206 = vpack.c.b16 %v163, %v162
    %v207 = vpack.c.b16 %v165, %v164
    %v208 = vpack.c.b16 %v167, %v166
    %v209 = vpack.c.b16 %v169, %v168
    %v210 = vpack.c.b16 %v171, %v170
    %v211 = vpack.c.b16 %v173, %v172
    %v212 = vpack.c.b16 %v175, %v174
    %v213 = vpack.c.b16 %v177, %v176
    %v214 = vpack.c.b16 %v179, %v178
    %v215 = vpack.c.b16 %v181, %v180
    %v216 = vpack.c.b16 %v183, %v182
    %v217 = vpack.c.b16 %v185, %v184
    %v218 = vpack.c.b16 %v187, %v186
    %v219 = vpack.c.b16 %v189, %v188
    %v220 = vpack.c.b16 %v191, %v190
    %v221 = vpack.c.b16 %v193, %v192
    %v222 = vpack.c.b16 %v195, %v194
    %v223 = vpack.c.b16 %v197, %v196
    %v224 = vpack.c.b16 %v199, %v198
    %v225 = vpack.c.b16 %v200, %v200
    %v228 = vunpack.c.l.b16 %v94
    %v229 = vunpack.c.l.b16 %v95
    %v230 = vpack.c.b16 %v229, %v228
    %vm232 = vcmask 130048
    %v234 = vsel %vm232, %v201, 0
    %v237 = vsel %vm232, %v202, 0
    %v240 = vsel %vm232, %v203, 0
    %v243 = vsel %vm232, %v204, 0
    %v246 = vsel %vm232, %v205, 0
    %v249 = vsel %vm232, %v206, 0
    %v252 = vsel %vm232, %v207, 0
    %v255 = vsel %vm232, %v208, 0
    %v258 = vsel %vm232, %v209, 0
    %v261 = vsel %vm232, %v210, 0
    %v264 = vsel %vm232, %v211, 0
    %v267 = vsel %vm232, %v212, 0
    %v270 = vsel %vm232, %v213, 0
    %v273 = vsel %vm232, %v214, 0
    %v276 = vsel %vm232, %v215, 0
    %v279 = vsel %vm232, %v216, 0
    %v282 = vsel %vm232, %v217, 0
    %v285 = vsel %vm232, %v218, 0
    %v288 = vsel %vm232, %v219, 0
    %v291 = vsel %vm232, %v220, 0
    %v294 = vsel %vm232, %v221, 0
    %v297 = vsel %vm232, %v222, 0
    %v300 = vsel %vm232, %v223, 0
    %v303 = vsel %vm232, %v224, 0
    %v306 = vsel %vm232, %v225, 0
    %308 = vmatprep.subr.bf16.mxu0 0
    %309 = vmatpush1.bf16.msra.mxu0 %v230
    %310 = vmatprep.subr.bf16.mxu0 0
    %311 = vmatpush1.bf16.msra.mxu0 0
    %312 = vmatprep.subr.bf16.mxu0 0
    %313 = vmatpush1.bf16.msra.mxu0 0
    %314 = vmatprep.subr.bf16.mxu0 0
    %315 = vmatpush1.bf16.msra.mxu0 0
    %316 = vmatprep.subr.bf16.mxu0 0
    %317 = vmatpush1.bf16.msra.mxu0 0
    %318 = vmatprep.subr.bf16.mxu0 0
    %319 = vmatpush1.bf16.msra.mxu0 0
    %320 = vmatprep.subr.bf16.mxu0 0
    %321 = vmatpush1.bf16.msra.mxu0 0
    %322 = vmatprep.subr.bf16.mxu0 0
    %323 = vmatpush1.bf16.msra.mxu0 0
    %324 = vmatprep.subr.bf16.mxu0 0
    %325 = vmatpush1.bf16.msra.mxu0 0
    %326 = vmatprep.subr.bf16.mxu0 0
    %327 = vmatpush1.bf16.msra.mxu0 0
    %328 = vmatprep.subr.bf16.mxu0 0
    %329 = vmatpush1.bf16.msra.mxu0 0
    %330 = vmatprep.subr.bf16.mxu0 0
    %331 = vmatpush1.bf16.msra.mxu0 0
    %332 = vmatprep.subr.bf16.mxu0 0
    %333 = vmatpush1.bf16.msra.mxu0 0
    %334 = vmatprep.subr.bf16.mxu0 0
    %335 = vmatpush1.bf16.msra.mxu0 0
    %336 = vmatprep.subr.bf16.mxu0 0
    %337 = vmatpush1.bf16.msra.mxu0 0
    %338 = vmatprep.subr.bf16.mxu0 0
    %339 = vmatpush1.bf16.msra.mxu0 0
    %340 = vmatprep.mubr.bf16.mxu0 0
    %341 = vmatmul.mubr.bf16.gmra.mrb[0].mxu0 %v234
    %v342 = vpop.f32.mrb[0].mxu0
    %v343 = vadd.f32 %v101, %v342
    %v344 = vpop.f32.mrb[0].mxu0
    %v345 = vpop.f32.mrb[0].mxu0
    %v346 = vadd.f32 %v101, %v345
    %v347 = vpop.f32.mrb[0].mxu0
    %348 = vmatprep.mubr.bf16.mxu0 0
    %349 = vmatmul.mubr.bf16.gmra.mrb[0].mxu0 %v237
    %v350 = vpop.f32.mrb[0].mxu0
    %v351 = vadd.f32 %v101, %v350
    %v352 = vpop.f32.mrb[0].mxu0
    %v353 = vpop.f32.mrb[0].mxu0
    %v354 = vadd.f32 %v101, %v353
    %v355 = vpop.f32.mrb[0].mxu0
    %356 = vmatprep.mubr.bf16.mxu0 0
    %357 = vmatmul.mubr.bf16.gmra.mrb[0].mxu0 %v240
    %v358 = vpop.f32.mrb[0].mxu0
    %v359 = vadd.f32 %v101, %v358
    %v360 = vpop.f32.mrb[0].mxu0
    %v361 = vpop.f32.mrb[0].mxu0
    %v362 = vadd.f32 %v101, %v361
    %v363 = vpop.f32.mrb[0].mxu0
    %364 = vmatprep.mubr.bf16.mxu0 0
    %365 = vmatmul.mubr.bf16.gmra.mrb[0].mxu0 %v243
    %v366 = vpop.f32.mrb[0].mxu0
    %v367 = vadd.f32 %v101, %v366
    %v368 = vpop.f32.mrb[0].mxu0
    %v369 = vpop.f32.mrb[0].mxu0
    %v370 = vadd.f32 %v101, %v369
    %v371 = vpop.f32.mrb[0].mxu0
    %372 = vmatprep.mubr.bf16.mxu0 0
    %373 = vmatmul.mubr.bf16.gmra.mrb[0].mxu0 %v246
    %v374 = vpop.f32.mrb[0].mxu0
    %v375 = vadd.f32 %v101, %v374
    %v376 = vpop.f32.mrb[0].mxu0
    %v377 = vpop.f32.mrb[0].mxu0
    %v378 = vadd.f32 %v101, %v377
    %v379 = vpop.f32.mrb[0].mxu0
    %380 = vmatprep.mubr.bf16.mxu0 0
    %381 = vmatmul.mubr.bf16.gmra.mrb[0].mxu0 %v249
    %v382 = vpop.f32.mrb[0].mxu0
    %v383 = vadd.f32 %v101, %v382
    %v384 = vpop.f32.mrb[0].mxu0
    %v385 = vpop.f32.mrb[0].mxu0
    %v386 = vadd.f32 %v101, %v385
    %v387 = vpop.f32.mrb[0].mxu0
    %388 = vmatprep.mubr.bf16.mxu0 0
    %389 = vmatmul.mubr.bf16.gmra.mrb[0].mxu0 %v252
    %v390 = vpop.f32.mrb[0].mxu0
    %v391 = vadd.f32 %v101, %v390
    %v392 = vpop.f32.mrb[0].mxu0
    %v393 = vpop.f32.mrb[0].mxu0
    %v394 = vadd.f32 %v101, %v393
    %v395 = vpop.f32.mrb[0].mxu0
    %396 = vmatprep.mubr.bf16.mxu0 0
    %397 = vmatmul.mubr.bf16.gmra.mrb[0].mxu0 %v255
    %v398 = vpop.f32.mrb[0].mxu0
    %v399 = vadd.f32 %v101, %v398
    %v400 = vpop.f32.mrb[0].mxu0
    %v401 = vpop.f32.mrb[0].mxu0
    %v402 = vadd.f32 %v101, %v401
    %v403 = vpop.f32.mrb[0].mxu0
    %404 = vmatprep.mubr.bf16.mxu0 0
    %405 = vmatmul.mubr.bf16.gmra.mrb[0].mxu0 %v258
    %v406 = vpop.f32.mrb[0].mxu0
    %v407 = vadd.f32 %v101, %v406
    %v408 = vpop.f32.mrb[0].mxu0
    %v409 = vpop.f32.mrb[0].mxu0
    %v410 = vadd.f32 %v101, %v409
    %v411 = vpop.f32.mrb[0].mxu0
    %412 = vmatprep.mubr.bf16.mxu0 0
    %413 = vmatmul.mubr.bf16.gmra.mrb[0].mxu0 %v261
    %v414 = vpop.f32.mrb[0].mxu0
    %v415 = vadd.f32 %v101, %v414
    %v416 = vpop.f32.mrb[0].mxu0
    %v417 = vpop.f32.mrb[0].mxu0
    %v418 = vadd.f32 %v101, %v417
    %v419 = vpop.f32.mrb[0].mxu0
    %420 = vmatprep.mubr.bf16.mxu0 0
    %421 = vmatmul.mubr.bf16.gmra.mrb[0].mxu0 %v264
    %v422 = vpop.f32.mrb[0].mxu0
    %v423 = vadd.f32 %v101, %v422
    %v424 = vpop.f32.mrb[0].mxu0
    %v425 = vpop.f32.mrb[0].mxu0
    %v426 = vadd.f32 %v101, %v425
    %v427 = vpop.f32.mrb[0].mxu0
    %428 = vmatprep.mubr.bf16.mxu0 0
    %429 = vmatmul.mubr.bf16.gmra.mrb[0].mxu0 %v267
    %v430 = vpop.f32.mrb[0].mxu0
    %v431 = vadd.f32 %v101, %v430
    %v432 = vpop.f32.mrb[0].mxu0
    %v433 = vpop.f32.mrb[0].mxu0
    %v434 = vadd.f32 %v101, %v433
    %v435 = vpop.f32.mrb[0].mxu0
    %436 = vmatprep.mubr.bf16.mxu0 0
    %437 = vmatmul.mubr.bf16.gmra.mrb[0].mxu0 %v270
    %v438 = vpop.f32.mrb[0].mxu0
    %v439 = vadd.f32 %v101, %v438
    %v440 = vpop.f32.mrb[0].mxu0
    %v441 = vpop.f32.mrb[0].mxu0
    %v442 = vadd.f32 %v101, %v441
    %v443 = vpop.f32.mrb[0].mxu0
    %444 = vmatprep.mubr.bf16.mxu0 0
    %445 = vmatmul.mubr.bf16.gmra.mrb[0].mxu0 %v273
    %v446 = vpop.f32.mrb[0].mxu0
    %v447 = vadd.f32 %v101, %v446
    %v448 = vpop.f32.mrb[0].mxu0
    %v449 = vpop.f32.mrb[0].mxu0
    %v450 = vadd.f32 %v101, %v449
    %v451 = vpop.f32.mrb[0].mxu0
    %452 = vmatprep.mubr.bf16.mxu0 0
    %453 = vmatmul.mubr.bf16.gmra.mrb[0].mxu0 %v276
    %v454 = vpop.f32.mrb[0].mxu0
    %v455 = vadd.f32 %v101, %v454
    %v456 = vpop.f32.mrb[0].mxu0
    %v457 = vpop.f32.mrb[0].mxu0
    %v458 = vadd.f32 %v101, %v457
    %v459 = vpop.f32.mrb[0].mxu0
    %460 = vmatprep.mubr.bf16.mxu0 0
    %461 = vmatmul.mubr.bf16.gmra.mrb[0].mxu0 %v279
    %v462 = vpop.f32.mrb[0].mxu0
    %v463 = vadd.f32 %v101, %v462
    %v464 = vpop.f32.mrb[0].mxu0
    %v465 = vpop.f32.mrb[0].mxu0
    %v466 = vadd.f32 %v101, %v465
    %v467 = vpop.f32.mrb[0].mxu0
    %468 = vmatprep.mubr.bf16.mxu0 0
    %469 = vmatmul.mubr.bf16.gmra.mrb[0].mxu0 %v282
    %v470 = vpop.f32.mrb[0].mxu0
    %v471 = vadd.f32 %v101, %v470
    %v472 = vpop.f32.mrb[0].mxu0
    %v473 = vpop.f32.mrb[0].mxu0
    %v474 = vadd.f32 %v101, %v473
    %v475 = vpop.f32.mrb[0].mxu0
    %476 = vmatprep.mubr.bf16.mxu0 0
    %477 = vmatmul.mubr.bf16.gmra.mrb[0].mxu0 %v285
    %v478 = vpop.f32.mrb[0].mxu0
    %v479 = vadd.f32 %v101, %v478
    %v480 = vpop.f32.mrb[0].mxu0
    %v481 = vpop.f32.mrb[0].mxu0
    %v482 = vadd.f32 %v101, %v481
    %v483 = vpop.f32.mrb[0].mxu0
    %484 = vmatprep.mubr.bf16.mxu0 0
    %485 = vmatmul.mubr.bf16.gmra.mrb[0].mxu0 %v288
    %v486 = vpop.f32.mrb[0].mxu0
    %v487 = vadd.f32 %v101, %v486
    %v488 = vpop.f32.mrb[0].mxu0
    %v489 = vpop.f32.mrb[0].mxu0
    %v490 = vadd.f32 %v101, %v489
    %v491 = vpop.f32.mrb[0].mxu0
    %492 = vmatprep.mubr.bf16.mxu0 0
    %493 = vmatmul.mubr.bf16.gmra.mrb[0].mxu0 %v291
    %v494 = vpop.f32.mrb[0].mxu0
    %v495 = vadd.f32 %v101, %v494
    %v496 = vpop.f32.mrb[0].mxu0
    %v497 = vpop.f32.mrb[0].mxu0
    %v498 = vadd.f32 %v101, %v497
    %v499 = vpop.f32.mrb[0].mxu0
    %500 = vmatprep.mubr.bf16.mxu0 0
    %501 = vmatmul.mubr.bf16.gmra.mrb[0].mxu0 %v294
    %v502 = vpop.f32.mrb[0].mxu0
    %v503 = vadd.f32 %v101, %v502
    %v504 = vpop.f32.mrb[0].mxu0
    %v505 = vpop.f32.mrb[0].mxu0
    %v506 = vadd.f32 %v101, %v505
    %v507 = vpop.f32.mrb[0].mxu0
    %508 = vmatprep.mubr.bf16.mxu0 0
    %509 = vmatmul.mubr.bf16.gmra.mrb[0].mxu0 %v297
    %v510 = vpop.f32.mrb[0].mxu0
    %v511 = vadd.f32 %v101, %v510
    %v512 = vpop.f32.mrb[0].mxu0
    %v513 = vpop.f32.mrb[0].mxu0
    %v514 = vadd.f32 %v101, %v513
    %v515 = vpop.f32.mrb[0].mxu0
    %516 = vmatprep.mubr.bf16.mxu0 0
    %517 = vmatmul.mubr.bf16.gmra.mrb[0].mxu0 %v300
    %v518 = vpop.f32.mrb[0].mxu0
    %v519 = vadd.f32 %v101, %v518
    %v520 = vpop.f32.mrb[0].mxu0
    %v521 = vpop.f32.mrb[0].mxu0
    %v522 = vadd.f32 %v101, %v521
    %v523 = vpop.f32.mrb[0].mxu0
    %524 = vmatprep.mubr.bf16.mxu0 0
    %525 = vmatmul.mubr.bf16.gmra.mrb[0].mxu0 %v303
    %v526 = vpop.f32.mrb[0].mxu0
    %v527 = vadd.f32 %v101, %v526
    %v528 = vpop.f32.mrb[0].mxu0
    %v529 = vpop.f32.mrb[0].mxu0
    %v530 = vadd.f32 %v101, %v529
    %v531 = vpop.f32.mrb[0].mxu0
    %532 = vmatprep.mubr.bf16.mxu0 0
    %533 = vmatmul.mubr.bf16.gmra.mrb[0].mxu0 %v306
    %v534 = vpop.f32.mrb[0].mxu0
    %v535 = vadd.f32 %v101, %v534
    %v536 = vpop.f32.mrb[0].mxu0
    %v537 = vpop.f32.mrb[0].mxu0
    %v538 = vpop.f32.mrb[0].mxu0
    %539 = vdwg.mxu0
    %v540 = vmul.f32 %v343, 0.01
    %v541 = vmul.f32 %v346, 0.01
    %v542 = vmul.f32 %v351, 0.01
    %v543 = vmul.f32 %v354, 0.01
    %v544 = vmul.f32 %v359, 0.01
    %v545 = vmul.f32 %v362, 0.01
    %v546 = vmul.f32 %v367, 0.01
    %v547 = vmul.f32 %v370, 0.01
    %v548 = vmul.f32 %v375, 0.01
    %v549 = vmul.f32 %v378, 0.01
    %v550 = vmul.f32 %v383, 0.01
    %v551 = vmul.f32 %v386, 0.01
    %v552 = vmul.f32 %v391, 0.01
    %v553 = vmul.f32 %v394, 0.01
    %v554 = vmul.f32 %v399, 0.01
    %v555 = vmul.f32 %v402, 0.01
    %v556 = vmul.f32 %v407, 0.01
    %v557 = vmul.f32 %v410, 0.01
    %v558 = vmul.f32 %v415, 0.01
    %v559 = vmul.f32 %v418, 0.01
    %v560 = vmul.f32 %v423, 0.01
    %v561 = vmul.f32 %v426, 0.01
    %v562 = vmul.f32 %v431, 0.01
    %v563 = vmul.f32 %v434, 0.01
    %v564 = vmul.f32 %v439, 0.01
    %v565 = vmul.f32 %v442, 0.01
    %v566 = vmul.f32 %v447, 0.01
    %v567 = vmul.f32 %v450, 0.01
    %v568 = vmul.f32 %v455, 0.01
    %v569 = vmul.f32 %v458, 0.01
    %v570 = vmul.f32 %v463, 0.01
    %v571 = vmul.f32 %v466, 0.01
    %v572 = vmul.f32 %v471, 0.01
    %v573 = vmul.f32 %v474, 0.01
    %v574 = vmul.f32 %v479, 0.01
    %v575 = vmul.f32 %v482, 0.01
    %v576 = vmul.f32 %v487, 0.01
    %v577 = vmul.f32 %v490, 0.01
    %v578 = vmul.f32 %v495, 0.01
    %v579 = vmul.f32 %v498, 0.01
    %v580 = vmul.f32 %v503, 0.01
    %v581 = vmul.f32 %v506, 0.01
    %v582 = vmul.f32 %v511, 0.01
    %v583 = vmul.f32 %v514, 0.01
    %v584 = vmul.f32 %v519, 0.01
    %v585 = vmul.f32 %v522, 0.01
    %v586 = vmul.f32 %v527, 0.01
    %v587 = vmul.f32 %v530, 0.01
    %v588 = vmul.f32 %v535, 0.01
    %v589 = vmax.f32 %v343, %v540
    %v590 = vmax.f32 %v346, %v541
    %v591 = vmax.f32 %v351, %v542
    %v592 = vmax.f32 %v354, %v543
    %v593 = vmax.f32 %v359, %v544
    %v594 = vmax.f32 %v362, %v545
    %v595 = vmax.f32 %v367, %v546
    %v596 = vmax.f32 %v370, %v547
    %v597 = vmax.f32 %v375, %v548
    %v598 = vmax.f32 %v378, %v549
    %v599 = vmax.f32 %v383, %v550
    %v600 = vmax.f32 %v386, %v551
    %v601 = vmax.f32 %v391, %v552
    %v602 = vmax.f32 %v394, %v553
    %v603 = vmax.f32 %v399, %v554
    %v604 = vmax.f32 %v402, %v555
    %v605 = vmax.f32 %v407, %v556
    %v606 = vmax.f32 %v410, %v557
    %v607 = vmax.f32 %v415, %v558
    %v608 = vmax.f32 %v418, %v559
    %v609 = vmax.f32 %v423, %v560
    %v610 = vmax.f32 %v426, %v561
    %v611 = vmax.f32 %v431, %v562
    %v612 = vmax.f32 %v434, %v563
    %v613 = vmax.f32 %v439, %v564
    %v614 = vmax.f32 %v442, %v565
    %v615 = vmax.f32 %v447, %v566
    %v616 = vmax.f32 %v450, %v567
    %v617 = vmax.f32 %v455, %v568
    %v618 = vmax.f32 %v458, %v569
    %v619 = vmax.f32 %v463, %v570
    %v620 = vmax.f32 %v466, %v571
    %v621 = vmax.f32 %v471, %v572
    %v622 = vmax.f32 %v474, %v573
    %v623 = vmax.f32 %v479, %v574
    %v624 = vmax.f32 %v482, %v575
    %v625 = vmax.f32 %v487, %v576
    %v626 = vmax.f32 %v490, %v577
    %v627 = vmax.f32 %v495, %v578
    %v628 = vmax.f32 %v498, %v579
    %v629 = vmax.f32 %v503, %v580
    %v630 = vmax.f32 %v506, %v581
    %v631 = vmax.f32 %v511, %v582
    %v632 = vmax.f32 %v514, %v583
    %v633 = vmax.f32 %v519, %v584
    %v634 = vmax.f32 %v522, %v585
    %v635 = vmax.f32 %v527, %v586
    %v636 = vmax.f32 %v530, %v587
    %v637 = vmax.f32 %v535, %v588
    %v638 = vpack.c.bf16 %v590, %v589
    %v639 = vpack.c.bf16 %v592, %v591
    %v640 = vpack.c.bf16 %v594, %v593
    %v641 = vpack.c.bf16 %v596, %v595
    %v642 = vpack.c.bf16 %v598, %v597
    %v643 = vpack.c.bf16 %v600, %v599
    %v644 = vpack.c.bf16 %v602, %v601
    %v645 = vpack.c.bf16 %v604, %v603
    %v646 = vpack.c.bf16 %v606, %v605
    %v647 = vpack.c.bf16 %v608, %v607
    %v648 = vpack.c.bf16 %v610, %v609
    %v649 = vpack.c.bf16 %v612, %v611
    %v650 = vpack.c.bf16 %v614, %v613
    %v651 = vpack.c.bf16 %v616, %v615
    %v652 = vpack.c.bf16 %v618, %v617
    %v653 = vpack.c.bf16 %v620, %v619
    %v654 = vpack.c.bf16 %v622, %v621
    %v655 = vpack.c.bf16 %v624, %v623
    %v656 = vpack.c.bf16 %v626, %v625
    %v657 = vpack.c.bf16 %v628, %v627
    %v658 = vpack.c.bf16 %v630, %v629
    %v659 = vpack.c.bf16 %v632, %v631
    %v660 = vpack.c.bf16 %v634, %v633
    %v661 = vpack.c.bf16 %v636, %v635
    %v662 = vpack.c.bf16 %v637, %v637
    %v688 = vunpack.c.l.b16 %v638
    %v689 = vunpack.c.h.b16 %v638
    %v690 = vunpack.c.l.b16 %v639
    %v691 = vunpack.c.h.b16 %v639
    %v692 = vunpack.c.l.b16 %v640
    %v693 = vunpack.c.h.b16 %v640
    %v694 = vunpack.c.l.b16 %v641
    %v695 = vunpack.c.h.b16 %v641
    %v696 = vunpack.c.l.b16 %v642
    %v697 = vunpack.c.h.b16 %v642
    %v698 = vunpack.c.l.b16 %v643
    %v699 = vunpack.c.h.b16 %v643
    %v700 = vunpack.c.l.b16 %v644
    %v701 = vunpack.c.h.b16 %v644
    %v702 = vunpack.c.l.b16 %v645
    %v703 = vunpack.c.h.b16 %v645
    %v704 = vunpack.c.l.b16 %v646
    %v705 = vunpack.c.h.b16 %v646
    %v706 = vunpack.c.l.b16 %v647
    %v707 = vunpack.c.h.b16 %v647
    %v708 = vunpack.c.l.b16 %v648
    %v709 = vunpack.c.h.b16 %v648
    %v710 = vunpack.c.l.b16 %v649
    %v711 = vunpack.c.h.b16 %v649
    %v712 = vunpack.c.l.b16 %v650
    %v713 = vunpack.c.h.b16 %v650
    %v714 = vunpack.c.l.b16 %v651
    %v715 = vunpack.c.h.b16 %v651
    %v716 = vunpack.c.l.b16 %v652
    %v717 = vunpack.c.h.b16 %v652
    %v718 = vunpack.c.l.b16 %v653
    %v719 = vunpack.c.h.b16 %v653
    %v720 = vunpack.c.l.b16 %v654
    %v721 = vunpack.c.h.b16 %v654
    %v722 = vunpack.c.l.b16 %v655
    %v723 = vunpack.c.h.b16 %v655
    %v724 = vunpack.c.l.b16 %v656
    %v725 = vunpack.c.h.b16 %v656
    %v726 = vunpack.c.l.b16 %v657
    %v727 = vunpack.c.h.b16 %v657
    %v728 = vunpack.c.l.b16 %v658
    %v729 = vunpack.c.h.b16 %v658
    %v730 = vunpack.c.l.b16 %v659
    %v731 = vunpack.c.h.b16 %v659
    %v732 = vunpack.c.l.b16 %v660
    %v733 = vunpack.c.h.b16 %v660
    %v734 = vunpack.c.l.b16 %v661
    %v735 = vunpack.c.h.b16 %v661
    %v736 = vunpack.c.l.b16 %v662
    %v737 = vpack.c.b16 %v688, %v688
    %v738 = vpack.c.b16 %v689, %v689
    %v739 = vpack.c.b16 %v690, %v690
    %v740 = vpack.c.b16 %v691, %v691
    %v741 = vpack.c.b16 %v692, %v692
    %v742 = vpack.c.b16 %v693, %v693
    %v743 = vpack.c.b16 %v694, %v694
    %v744 = vpack.c.b16 %v695, %v695
    %v745 = vpack.c.b16 %v696, %v696
    %v746 = vpack.c.b16 %v697, %v697
    %v747 = vpack.c.b16 %v698, %v698
    %v748 = vpack.c.b16 %v699, %v699
    %v749 = vpack.c.b16 %v700, %v700
    %v750 = vpack.c.b16 %v701, %v701
    %v751 = vpack.c.b16 %v702, %v702
    %v752 = vpack.c.b16 %v703, %v703
    %v753 = vpack.c.b16 %v704, %v704
    %v754 = vpack.c.b16 %v705, %v705
    %v755 = vpack.c.b16 %v706, %v706
    %v756 = vpack.c.b16 %v707, %v707
    %v757 = vpack.c.b16 %v708, %v708
    %v758 = vpack.c.b16 %v709, %v709
    %v759 = vpack.c.b16 %v710, %v710
    %v760 = vpack.c.b16 %v711, %v711
    %v761 = vpack.c.b16 %v712, %v712
    %v762 = vpack.c.b16 %v713, %v713
    %v763 = vpack.c.b16 %v714, %v714
    %v764 = vpack.c.b16 %v715, %v715
    %v765 = vpack.c.b16 %v716, %v716
    %v766 = vpack.c.b16 %v717, %v717
    %v767 = vpack.c.b16 %v718, %v718
    %v768 = vpack.c.b16 %v719, %v719
    %v769 = vpack.c.b16 %v720, %v720
    %v770 = vpack.c.b16 %v721, %v721
    %v771 = vpack.c.b16 %v722, %v722
    %v772 = vpack.c.b16 %v723, %v723
    %v773 = vpack.c.b16 %v724, %v724
    %v774 = vpack.c.b16 %v725, %v725
    %v775 = vpack.c.b16 %v726, %v726
    %v776 = vpack.c.b16 %v727, %v727
    %v777 = vpack.c.b16 %v728, %v728
    %v778 = vpack.c.b16 %v729, %v729
    %v779 = vpack.c.b16 %v730, %v730
    %v780 = vpack.c.b16 %v731, %v731
    %v781 = vpack.c.b16 %v732, %v732
    %v782 = vpack.c.b16 %v733, %v733
    %v783 = vpack.c.b16 %v734, %v734
    %v784 = vpack.c.b16 %v735, %v735
    %v785 = vpack.c.b16 %v736, %v736
    %vm835 = vcmask 125952
    %836 = vst.msk [vmem:[#allocation2] sm:$0xf] %vm835, %v737
    %837 = vst.msk [vmem:[#allocation2 + $0x4] sm:$0xf] %vm835, %v738
    %838 = vst.msk [vmem:[#allocation2 + $0x8] sm:$0xf] %vm835, %v739
    %839 = vst.msk [vmem:[#allocation2 + $0xc] sm:$0xf] %vm835, %v740
    %840 = vst.msk [vmem:[#allocation2 + $0x10] sm:$0xf] %vm835, %v741
    %841 = vst.msk [vmem:[#allocation2 + $0x14] sm:$0xf] %vm835, %v742
    %842 = vst.msk [vmem:[#allocation2 + $0x18] sm:$0xf] %vm835, %v743
    %843 = vst.msk [vmem:[#allocation2 + $0x1c] sm:$0xf] %vm835, %v744
    %844 = vst.msk [vmem:[#allocation2 + $0x20] sm:$0xf] %vm835, %v745
    %845 = vst.msk [vmem:[#allocation2 + $0x24] sm:$0xf] %vm835, %v746
    %846 = vst.msk [vmem:[#allocation2 + $0x28] sm:$0xf] %vm835, %v747
    %847 = vst.msk [vmem:[#allocation2 + $0x2c] sm:$0xf] %vm835, %v748
    %848 = vst.msk [vmem:[#allocation2 + $0x30] sm:$0xf] %vm835, %v749
    %849 = vst.msk [vmem:[#allocation2 + $0x34] sm:$0xf] %vm835, %v750
    %850 = vst.msk [vmem:[#allocation2 + $0x38] sm:$0xf] %vm835, %v751
    %851 = vst.msk [vmem:[#allocation2 + $0x3c] sm:$0xf] %vm835, %v752
    %852 = vst.msk [vmem:[#allocation2 + $0x40] sm:$0xf] %vm835, %v753
    %853 = vst.msk [vmem:[#allocation2 + $0x44] sm:$0xf] %vm835, %v754
    %854 = vst.msk [vmem:[#allocation2 + $0x48] sm:$0xf] %vm835, %v755
    %855 = vst.msk [vmem:[#allocation2 + $0x4c] sm:$0xf] %vm835, %v756
    %856 = vst.msk [vmem:[#allocation2 + $0x50] sm:$0xf] %vm835, %v757
    %857 = vst.msk [vmem:[#allocation2 + $0x54] sm:$0xf] %vm835, %v758
    %858 = vst.msk [vmem:[#allocation2 + $0x58] sm:$0xf] %vm835, %v759
    %859 = vst.msk [vmem:[#allocation2 + $0x5c] sm:$0xf] %vm835, %v760
    %860 = vst.msk [vmem:[#allocation2 + $0x60] sm:$0xf] %vm835, %v761
    %861 = vst.msk [vmem:[#allocation2 + $0x64] sm:$0xf] %vm835, %v762
    %862 = vst.msk [vmem:[#allocation2 + $0x68] sm:$0xf] %vm835, %v763
    %863 = vst.msk [vmem:[#allocation2 + $0x6c] sm:$0xf] %vm835, %v764
    %864 = vst.msk [vmem:[#allocation2 + $0x70] sm:$0xf] %vm835, %v765
    %865 = vst.msk [vmem:[#allocation2 + $0x74] sm:$0xf] %vm835, %v766
    %866 = vst.msk [vmem:[#allocation2 + $0x78] sm:$0xf] %vm835, %v767
    %867 = vst.msk [vmem:[#allocation2 + $0x7c] sm:$0xf] %vm835, %v768
    %868 = vst.msk [vmem:[#allocation2 + $0x80] sm:$0xf] %vm835, %v769
    %869 = vst.msk [vmem:[#allocation2 + $0x84] sm:$0xf] %vm835, %v770
    %870 = vst.msk [vmem:[#allocation2 + $0x88] sm:$0xf] %vm835, %v771
    %871 = vst.msk [vmem:[#allocation2 + $0x8c] sm:$0xf] %vm835, %v772
    %872 = vst.msk [vmem:[#allocation2 + $0x90] sm:$0xf] %vm835, %v773
    %873 = vst.msk [vmem:[#allocation2 + $0x94] sm:$0xf] %vm835, %v774
    %874 = vst.msk [vmem:[#allocation2 + $0x98] sm:$0xf] %vm835, %v775
    %875 = vst.msk [vmem:[#allocation2 + $0x9c] sm:$0xf] %vm835, %v776
    %876 = vst.msk [vmem:[#allocation2 + $0xa0] sm:$0xf] %vm835, %v777
    %877 = vst.msk [vmem:[#allocation2 + $0xa4] sm:$0xf] %vm835, %v778
    %878 = vst.msk [vmem:[#allocation2 + $0xa8] sm:$0xf] %vm835, %v779
    %879 = vst.msk [vmem:[#allocation2 + $0xac] sm:$0xf] %vm835, %v780
    %880 = vst.msk [vmem:[#allocation2 + $0xb0] sm:$0xf] %vm835, %v781
    %881 = vst.msk [vmem:[#allocation2 + $0xb4] sm:$0xf] %vm835, %v782
    %882 = vst.msk [vmem:[#allocation2 + $0xb8] sm:$0xf] %vm835, %v783
    %883 = vst.msk [vmem:[#allocation2 + $0xbc] sm:$0xf] %vm835, %v784
    %884 = vst.msk [vmem:[#allocation2 + $0xc0] sm:$0xf] %vm835, %v785
    %885 = vst.msk [vmem:[#allocation2 + $0xc4] sm:$0xf] %vm835, 0
    %886 = vst.msk [vmem:[#allocation2 + $0xc8] sm:$0xf] %vm835, 0
    %887 = vst.msk [vmem:[#allocation2 + $0xcc] sm:$0xf] %vm835, 0
    %888 = vst.msk [vmem:[#allocation2 + $0xd0] sm:$0xf] %vm835, 0
    %v889 = vld [vmem:[#allocation2] sm:$0xf]
    %v890 = vld [vmem:[#allocation2 + $0x4] sm:$0xf]
    %v891 = vld [vmem:[#allocation2 + $0x8] sm:$0xf]
    %v892 = vld [vmem:[#allocation2 + $0xc] sm:$0xf]
    %v893 = vld [vmem:[#allocation2 + $0x10] sm:$0xf]
    %v894 = vld [vmem:[#allocation2 + $0x14] sm:$0xf]
    %v895 = vld [vmem:[#allocation2 + $0x18] sm:$0xf]
    %v896 = vld [vmem:[#allocation2 + $0x1c] sm:$0xf]
    %v897 = vld [vmem:[#allocation2 + $0x20] sm:$0xf]
    %v898 = vld [vmem:[#allocation2 + $0x24] sm:$0xf]
    %v899 = vld [vmem:[#allocation2 + $0x28] sm:$0xf]
    %v900 = vld [vmem:[#allocation2 + $0x2c] sm:$0xf]
    %v901 = vld [vmem:[#allocation2 + $0x30] sm:$0xf]
    %v902 = vld [vmem:[#allocation2 + $0x34] sm:$0xf]
    %v903 = vld [vmem:[#allocation2 + $0x38] sm:$0xf]
    %v904 = vld [vmem:[#allocation2 + $0x3c] sm:$0xf]
    %v905 = vld [vmem:[#allocation2 + $0x40] sm:$0xf]
    %v906 = vld [vmem:[#allocation2 + $0x44] sm:$0xf]
    %v907 = vld [vmem:[#allocation2 + $0x48] sm:$0xf]
    %v908 = vld [vmem:[#allocation2 + $0x4c] sm:$0xf]
    %v909 = vld [vmem:[#allocation2 + $0x50] sm:$0xf]
    %v910 = vld [vmem:[#allocation2 + $0x54] sm:$0xf]
    %v911 = vld [vmem:[#allocation2 + $0x58] sm:$0xf]
    %v912 = vld [vmem:[#allocation2 + $0x5c] sm:$0xf]
    %v913 = vld [vmem:[#allocation2 + $0x60] sm:$0xf]
    %v914 = vld [vmem:[#allocation2 + $0x64] sm:$0xf]
    %v915 = vld [vmem:[#allocation2 + $0x68] sm:$0xf]
    %v916 = vld [vmem:[#allocation2 + $0x6c] sm:$0xf]
    %v917 = vld [vmem:[#allocation2 + $0x70] sm:$0xf]
    %v918 = vld [vmem:[#allocation2 + $0x74] sm:$0xf]
    %v919 = vld [vmem:[#allocation2 + $0x78] sm:$0xf]
    %v920 = vld [vmem:[#allocation2 + $0x7c] sm:$0xf]
    %v921 = vld [vmem:[#allocation2 + $0x80] sm:$0xf]
    %v922 = vld [vmem:[#allocation2 + $0x84] sm:$0xf]
    %v923 = vld [vmem:[#allocation2 + $0x88] sm:$0xf]
    %v924 = vld [vmem:[#allocation2 + $0x8c] sm:$0xf]
    %v925 = vld [vmem:[#allocation2 + $0x90] sm:$0xf]
    %v926 = vld [vmem:[#allocation2 + $0x94] sm:$0xf]
    %v927 = vld [vmem:[#allocation2 + $0x98] sm:$0xf]
    %v928 = vld [vmem:[#allocation2 + $0x9c] sm:$0xf]
    %v929 = vld [vmem:[#allocation2 + $0xa0] sm:$0xf]
    %v930 = vld [vmem:[#allocation2 + $0xa4] sm:$0xf]
    %v931 = vld [vmem:[#allocation2 + $0xa8] sm:$0xf]
    %v932 = vld [vmem:[#allocation2 + $0xac] sm:$0xf]
    %v933 = vld [vmem:[#allocation2 + $0xb0] sm:$0xf]
    %v934 = vld [vmem:[#allocation2 + $0xb4] sm:$0xf]
    %v935 = vld [vmem:[#allocation2 + $0xb8] sm:$0xf]
    %v936 = vld [vmem:[#allocation2 + $0xbc] sm:$0xf]
    %v937 = vld [vmem:[#allocation2 + $0xc0] sm:$0xf]
    %v938 = vld [vmem:[%s3] sm:$0xf]
    %v939 = vld [vmem:[%s3 + $0x4] sm:$0xf]
    %v989 = vunpack.c.l.b16 %v889
    %v990 = vunpack.c.l.b16 %v890
    %v991 = vunpack.c.l.b16 %v891
    %v992 = vunpack.c.l.b16 %v892
    %v993 = vunpack.c.l.b16 %v893
    %v994 = vunpack.c.l.b16 %v894
    %v995 = vunpack.c.l.b16 %v895
    %v996 = vunpack.c.l.b16 %v896
    %v997 = vunpack.c.l.b16 %v897
    %v998 = vunpack.c.l.b16 %v898
    %v999 = vunpack.c.l.b16 %v899
    %v1000 = vunpack.c.l.b16 %v900
    %v1001 = vunpack.c.l.b16 %v901
    %v1002 = vunpack.c.l.b16 %v902
    %v1003 = vunpack.c.l.b16 %v903
    %v1004 = vunpack.c.l.b16 %v904
    %v1005 = vunpack.c.l.b16 %v905
    %v1006 = vunpack.c.l.b16 %v906
    %v1007 = vunpack.c.l.b16 %v907
    %v1008 = vunpack.c.l.b16 %v908
    %v1009 = vunpack.c.l.b16 %v909
    %v1010 = vunpack.c.l.b16 %v910
    %v1011 = vunpack.c.l.b16 %v911
    %v1012 = vunpack.c.l.b16 %v912
    %v1013 = vunpack.c.l.b16 %v913
    %v1014 = vunpack.c.l.b16 %v914
    %v1015 = vunpack.c.l.b16 %v915
    %v1016 = vunpack.c.l.b16 %v916
    %v1017 = vunpack.c.l.b16 %v917
    %v1018 = vunpack.c.l.b16 %v918
    %v1019 = vunpack.c.l.b16 %v919
    %v1020 = vunpack.c.l.b16 %v920
    %v1021 = vunpack.c.l.b16 %v921
    %v1022 = vunpack.c.l.b16 %v922
    %v1023 = vunpack.c.l.b16 %v923
    %v1024 = vunpack.c.l.b16 %v924
    %v1025 = vunpack.c.l.b16 %v925
    %v1026 = vunpack.c.l.b16 %v926
    %v1027 = vunpack.c.l.b16 %v927
    %v1028 = vunpack.c.l.b16 %v928
    %v1029 = vunpack.c.l.b16 %v929
    %v1030 = vunpack.c.l.b16 %v930
    %v1031 = vunpack.c.l.b16 %v931
    %v1032 = vunpack.c.l.b16 %v932
    %v1033 = vunpack.c.l.b16 %v933
    %v1034 = vunpack.c.l.b16 %v934
    %v1035 = vunpack.c.l.b16 %v935
    %v1036 = vunpack.c.l.b16 %v936
    %v1037 = vunpack.c.l.b16 %v937
    %v1038 = vpack.c.b16 %v990, %v989
    %v1039 = vpack.c.b16 %v992, %v991
    %v1040 = vpack.c.b16 %v994, %v993
    %v1041 = vpack.c.b16 %v996, %v995
    %v1042 = vpack.c.b16 %v998, %v997
    %v1043 = vpack.c.b16 %v1000, %v999
    %v1044 = vpack.c.b16 %v1002, %v1001
    %v1045 = vpack.c.b16 %v1004, %v1003
    %v1046 = vpack.c.b16 %v1006, %v1005
    %v1047 = vpack.c.b16 %v1008, %v1007
    %v1048 = vpack.c.b16 %v1010, %v1009
    %v1049 = vpack.c.b16 %v1012, %v1011
    %v1050 = vpack.c.b16 %v1014, %v1013
    %v1051 = vpack.c.b16 %v1016, %v1015
    %v1052 = vpack.c.b16 %v1018, %v1017
    %v1053 = vpack.c.b16 %v1020, %v1019
    %v1054 = vpack.c.b16 %v1022, %v1021
    %v1055 = vpack.c.b16 %v1024, %v1023
    %v1056 = vpack.c.b16 %v1026, %v1025
    %v1057 = vpack.c.b16 %v1028, %v1027
    %v1058 = vpack.c.b16 %v1030, %v1029
    %v1059 = vpack.c.b16 %v1032, %v1031
    %v1060 = vpack.c.b16 %v1034, %v1033
    %v1061 = vpack.c.b16 %v1036, %v1035
    %v1062 = vpack.c.b16 %v1037, %v1037
    %v1065 = vunpack.c.l.b16 %v938
    %v1066 = vunpack.c.l.b16 %v939
    %v1067 = vpack.c.b16 %v1066, %v1065
    %v1070 = vsel %vm232, %v1038, 0
    %v1073 = vsel %vm232, %v1039, 0
    %v1076 = vsel %vm232, %v1040, 0
    %v1079 = vsel %vm232, %v1041, 0
    %v1082 = vsel %vm232, %v1042, 0
    %v1085 = vsel %vm232, %v1043, 0
    %v1088 = vsel %vm232, %v1044, 0
    %v1091 = vsel %vm232, %v1045, 0
    %v1094 = vsel %vm232, %v1046, 0
    %v1097 = vsel %vm232, %v1047, 0
    %v1100 = vsel %vm232, %v1048, 0
    %v1103 = vsel %vm232, %v1049, 0
    %v1106 = vsel %vm232, %v1050, 0
    %v1109 = vsel %vm232, %v1051, 0
    %v1112 = vsel %vm232, %v1052, 0
    %v1115 = vsel %vm232, %v1053, 0
    %v1118 = vsel %vm232, %v1054, 0
    %v1121 = vsel %vm232, %v1055, 0
    %v1124 = vsel %vm232, %v1056, 0
    %v1127 = vsel %vm232, %v1057, 0
    %v1130 = vsel %vm232, %v1058, 0
    %v1133 = vsel %vm232, %v1059, 0
    %v1136 = vsel %vm232, %v1060, 0
    %v1139 = vsel %vm232, %v1061, 0
    %v1142 = vsel %vm232, %v1062, 0
    %1144 = vmatprep.subr.bf16.mxu0 0
    %1145 = vmatpush1.bf16.msra.mxu0 %v1067
    %1146 = vmatprep.subr.bf16.mxu0 0
    %1147 = vmatpush1.bf16.msra.mxu0 0
    %1148 = vmatprep.subr.bf16.mxu0 0
    %1149 = vmatpush1.bf16.msra.mxu0 0
    %1150 = vmatprep.subr.bf16.mxu0 0
    %1151 = vmatpush1.bf16.msra.mxu0 0
    %1152 = vmatprep.subr.bf16.mxu0 0
    %1153 = vmatpush1.bf16.msra.mxu0 0
    %1154 = vmatprep.subr.bf16.mxu0 0
    %1155 = vmatpush1.bf16.msra.mxu0 0
    %1156 = vmatprep.subr.bf16.mxu0 0
    %1157 = vmatpush1.bf16.msra.mxu0 0
    %1158 = vmatprep.subr.bf16.mxu0 0
    %1159 = vmatpush1.bf16.msra.mxu0 0
    %1160 = vmatprep.subr.bf16.mxu0 0
    %1161 = vmatpush1.bf16.msra.mxu0 0
    %1162 = vmatprep.subr.bf16.mxu0 0
    %1163 = vmatpush1.bf16.msra.mxu0 0
    %1164 = vmatprep.subr.bf16.mxu0 0
    %1165 = vmatpush1.bf16.msra.mxu0 0
    %1166 = vmatprep.subr.bf16.mxu0 0
    %1167 = vmatpush1.bf16.msra.mxu0 0
    %1168 = vmatprep.subr.bf16.mxu0 0
    %1169 = vmatpush1.bf16.msra.mxu0 0
    %1170 = vmatprep.subr.bf16.mxu0 0
    %1171 = vmatpush1.bf16.msra.mxu0 0
    %1172 = vmatprep.subr.bf16.mxu0 0
    %1173 = vmatpush1.bf16.msra.mxu0 0
    %1174 = vmatprep.subr.bf16.mxu0 0
    %1175 = vmatpush1.bf16.msra.mxu0 0
    %1176 = vmatprep.mubr.bf16.mxu0 0
    %1177 = vmatmul.mubr.bf16.gmra.mrb[0].mxu0 %v1070
    %v1178 = vpop.f32.mrb[0].mxu0
    %v1179 = vadd.f32 0.0, %v1178
    %v1180 = vpop.f32.mrb[0].mxu0
    %v1181 = vpop.f32.mrb[0].mxu0
    %v1182 = vadd.f32 0.0, %v1181
    %v1183 = vpop.f32.mrb[0].mxu0
    %1184 = vmatprep.mubr.bf16.mxu0 0
    %1185 = vmatmul.mubr.bf16.gmra.mrb[0].mxu0 %v1073
    %v1186 = vpop.f32.mrb[0].mxu0
    %v1187 = vadd.f32 0.0, %v1186
    %v1188 = vpop.f32.mrb[0].mxu0
    %v1189 = vpop.f32.mrb[0].mxu0
    %v1190 = vadd.f32 0.0, %v1189
    %v1191 = vpop.f32.mrb[0].mxu0
    %1192 = vmatprep.mubr.bf16.mxu0 0
    %1193 = vmatmul.mubr.bf16.gmra.mrb[0].mxu0 %v1076
    %v1194 = vpop.f32.mrb[0].mxu0
    %v1195 = vadd.f32 0.0, %v1194
    %v1196 = vpop.f32.mrb[0].mxu0
    %v1197 = vpop.f32.mrb[0].mxu0
    %v1198 = vadd.f32 0.0, %v1197
    %v1199 = vpop.f32.mrb[0].mxu0
    %1200 = vmatprep.mubr.bf16.mxu0 0
    %1201 = vmatmul.mubr.bf16.gmra.mrb[0].mxu0 %v1079
    %v1202 = vpop.f32.mrb[0].mxu0
    %v1203 = vadd.f32 0.0, %v1202
    %v1204 = vpop.f32.mrb[0].mxu0
    %v1205 = vpop.f32.mrb[0].mxu0
    %v1206 = vadd.f32 0.0, %v1205
    %v1207 = vpop.f32.mrb[0].mxu0
    %1208 = vmatprep.mubr.bf16.mxu0 0
    %1209 = vmatmul.mubr.bf16.gmra.mrb[0].mxu0 %v1082
    %v1210 = vpop.f32.mrb[0].mxu0
    %v1211 = vadd.f32 0.0, %v1210
    %v1212 = vpop.f32.mrb[0].mxu0
    %v1213 = vpop.f32.mrb[0].mxu0
    %v1214 = vadd.f32 0.0, %v1213
    %v1215 = vpop.f32.mrb[0].mxu0
    %1216 = vmatprep.mubr.bf16.mxu0 0
    %1217 = vmatmul.mubr.bf16.gmra.mrb[0].mxu0 %v1085
    %v1218 = vpop.f32.mrb[0].mxu0
    %v1219 = vadd.f32 0.0, %v1218
    %v1220 = vpop.f32.mrb[0].mxu0
    %v1221 = vpop.f32.mrb[0].mxu0
    %v1222 = vadd.f32 0.0, %v1221
    %v1223 = vpop.f32.mrb[0].mxu0
    %1224 = vmatprep.mubr.bf16.mxu0 0
    %1225 = vmatmul.mubr.bf16.gmra.mrb[0].mxu0 %v1088
    %v1226 = vpop.f32.mrb[0].mxu0
    %v1227 = vadd.f32 0.0, %v1226
    %v1228 = vpop.f32.mrb[0].mxu0
    %v1229 = vpop.f32.mrb[0].mxu0
    %v1230 = vadd.f32 0.0, %v1229
    %v1231 = vpop.f32.mrb[0].mxu0
    %1232 = vmatprep.mubr.bf16.mxu0 0
    %1233 = vmatmul.mubr.bf16.gmra.mrb[0].mxu0 %v1091
    %v1234 = vpop.f32.mrb[0].mxu0
    %v1235 = vadd.f32 0.0, %v1234
    %v1236 = vpop.f32.mrb[0].mxu0
    %v1237 = vpop.f32.mrb[0].mxu0
    %v1238 = vadd.f32 0.0, %v1237
    %v1239 = vpop.f32.mrb[0].mxu0
    %1240 = vmatprep.mubr.bf16.mxu0 0
    %1241 = vmatmul.mubr.bf16.gmra.mrb[0].mxu0 %v1094
    %v1242 = vpop.f32.mrb[0].mxu0
    %v1243 = vadd.f32 0.0, %v1242
    %v1244 = vpop.f32.mrb[0].mxu0
    %v1245 = vpop.f32.mrb[0].mxu0
    %v1246 = vadd.f32 0.0, %v1245
    %v1247 = vpop.f32.mrb[0].mxu0
    %1248 = vmatprep.mubr.bf16.mxu0 0
    %1249 = vmatmul.mubr.bf16.gmra.mrb[0].mxu0 %v1097
    %v1250 = vpop.f32.mrb[0].mxu0
    %v1251 = vadd.f32 0.0, %v1250
    %v1252 = vpop.f32.mrb[0].mxu0
    %v1253 = vpop.f32.mrb[0].mxu0
    %v1254 = vadd.f32 0.0, %v1253
    %v1255 = vpop.f32.mrb[0].mxu0
    %1256 = vmatprep.mubr.bf16.mxu0 0
    %1257 = vmatmul.mubr.bf16.gmra.mrb[0].mxu0 %v1100
    %v1258 = vpop.f32.mrb[0].mxu0
    %v1259 = vadd.f32 0.0, %v1258
    %v1260 = vpop.f32.mrb[0].mxu0
    %v1261 = vpop.f32.mrb[0].mxu0
    %v1262 = vadd.f32 0.0, %v1261
    %v1263 = vpop.f32.mrb[0].mxu0
    %1264 = vmatprep.mubr.bf16.mxu0 0
    %1265 = vmatmul.mubr.bf16.gmra.mrb[0].mxu0 %v1103
    %v1266 = vpop.f32.mrb[0].mxu0
    %v1267 = vadd.f32 0.0, %v1266
    %v1268 = vpop.f32.mrb[0].mxu0
    %v1269 = vpop.f32.mrb[0].mxu0
    %v1270 = vadd.f32 0.0, %v1269
    %v1271 = vpop.f32.mrb[0].mxu0
    %1272 = vmatprep.mubr.bf16.mxu0 0
    %1273 = vmatmul.mubr.bf16.gmra.mrb[0].mxu0 %v1106
    %v1274 = vpop.f32.mrb[0].mxu0
    %v1275 = vadd.f32 0.0, %v1274
    %v1276 = vpop.f32.mrb[0].mxu0
    %v1277 = vpop.f32.mrb[0].mxu0
    %v1278 = vadd.f32 0.0, %v1277
    %v1279 = vpop.f32.mrb[0].mxu0
    %1280 = vmatprep.mubr.bf16.mxu0 0
    %1281 = vmatmul.mubr.bf16.gmra.mrb[0].mxu0 %v1109
    %v1282 = vpop.f32.mrb[0].mxu0
    %v1283 = vadd.f32 0.0, %v1282
    %v1284 = vpop.f32.mrb[0].mxu0
    %v1285 = vpop.f32.mrb[0].mxu0
    %v1286 = vadd.f32 0.0, %v1285
    %v1287 = vpop.f32.mrb[0].mxu0
    %1288 = vmatprep.mubr.bf16.mxu0 0
    %1289 = vmatmul.mubr.bf16.gmra.mrb[0].mxu0 %v1112
    %v1290 = vpop.f32.mrb[0].mxu0
    %v1291 = vadd.f32 0.0, %v1290
    %v1292 = vpop.f32.mrb[0].mxu0
    %v1293 = vpop.f32.mrb[0].mxu0
    %v1294 = vadd.f32 0.0, %v1293
    %v1295 = vpop.f32.mrb[0].mxu0
    %1296 = vmatprep.mubr.bf16.mxu0 0
    %1297 = vmatmul.mubr.bf16.gmra.mrb[0].mxu0 %v1115
    %v1298 = vpop.f32.mrb[0].mxu0
    %v1299 = vadd.f32 0.0, %v1298
    %v1300 = vpop.f32.mrb[0].mxu0
    %v1301 = vpop.f32.mrb[0].mxu0
    %v1302 = vadd.f32 0.0, %v1301
    %v1303 = vpop.f32.mrb[0].mxu0
    %1304 = vmatprep.mubr.bf16.mxu0 0
    %1305 = vmatmul.mubr.bf16.gmra.mrb[0].mxu0 %v1118
    %v1306 = vpop.f32.mrb[0].mxu0
    %v1307 = vadd.f32 0.0, %v1306
    %v1308 = vpop.f32.mrb[0].mxu0
    %v1309 = vpop.f32.mrb[0].mxu0
    %v1310 = vadd.f32 0.0, %v1309
    %v1311 = vpop.f32.mrb[0].mxu0
    %1312 = vmatprep.mubr.bf16.mxu0 0
    %1313 = vmatmul.mubr.bf16.gmra.mrb[0].mxu0 %v1121
    %v1314 = vpop.f32.mrb[0].mxu0
    %v1315 = vadd.f32 0.0, %v1314
    %v1316 = vpop.f32.mrb[0].mxu0
    %v1317 = vpop.f32.mrb[0].mxu0
    %v1318 = vadd.f32 0.0, %v1317
    %v1319 = vpop.f32.mrb[0].mxu0
    %1320 = vmatprep.mubr.bf16.mxu0 0
    %1321 = vmatmul.mubr.bf16.gmra.mrb[0].mxu0 %v1124
    %v1322 = vpop.f32.mrb[0].mxu0
    %v1323 = vadd.f32 0.0, %v1322
    %v1324 = vpop.f32.mrb[0].mxu0
    %v1325 = vpop.f32.mrb[0].mxu0
    %v1326 = vadd.f32 0.0, %v1325
    %v1327 = vpop.f32.mrb[0].mxu0
    %1328 = vmatprep.mubr.bf16.mxu0 0
    %1329 = vmatmul.mubr.bf16.gmra.mrb[0].mxu0 %v1127
    %v1330 = vpop.f32.mrb[0].mxu0
    %v1331 = vadd.f32 0.0, %v1330
    %v1332 = vpop.f32.mrb[0].mxu0
    %v1333 = vpop.f32.mrb[0].mxu0
    %v1334 = vadd.f32 0.0, %v1333
    %v1335 = vpop.f32.mrb[0].mxu0
    %1336 = vmatprep.mubr.bf16.mxu0 0
    %1337 = vmatmul.mubr.bf16.gmra.mrb[0].mxu0 %v1130
    %v1338 = vpop.f32.mrb[0].mxu0
    %v1339 = vadd.f32 0.0, %v1338
    %v1340 = vpop.f32.mrb[0].mxu0
    %v1341 = vpop.f32.mrb[0].mxu0
    %v1342 = vadd.f32 0.0, %v1341
    %v1343 = vpop.f32.mrb[0].mxu0
    %1344 = vmatprep.mubr.bf16.mxu0 0
    %1345 = vmatmul.mubr.bf16.gmra.mrb[0].mxu0 %v1133
    %v1346 = vpop.f32.mrb[0].mxu0
    %v1347 = vadd.f32 0.0, %v1346
    %v1348 = vpop.f32.mrb[0].mxu0
    %v1349 = vpop.f32.mrb[0].mxu0
    %v1350 = vadd.f32 0.0, %v1349
    %v1351 = vpop.f32.mrb[0].mxu0
    %1352 = vmatprep.mubr.bf16.mxu0 0
    %1353 = vmatmul.mubr.bf16.gmra.mrb[0].mxu0 %v1136
    %v1354 = vpop.f32.mrb[0].mxu0
    %v1355 = vadd.f32 0.0, %v1354
    %v1356 = vpop.f32.mrb[0].mxu0
    %v1357 = vpop.f32.mrb[0].mxu0
    %v1358 = vadd.f32 0.0, %v1357
    %v1359 = vpop.f32.mrb[0].mxu0
    %1360 = vmatprep.mubr.bf16.mxu0 0
    %1361 = vmatmul.mubr.bf16.gmra.mrb[0].mxu0 %v1139
    %v1362 = vpop.f32.mrb[0].mxu0
    %v1363 = vadd.f32 0.0, %v1362
    %v1364 = vpop.f32.mrb[0].mxu0
    %v1365 = vpop.f32.mrb[0].mxu0
    %v1366 = vadd.f32 0.0, %v1365
    %v1367 = vpop.f32.mrb[0].mxu0
    %1368 = vmatprep.mubr.bf16.mxu0 0
    %1369 = vmatmul.mubr.bf16.gmra.mrb[0].mxu0 %v1142
    %v1370 = vpop.f32.mrb[0].mxu0
    %v1371 = vadd.f32 0.0, %v1370
    %v1372 = vpop.f32.mrb[0].mxu0
    %v1373 = vpop.f32.mrb[0].mxu0
    %v1374 = vpop.f32.mrb[0].mxu0
    %1375 = vdwg.mxu0
    %vm1376 = vcmask 261120
    %1377 = vst.msk [vmem:[#allocation3] sm:$0xff] %vm1376, %v1179
    %1378 = vst.msk [vmem:[#allocation3 + $0x8] sm:$0xff] %vm1376, %v1182
    %1379 = vst.msk [vmem:[#allocation3 + $0x10] sm:$0xff] %vm1376, %v1187
    %1380 = vst.msk [vmem:[#allocation3 + $0x18] sm:$0xff] %vm1376, %v1190
    %1381 = vst.msk [vmem:[#allocation3 + $0x20] sm:$0xff] %vm1376, %v1195
    %1382 = vst.msk [vmem:[#allocation3 + $0x28] sm:$0xff] %vm1376, %v1198
    %1383 = vst.msk [vmem:[#allocation3 + $0x30] sm:$0xff] %vm1376, %v1203
    %1384 = vst.msk [vmem:[#allocation3 + $0x38] sm:$0xff] %vm1376, %v1206
    %1385 = vst.msk [vmem:[#allocation3 + $0x40] sm:$0xff] %vm1376, %v1211
    %1386 = vst.msk [vmem:[#allocation3 + $0x48] sm:$0xff] %vm1376, %v1214
    %1387 = vst.msk [vmem:[#allocation3 + $0x50] sm:$0xff] %vm1376, %v1219
    %1388 = vst.msk [vmem:[#allocation3 + $0x58] sm:$0xff] %vm1376, %v1222
    %1389 = vst.msk [vmem:[#allocation3 + $0x60] sm:$0xff] %vm1376, %v1227
    %1390 = vst.msk [vmem:[#allocation3 + $0x68] sm:$0xff] %vm1376, %v1230
    %1391 = vst.msk [vmem:[#allocation3 + $0x70] sm:$0xff] %vm1376, %v1235
    %1392 = vst.msk [vmem:[#allocation3 + $0x78] sm:$0xff] %vm1376, %v1238
    %1393 = vst.msk [vmem:[#allocation3 + $0x80] sm:$0xff] %vm1376, %v1243
    %1394 = vst.msk [vmem:[#allocation3 + $0x88] sm:$0xff] %vm1376, %v1246
    %1395 = vst.msk [vmem:[#allocation3 + $0x90] sm:$0xff] %vm1376, %v1251
    %1396 = vst.msk [vmem:[#allocation3 + $0x98] sm:$0xff] %vm1376, %v1254
    %1397 = vst.msk [vmem:[#allocation3 + $0xa0] sm:$0xff] %vm1376, %v1259
    %1398 = vst.msk [vmem:[#allocation3 + $0xa8] sm:$0xff] %vm1376, %v1262
    %1399 = vst.msk [vmem:[#allocation3 + $0xb0] sm:$0xff] %vm1376, %v1267
    %1400 = vst.msk [vmem:[#allocation3 + $0xb8] sm:$0xff] %vm1376, %v1270
    %1401 = vst.msk [vmem:[#allocation3 + $0xc0] sm:$0xff] %vm1376, %v1275
    %1402 = vst.msk [vmem:[#allocation3 + $0xc8] sm:$0xff] %vm1376, %v1278
    %1403 = vst.msk [vmem:[#allocation3 + $0xd0] sm:$0xff] %vm1376, %v1283
    %1404 = vst.msk [vmem:[#allocation3 + $0xd8] sm:$0xff] %vm1376, %v1286
    %1405 = vst.msk [vmem:[#allocation3 + $0xe0] sm:$0xff] %vm1376, %v1291
    %1406 = vst.msk [vmem:[#allocation3 + $0xe8] sm:$0xff] %vm1376, %v1294
    %1407 = vst.msk [vmem:[#allocation3 + $0xf0] sm:$0xff] %vm1376, %v1299
    %1408 = vst.msk [vmem:[#allocation3 + $0xf8] sm:$0xff] %vm1376, %v1302
    %1409 = vst.msk [vmem:[#allocation3 + $0x100] sm:$0xff] %vm1376, %v1307
    %1410 = vst.msk [vmem:[#allocation3 + $0x108] sm:$0xff] %vm1376, %v1310
    %1411 = vst.msk [vmem:[#allocation3 + $0x110] sm:$0xff] %vm1376, %v1315
    %1412 = vst.msk [vmem:[#allocation3 + $0x118] sm:$0xff] %vm1376, %v1318
    %1413 = vst.msk [vmem:[#allocation3 + $0x120] sm:$0xff] %vm1376, %v1323
    %1414 = vst.msk [vmem:[#allocation3 + $0x128] sm:$0xff] %vm1376, %v1326
    %1415 = vst.msk [vmem:[#allocation3 + $0x130] sm:$0xff] %vm1376, %v1331
    %1416 = vst.msk [vmem:[#allocation3 + $0x138] sm:$0xff] %vm1376, %v1334
    %1417 = vst.msk [vmem:[#allocation3 + $0x140] sm:$0xff] %vm1376, %v1339
    %1418 = vst.msk [vmem:[#allocation3 + $0x148] sm:$0xff] %vm1376, %v1342
    %1419 = vst.msk [vmem:[#allocation3 + $0x150] sm:$0xff] %vm1376, %v1347
    %1420 = vst.msk [vmem:[#allocation3 + $0x158] sm:$0xff] %vm1376, %v1350
    %1421 = vst.msk [vmem:[#allocation3 + $0x160] sm:$0xff] %vm1376, %v1355
    %1422 = vst.msk [vmem:[#allocation3 + $0x168] sm:$0xff] %vm1376, %v1358
    %1423 = vst.msk [vmem:[#allocation3 + $0x170] sm:$0xff] %vm1376, %v1363
    %1424 = vst.msk [vmem:[#allocation3 + $0x178] sm:$0xff] %vm1376, %v1366
    %1425 = vst.msk [vmem:[#allocation3 + $0x180] sm:$0xff] %vm1376, %v1371
    %v1426 = vld [vmem:[#allocation3] sm:$0xff]
    %v1427 = vld [vmem:[#allocation3 + $0x8] sm:$0xff]
    %v1428 = vld [vmem:[#allocation3 + $0x10] sm:$0xff]
    %v1429 = vld [vmem:[#allocation3 + $0x18] sm:$0xff]
    %v1430 = vld [vmem:[#allocation3 + $0x20] sm:$0xff]
    %v1431 = vld [vmem:[#allocation3 + $0x28] sm:$0xff]
    %v1432 = vld [vmem:[#allocation3 + $0x30] sm:$0xff]
    %v1433 = vld [vmem:[#allocation3 + $0x38] sm:$0xff]
    %v1434 = vld [vmem:[#allocation3 + $0x40] sm:$0xff]
    %v1435 = vld [vmem:[#allocation3 + $0x48] sm:$0xff]
    %v1436 = vld [vmem:[#allocation3 + $0x50] sm:$0xff]
    %v1437 = vld [vmem:[#allocation3 + $0x58] sm:$0xff]
    %v1438 = vld [vmem:[#allocation3 + $0x60] sm:$0xff]
    %v1439 = vld [vmem:[#allocation3 + $0x68] sm:$0xff]
    %v1440 = vld [vmem:[#allocation3 + $0x70] sm:$0xff]
    %v1441 = vld [vmem:[#allocation3 + $0x78] sm:$0xff]
    %v1442 = vld [vmem:[#allocation3 + $0x80] sm:$0xff]
    %v1443 = vld [vmem:[#allocation3 + $0x88] sm:$0xff]
    %v1444 = vld [vmem:[#allocation3 + $0x90] sm:$0xff]
    %v1445 = vld [vmem:[#allocation3 + $0x98] sm:$0xff]
    %v1446 = vld [vmem:[#allocation3 + $0xa0] sm:$0xff]
    %v1447 = vld [vmem:[#allocation3 + $0xa8] sm:$0xff]
    %v1448 = vld [vmem:[#allocation3 + $0xb0] sm:$0xff]
    %v1449 = vld [vmem:[#allocation3 + $0xb8] sm:$0xff]
    %v1450 = vld [vmem:[#allocation3 + $0xc0] sm:$0xff]
    %v1451 = vld [vmem:[#allocation3 + $0xc8] sm:$0xff]
    %v1452 = vld [vmem:[#allocation3 + $0xd0] sm:$0xff]
    %v1453 = vld [vmem:[#allocation3 + $0xd8] sm:$0xff]
    %v1454 = vld [vmem:[#allocation3 + $0xe0] sm:$0xff]
    %v1455 = vld [vmem:[#allocation3 + $0xe8] sm:$0xff]
    %v1456 = vld [vmem:[#allocation3 + $0xf0] sm:$0xff]
    %v1457 = vld [vmem:[#allocation3 + $0xf8] sm:$0xff]
    %v1458 = vld [vmem:[#allocation3 + $0x100] sm:$0xff]
    %v1459 = vld [vmem:[#allocation3 + $0x108] sm:$0xff]
    %v1460 = vld [vmem:[#allocation3 + $0x110] sm:$0xff]
    %v1461 = vld [vmem:[#allocation3 + $0x118] sm:$0xff]
    %v1462 = vld [vmem:[#allocation3 + $0x120] sm:$0xff]
    %v1463 = vld [vmem:[#allocation3 + $0x128] sm:$0xff]
    %v1464 = vld [vmem:[#allocation3 + $0x130] sm:$0xff]
    %v1465 = vld [vmem:[#allocation3 + $0x138] sm:$0xff]
    %v1466 = vld [vmem:[#allocation3 + $0x140] sm:$0xff]
    %v1467 = vld [vmem:[#allocation3 + $0x148] sm:$0xff]
    %v1468 = vld [vmem:[#allocation3 + $0x150] sm:$0xff]
    %v1469 = vld [vmem:[#allocation3 + $0x158] sm:$0xff]
    %v1470 = vld [vmem:[#allocation3 + $0x160] sm:$0xff]
    %v1471 = vld [vmem:[#allocation3 + $0x168] sm:$0xff]
    %v1472 = vld [vmem:[#allocation3 + $0x170] sm:$0xff]
    %v1473 = vld [vmem:[#allocation3 + $0x178] sm:$0xff]
    %v1474 = vld [vmem:[#allocation3 + $0x180] sm:$0xff]
    %v1475 = vld [vmem:[#allocation2] sm:$0xf]
    %v1476 = vld [vmem:[#allocation2 + $0x4] sm:$0xf]
    %v1477 = vld [vmem:[#allocation2 + $0x8] sm:$0xf]
    %v1478 = vld [vmem:[#allocation2 + $0xc] sm:$0xf]
    %v1479 = vld [vmem:[#allocation2 + $0x10] sm:$0xf]
    %v1480 = vld [vmem:[#allocation2 + $0x14] sm:$0xf]
    %v1481 = vld [vmem:[#allocation2 + $0x18] sm:$0xf]
    %v1482 = vld [vmem:[#allocation2 + $0x1c] sm:$0xf]
    %v1483 = vld [vmem:[#allocation2 + $0x20] sm:$0xf]
    %v1484 = vld [vmem:[#allocation2 + $0x24] sm:$0xf]
    %v1485 = vld [vmem:[#allocation2 + $0x28] sm:$0xf]
    %v1486 = vld [vmem:[#allocation2 + $0x2c] sm:$0xf]
    %v1487 = vld [vmem:[#allocation2 + $0x30] sm:$0xf]
    %v1488 = vld [vmem:[#allocation2 + $0x34] sm:$0xf]
    %v1489 = vld [vmem:[#allocation2 + $0x38] sm:$0xf]
    %v1490 = vld [vmem:[#allocation2 + $0x3c] sm:$0xf]
    %v1491 = vld [vmem:[#allocation2 + $0x40] sm:$0xf]
    %v1492 = vld [vmem:[#allocation2 + $0x44] sm:$0xf]
    %v1493 = vld [vmem:[#allocation2 + $0x48] sm:$0xf]
    %v1494 = vld [vmem:[#allocation2 + $0x4c] sm:$0xf]
    %v1495 = vld [vmem:[#allocation2 + $0x50] sm:$0xf]
    %v1496 = vld [vmem:[#allocation2 + $0x54] sm:$0xf]
    %v1497 = vld [vmem:[#allocation2 + $0x58] sm:$0xf]
    %v1498 = vld [vmem:[#allocation2 + $0x5c] sm:$0xf]
    %v1499 = vld [vmem:[#allocation2 + $0x60] sm:$0xf]
    %v1500 = vld [vmem:[#allocation2 + $0x64] sm:$0xf]
    %v1501 = vld [vmem:[#allocation2 + $0x68] sm:$0xf]
    %v1502 = vld [vmem:[#allocation2 + $0x6c] sm:$0xf]
    %v1503 = vld [vmem:[#allocation2 + $0x70] sm:$0xf]
    %v1504 = vld [vmem:[#allocation2 + $0x74] sm:$0xf]
    %v1505 = vld [vmem:[#allocation2 + $0x78] sm:$0xf]
    %v1506 = vld [vmem:[#allocation2 + $0x7c] sm:$0xf]
    %v1507 = vld [vmem:[#allocation2 + $0x80] sm:$0xf]
    %v1508 = vld [vmem:[#allocation2 + $0x84] sm:$0xf]
    %v1509 = vld [vmem:[#allocation2 + $0x88] sm:$0xf]
    %v1510 = vld [vmem:[#allocation2 + $0x8c] sm:$0xf]
    %v1511 = vld [vmem:[#allocation2 + $0x90] sm:$0xf]
    %v1512 = vld [vmem:[#allocation2 + $0x94] sm:$0xf]
    %v1513 = vld [vmem:[#allocation2 + $0x98] sm:$0xf]
    %v1514 = vld [vmem:[#allocation2 + $0x9c] sm:$0xf]
    %v1515 = vld [vmem:[#allocation2 + $0xa0] sm:$0xf]
    %v1516 = vld [vmem:[#allocation2 + $0xa4] sm:$0xf]
    %v1517 = vld [vmem:[#allocation2 + $0xa8] sm:$0xf]
    %v1518 = vld [vmem:[#allocation2 + $0xac] sm:$0xf]
    %v1519 = vld [vmem:[#allocation2 + $0xb0] sm:$0xf]
    %v1520 = vld [vmem:[#allocation2 + $0xb4] sm:$0xf]
    %v1521 = vld [vmem:[#allocation2 + $0xb8] sm:$0xf]
    %v1522 = vld [vmem:[#allocation2 + $0xbc] sm:$0xf]
    %v1523 = vld [vmem:[#allocation2 + $0xc0] sm:$0xf]
    %v1524 = vld [vmem:[#allocation2 + $0xc4] sm:$0x1]
    %v1525 = vld [vmem:[%s3 + $0x8] sm:$0xf]
    %v1526 = vld [vmem:[%s3 + $0xc] sm:$0xf]
    %v1577 = vunpack.c.l.b16 %v1475
    %v1578 = vunpack.c.l.b16 %v1476
    %v1579 = vunpack.c.l.b16 %v1477
    %v1580 = vunpack.c.l.b16 %v1478
    %v1581 = vunpack.c.l.b16 %v1479
    %v1582 = vunpack.c.l.b16 %v1480
    %v1583 = vunpack.c.l.b16 %v1481
    %v1584 = vunpack.c.l.b16 %v1482
    %v1585 = vunpack.c.l.b16 %v1483
    %v1586 = vunpack.c.l.b16 %v1484
    %v1587 = vunpack.c.l.b16 %v1485
    %v1588 = vunpack.c.l.b16 %v1486
    %v1589 = vunpack.c.l.b16 %v1487
    %v1590 = vunpack.c.l.b16 %v1488
    %v1591 = vunpack.c.l.b16 %v1489
    %v1592 = vunpack.c.l.b16 %v1490
    %v1593 = vunpack.c.l.b16 %v1491
    %v1594 = vunpack.c.l.b16 %v1492
    %v1595 = vunpack.c.l.b16 %v1493
    %v1596 = vunpack.c.l.b16 %v1494
    %v1597 = vunpack.c.l.b16 %v1495
    %v1598 = vunpack.c.l.b16 %v1496
    %v1599 = vunpack.c.l.b16 %v1497
    %v1600 = vunpack.c.l.b16 %v1498
    %v1601 = vunpack.c.l.b16 %v1499
    %v1602 = vunpack.c.l.b16 %v1500
    %v1603 = vunpack.c.l.b16 %v1501
    %v1604 = vunpack.c.l.b16 %v1502
    %v1605 = vunpack.c.l.b16 %v1503
    %v1606 = vunpack.c.l.b16 %v1504
    %v1607 = vunpack.c.l.b16 %v1505
    %v1608 = vunpack.c.l.b16 %v1506
    %v1609 = vunpack.c.l.b16 %v1507
    %v1610 = vunpack.c.l.b16 %v1508
    %v1611 = vunpack.c.l.b16 %v1509
    %v1612 = vunpack.c.l.b16 %v1510
    %v1613 = vunpack.c.l.b16 %v1511
    %v1614 = vunpack.c.l.b16 %v1512
    %v1615 = vunpack.c.l.b16 %v1513
    %v1616 = vunpack.c.l.b16 %v1514
    %v1617 = vunpack.c.l.b16 %v1515
    %v1618 = vunpack.c.l.b16 %v1516
    %v1619 = vunpack.c.l.b16 %v1517
    %v1620 = vunpack.c.l.b16 %v1518
    %v1621 = vunpack.c.l.b16 %v1519
    %v1622 = vunpack.c.l.b16 %v1520
    %v1623 = vunpack.c.l.b16 %v1521
    %v1624 = vunpack.c.l.b16 %v1522
    %v1625 = vunpack.c.l.b16 %v1523
    %v1626 = vunpack.c.l.b16 %v1524
    %v1627 = vpack.c.b16 %v1578, %v1577
    %v1628 = vpack.c.b16 %v1580, %v1579
    %v1629 = vpack.c.b16 %v1582, %v1581
    %v1630 = vpack.c.b16 %v1584, %v1583
    %v1631 = vpack.c.b16 %v1586, %v1585
    %v1632 = vpack.c.b16 %v1588, %v1587
    %v1633 = vpack.c.b16 %v1590, %v1589
    %v1634 = vpack.c.b16 %v1592, %v1591
    %v1635 = vpack.c.b16 %v1594, %v1593
    %v1636 = vpack.c.b16 %v1596, %v1595
    %v1637 = vpack.c.b16 %v1598, %v1597
    %v1638 = vpack.c.b16 %v1600, %v1599
    %v1639 = vpack.c.b16 %v1602, %v1601
    %v1640 = vpack.c.b16 %v1604, %v1603
    %v1641 = vpack.c.b16 %v1606, %v1605
    %v1642 = vpack.c.b16 %v1608, %v1607
    %v1643 = vpack.c.b16 %v1610, %v1609
    %v1644 = vpack.c.b16 %v1612, %v1611
    %v1645 = vpack.c.b16 %v1614, %v1613
    %v1646 = vpack.c.b16 %v1616, %v1615
    %v1647 = vpack.c.b16 %v1618, %v1617
    %v1648 = vpack.c.b16 %v1620, %v1619
    %v1649 = vpack.c.b16 %v1622, %v1621
    %v1650 = vpack.c.b16 %v1624, %v1623
    %v1651 = vpack.c.b16 %v1626, %v1625
    %vm1652 = vsmask.f32 7424
    %v1654 = vshrl.u32 %v1627, 16
    %v1656 = vshll.u32 %v1627, 16
    %v1658 = vrot.slane %v1656, 1
    %v1659 = vor.u32 %v1654, %v1658
    %v1661 = vshll.u32 %v1628, 16
    %v1663 = vrot.slane %v1661, 1
    %v1664 = vsel %vm1652, %v1659, %v1663
    %v1665 = vshrl.u32 %v1628, 16
    %v1667 = vor.u32 %v1665, %v1663
    %v1669 = vshll.u32 %v1629, 16
    %v1671 = vrot.slane %v1669, 1
    %v1672 = vsel %vm1652, %v1667, %v1671
    %v1673 = vshrl.u32 %v1629, 16
    %v1675 = vor.u32 %v1673, %v1671
    %v1677 = vshll.u32 %v1630, 16
    %v1679 = vrot.slane %v1677, 1
    %v1680 = vsel %vm1652, %v1675, %v1679
    %v1681 = vshrl.u32 %v1630, 16
    %v1683 = vor.u32 %v1681, %v1679
    %v1685 = vshll.u32 %v1631, 16
    %v1687 = vrot.slane %v1685, 1
    %v1688 = vsel %vm1652, %v1683, %v1687
    %v1689 = vshrl.u32 %v1631, 16
    %v1691 = vor.u32 %v1689, %v1687
    %v1693 = vshll.u32 %v1632, 16
    %v1695 = vrot.slane %v1693, 1
    %v1696 = vsel %vm1652, %v1691, %v1695
    %v1697 = vshrl.u32 %v1632, 16
    %v1699 = vor.u32 %v1697, %v1695
    %v1701 = vshll.u32 %v1633, 16
    %v1703 = vrot.slane %v1701, 1
    %v1704 = vsel %vm1652, %v1699, %v1703
    %v1705 = vshrl.u32 %v1633, 16
    %v1707 = vor.u32 %v1705, %v1703
    %v1709 = vshll.u32 %v1634, 16
    %v1711 = vrot.slane %v1709, 1
    %v1712 = vsel %vm1652, %v1707, %v1711
    %v1713 = vshrl.u32 %v1634, 16
    %v1715 = vor.u32 %v1713, %v1711
    %v1717 = vshll.u32 %v1635, 16
    %v1719 = vrot.slane %v1717, 1
    %v1720 = vsel %vm1652, %v1715, %v1719
    %v1721 = vshrl.u32 %v1635, 16
    %v1723 = vor.u32 %v1721, %v1719
    %v1725 = vshll.u32 %v1636, 16
    %v1727 = vrot.slane %v1725, 1
    %v1728 = vsel %vm1652, %v1723, %v1727
    %v1729 = vshrl.u32 %v1636, 16
    %v1731 = vor.u32 %v1729, %v1727
    %v1733 = vshll.u32 %v1637, 16
    %v1735 = vrot.slane %v1733, 1
    %v1736 = vsel %vm1652, %v1731, %v1735
    %v1737 = vshrl.u32 %v1637, 16
    %v1739 = vor.u32 %v1737, %v1735
    %v1741 = vshll.u32 %v1638, 16
    %v1743 = vrot.slane %v1741, 1
    %v1744 = vsel %vm1652, %v1739, %v1743
    %v1745 = vshrl.u32 %v1638, 16
    %v1747 = vor.u32 %v1745, %v1743
    %v1749 = vshll.u32 %v1639, 16
    %v1751 = vrot.slane %v1749, 1
    %v1752 = vsel %vm1652, %v1747, %v1751
    %v1753 = vshrl.u32 %v1639, 16
    %v1755 = vor.u32 %v1753, %v1751
    %v1757 = vshll.u32 %v1640, 16
    %v1759 = vrot.slane %v1757, 1
    %v1760 = vsel %vm1652, %v1755, %v1759
    %v1761 = vshrl.u32 %v1640, 16
    %v1763 = vor.u32 %v1761, %v1759
    %v1765 = vshll.u32 %v1641, 16
    %v1767 = vrot.slane %v1765, 1
    %v1768 = vsel %vm1652, %v1763, %v1767
    %v1769 = vshrl.u32 %v1641, 16
    %v1771 = vor.u32 %v1769, %v1767
    %v1773 = vshll.u32 %v1642, 16
    %v1775 = vrot.slane %v1773, 1
    %v1776 = vsel %vm1652, %v1771, %v1775
    %v1777 = vshrl.u32 %v1642, 16
    %v1779 = vor.u32 %v1777, %v1775
    %v1781 = vshll.u32 %v1643, 16
    %v1783 = vrot.slane %v1781, 1
    %v1784 = vsel %vm1652, %v1779, %v1783
    %v1785 = vshrl.u32 %v1643, 16
    %v1787 = vor.u32 %v1785, %v1783
    %v1789 = vshll.u32 %v1644, 16
    %v1791 = vrot.slane %v1789, 1
    %v1792 = vsel %vm1652, %v1787, %v1791
    %v1793 = vshrl.u32 %v1644, 16
    %v1795 = vor.u32 %v1793, %v1791
    %v1797 = vshll.u32 %v1645, 16
    %v1799 = vrot.slane %v1797, 1
    %v1800 = vsel %vm1652, %v1795, %v1799
    %v1801 = vshrl.u32 %v1645, 16
    %v1803 = vor.u32 %v1801, %v1799
    %v1805 = vshll.u32 %v1646, 16
    %v1807 = vrot.slane %v1805, 1
    %v1808 = vsel %vm1652, %v1803, %v1807
    %v1809 = vshrl.u32 %v1646, 16
    %v1811 = vor.u32 %v1809, %v1807
    %v1813 = vshll.u32 %v1647, 16
    %v1815 = vrot.slane %v1813, 1
    %v1816 = vsel %vm1652, %v1811, %v1815
    %v1817 = vshrl.u32 %v1647, 16
    %v1819 = vor.u32 %v1817, %v1815
    %v1821 = vshll.u32 %v1648, 16
    %v1823 = vrot.slane %v1821, 1
    %v1824 = vsel %vm1652, %v1819, %v1823
    %v1825 = vshrl.u32 %v1648, 16
    %v1827 = vor.u32 %v1825, %v1823
    %v1829 = vshll.u32 %v1649, 16
    %v1831 = vrot.slane %v1829, 1
    %v1832 = vsel %vm1652, %v1827, %v1831
    %v1833 = vshrl.u32 %v1649, 16
    %v1835 = vor.u32 %v1833, %v1831
    %v1837 = vshll.u32 %v1650, 16
    %v1839 = vrot.slane %v1837, 1
    %v1840 = vsel %vm1652, %v1835, %v1839
    %v1841 = vshrl.u32 %v1650, 16
    %v1843 = vor.u32 %v1841, %v1839
    %v1845 = vshll.u32 %v1651, 16
    %v1847 = vrot.slane %v1845, 1
    %v1848 = vsel %vm1652, %v1843, %v1847
    %v1849 = vshrl.u32 %v1651, 16
    %v1851 = vor.u32 %v1849, %v1847
    %v1854 = vunpack.c.l.b16 %v1525
    %v1855 = vunpack.c.l.b16 %v1526
    %v1856 = vpack.c.b16 %v1855, %v1854
    %v1859 = vsel %vm232, %v1664, 0
    %v1862 = vsel %vm232, %v1672, 0
    %v1865 = vsel %vm232, %v1680, 0
    %v1868 = vsel %vm232, %v1688, 0
    %v1871 = vsel %vm232, %v1696, 0
    %v1874 = vsel %vm232, %v1704, 0
    %v1877 = vsel %vm232, %v1712, 0
    %v1880 = vsel %vm232, %v1720, 0
    %v1883 = vsel %vm232, %v1728, 0
    %v1886 = vsel %vm232, %v1736, 0
    %v1889 = vsel %vm232, %v1744, 0
    %v1892 = vsel %vm232, %v1752, 0
    %v1895 = vsel %vm232, %v1760, 0
    %v1898 = vsel %vm232, %v1768, 0
    %v1901 = vsel %vm232, %v1776, 0
    %v1904 = vsel %vm232, %v1784, 0
    %v1907 = vsel %vm232, %v1792, 0
    %v1910 = vsel %vm232, %v1800, 0
    %v1913 = vsel %vm232, %v1808, 0
    %v1916 = vsel %vm232, %v1816, 0
    %v1919 = vsel %vm232, %v1824, 0
    %v1922 = vsel %vm232, %v1832, 0
    %v1925 = vsel %vm232, %v1840, 0
    %v1928 = vsel %vm232, %v1848, 0
    %v1931 = vsel %vm232, %v1851, 0
    %1933 = vmatprep.subr.bf16.mxu0 0
    %1934 = vmatpush1.bf16.msra.mxu0 %v1856
    %1935 = vmatprep.subr.bf16.mxu0 0
    %1936 = vmatpush1.bf16.msra.mxu0 0
    %1937 = vmatprep.subr.bf16.mxu0 0
    %1938 = vmatpush1.bf16.msra.mxu0 0
    %1939 = vmatprep.subr.bf16.mxu0 0
    %1940 = vmatpush1.bf16.msra.mxu0 0
    %1941 = vmatprep.subr.bf16.mxu0 0
    %1942 = vmatpush1.bf16.msra.mxu0 0
    %1943 = vmatprep.subr.bf16.mxu0 0
    %1944 = vmatpush1.bf16.msra.mxu0 0
    %1945 = vmatprep.subr.bf16.mxu0 0
    %1946 = vmatpush1.bf16.msra.mxu0 0
    %1947 = vmatprep.subr.bf16.mxu0 0
    %1948 = vmatpush1.bf16.msra.mxu0 0
    %1949 = vmatprep.subr.bf16.mxu0 0
    %1950 = vmatpush1.bf16.msra.mxu0 0
    %1951 = vmatprep.subr.bf16.mxu0 0
    %1952 = vmatpush1.bf16.msra.mxu0 0
    %1953 = vmatprep.subr.bf16.mxu0 0
    %1954 = vmatpush1.bf16.msra.mxu0 0
    %1955 = vmatprep.subr.bf16.mxu0 0
    %1956 = vmatpush1.bf16.msra.mxu0 0
    %1957 = vmatprep.subr.bf16.mxu0 0
    %1958 = vmatpush1.bf16.msra.mxu0 0
    %1959 = vmatprep.subr.bf16.mxu0 0
    %1960 = vmatpush1.bf16.msra.mxu0 0
    %1961 = vmatprep.subr.bf16.mxu0 0
    %1962 = vmatpush1.bf16.msra.mxu0 0
    %1963 = vmatprep.subr.bf16.mxu0 0
    %1964 = vmatpush1.bf16.msra.mxu0 0
    %1965 = vmatprep.mubr.bf16.mxu0 0
    %1966 = vmatmul.mubr.bf16.gmra.mrb[0].mxu0 %v1859
    %v1967 = vpop.f32.mrb[0].mxu0
    %v1968 = vadd.f32 0.0, %v1967
    %v1969 = vpop.f32.mrb[0].mxu0
    %v1970 = vpop.f32.mrb[0].mxu0
    %v1971 = vadd.f32 0.0, %v1970
    %v1972 = vpop.f32.mrb[0].mxu0
    %1973 = vmatprep.mubr.bf16.mxu0 0
    %1974 = vmatmul.mubr.bf16.gmra.mrb[0].mxu0 %v1862
    %v1975 = vpop.f32.mrb[0].mxu0
    %v1976 = vadd.f32 0.0, %v1975
    %v1977 = vpop.f32.mrb[0].mxu0
    %v1978 = vpop.f32.mrb[0].mxu0
    %v1979 = vadd.f32 0.0, %v1978
    %v1980 = vpop.f32.mrb[0].mxu0
    %1981 = vmatprep.mubr.bf16.mxu0 0
    %1982 = vmatmul.mubr.bf16.gmra.mrb[0].mxu0 %v1865
    %v1983 = vpop.f32.mrb[0].mxu0
    %v1984 = vadd.f32 0.0, %v1983
    %v1985 = vpop.f32.mrb[0].mxu0
    %v1986 = vpop.f32.mrb[0].mxu0
    %v1987 = vadd.f32 0.0, %v1986
    %v1988 = vpop.f32.mrb[0].mxu0
    %1989 = vmatprep.mubr.bf16.mxu0 0
    %1990 = vmatmul.mubr.bf16.gmra.mrb[0].mxu0 %v1868
    %v1991 = vpop.f32.mrb[0].mxu0
    %v1992 = vadd.f32 0.0, %v1991
    %v1993 = vpop.f32.mrb[0].mxu0
    %v1994 = vpop.f32.mrb[0].mxu0
    %v1995 = vadd.f32 0.0, %v1994
    %v1996 = vpop.f32.mrb[0].mxu0
    %1997 = vmatprep.mubr.bf16.mxu0 0
    %1998 = vmatmul.mubr.bf16.gmra.mrb[0].mxu0 %v1871
    %v1999 = vpop.f32.mrb[0].mxu0
    %v2000 = vadd.f32 0.0, %v1999
    %v2001 = vpop.f32.mrb[0].mxu0
    %v2002 = vpop.f32.mrb[0].mxu0
    %v2003 = vadd.f32 0.0, %v2002
    %v2004 = vpop.f32.mrb[0].mxu0
    %2005 = vmatprep.mubr.bf16.mxu0 0
    %2006 = vmatmul.mubr.bf16.gmra.mrb[0].mxu0 %v1874
    %v2007 = vpop.f32.mrb[0].mxu0
    %v2008 = vadd.f32 0.0, %v2007
    %v2009 = vpop.f32.mrb[0].mxu0
    %v2010 = vpop.f32.mrb[0].mxu0
    %v2011 = vadd.f32 0.0, %v2010
    %v2012 = vpop.f32.mrb[0].mxu0
    %2013 = vmatprep.mubr.bf16.mxu0 0
    %2014 = vmatmul.mubr.bf16.gmra.mrb[0].mxu0 %v1877
    %v2015 = vpop.f32.mrb[0].mxu0
    %v2016 = vadd.f32 0.0, %v2015
    %v2017 = vpop.f32.mrb[0].mxu0
    %v2018 = vpop.f32.mrb[0].mxu0
    %v2019 = vadd.f32 0.0, %v2018
    %v2020 = vpop.f32.mrb[0].mxu0
    %2021 = vmatprep.mubr.bf16.mxu0 0
    %2022 = vmatmul.mubr.bf16.gmra.mrb[0].mxu0 %v1880
    %v2023 = vpop.f32.mrb[0].mxu0
    %v2024 = vadd.f32 0.0, %v2023
    %v2025 = vpop.f32.mrb[0].mxu0
    %v2026 = vpop.f32.mrb[0].mxu0
    %v2027 = vadd.f32 0.0, %v2026
    %v2028 = vpop.f32.mrb[0].mxu0
    %2029 = vmatprep.mubr.bf16.mxu0 0
    %2030 = vmatmul.mubr.bf16.gmra.mrb[0].mxu0 %v1883
    %v2031 = vpop.f32.mrb[0].mxu0
    %v2032 = vadd.f32 0.0, %v2031
    %v2033 = vpop.f32.mrb[0].mxu0
    %v2034 = vpop.f32.mrb[0].mxu0
    %v2035 = vadd.f32 0.0, %v2034
    %v2036 = vpop.f32.mrb[0].mxu0
    %2037 = vmatprep.mubr.bf16.mxu0 0
    %2038 = vmatmul.mubr.bf16.gmra.mrb[0].mxu0 %v1886
    %v2039 = vpop.f32.mrb[0].mxu0
    %v2040 = vadd.f32 0.0, %v2039
    %v2041 = vpop.f32.mrb[0].mxu0
    %v2042 = vpop.f32.mrb[0].mxu0
    %v2043 = vadd.f32 0.0, %v2042
    %v2044 = vpop.f32.mrb[0].mxu0
    %2045 = vmatprep.mubr.bf16.mxu0 0
    %2046 = vmatmul.mubr.bf16.gmra.mrb[0].mxu0 %v1889
    %v2047 = vpop.f32.mrb[0].mxu0
    %v2048 = vadd.f32 0.0, %v2047
    %v2049 = vpop.f32.mrb[0].mxu0
    %v2050 = vpop.f32.mrb[0].mxu0
    %v2051 = vadd.f32 0.0, %v2050
    %v2052 = vpop.f32.mrb[0].mxu0
    %2053 = vmatprep.mubr.bf16.mxu0 0
    %2054 = vmatmul.mubr.bf16.gmra.mrb[0].mxu0 %v1892
    %v2055 = vpop.f32.mrb[0].mxu0
    %v2056 = vadd.f32 0.0, %v2055
    %v2057 = vpop.f32.mrb[0].mxu0
    %v2058 = vpop.f32.mrb[0].mxu0
    %v2059 = vadd.f32 0.0, %v2058
    %v2060 = vpop.f32.mrb[0].mxu0
    %2061 = vmatprep.mubr.bf16.mxu0 0
    %2062 = vmatmul.mubr.bf16.gmra.mrb[0].mxu0 %v1895
    %v2063 = vpop.f32.mrb[0].mxu0
    %v2064 = vadd.f32 0.0, %v2063
    %v2065 = vpop.f32.mrb[0].mxu0
    %v2066 = vpop.f32.mrb[0].mxu0
    %v2067 = vadd.f32 0.0, %v2066
    %v2068 = vpop.f32.mrb[0].mxu0
    %2069 = vmatprep.mubr.bf16.mxu0 0
    %2070 = vmatmul.mubr.bf16.gmra.mrb[0].mxu0 %v1898
    %v2071 = vpop.f32.mrb[0].mxu0
    %v2072 = vadd.f32 0.0, %v2071
    %v2073 = vpop.f32.mrb[0].mxu0
    %v2074 = vpop.f32.mrb[0].mxu0
    %v2075 = vadd.f32 0.0, %v2074
    %v2076 = vpop.f32.mrb[0].mxu0
    %2077 = vmatprep.mubr.bf16.mxu0 0
    %2078 = vmatmul.mubr.bf16.gmra.mrb[0].mxu0 %v1901
    %v2079 = vpop.f32.mrb[0].mxu0
    %v2080 = vadd.f32 0.0, %v2079
    %v2081 = vpop.f32.mrb[0].mxu0
    %v2082 = vpop.f32.mrb[0].mxu0
    %v2083 = vadd.f32 0.0, %v2082
    %v2084 = vpop.f32.mrb[0].mxu0
    %2085 = vmatprep.mubr.bf16.mxu0 0
    %2086 = vmatmul.mubr.bf16.gmra.mrb[0].mxu0 %v1904
    %v2087 = vpop.f32.mrb[0].mxu0
    %v2088 = vadd.f32 0.0, %v2087
    %v2089 = vpop.f32.mrb[0].mxu0
    %v2090 = vpop.f32.mrb[0].mxu0
    %v2091 = vadd.f32 0.0, %v2090
    %v2092 = vpop.f32.mrb[0].mxu0
    %2093 = vmatprep.mubr.bf16.mxu0 0
    %2094 = vmatmul.mubr.bf16.gmra.mrb[0].mxu0 %v1907
    %v2095 = vpop.f32.mrb[0].mxu0
    %v2096 = vadd.f32 0.0, %v2095
    %v2097 = vpop.f32.mrb[0].mxu0
    %v2098 = vpop.f32.mrb[0].mxu0
    %v2099 = vadd.f32 0.0, %v2098
    %v2100 = vpop.f32.mrb[0].mxu0
    %2101 = vmatprep.mubr.bf16.mxu0 0
    %2102 = vmatmul.mubr.bf16.gmra.mrb[0].mxu0 %v1910
    %v2103 = vpop.f32.mrb[0].mxu0
    %v2104 = vadd.f32 0.0, %v2103
    %v2105 = vpop.f32.mrb[0].mxu0
    %v2106 = vpop.f32.mrb[0].mxu0
    %v2107 = vadd.f32 0.0, %v2106
    %v2108 = vpop.f32.mrb[0].mxu0
    %2109 = vmatprep.mubr.bf16.mxu0 0
    %2110 = vmatmul.mubr.bf16.gmra.mrb[0].mxu0 %v1913
    %v2111 = vpop.f32.mrb[0].mxu0
    %v2112 = vadd.f32 0.0, %v2111
    %v2113 = vpop.f32.mrb[0].mxu0
    %v2114 = vpop.f32.mrb[0].mxu0
    %v2115 = vadd.f32 0.0, %v2114
    %v2116 = vpop.f32.mrb[0].mxu0
    %2117 = vmatprep.mubr.bf16.mxu0 0
    %2118 = vmatmul.mubr.bf16.gmra.mrb[0].mxu0 %v1916
    %v2119 = vpop.f32.mrb[0].mxu0
    %v2120 = vadd.f32 0.0, %v2119
    %v2121 = vpop.f32.mrb[0].mxu0
    %v2122 = vpop.f32.mrb[0].mxu0
    %v2123 = vadd.f32 0.0, %v2122
    %v2124 = vpop.f32.mrb[0].mxu0
    %2125 = vmatprep.mubr.bf16.mxu0 0
    %2126 = vmatmul.mubr.bf16.gmra.mrb[0].mxu0 %v1919
    %v2127 = vpop.f32.mrb[0].mxu0
    %v2128 = vadd.f32 0.0, %v2127
    %v2129 = vpop.f32.mrb[0].mxu0
    %v2130 = vpop.f32.mrb[0].mxu0
    %v2131 = vadd.f32 0.0, %v2130
    %v2132 = vpop.f32.mrb[0].mxu0
    %2133 = vmatprep.mubr.bf16.mxu0 0
    %2134 = vmatmul.mubr.bf16.gmra.mrb[0].mxu0 %v1922
    %v2135 = vpop.f32.mrb[0].mxu0
    %v2136 = vadd.f32 0.0, %v2135
    %v2137 = vpop.f32.mrb[0].mxu0
    %v2138 = vpop.f32.mrb[0].mxu0
    %v2139 = vadd.f32 0.0, %v2138
    %v2140 = vpop.f32.mrb[0].mxu0
    %2141 = vmatprep.mubr.bf16.mxu0 0
    %2142 = vmatmul.mubr.bf16.gmra.mrb[0].mxu0 %v1925
    %v2143 = vpop.f32.mrb[0].mxu0
    %v2144 = vadd.f32 0.0, %v2143
    %v2145 = vpop.f32.mrb[0].mxu0
    %v2146 = vpop.f32.mrb[0].mxu0
    %v2147 = vadd.f32 0.0, %v2146
    %v2148 = vpop.f32.mrb[0].mxu0
    %2149 = vmatprep.mubr.bf16.mxu0 0
    %2150 = vmatmul.mubr.bf16.gmra.mrb[0].mxu0 %v1928
    %v2151 = vpop.f32.mrb[0].mxu0
    %v2152 = vadd.f32 0.0, %v2151
    %v2153 = vpop.f32.mrb[0].mxu0
    %v2154 = vpop.f32.mrb[0].mxu0
    %v2155 = vadd.f32 0.0, %v2154
    %v2156 = vpop.f32.mrb[0].mxu0
    %2157 = vmatprep.mubr.bf16.mxu0 0
    %2158 = vmatmul.mubr.bf16.gmra.mrb[0].mxu0 %v1931
    %v2159 = vpop.f32.mrb[0].mxu0
    %v2160 = vadd.f32 0.0, %v2159
    %v2161 = vpop.f32.mrb[0].mxu0
    %v2162 = vpop.f32.mrb[0].mxu0
    %v2163 = vpop.f32.mrb[0].mxu0
    %2164 = vdwg.mxu0
    %v2165 = vadd.f32 %v1426, %v1968
    %v2166 = vadd.f32 %v1427, %v1971
    %v2167 = vadd.f32 %v1428, %v1976
    %v2168 = vadd.f32 %v1429, %v1979
    %v2169 = vadd.f32 %v1430, %v1984
    %v2170 = vadd.f32 %v1431, %v1987
    %v2171 = vadd.f32 %v1432, %v1992
    %v2172 = vadd.f32 %v1433, %v1995
    %v2173 = vadd.f32 %v1434, %v2000
    %v2174 = vadd.f32 %v1435, %v2003
    %v2175 = vadd.f32 %v1436, %v2008
    %v2176 = vadd.f32 %v1437, %v2011
    %v2177 = vadd.f32 %v1438, %v2016
    %v2178 = vadd.f32 %v1439, %v2019
    %v2179 = vadd.f32 %v1440, %v2024
    %v2180 = vadd.f32 %v1441, %v2027
    %v2181 = vadd.f32 %v1442, %v2032
    %v2182 = vadd.f32 %v1443, %v2035
    %v2183 = vadd.f32 %v1444, %v2040
    %v2184 = vadd.f32 %v1445, %v2043
    %v2185 = vadd.f32 %v1446, %v2048
    %v2186 = vadd.f32 %v1447, %v2051
    %v2187 = vadd.f32 %v1448, %v2056
    %v2188 = vadd.f32 %v1449, %v2059
    %v2189 = vadd.f32 %v1450, %v2064
    %v2190 = vadd.f32 %v1451, %v2067
    %v2191 = vadd.f32 %v1452, %v2072
    %v2192 = vadd.f32 %v1453, %v2075
    %v2193 = vadd.f32 %v1454, %v2080
    %v2194 = vadd.f32 %v1455, %v2083
    %v2195 = vadd.f32 %v1456, %v2088
    %v2196 = vadd.f32 %v1457, %v2091
    %v2197 = vadd.f32 %v1458, %v2096
    %v2198 = vadd.f32 %v1459, %v2099
    %v2199 = vadd.f32 %v1460, %v2104
    %v2200 = vadd.f32 %v1461, %v2107
    %v2201 = vadd.f32 %v1462, %v2112
    %v2202 = vadd.f32 %v1463, %v2115
    %v2203 = vadd.f32 %v1464, %v2120
    %v2204 = vadd.f32 %v1465, %v2123
    %v2205 = vadd.f32 %v1466, %v2128
    %v2206 = vadd.f32 %v1467, %v2131
    %v2207 = vadd.f32 %v1468, %v2136
    %v2208 = vadd.f32 %v1469, %v2139
    %v2209 = vadd.f32 %v1470, %v2144
    %v2210 = vadd.f32 %v1471, %v2147
    %v2211 = vadd.f32 %v1472, %v2152
    %v2212 = vadd.f32 %v1473, %v2155
    %v2213 = vadd.f32 %v1474, %v2160
    %2214 = vst.msk [vmem:[#allocation3] sm:$0xff] %vm1376, %v2165
    %2215 = vst.msk [vmem:[#allocation3 + $0x8] sm:$0xff] %vm1376, %v2166
    %2216 = vst.msk [vmem:[#allocation3 + $0x10] sm:$0xff] %vm1376, %v2167
    %2217 = vst.msk [vmem:[#allocation3 + $0x18] sm:$0xff] %vm1376, %v2168
    %2218 = vst.msk [vmem:[#allocation3 + $0x20] sm:$0xff] %vm1376, %v2169
    %2219 = vst.msk [vmem:[#allocation3 + $0x28] sm:$0xff] %vm1376, %v2170
    %2220 = vst.msk [vmem:[#allocation3 + $0x30] sm:$0xff] %vm1376, %v2171
    %2221 = vst.msk [vmem:[#allocation3 + $0x38] sm:$0xff] %vm1376, %v2172
    %2222 = vst.msk [vmem:[#allocation3 + $0x40] sm:$0xff] %vm1376, %v2173
    %2223 = vst.msk [vmem:[#allocation3 + $0x48] sm:$0xff] %vm1376, %v2174
    %2224 = vst.msk [vmem:[#allocation3 + $0x50] sm:$0xff] %vm1376, %v2175
    %2225 = vst.msk [vmem:[#allocation3 + $0x58] sm:$0xff] %vm1376, %v2176
    %2226 = vst.msk [vmem:[#allocation3 + $0x60] sm:$0xff] %vm1376, %v2177
    %2227 = vst.msk [vmem:[#allocation3 + $0x68] sm:$0xff] %vm1376, %v2178
    %2228 = vst.msk [vmem:[#allocation3 + $0x70] sm:$0xff] %vm1376, %v2179
    %2229 = vst.msk [vmem:[#allocation3 + $0x78] sm:$0xff] %vm1376, %v2180
    %2230 = vst.msk [vmem:[#allocation3 + $0x80] sm:$0xff] %vm1376, %v2181
    %2231 = vst.msk [vmem:[#allocation3 + $0x88] sm:$0xff] %vm1376, %v2182
    %2232 = vst.msk [vmem:[#allocation3 + $0x90] sm:$0xff] %vm1376, %v2183
    %2233 = vst.msk [vmem:[#allocation3 + $0x98] sm:$0xff] %vm1376, %v2184
    %2234 = vst.msk [vmem:[#allocation3 + $0xa0] sm:$0xff] %vm1376, %v2185
    %2235 = vst.msk [vmem:[#allocation3 + $0xa8] sm:$0xff] %vm1376, %v2186
    %2236 = vst.msk [vmem:[#allocation3 + $0xb0] sm:$0xff] %vm1376, %v2187
    %2237 = vst.msk [vmem:[#allocation3 + $0xb8] sm:$0xff] %vm1376, %v2188
    %2238 = vst.msk [vmem:[#allocation3 + $0xc0] sm:$0xff] %vm1376, %v2189
    %2239 = vst.msk [vmem:[#allocation3 + $0xc8] sm:$0xff] %vm1376, %v2190
    %2240 = vst.msk [vmem:[#allocation3 + $0xd0] sm:$0xff] %vm1376, %v2191
    %2241 = vst.msk [vmem:[#allocation3 + $0xd8] sm:$0xff] %vm1376, %v2192
    %2242 = vst.msk [vmem:[#allocation3 + $0xe0] sm:$0xff] %vm1376, %v2193
    %2243 = vst.msk [vmem:[#allocation3 + $0xe8] sm:$0xff] %vm1376, %v2194
    %2244 = vst.msk [vmem:[#allocation3 + $0xf0] sm:$0xff] %vm1376, %v2195
    %2245 = vst.msk [vmem:[#allocation3 + $0xf8] sm:$0xff] %vm1376, %v2196
    %2246 = vst.msk [vmem:[#allocation3 + $0x100] sm:$0xff] %vm1376, %v2197
    %2247 = vst.msk [vmem:[#allocation3 + $0x108] sm:$0xff] %vm1376, %v2198
    %2248 = vst.msk [vmem:[#allocation3 + $0x110] sm:$0xff] %vm1376, %v2199
    %2249 = vst.msk [vmem:[#allocation3 + $0x118] sm:$0xff] %vm1376, %v2200
    %2250 = vst.msk [vmem:[#allocation3 + $0x120] sm:$0xff] %vm1376, %v2201
    %2251 = vst.msk [vmem:[#allocation3 + $0x128] sm:$0xff] %vm1376, %v2202
    %2252 = vst.msk [vmem:[#allocation3 + $0x130] sm:$0xff] %vm1376, %v2203
    %2253 = vst.msk [vmem:[#allocation3 + $0x138] sm:$0xff] %vm1376, %v2204
    %2254 = vst.msk [vmem:[#allocation3 + $0x140] sm:$0xff] %vm1376, %v2205
    %2255 = vst.msk [vmem:[#allocation3 + $0x148] sm:$0xff] %vm1376, %v2206
    %2256 = vst.msk [vmem:[#allocation3 + $0x150] sm:$0xff] %vm1376, %v2207
    %2257 = vst.msk [vmem:[#allocation3 + $0x158] sm:$0xff] %vm1376, %v2208
    %2258 = vst.msk [vmem:[#allocation3 + $0x160] sm:$0xff] %vm1376, %v2209
    %2259 = vst.msk [vmem:[#allocation3 + $0x168] sm:$0xff] %vm1376, %v2210
    %2260 = vst.msk [vmem:[#allocation3 + $0x170] sm:$0xff] %vm1376, %v2211
    %2261 = vst.msk [vmem:[#allocation3 + $0x178] sm:$0xff] %vm1376, %v2212
    %2262 = vst.msk [vmem:[#allocation3 + $0x180] sm:$0xff] %vm1376, %v2213
    %v2263 = vld [vmem:[#allocation3] sm:$0xff]
    %v2264 = vld [vmem:[#allocation3 + $0x8] sm:$0xff]
    %v2265 = vld [vmem:[#allocation3 + $0x10] sm:$0xff]
    %v2266 = vld [vmem:[#allocation3 + $0x18] sm:$0xff]
    %v2267 = vld [vmem:[#allocation3 + $0x20] sm:$0xff]
    %v2268 = vld [vmem:[#allocation3 + $0x28] sm:$0xff]
    %v2269 = vld [vmem:[#allocation3 + $0x30] sm:$0xff]
    %v2270 = vld [vmem:[#allocation3 + $0x38] sm:$0xff]
    %v2271 = vld [vmem:[#allocation3 + $0x40] sm:$0xff]
    %v2272 = vld [vmem:[#allocation3 + $0x48] sm:$0xff]
    %v2273 = vld [vmem:[#allocation3 + $0x50] sm:$0xff]
    %v2274 = vld [vmem:[#allocation3 + $0x58] sm:$0xff]
    %v2275 = vld [vmem:[#allocation3 + $0x60] sm:$0xff]
    %v2276 = vld [vmem:[#allocation3 + $0x68] sm:$0xff]
    %v2277 = vld [vmem:[#allocation3 + $0x70] sm:$0xff]
    %v2278 = vld [vmem:[#allocation3 + $0x78] sm:$0xff]
    %v2279 = vld [vmem:[#allocation3 + $0x80] sm:$0xff]
    %v2280 = vld [vmem:[#allocation3 + $0x88] sm:$0xff]
    %v2281 = vld [vmem:[#allocation3 + $0x90] sm:$0xff]
    %v2282 = vld [vmem:[#allocation3 + $0x98] sm:$0xff]
    %v2283 = vld [vmem:[#allocation3 + $0xa0] sm:$0xff]
    %v2284 = vld [vmem:[#allocation3 + $0xa8] sm:$0xff]
    %v2285 = vld [vmem:[#allocation3 + $0xb0] sm:$0xff]
    %v2286 = vld [vmem:[#allocation3 + $0xb8] sm:$0xff]
    %v2287 = vld [vmem:[#allocation3 + $0xc0] sm:$0xff]
    %v2288 = vld [vmem:[#allocation3 + $0xc8] sm:$0xff]
    %v2289 = vld [vmem:[#allocation3 + $0xd0] sm:$0xff]
    %v2290 = vld [vmem:[#allocation3 + $0xd8] sm:$0xff]
    %v2291 = vld [vmem:[#allocation3 + $0xe0] sm:$0xff]
    %v2292 = vld [vmem:[#allocation3 + $0xe8] sm:$0xff]
    %v2293 = vld [vmem:[#allocation3 + $0xf0] sm:$0xff]
    %v2294 = vld [vmem:[#allocation3 + $0xf8] sm:$0xff]
    %v2295 = vld [vmem:[#allocation3 + $0x100] sm:$0xff]
    %v2296 = vld [vmem:[#allocation3 + $0x108] sm:$0xff]
    %v2297 = vld [vmem:[#allocation3 + $0x110] sm:$0xff]
    %v2298 = vld [vmem:[#allocation3 + $0x118] sm:$0xff]
    %v2299 = vld [vmem:[#allocation3 + $0x120] sm:$0xff]
    %v2300 = vld [vmem:[#allocation3 + $0x128] sm:$0xff]
    %v2301 = vld [vmem:[#allocation3 + $0x130] sm:$0xff]
    %v2302 = vld [vmem:[#allocation3 + $0x138] sm:$0xff]
    %v2303 = vld [vmem:[#allocation3 + $0x140] sm:$0xff]
    %v2304 = vld [vmem:[#allocation3 + $0x148] sm:$0xff]
    %v2305 = vld [vmem:[#allocation3 + $0x150] sm:$0xff]
    %v2306 = vld [vmem:[#allocation3 + $0x158] sm:$0xff]
    %v2307 = vld [vmem:[#allocation3 + $0x160] sm:$0xff]
    %v2308 = vld [vmem:[#allocation3 + $0x168] sm:$0xff]
    %v2309 = vld [vmem:[#allocation3 + $0x170] sm:$0xff]
    %v2310 = vld [vmem:[#allocation3 + $0x178] sm:$0xff]
    %v2311 = vld [vmem:[#allocation3 + $0x180] sm:$0xff]
    %v2312 = vld [vmem:[#allocation2] sm:$0xe]
    %v2313 = vld [vmem:[#allocation2 + $0x4] sm:$0xf]
    %v2314 = vld [vmem:[#allocation2 + $0x8] sm:$0xf]
    %v2315 = vld [vmem:[#allocation2 + $0xc] sm:$0xf]
    %v2316 = vld [vmem:[#allocation2 + $0x10] sm:$0xf]
    %v2317 = vld [vmem:[#allocation2 + $0x14] sm:$0xf]
    %v2318 = vld [vmem:[#allocation2 + $0x18] sm:$0xf]
    %v2319 = vld [vmem:[#allocation2 + $0x1c] sm:$0xf]
    %v2320 = vld [vmem:[#allocation2 + $0x20] sm:$0xf]
    %v2321 = vld [vmem:[#allocation2 + $0x24] sm:$0xf]
    %v2322 = vld [vmem:[#allocation2 + $0x28] sm:$0xf]
    %v2323 = vld [vmem:[#allocation2 + $0x2c] sm:$0xf]
    %v2324 = vld [vmem:[#allocation2 + $0x30] sm:$0xf]
    %v2325 = vld [vmem:[#allocation2 + $0x34] sm:$0xf]
    %v2326 = vld [vmem:[#allocation2 + $0x38] sm:$0xf]
    %v2327 = vld [vmem:[#allocation2 + $0x3c] sm:$0xf]
    %v2328 = vld [vmem:[#allocation2 + $0x40] sm:$0xf]
    %v2329 = vld [vmem:[#allocation2 + $0x44] sm:$0xf]
    %v2330 = vld [vmem:[#allocation2 + $0x48] sm:$0xf]
    %v2331 = vld [vmem:[#allocation2 + $0x4c] sm:$0xf]
    %v2332 = vld [vmem:[#allocation2 + $0x50] sm:$0xf]
    %v2333 = vld [vmem:[#allocation2 + $0x54] sm:$0xf]
    %v2334 = vld [vmem:[#allocation2 + $0x58] sm:$0xf]
    %v2335 = vld [vmem:[#allocation2 + $0x5c] sm:$0xf]
    %v2336 = vld [vmem:[#allocation2 + $0x60] sm:$0xf]
    %v2337 = vld [vmem:[#allocation2 + $0x64] sm:$0xf]
    %v2338 = vld [vmem:[#allocation2 + $0x68] sm:$0xf]
    %v2339 = vld [vmem:[#allocation2 + $0x6c] sm:$0xf]
    %v2340 = vld [vmem:[#allocation2 + $0x70] sm:$0xf]
    %v2341 = vld [vmem:[#allocation2 + $0x74] sm:$0xf]
    %v2342 = vld [vmem:[#allocation2 + $0x78] sm:$0xf]
    %v2343 = vld [vmem:[#allocation2 + $0x7c] sm:$0xf]
    %v2344 = vld [vmem:[#allocation2 + $0x80] sm:$0xf]
    %v2345 = vld [vmem:[#allocation2 + $0x84] sm:$0xf]
    %v2346 = vld [vmem:[#allocation2 + $0x88] sm:$0xf]
    %v2347 = vld [vmem:[#allocation2 + $0x8c] sm:$0xf]
    %v2348 = vld [vmem:[#allocation2 + $0x90] sm:$0xf]
    %v2349 = vld [vmem:[#allocation2 + $0x94] sm:$0xf]
    %v2350 = vld [vmem:[#allocation2 + $0x98] sm:$0xf]
    %v2351 = vld [vmem:[#allocation2 + $0x9c] sm:$0xf]
    %v2352 = vld [vmem:[#allocation2 + $0xa0] sm:$0xf]
    %v2353 = vld [vmem:[#allocation2 + $0xa4] sm:$0xf]
    %v2354 = vld [vmem:[#allocation2 + $0xa8] sm:$0xf]
    %v2355 = vld [vmem:[#allocation2 + $0xac] sm:$0xf]
    %v2356 = vld [vmem:[#allocation2 + $0xb0] sm:$0xf]
    %v2357 = vld [vmem:[#allocation2 + $0xb4] sm:$0xf]
    %v2358 = vld [vmem:[#allocation2 + $0xb8] sm:$0xf]
    %v2359 = vld [vmem:[#allocation2 + $0xbc] sm:$0xf]
    %v2360 = vld [vmem:[#allocation2 + $0xc0] sm:$0xf]
    %v2361 = vld [vmem:[#allocation2 + $0xc4] sm:$0x1]
    %v2362 = vld [vmem:[%s3 + $0x10] sm:$0xf]
    %v2363 = vld [vmem:[%s3 + $0x14] sm:$0xf]
    %v2414 = vunpack.c.l.b16 %v2312
    %v2415 = vunpack.c.l.b16 %v2313
    %v2416 = vunpack.c.l.b16 %v2314
    %v2417 = vunpack.c.l.b16 %v2315
    %v2418 = vunpack.c.l.b16 %v2316
    %v2419 = vunpack.c.l.b16 %v2317
    %v2420 = vunpack.c.l.b16 %v2318
    %v2421 = vunpack.c.l.b16 %v2319
    %v2422 = vunpack.c.l.b16 %v2320
    %v2423 = vunpack.c.l.b16 %v2321
    %v2424 = vunpack.c.l.b16 %v2322
    %v2425 = vunpack.c.l.b16 %v2323
    %v2426 = vunpack.c.l.b16 %v2324
    %v2427 = vunpack.c.l.b16 %v2325
    %v2428 = vunpack.c.l.b16 %v2326
    %v2429 = vunpack.c.l.b16 %v2327
    %v2430 = vunpack.c.l.b16 %v2328
    %v2431 = vunpack.c.l.b16 %v2329
    %v2432 = vunpack.c.l.b16 %v2330
    %v2433 = vunpack.c.l.b16 %v2331
    %v2434 = vunpack.c.l.b16 %v2332
    %v2435 = vunpack.c.l.b16 %v2333
    %v2436 = vunpack.c.l.b16 %v2334
    %v2437 = vunpack.c.l.b16 %v2335
    %v2438 = vunpack.c.l.b16 %v2336
    %v2439 = vunpack.c.l.b16 %v2337
    %v2440 = vunpack.c.l.b16 %v2338
    %v2441 = vunpack.c.l.b16 %v2339
    %v2442 = vunpack.c.l.b16 %v2340
    %v2443 = vunpack.c.l.b16 %v2341
    %v2444 = vunpack.c.l.b16 %v2342
    %v2445 = vunpack.c.l.b16 %v2343
    %v2446 = vunpack.c.l.b16 %v2344
    %v2447 = vunpack.c.l.b16 %v2345
    %v2448 = vunpack.c.l.b16 %v2346
    %v2449 = vunpack.c.l.b16 %v2347
    %v2450 = vunpack.c.l.b16 %v2348
    %v2451 = vunpack.c.l.b16 %v2349
    %v2452 = vunpack.c.l.b16 %v2350
    %v2453 = vunpack.c.l.b16 %v2351
    %v2454 = vunpack.c.l.b16 %v2352
    %v2455 = vunpack.c.l.b16 %v2353
    %v2456 = vunpack.c.l.b16 %v2354
    %v2457 = vunpack.c.l.b16 %v2355
    %v2458 = vunpack.c.l.b16 %v2356
    %v2459 = vunpack.c.l.b16 %v2357
    %v2460 = vunpack.c.l.b16 %v2358
    %v2461 = vunpack.c.l.b16 %v2359
    %v2462 = vunpack.c.l.b16 %v2360
    %v2463 = vunpack.c.l.b16 %v2361
    %v2464 = vpack.c.b16 %v2415, %v2414
    %v2465 = vpack.c.b16 %v2417, %v2416
    %v2466 = vpack.c.b16 %v2419, %v2418
    %v2467 = vpack.c.b16 %v2421, %v2420
    %v2468 = vpack.c.b16 %v2423, %v2422
    %v2469 = vpack.c.b16 %v2425, %v2424
    %v2470 = vpack.c.b16 %v2427, %v2426
    %v2471 = vpack.c.b16 %v2429, %v2428
    %v2472 = vpack.c.b16 %v2431, %v2430
    %v2473 = vpack.c.b16 %v2433, %v2432
    %v2474 = vpack.c.b16 %v2435, %v2434
    %v2475 = vpack.c.b16 %v2437, %v2436
    %v2476 = vpack.c.b16 %v2439, %v2438
    %v2477 = vpack.c.b16 %v2441, %v2440
    %v2478 = vpack.c.b16 %v2443, %v2442
    %v2479 = vpack.c.b16 %v2445, %v2444
    %v2480 = vpack.c.b16 %v2447, %v2446
    %v2481 = vpack.c.b16 %v2449, %v2448
    %v2482 = vpack.c.b16 %v2451, %v2450
    %v2483 = vpack.c.b16 %v2453, %v2452
    %v2484 = vpack.c.b16 %v2455, %v2454
    %v2485 = vpack.c.b16 %v2457, %v2456
    %v2486 = vpack.c.b16 %v2459, %v2458
    %v2487 = vpack.c.b16 %v2461, %v2460
    %v2488 = vpack.c.b16 %v2463, %v2462
    %vm2489 = vcmask 1046528
    %v2490 = vrot.slane %v2464, 1
    %v2491 = vrot.slane %v2465, 1
    %v2492 = vsel %vm2489, %v2490, %v2491
    %v2493 = vrot.slane %v2466, 1
    %v2494 = vsel %vm2489, %v2491, %v2493
    %v2495 = vrot.slane %v2467, 1
    %v2496 = vsel %vm2489, %v2493, %v2495
    %v2497 = vrot.slane %v2468, 1
    %v2498 = vsel %vm2489, %v2495, %v2497
    %v2499 = vrot.slane %v2469, 1
    %v2500 = vsel %vm2489, %v2497, %v2499
    %v2501 = vrot.slane %v2470, 1
    %v2502 = vsel %vm2489, %v2499, %v2501
    %v2503 = vrot.slane %v2471, 1
    %v2504 = vsel %vm2489, %v2501, %v2503
    %v2505 = vrot.slane %v2472, 1
    %v2506 = vsel %vm2489, %v2503, %v2505
    %v2507 = vrot.slane %v2473, 1
    %v2508 = vsel %vm2489, %v2505, %v2507
    %v2509 = vrot.slane %v2474, 1
    %v2510 = vsel %vm2489, %v2507, %v2509
    %v2511 = vrot.slane %v2475, 1
    %v2512 = vsel %vm2489, %v2509, %v2511
    %v2513 = vrot.slane %v2476, 1
    %v2514 = vsel %vm2489, %v2511, %v2513
    %v2515 = vrot.slane %v2477, 1
    %v2516 = vsel %vm2489, %v2513, %v2515
    %v2517 = vrot.slane %v2478, 1
    %v2518 = vsel %vm2489, %v2515, %v2517
    %v2519 = vrot.slane %v2479, 1
    %v2520 = vsel %vm2489, %v2517, %v2519
    %v2521 = vrot.slane %v2480, 1
    %v2522 = vsel %vm2489, %v2519, %v2521
    %v2523 = vrot.slane %v2481, 1
    %v2524 = vsel %vm2489, %v2521, %v2523
    %v2525 = vrot.slane %v2482, 1
    %v2526 = vsel %vm2489, %v2523, %v2525
    %v2527 = vrot.slane %v2483, 1
    %v2528 = vsel %vm2489, %v2525, %v2527
    %v2529 = vrot.slane %v2484, 1
    %v2530 = vsel %vm2489, %v2527, %v2529
    %v2531 = vrot.slane %v2485, 1
    %v2532 = vsel %vm2489, %v2529, %v2531
    %v2533 = vrot.slane %v2486, 1
    %v2534 = vsel %vm2489, %v2531, %v2533
    %v2535 = vrot.slane %v2487, 1
    %v2536 = vsel %vm2489, %v2533, %v2535
    %v2537 = vrot.slane %v2488, 1
    %v2538 = vsel %vm2489, %v2535, %v2537
    %v2541 = vunpack.c.l.b16 %v2362
    %v2542 = vunpack.c.l.b16 %v2363
    %v2543 = vpack.c.b16 %v2542, %v2541
    %v2546 = vsel %vm232, %v2492, 0
    %v2549 = vsel %vm232, %v2494, 0
    %v2552 = vsel %vm232, %v2496, 0
    %v2555 = vsel %vm232, %v2498, 0
    %v2558 = vsel %vm232, %v2500, 0
    %v2561 = vsel %vm232, %v2502, 0
    %v2564 = vsel %vm232, %v2504, 0
    %v2567 = vsel %vm232, %v2506, 0
    %v2570 = vsel %vm232, %v2508, 0
    %v2573 = vsel %vm232, %v2510, 0
    %v2576 = vsel %vm232, %v2512, 0
    %v2579 = vsel %vm232, %v2514, 0
    %v2582 = vsel %vm232, %v2516, 0
    %v2585 = vsel %vm232, %v2518, 0
    %v2588 = vsel %vm232, %v2520, 0
    %v2591 = vsel %vm232, %v2522, 0
    %v2594 = vsel %vm232, %v2524, 0
    %v2597 = vsel %vm232, %v2526, 0
    %v2600 = vsel %vm232, %v2528, 0
    %v2603 = vsel %vm232, %v2530, 0
    %v2606 = vsel %vm232, %v2532, 0
    %v2609 = vsel %vm232, %v2534, 0
    %v2612 = vsel %vm232, %v2536, 0
    %v2615 = vsel %vm232, %v2538, 0
    %v2618 = vsel %vm232, %v2537, 0
    %2620 = vmatprep.subr.bf16.mxu0 0
    %2621 = vmatpush1.bf16.msra.mxu0 %v2543
    %2622 = vmatprep.subr.bf16.mxu0 0
    %2623 = vmatpush1.bf16.msra.mxu0 0
    %2624 = vmatprep.subr.bf16.mxu0 0
    %2625 = vmatpush1.bf16.msra.mxu0 0
    %2626 = vmatprep.subr.bf16.mxu0 0
    %2627 = vmatpush1.bf16.msra.mxu0 0
    %2628 = vmatprep.subr.bf16.mxu0 0
    %2629 = vmatpush1.bf16.msra.mxu0 0
    %2630 = vmatprep.subr.bf16.mxu0 0
    %2631 = vmatpush1.bf16.msra.mxu0 0
    %2632 = vmatprep.subr.bf16.mxu0 0
    %2633 = vmatpush1.bf16.msra.mxu0 0
    %2634 = vmatprep.subr.bf16.mxu0 0
    %2635 = vmatpush1.bf16.msra.mxu0 0
    %2636 = vmatprep.subr.bf16.mxu0 0
    %2637 = vmatpush1.bf16.msra.mxu0 0
    %2638 = vmatprep.subr.bf16.mxu0 0
    %2639 = vmatpush1.bf16.msra.mxu0 0
    %2640 = vmatprep.subr.bf16.mxu0 0
    %2641 = vmatpush1.bf16.msra.mxu0 0
    %2642 = vmatprep.subr.bf16.mxu0 0
    %2643 = vmatpush1.bf16.msra.mxu0 0
    %2644 = vmatprep.subr.bf16.mxu0 0
    %2645 = vmatpush1.bf16.msra.mxu0 0
    %2646 = vmatprep.subr.bf16.mxu0 0
    %2647 = vmatpush1.bf16.msra.mxu0 0
    %2648 = vmatprep.subr.bf16.mxu0 0
    %2649 = vmatpush1.bf16.msra.mxu0 0
    %2650 = vmatprep.subr.bf16.mxu0 0
    %2651 = vmatpush1.bf16.msra.mxu0 0
    %2652 = vmatprep.mubr.bf16.mxu0 0
    %2653 = vmatmul.mubr.bf16.gmra.mrb[0].mxu0 %v2546
    %v2654 = vpop.f32.mrb[0].mxu0
    %v2655 = vadd.f32 0.0, %v2654
    %v2656 = vpop.f32.mrb[0].mxu0
    %v2657 = vpop.f32.mrb[0].mxu0
    %v2658 = vadd.f32 0.0, %v2657
    %v2659 = vpop.f32.mrb[0].mxu0
    %2660 = vmatprep.mubr.bf16.mxu0 0
    %2661 = vmatmul.mubr.bf16.gmra.mrb[0].mxu0 %v2549
    %v2662 = vpop.f32.mrb[0].mxu0
    %v2663 = vadd.f32 0.0, %v2662
    %v2664 = vpop.f32.mrb[0].mxu0
    %v2665 = vpop.f32.mrb[0].mxu0
    %v2666 = vadd.f32 0.0, %v2665
    %v2667 = vpop.f32.mrb[0].mxu0
    %2668 = vmatprep.mubr.bf16.mxu0 0
    %2669 = vmatmul.mubr.bf16.gmra.mrb[0].mxu0 %v2552
    %v2670 = vpop.f32.mrb[0].mxu0
    %v2671 = vadd.f32 0.0, %v2670
    %v2672 = vpop.f32.mrb[0].mxu0
    %v2673 = vpop.f32.mrb[0].mxu0
    %v2674 = vadd.f32 0.0, %v2673
    %v2675 = vpop.f32.mrb[0].mxu0
    %2676 = vmatprep.mubr.bf16.mxu0 0
    %2677 = vmatmul.mubr.bf16.gmra.mrb[0].mxu0 %v2555
    %v2678 = vpop.f32.mrb[0].mxu0
    %v2679 = vadd.f32 0.0, %v2678
    %v2680 = vpop.f32.mrb[0].mxu0
    %v2681 = vpop.f32.mrb[0].mxu0
    %v2682 = vadd.f32 0.0, %v2681
    %v2683 = vpop.f32.mrb[0].mxu0
    %2684 = vmatprep.mubr.bf16.mxu0 0
    %2685 = vmatmul.mubr.bf16.gmra.mrb[0].mxu0 %v2558
    %v2686 = vpop.f32.mrb[0].mxu0
    %v2687 = vadd.f32 0.0, %v2686
    %v2688 = vpop.f32.mrb[0].mxu0
    %v2689 = vpop.f32.mrb[0].mxu0
    %v2690 = vadd.f32 0.0, %v2689
    %v2691 = vpop.f32.mrb[0].mxu0
    %2692 = vmatprep.mubr.bf16.mxu0 0
    %2693 = vmatmul.mubr.bf16.gmra.mrb[0].mxu0 %v2561
    %v2694 = vpop.f32.mrb[0].mxu0
    %v2695 = vadd.f32 0.0, %v2694
    %v2696 = vpop.f32.mrb[0].mxu0
    %v2697 = vpop.f32.mrb[0].mxu0
    %v2698 = vadd.f32 0.0, %v2697
    %v2699 = vpop.f32.mrb[0].mxu0
    %2700 = vmatprep.mubr.bf16.mxu0 0
    %2701 = vmatmul.mubr.bf16.gmra.mrb[0].mxu0 %v2564
    %v2702 = vpop.f32.mrb[0].mxu0
    %v2703 = vadd.f32 0.0, %v2702
    %v2704 = vpop.f32.mrb[0].mxu0
    %v2705 = vpop.f32.mrb[0].mxu0
    %v2706 = vadd.f32 0.0, %v2705
    %v2707 = vpop.f32.mrb[0].mxu0
    %2708 = vmatprep.mubr.bf16.mxu0 0
    %2709 = vmatmul.mubr.bf16.gmra.mrb[0].mxu0 %v2567
    %v2710 = vpop.f32.mrb[0].mxu0
    %v2711 = vadd.f32 0.0, %v2710
    %v2712 = vpop.f32.mrb[0].mxu0
    %v2713 = vpop.f32.mrb[0].mxu0
    %v2714 = vadd.f32 0.0, %v2713
    %v2715 = vpop.f32.mrb[0].mxu0
    %2716 = vmatprep.mubr.bf16.mxu0 0
    %2717 = vmatmul.mubr.bf16.gmra.mrb[0].mxu0 %v2570
    %v2718 = vpop.f32.mrb[0].mxu0
    %v2719 = vadd.f32 0.0, %v2718
    %v2720 = vpop.f32.mrb[0].mxu0
    %v2721 = vpop.f32.mrb[0].mxu0
    %v2722 = vadd.f32 0.0, %v2721
    %v2723 = vpop.f32.mrb[0].mxu0
    %2724 = vmatprep.mubr.bf16.mxu0 0
    %2725 = vmatmul.mubr.bf16.gmra.mrb[0].mxu0 %v2573
    %v2726 = vpop.f32.mrb[0].mxu0
    %v2727 = vadd.f32 0.0, %v2726
    %v2728 = vpop.f32.mrb[0].mxu0
    %v2729 = vpop.f32.mrb[0].mxu0
    %v2730 = vadd.f32 0.0, %v2729
    %v2731 = vpop.f32.mrb[0].mxu0
    %2732 = vmatprep.mubr.bf16.mxu0 0
    %2733 = vmatmul.mubr.bf16.gmra.mrb[0].mxu0 %v2576
    %v2734 = vpop.f32.mrb[0].mxu0
    %v2735 = vadd.f32 0.0, %v2734
    %v2736 = vpop.f32.mrb[0].mxu0
    %v2737 = vpop.f32.mrb[0].mxu0
    %v2738 = vadd.f32 0.0, %v2737
    %v2739 = vpop.f32.mrb[0].mxu0
    %2740 = vmatprep.mubr.bf16.mxu0 0
    %2741 = vmatmul.mubr.bf16.gmra.mrb[0].mxu0 %v2579
    %v2742 = vpop.f32.mrb[0].mxu0
    %v2743 = vadd.f32 0.0, %v2742
    %v2744 = vpop.f32.mrb[0].mxu0
    %v2745 = vpop.f32.mrb[0].mxu0
    %v2746 = vadd.f32 0.0, %v2745
    %v2747 = vpop.f32.mrb[0].mxu0
    %2748 = vmatprep.mubr.bf16.mxu0 0
    %2749 = vmatmul.mubr.bf16.gmra.mrb[0].mxu0 %v2582
    %v2750 = vpop.f32.mrb[0].mxu0
    %v2751 = vadd.f32 0.0, %v2750
    %v2752 = vpop.f32.mrb[0].mxu0
    %v2753 = vpop.f32.mrb[0].mxu0
    %v2754 = vadd.f32 0.0, %v2753
    %v2755 = vpop.f32.mrb[0].mxu0
    %2756 = vmatprep.mubr.bf16.mxu0 0
    %2757 = vmatmul.mubr.bf16.gmra.mrb[0].mxu0 %v2585
    %v2758 = vpop.f32.mrb[0].mxu0
    %v2759 = vadd.f32 0.0, %v2758
    %v2760 = vpop.f32.mrb[0].mxu0
    %v2761 = vpop.f32.mrb[0].mxu0
    %v2762 = vadd.f32 0.0, %v2761
    %v2763 = vpop.f32.mrb[0].mxu0
    %2764 = vmatprep.mubr.bf16.mxu0 0
    %2765 = vmatmul.mubr.bf16.gmra.mrb[0].mxu0 %v2588
    %v2766 = vpop.f32.mrb[0].mxu0
    %v2767 = vadd.f32 0.0, %v2766
    %v2768 = vpop.f32.mrb[0].mxu0
    %v2769 = vpop.f32.mrb[0].mxu0
    %v2770 = vadd.f32 0.0, %v2769
    %v2771 = vpop.f32.mrb[0].mxu0
    %2772 = vmatprep.mubr.bf16.mxu0 0
    %2773 = vmatmul.mubr.bf16.gmra.mrb[0].mxu0 %v2591
    %v2774 = vpop.f32.mrb[0].mxu0
    %v2775 = vadd.f32 0.0, %v2774
    %v2776 = vpop.f32.mrb[0].mxu0
    %v2777 = vpop.f32.mrb[0].mxu0
    %v2778 = vadd.f32 0.0, %v2777
    %v2779 = vpop.f32.mrb[0].mxu0
    %2780 = vmatprep.mubr.bf16.mxu0 0
    %2781 = vmatmul.mubr.bf16.gmra.mrb[0].mxu0 %v2594
    %v2782 = vpop.f32.mrb[0].mxu0
    %v2783 = vadd.f32 0.0, %v2782
    %v2784 = vpop.f32.mrb[0].mxu0
    %v2785 = vpop.f32.mrb[0].mxu0
    %v2786 = vadd.f32 0.0, %v2785
    %v2787 = vpop.f32.mrb[0].mxu0
    %2788 = vmatprep.mubr.bf16.mxu0 0
    %2789 = vmatmul.mubr.bf16.gmra.mrb[0].mxu0 %v2597
    %v2790 = vpop.f32.mrb[0].mxu0
    %v2791 = vadd.f32 0.0, %v2790
    %v2792 = vpop.f32.mrb[0].mxu0
    %v2793 = vpop.f32.mrb[0].mxu0
    %v2794 = vadd.f32 0.0, %v2793
    %v2795 = vpop.f32.mrb[0].mxu0
    %2796 = vmatprep.mubr.bf16.mxu0 0
    %2797 = vmatmul.mubr.bf16.gmra.mrb[0].mxu0 %v2600
    %v2798 = vpop.f32.mrb[0].mxu0
    %v2799 = vadd.f32 0.0, %v2798
    %v2800 = vpop.f32.mrb[0].mxu0
    %v2801 = vpop.f32.mrb[0].mxu0
    %v2802 = vadd.f32 0.0, %v2801
    %v2803 = vpop.f32.mrb[0].mxu0
    %2804 = vmatprep.mubr.bf16.mxu0 0
    %2805 = vmatmul.mubr.bf16.gmra.mrb[0].mxu0 %v2603
    %v2806 = vpop.f32.mrb[0].mxu0
    %v2807 = vadd.f32 0.0, %v2806
    %v2808 = vpop.f32.mrb[0].mxu0
    %v2809 = vpop.f32.mrb[0].mxu0
    %v2810 = vadd.f32 0.0, %v2809
    %v2811 = vpop.f32.mrb[0].mxu0
    %2812 = vmatprep.mubr.bf16.mxu0 0
    %2813 = vmatmul.mubr.bf16.gmra.mrb[0].mxu0 %v2606
    %v2814 = vpop.f32.mrb[0].mxu0
    %v2815 = vadd.f32 0.0, %v2814
    %v2816 = vpop.f32.mrb[0].mxu0
    %v2817 = vpop.f32.mrb[0].mxu0
    %v2818 = vadd.f32 0.0, %v2817
    %v2819 = vpop.f32.mrb[0].mxu0
    %2820 = vmatprep.mubr.bf16.mxu0 0
    %2821 = vmatmul.mubr.bf16.gmra.mrb[0].mxu0 %v2609
    %v2822 = vpop.f32.mrb[0].mxu0
    %v2823 = vadd.f32 0.0, %v2822
    %v2824 = vpop.f32.mrb[0].mxu0
    %v2825 = vpop.f32.mrb[0].mxu0
    %v2826 = vadd.f32 0.0, %v2825
    %v2827 = vpop.f32.mrb[0].mxu0
    %2828 = vmatprep.mubr.bf16.mxu0 0
    %2829 = vmatmul.mubr.bf16.gmra.mrb[0].mxu0 %v2612
    %v2830 = vpop.f32.mrb[0].mxu0
    %v2831 = vadd.f32 0.0, %v2830
    %v2832 = vpop.f32.mrb[0].mxu0
    %v2833 = vpop.f32.mrb[0].mxu0
    %v2834 = vadd.f32 0.0, %v2833
    %v2835 = vpop.f32.mrb[0].mxu0
    %2836 = vmatprep.mubr.bf16.mxu0 0
    %2837 = vmatmul.mubr.bf16.gmra.mrb[0].mxu0 %v2615
    %v2838 = vpop.f32.mrb[0].mxu0
    %v2839 = vadd.f32 0.0, %v2838
    %v2840 = vpop.f32.mrb[0].mxu0
    %v2841 = vpop.f32.mrb[0].mxu0
    %v2842 = vadd.f32 0.0, %v2841
    %v2843 = vpop.f32.mrb[0].mxu0
    %2844 = vmatprep.mubr.bf16.mxu0 0
    %2845 = vmatmul.mubr.bf16.gmra.mrb[0].mxu0 %v2618
    %v2846 = vpop.f32.mrb[0].mxu0
    %v2847 = vadd.f32 0.0, %v2846
    %v2848 = vpop.f32.mrb[0].mxu0
    %v2849 = vpop.f32.mrb[0].mxu0
    %v2850 = vpop.f32.mrb[0].mxu0
    %2851 = vdwg.mxu0
    %v2852 = vadd.f32 %v2263, %v2655
    %v2853 = vadd.f32 %v2264, %v2658
    %v2854 = vadd.f32 %v2265, %v2663
    %v2855 = vadd.f32 %v2266, %v2666
    %v2856 = vadd.f32 %v2267, %v2671
    %v2857 = vadd.f32 %v2268, %v2674
    %v2858 = vadd.f32 %v2269, %v2679
    %v2859 = vadd.f32 %v2270, %v2682
    %v2860 = vadd.f32 %v2271, %v2687
    %v2861 = vadd.f32 %v2272, %v2690
    %v2862 = vadd.f32 %v2273, %v2695
    %v2863 = vadd.f32 %v2274, %v2698
    %v2864 = vadd.f32 %v2275, %v2703
    %v2865 = vadd.f32 %v2276, %v2706
    %v2866 = vadd.f32 %v2277, %v2711
    %v2867 = vadd.f32 %v2278, %v2714
    %v2868 = vadd.f32 %v2279, %v2719
    %v2869 = vadd.f32 %v2280, %v2722
    %v2870 = vadd.f32 %v2281, %v2727
    %v2871 = vadd.f32 %v2282, %v2730
    %v2872 = vadd.f32 %v2283, %v2735
    %v2873 = vadd.f32 %v2284, %v2738
    %v2874 = vadd.f32 %v2285, %v2743
    %v2875 = vadd.f32 %v2286, %v2746
    %v2876 = vadd.f32 %v2287, %v2751
    %v2877 = vadd.f32 %v2288, %v2754
    %v2878 = vadd.f32 %v2289, %v2759
    %v2879 = vadd.f32 %v2290, %v2762
    %v2880 = vadd.f32 %v2291, %v2767
    %v2881 = vadd.f32 %v2292, %v2770
    %v2882 = vadd.f32 %v2293, %v2775
    %v2883 = vadd.f32 %v2294, %v2778
    %v2884 = vadd.f32 %v2295, %v2783
    %v2885 = vadd.f32 %v2296, %v2786
    %v2886 = vadd.f32 %v2297, %v2791
    %v2887 = vadd.f32 %v2298, %v2794
    %v2888 = vadd.f32 %v2299, %v2799
    %v2889 = vadd.f32 %v2300, %v2802
    %v2890 = vadd.f32 %v2301, %v2807
    %v2891 = vadd.f32 %v2302, %v2810
    %v2892 = vadd.f32 %v2303, %v2815
    %v2893 = vadd.f32 %v2304, %v2818
    %v2894 = vadd.f32 %v2305, %v2823
    %v2895 = vadd.f32 %v2306, %v2826
    %v2896 = vadd.f32 %v2307, %v2831
    %v2897 = vadd.f32 %v2308, %v2834
    %v2898 = vadd.f32 %v2309, %v2839
    %v2899 = vadd.f32 %v2310, %v2842
    %v2900 = vadd.f32 %v2311, %v2847
    %2901 = vst.msk [vmem:[#allocation3] sm:$0xff] %vm1376, %v2852
    %2902 = vst.msk [vmem:[#allocation3 + $0x8] sm:$0xff] %vm1376, %v2853
    %2903 = vst.msk [vmem:[#allocation3 + $0x10] sm:$0xff] %vm1376, %v2854
    %2904 = vst.msk [vmem:[#allocation3 + $0x18] sm:$0xff] %vm1376, %v2855
    %2905 = vst.msk [vmem:[#allocation3 + $0x20] sm:$0xff] %vm1376, %v2856
    %2906 = vst.msk [vmem:[#allocation3 + $0x28] sm:$0xff] %vm1376, %v2857
    %2907 = vst.msk [vmem:[#allocation3 + $0x30] sm:$0xff] %vm1376, %v2858
    %2908 = vst.msk [vmem:[#allocation3 + $0x38] sm:$0xff] %vm1376, %v2859
    %2909 = vst.msk [vmem:[#allocation3 + $0x40] sm:$0xff] %vm1376, %v2860
    %2910 = vst.msk [vmem:[#allocation3 + $0x48] sm:$0xff] %vm1376, %v2861
    %2911 = vst.msk [vmem:[#allocation3 + $0x50] sm:$0xff] %vm1376, %v2862
    %2912 = vst.msk [vmem:[#allocation3 + $0x58] sm:$0xff] %vm1376, %v2863
    %2913 = vst.msk [vmem:[#allocation3 + $0x60] sm:$0xff] %vm1376, %v2864
    %2914 = vst.msk [vmem:[#allocation3 + $0x68] sm:$0xff] %vm1376, %v2865
    %2915 = vst.msk [vmem:[#allocation3 + $0x70] sm:$0xff] %vm1376, %v2866
    %2916 = vst.msk [vmem:[#allocation3 + $0x78] sm:$0xff] %vm1376, %v2867
    %2917 = vst.msk [vmem:[#allocation3 + $0x80] sm:$0xff] %vm1376, %v2868
    %2918 = vst.msk [vmem:[#allocation3 + $0x88] sm:$0xff] %vm1376, %v2869
    %2919 = vst.msk [vmem:[#allocation3 + $0x90] sm:$0xff] %vm1376, %v2870
    %2920 = vst.msk [vmem:[#allocation3 + $0x98] sm:$0xff] %vm1376, %v2871
    %2921 = vst.msk [vmem:[#allocation3 + $0xa0] sm:$0xff] %vm1376, %v2872
    %2922 = vst.msk [vmem:[#allocation3 + $0xa8] sm:$0xff] %vm1376, %v2873
    %2923 = vst.msk [vmem:[#allocation3 + $0xb0] sm:$0xff] %vm1376, %v2874
    %2924 = vst.msk [vmem:[#allocation3 + $0xb8] sm:$0xff] %vm1376, %v2875
    %2925 = vst.msk [vmem:[#allocation3 + $0xc0] sm:$0xff] %vm1376, %v2876
    %2926 = vst.msk [vmem:[#allocation3 + $0xc8] sm:$0xff] %vm1376, %v2877
    %2927 = vst.msk [vmem:[#allocation3 + $0xd0] sm:$0xff] %vm1376, %v2878
    %2928 = vst.msk [vmem:[#allocation3 + $0xd8] sm:$0xff] %vm1376, %v2879
    %2929 = vst.msk [vmem:[#allocation3 + $0xe0] sm:$0xff] %vm1376, %v2880
    %2930 = vst.msk [vmem:[#allocation3 + $0xe8] sm:$0xff] %vm1376, %v2881
    %2931 = vst.msk [vmem:[#allocation3 + $0xf0] sm:$0xff] %vm1376, %v2882
    %2932 = vst.msk [vmem:[#allocation3 + $0xf8] sm:$0xff] %vm1376, %v2883
    %2933 = vst.msk [vmem:[#allocation3 + $0x100] sm:$0xff] %vm1376, %v2884
    %2934 = vst.msk [vmem:[#allocation3 + $0x108] sm:$0xff] %vm1376, %v2885
    %2935 = vst.msk [vmem:[#allocation3 + $0x110] sm:$0xff] %vm1376, %v2886
    %2936 = vst.msk [vmem:[#allocation3 + $0x118] sm:$0xff] %vm1376, %v2887
    %2937 = vst.msk [vmem:[#allocation3 + $0x120] sm:$0xff] %vm1376, %v2888
    %2938 = vst.msk [vmem:[#allocation3 + $0x128] sm:$0xff] %vm1376, %v2889
    %2939 = vst.msk [vmem:[#allocation3 + $0x130] sm:$0xff] %vm1376, %v2890
    %2940 = vst.msk [vmem:[#allocation3 + $0x138] sm:$0xff] %vm1376, %v2891
    %2941 = vst.msk [vmem:[#allocation3 + $0x140] sm:$0xff] %vm1376, %v2892
    %2942 = vst.msk [vmem:[#allocation3 + $0x148] sm:$0xff] %vm1376, %v2893
    %2943 = vst.msk [vmem:[#allocation3 + $0x150] sm:$0xff] %vm1376, %v2894
    %2944 = vst.msk [vmem:[#allocation3 + $0x158] sm:$0xff] %vm1376, %v2895
    %2945 = vst.msk [vmem:[#allocation3 + $0x160] sm:$0xff] %vm1376, %v2896
    %2946 = vst.msk [vmem:[#allocation3 + $0x168] sm:$0xff] %vm1376, %v2897
    %2947 = vst.msk [vmem:[#allocation3 + $0x170] sm:$0xff] %vm1376, %v2898
    %2948 = vst.msk [vmem:[#allocation3 + $0x178] sm:$0xff] %vm1376, %v2899
    %2949 = vst.msk [vmem:[#allocation3 + $0x180] sm:$0xff] %vm1376, %v2900
    %v2950 = vld [vmem:[#allocation3] sm:$0xff]
    %v2951 = vld [vmem:[#allocation3 + $0x8] sm:$0xff]
    %v2952 = vld [vmem:[#allocation3 + $0x10] sm:$0xff]
    %v2953 = vld [vmem:[#allocation3 + $0x18] sm:$0xff]
    %v2954 = vld [vmem:[#allocation3 + $0x20] sm:$0xff]
    %v2955 = vld [vmem:[#allocation3 + $0x28] sm:$0xff]
    %v2956 = vld [vmem:[#allocation3 + $0x30] sm:$0xff]
    %v2957 = vld [vmem:[#allocation3 + $0x38] sm:$0xff]
    %v2958 = vld [vmem:[#allocation3 + $0x40] sm:$0xff]
    %v2959 = vld [vmem:[#allocation3 + $0x48] sm:$0xff]
    %v2960 = vld [vmem:[#allocation3 + $0x50] sm:$0xff]
    %v2961 = vld [vmem:[#allocation3 + $0x58] sm:$0xff]
    %v2962 = vld [vmem:[#allocation3 + $0x60] sm:$0xff]
    %v2963 = vld [vmem:[#allocation3 + $0x68] sm:$0xff]
    %v2964 = vld [vmem:[#allocation3 + $0x70] sm:$0xff]
    %v2965 = vld [vmem:[#allocation3 + $0x78] sm:$0xff]
    %v2966 = vld [vmem:[#allocation3 + $0x80] sm:$0xff]
    %v2967 = vld [vmem:[#allocation3 + $0x88] sm:$0xff]
    %v2968 = vld [vmem:[#allocation3 + $0x90] sm:$0xff]
    %v2969 = vld [vmem:[#allocation3 + $0x98] sm:$0xff]
    %v2970 = vld [vmem:[#allocation3 + $0xa0] sm:$0xff]
    %v2971 = vld [vmem:[#allocation3 + $0xa8] sm:$0xff]
    %v2972 = vld [vmem:[#allocation3 + $0xb0] sm:$0xff]
    %v2973 = vld [vmem:[#allocation3 + $0xb8] sm:$0xff]
    %v2974 = vld [vmem:[#allocation3 + $0xc0] sm:$0xff]
    %v2975 = vld [vmem:[#allocation3 + $0xc8] sm:$0xff]
    %v2976 = vld [vmem:[#allocation3 + $0xd0] sm:$0xff]
    %v2977 = vld [vmem:[#allocation3 + $0xd8] sm:$0xff]
    %v2978 = vld [vmem:[#allocation3 + $0xe0] sm:$0xff]
    %v2979 = vld [vmem:[#allocation3 + $0xe8] sm:$0xff]
    %v2980 = vld [vmem:[#allocation3 + $0xf0] sm:$0xff]
    %v2981 = vld [vmem:[#allocation3 + $0xf8] sm:$0xff]
    %v2982 = vld [vmem:[#allocation3 + $0x100] sm:$0xff]
    %v2983 = vld [vmem:[#allocation3 + $0x108] sm:$0xff]
    %v2984 = vld [vmem:[#allocation3 + $0x110] sm:$0xff]
    %v2985 = vld [vmem:[#allocation3 + $0x118] sm:$0xff]
    %v2986 = vld [vmem:[#allocation3 + $0x120] sm:$0xff]
    %v2987 = vld [vmem:[#allocation3 + $0x128] sm:$0xff]
    %v2988 = vld [vmem:[#allocation3 + $0x130] sm:$0xff]
    %v2989 = vld [vmem:[#allocation3 + $0x138] sm:$0xff]
    %v2990 = vld [vmem:[#allocation3 + $0x140] sm:$0xff]
    %v2991 = vld [vmem:[#allocation3 + $0x148] sm:$0xff]
    %v2992 = vld [vmem:[#allocation3 + $0x150] sm:$0xff]
    %v2993 = vld [vmem:[#allocation3 + $0x158] sm:$0xff]
    %v2994 = vld [vmem:[#allocation3 + $0x160] sm:$0xff]
    %v2995 = vld [vmem:[#allocation3 + $0x168] sm:$0xff]
    %v2996 = vld [vmem:[#allocation3 + $0x170] sm:$0xff]
    %v2997 = vld [vmem:[#allocation3 + $0x178] sm:$0xff]
    %v2998 = vld [vmem:[#allocation3 + $0x180] sm:$0xff]
    %v2999 = vld [vmem:[#allocation2 + $0x4] sm:$0x8]
    %v3000 = vld [vmem:[#allocation2 + $0x8] sm:$0xf]
    %v3001 = vld [vmem:[#allocation2 + $0xc] sm:$0xf]
    %v3002 = vld [vmem:[#allocation2 + $0x10] sm:$0xf]
    %v3003 = vld [vmem:[#allocation2 + $0x14] sm:$0xf]
    %v3004 = vld [vmem:[#allocation2 + $0x18] sm:$0xf]
    %v3005 = vld [vmem:[#allocation2 + $0x1c] sm:$0xf]
    %v3006 = vld [vmem:[#allocation2 + $0x20] sm:$0xf]
    %v3007 = vld [vmem:[#allocation2 + $0x24] sm:$0xf]
    %v3008 = vld [vmem:[#allocation2 + $0x28] sm:$0xf]
    %v3009 = vld [vmem:[#allocation2 + $0x2c] sm:$0xf]
    %v3010 = vld [vmem:[#allocation2 + $0x30] sm:$0xf]
    %v3011 = vld [vmem:[#allocation2 + $0x34] sm:$0xf]
    %v3012 = vld [vmem:[#allocation2 + $0x38] sm:$0xf]
    %v3013 = vld [vmem:[#allocation2 + $0x3c] sm:$0xf]
    %v3014 = vld [vmem:[#allocation2 + $0x40] sm:$0xf]
    %v3015 = vld [vmem:[#allocation2 + $0x44] sm:$0xf]
    %v3016 = vld [vmem:[#allocation2 + $0x48] sm:$0xf]
    %v3017 = vld [vmem:[#allocation2 + $0x4c] sm:$0xf]
    %v3018 = vld [vmem:[#allocation2 + $0x50] sm:$0xf]
    %v3019 = vld [vmem:[#allocation2 + $0x54] sm:$0xf]
    %v3020 = vld [vmem:[#allocation2 + $0x58] sm:$0xf]
    %v3021 = vld [vmem:[#allocation2 + $0x5c] sm:$0xf]
    %v3022 = vld [vmem:[#allocation2 + $0x60] sm:$0xf]
    %v3023 = vld [vmem:[#allocation2 + $0x64] sm:$0xf]
    %v3024 = vld [vmem:[#allocation2 + $0x68] sm:$0xf]
    %v3025 = vld [vmem:[#allocation2 + $0x6c] sm:$0xf]
    %v3026 = vld [vmem:[#allocation2 + $0x70] sm:$0xf]
    %v3027 = vld [vmem:[#allocation2 + $0x74] sm:$0xf]
    %v3028 = vld [vmem:[#allocation2 + $0x78] sm:$0xf]
    %v3029 = vld [vmem:[#allocation2 + $0x7c] sm:$0xf]
    %v3030 = vld [vmem:[#allocation2 + $0x80] sm:$0xf]
    %v3031 = vld [vmem:[#allocation2 + $0x84] sm:$0xf]
    %v3032 = vld [vmem:[#allocation2 + $0x88] sm:$0xf]
    %v3033 = vld [vmem:[#allocation2 + $0x8c] sm:$0xf]
    %v3034 = vld [vmem:[#allocation2 + $0x90] sm:$0xf]
    %v3035 = vld [vmem:[#allocation2 + $0x94] sm:$0xf]
    %v3036 = vld [vmem:[#allocation2 + $0x98] sm:$0xf]
    %v3037 = vld [vmem:[#allocation2 + $0x9c] sm:$0xf]
    %v3038 = vld [vmem:[#allocation2 + $0xa0] sm:$0xf]
    %v3039 = vld [vmem:[#allocation2 + $0xa4] sm:$0xf]
    %v3040 = vld [vmem:[#allocation2 + $0xa8] sm:$0xf]
    %v3041 = vld [vmem:[#allocation2 + $0xac] sm:$0xf]
    %v3042 = vld [vmem:[#allocation2 + $0xb0] sm:$0xf]
    %v3043 = vld [vmem:[#allocation2 + $0xb4] sm:$0xf]
    %v3044 = vld [vmem:[#allocation2 + $0xb8] sm:$0xf]
    %v3045 = vld [vmem:[#allocation2 + $0xbc] sm:$0xf]
    %v3046 = vld [vmem:[#allocation2 + $0xc0] sm:$0xf]
    %v3047 = vld [vmem:[#allocation2 + $0xc4] sm:$0xf]
    %v3048 = vld [vmem:[#allocation2 + $0xc8] sm:$0x7]
    %v3049 = vld [vmem:[%s3 + $0x18] sm:$0xf]
    %v3050 = vld [vmem:[%s3 + $0x1c] sm:$0xf]
    %v3101 = vunpack.c.l.b16 %v2999
    %v3102 = vunpack.c.l.b16 %v3000
    %v3103 = vunpack.c.l.b16 %v3001
    %v3104 = vunpack.c.l.b16 %v3002
    %v3105 = vunpack.c.l.b16 %v3003
    %v3106 = vunpack.c.l.b16 %v3004
    %v3107 = vunpack.c.l.b16 %v3005
    %v3108 = vunpack.c.l.b16 %v3006
    %v3109 = vunpack.c.l.b16 %v3007
    %v3110 = vunpack.c.l.b16 %v3008
    %v3111 = vunpack.c.l.b16 %v3009
    %v3112 = vunpack.c.l.b16 %v3010
    %v3113 = vunpack.c.l.b16 %v3011
    %v3114 = vunpack.c.l.b16 %v3012
    %v3115 = vunpack.c.l.b16 %v3013
    %v3116 = vunpack.c.l.b16 %v3014
    %v3117 = vunpack.c.l.b16 %v3015
    %v3118 = vunpack.c.l.b16 %v3016
    %v3119 = vunpack.c.l.b16 %v3017
    %v3120 = vunpack.c.l.b16 %v3018
    %v3121 = vunpack.c.l.b16 %v3019
    %v3122 = vunpack.c.l.b16 %v3020
    %v3123 = vunpack.c.l.b16 %v3021
    %v3124 = vunpack.c.l.b16 %v3022
    %v3125 = vunpack.c.l.b16 %v3023
    %v3126 = vunpack.c.l.b16 %v3024
    %v3127 = vunpack.c.l.b16 %v3025
    %v3128 = vunpack.c.l.b16 %v3026
    %v3129 = vunpack.c.l.b16 %v3027
    %v3130 = vunpack.c.l.b16 %v3028
    %v3131 = vunpack.c.l.b16 %v3029
    %v3132 = vunpack.c.l.b16 %v3030
    %v3133 = vunpack.c.l.b16 %v3031
    %v3134 = vunpack.c.l.b16 %v3032
    %v3135 = vunpack.c.l.b16 %v3033
    %v3136 = vunpack.c.l.b16 %v3034
    %v3137 = vunpack.c.l.b16 %v3035
    %v3138 = vunpack.c.l.b16 %v3036
    %v3139 = vunpack.c.l.b16 %v3037
    %v3140 = vunpack.c.l.b16 %v3038
    %v3141 = vunpack.c.l.b16 %v3039
    %v3142 = vunpack.c.l.b16 %v3040
    %v3143 = vunpack.c.l.b16 %v3041
    %v3144 = vunpack.c.l.b16 %v3042
    %v3145 = vunpack.c.l.b16 %v3043
    %v3146 = vunpack.c.l.b16 %v3044
    %v3147 = vunpack.c.l.b16 %v3045
    %v3148 = vunpack.c.l.b16 %v3046
    %v3149 = vunpack.c.l.b16 %v3047
    %v3150 = vunpack.c.l.b16 %v3048
    %v3151 = vpack.c.b16 %v3102, %v3101
    %v3152 = vpack.c.b16 %v3104, %v3103
    %v3153 = vpack.c.b16 %v3106, %v3105
    %v3154 = vpack.c.b16 %v3108, %v3107
    %v3155 = vpack.c.b16 %v3110, %v3109
    %v3156 = vpack.c.b16 %v3112, %v3111
    %v3157 = vpack.c.b16 %v3114, %v3113
    %v3158 = vpack.c.b16 %v3116, %v3115
    %v3159 = vpack.c.b16 %v3118, %v3117
    %v3160 = vpack.c.b16 %v3120, %v3119
    %v3161 = vpack.c.b16 %v3122, %v3121
    %v3162 = vpack.c.b16 %v3124, %v3123
    %v3163 = vpack.c.b16 %v3126, %v3125
    %v3164 = vpack.c.b16 %v3128, %v3127
    %v3165 = vpack.c.b16 %v3130, %v3129
    %v3166 = vpack.c.b16 %v3132, %v3131
    %v3167 = vpack.c.b16 %v3134, %v3133
    %v3168 = vpack.c.b16 %v3136, %v3135
    %v3169 = vpack.c.b16 %v3138, %v3137
    %v3170 = vpack.c.b16 %v3140, %v3139
    %v3171 = vpack.c.b16 %v3142, %v3141
    %v3172 = vpack.c.b16 %v3144, %v3143
    %v3173 = vpack.c.b16 %v3146, %v3145
    %v3174 = vpack.c.b16 %v3148, %v3147
    %v3175 = vpack.c.b16 %v3150, %v3149
    %vm3176 = vcmask 1044480
    %v3177 = vrot.slane %v3151, 3
    %v3178 = vrot.slane %v3152, 3
    %v3179 = vsel %vm3176, %v3177, %v3178
    %v3180 = vrot.slane %v3153, 3
    %v3181 = vsel %vm3176, %v3178, %v3180
    %v3182 = vrot.slane %v3154, 3
    %v3183 = vsel %vm3176, %v3180, %v3182
    %v3184 = vrot.slane %v3155, 3
    %v3185 = vsel %vm3176, %v3182, %v3184
    %v3186 = vrot.slane %v3156, 3
    %v3187 = vsel %vm3176, %v3184, %v3186
    %v3188 = vrot.slane %v3157, 3
    %v3189 = vsel %vm3176, %v3186, %v3188
    %v3190 = vrot.slane %v3158, 3
    %v3191 = vsel %vm3176, %v3188, %v3190
    %v3192 = vrot.slane %v3159, 3
    %v3193 = vsel %vm3176, %v3190, %v3192
    %v3194 = vrot.slane %v3160, 3
    %v3195 = vsel %vm3176, %v3192, %v3194
    %v3196 = vrot.slane %v3161, 3
    %v3197 = vsel %vm3176, %v3194, %v3196
    %v3198 = vrot.slane %v3162, 3
    %v3199 = vsel %vm3176, %v3196, %v3198
    %v3200 = vrot.slane %v3163, 3
    %v3201 = vsel %vm3176, %v3198, %v3200
    %v3202 = vrot.slane %v3164, 3
    %v3203 = vsel %vm3176, %v3200, %v3202
    %v3204 = vrot.slane %v3165, 3
    %v3205 = vsel %vm3176, %v3202, %v3204
    %v3206 = vrot.slane %v3166, 3
    %v3207 = vsel %vm3176, %v3204, %v3206
    %v3208 = vrot.slane %v3167, 3
    %v3209 = vsel %vm3176, %v3206, %v3208
    %v3210 = vrot.slane %v3168, 3
    %v3211 = vsel %vm3176, %v3208, %v3210
    %v3212 = vrot.slane %v3169, 3
    %v3213 = vsel %vm3176, %v3210, %v3212
    %v3214 = vrot.slane %v3170, 3
    %v3215 = vsel %vm3176, %v3212, %v3214
    %v3216 = vrot.slane %v3171, 3
    %v3217 = vsel %vm3176, %v3214, %v3216
    %v3218 = vrot.slane %v3172, 3
    %v3219 = vsel %vm3176, %v3216, %v3218
    %v3220 = vrot.slane %v3173, 3
    %v3221 = vsel %vm3176, %v3218, %v3220
    %v3222 = vrot.slane %v3174, 3
    %v3223 = vsel %vm3176, %v3220, %v3222
    %v3224 = vrot.slane %v3175, 3
    %v3225 = vsel %vm3176, %v3222, %v3224
    %v3228 = vunpack.c.l.b16 %v3049
    %v3229 = vunpack.c.l.b16 %v3050
    %v3230 = vpack.c.b16 %v3229, %v3228
    %v3233 = vsel %vm232, %v3179, 0
    %v3236 = vsel %vm232, %v3181, 0
    %v3239 = vsel %vm232, %v3183, 0
    %v3242 = vsel %vm232, %v3185, 0
    %v3245 = vsel %vm232, %v3187, 0
    %v3248 = vsel %vm232, %v3189, 0
    %v3251 = vsel %vm232, %v3191, 0
    %v3254 = vsel %vm232, %v3193, 0
    %v3257 = vsel %vm232, %v3195, 0
    %v3260 = vsel %vm232, %v3197, 0
    %v3263 = vsel %vm232, %v3199, 0
    %v3266 = vsel %vm232, %v3201, 0
    %v3269 = vsel %vm232, %v3203, 0
    %v3272 = vsel %vm232, %v3205, 0
    %v3275 = vsel %vm232, %v3207, 0
    %v3278 = vsel %vm232, %v3209, 0
    %v3281 = vsel %vm232, %v3211, 0
    %v3284 = vsel %vm232, %v3213, 0
    %v3287 = vsel %vm232, %v3215, 0
    %v3290 = vsel %vm232, %v3217, 0
    %v3293 = vsel %vm232, %v3219, 0
    %v3296 = vsel %vm232, %v3221, 0
    %v3299 = vsel %vm232, %v3223, 0
    %v3302 = vsel %vm232, %v3225, 0
    %v3305 = vsel %vm232, %v3224, 0
    %3307 = vmatprep.subr.bf16.mxu0 0
    %3308 = vmatpush1.bf16.msra.mxu0 %v3230
    %3309 = vmatprep.subr.bf16.mxu0 0
    %3310 = vmatpush1.bf16.msra.mxu0 0
    %3311 = vmatprep.subr.bf16.mxu0 0
    %3312 = vmatpush1.bf16.msra.mxu0 0
    %3313 = vmatprep.subr.bf16.mxu0 0
    %3314 = vmatpush1.bf16.msra.mxu0 0
    %3315 = vmatprep.subr.bf16.mxu0 0
    %3316 = vmatpush1.bf16.msra.mxu0 0
    %3317 = vmatprep.subr.bf16.mxu0 0
    %3318 = vmatpush1.bf16.msra.mxu0 0
    %3319 = vmatprep.subr.bf16.mxu0 0
    %3320 = vmatpush1.bf16.msra.mxu0 0
    %3321 = vmatprep.subr.bf16.mxu0 0
    %3322 = vmatpush1.bf16.msra.mxu0 0
    %3323 = vmatprep.subr.bf16.mxu0 0
    %3324 = vmatpush1.bf16.msra.mxu0 0
    %3325 = vmatprep.subr.bf16.mxu0 0
    %3326 = vmatpush1.bf16.msra.mxu0 0
    %3327 = vmatprep.subr.bf16.mxu0 0
    %3328 = vmatpush1.bf16.msra.mxu0 0
    %3329 = vmatprep.subr.bf16.mxu0 0
    %3330 = vmatpush1.bf16.msra.mxu0 0
    %3331 = vmatprep.subr.bf16.mxu0 0
    %3332 = vmatpush1.bf16.msra.mxu0 0
    %3333 = vmatprep.subr.bf16.mxu0 0
    %3334 = vmatpush1.bf16.msra.mxu0 0
    %3335 = vmatprep.subr.bf16.mxu0 0
    %3336 = vmatpush1.bf16.msra.mxu0 0
    %3337 = vmatprep.subr.bf16.mxu0 0
    %3338 = vmatpush1.bf16.msra.mxu0 0
    %3339 = vmatprep.mubr.bf16.mxu0 0
    %3340 = vmatmul.mubr.bf16.gmra.mrb[0].mxu0 %v3233
    %v3341 = vpop.f32.mrb[0].mxu0
    %v3342 = vadd.f32 0.0, %v3341
    %v3343 = vpop.f32.mrb[0].mxu0
    %v3344 = vpop.f32.mrb[0].mxu0
    %v3345 = vadd.f32 0.0, %v3344
    %v3346 = vpop.f32.mrb[0].mxu0
    %3347 = vmatprep.mubr.bf16.mxu0 0
    %3348 = vmatmul.mubr.bf16.gmra.mrb[0].mxu0 %v3236
    %v3349 = vpop.f32.mrb[0].mxu0
    %v3350 = vadd.f32 0.0, %v3349
    %v3351 = vpop.f32.mrb[0].mxu0
    %v3352 = vpop.f32.mrb[0].mxu0
    %v3353 = vadd.f32 0.0, %v3352
    %v3354 = vpop.f32.mrb[0].mxu0
    %3355 = vmatprep.mubr.bf16.mxu0 0
    %3356 = vmatmul.mubr.bf16.gmra.mrb[0].mxu0 %v3239
    %v3357 = vpop.f32.mrb[0].mxu0
    %v3358 = vadd.f32 0.0, %v3357
    %v3359 = vpop.f32.mrb[0].mxu0
    %v3360 = vpop.f32.mrb[0].mxu0
    %v3361 = vadd.f32 0.0, %v3360
    %v3362 = vpop.f32.mrb[0].mxu0
    %3363 = vmatprep.mubr.bf16.mxu0 0
    %3364 = vmatmul.mubr.bf16.gmra.mrb[0].mxu0 %v3242
    %v3365 = vpop.f32.mrb[0].mxu0
    %v3366 = vadd.f32 0.0, %v3365
    %v3367 = vpop.f32.mrb[0].mxu0
    %v3368 = vpop.f32.mrb[0].mxu0
    %v3369 = vadd.f32 0.0, %v3368
    %v3370 = vpop.f32.mrb[0].mxu0
    %3371 = vmatprep.mubr.bf16.mxu0 0
    %3372 = vmatmul.mubr.bf16.gmra.mrb[0].mxu0 %v3245
    %v3373 = vpop.f32.mrb[0].mxu0
    %v3374 = vadd.f32 0.0, %v3373
    %v3375 = vpop.f32.mrb[0].mxu0
    %v3376 = vpop.f32.mrb[0].mxu0
    %v3377 = vadd.f32 0.0, %v3376
    %v3378 = vpop.f32.mrb[0].mxu0
    %3379 = vmatprep.mubr.bf16.mxu0 0
    %3380 = vmatmul.mubr.bf16.gmra.mrb[0].mxu0 %v3248
    %v3381 = vpop.f32.mrb[0].mxu0
    %v3382 = vadd.f32 0.0, %v3381
    %v3383 = vpop.f32.mrb[0].mxu0
    %v3384 = vpop.f32.mrb[0].mxu0
    %v3385 = vadd.f32 0.0, %v3384
    %v3386 = vpop.f32.mrb[0].mxu0
    %3387 = vmatprep.mubr.bf16.mxu0 0
    %3388 = vmatmul.mubr.bf16.gmra.mrb[0].mxu0 %v3251
    %v3389 = vpop.f32.mrb[0].mxu0
    %v3390 = vadd.f32 0.0, %v3389
    %v3391 = vpop.f32.mrb[0].mxu0
    %v3392 = vpop.f32.mrb[0].mxu0
    %v3393 = vadd.f32 0.0, %v3392
    %v3394 = vpop.f32.mrb[0].mxu0
    %3395 = vmatprep.mubr.bf16.mxu0 0
    %3396 = vmatmul.mubr.bf16.gmra.mrb[0].mxu0 %v3254
    %v3397 = vpop.f32.mrb[0].mxu0
    %v3398 = vadd.f32 0.0, %v3397
    %v3399 = vpop.f32.mrb[0].mxu0
    %v3400 = vpop.f32.mrb[0].mxu0
    %v3401 = vadd.f32 0.0, %v3400
    %v3402 = vpop.f32.mrb[0].mxu0
    %3403 = vmatprep.mubr.bf16.mxu0 0
    %3404 = vmatmul.mubr.bf16.gmra.mrb[0].mxu0 %v3257
    %v3405 = vpop.f32.mrb[0].mxu0
    %v3406 = vadd.f32 0.0, %v3405
    %v3407 = vpop.f32.mrb[0].mxu0
    %v3408 = vpop.f32.mrb[0].mxu0
    %v3409 = vadd.f32 0.0, %v3408
    %v3410 = vpop.f32.mrb[0].mxu0
    %3411 = vmatprep.mubr.bf16.mxu0 0
    %3412 = vmatmul.mubr.bf16.gmra.mrb[0].mxu0 %v3260
    %v3413 = vpop.f32.mrb[0].mxu0
    %v3414 = vadd.f32 0.0, %v3413
    %v3415 = vpop.f32.mrb[0].mxu0
    %v3416 = vpop.f32.mrb[0].mxu0
    %v3417 = vadd.f32 0.0, %v3416
    %v3418 = vpop.f32.mrb[0].mxu0
    %3419 = vmatprep.mubr.bf16.mxu0 0
    %3420 = vmatmul.mubr.bf16.gmra.mrb[0].mxu0 %v3263
    %v3421 = vpop.f32.mrb[0].mxu0
    %v3422 = vadd.f32 0.0, %v3421
    %v3423 = vpop.f32.mrb[0].mxu0
    %v3424 = vpop.f32.mrb[0].mxu0
    %v3425 = vadd.f32 0.0, %v3424
    %v3426 = vpop.f32.mrb[0].mxu0
    %3427 = vmatprep.mubr.bf16.mxu0 0
    %3428 = vmatmul.mubr.bf16.gmra.mrb[0].mxu0 %v3266
    %v3429 = vpop.f32.mrb[0].mxu0
    %v3430 = vadd.f32 0.0, %v3429
    %v3431 = vpop.f32.mrb[0].mxu0
    %v3432 = vpop.f32.mrb[0].mxu0
    %v3433 = vadd.f32 0.0, %v3432
    %v3434 = vpop.f32.mrb[0].mxu0
    %3435 = vmatprep.mubr.bf16.mxu0 0
    %3436 = vmatmul.mubr.bf16.gmra.mrb[0].mxu0 %v3269
    %v3437 = vpop.f32.mrb[0].mxu0
    %v3438 = vadd.f32 0.0, %v3437
    %v3439 = vpop.f32.mrb[0].mxu0
    %v3440 = vpop.f32.mrb[0].mxu0
    %v3441 = vadd.f32 0.0, %v3440
    %v3442 = vpop.f32.mrb[0].mxu0
    %3443 = vmatprep.mubr.bf16.mxu0 0
    %3444 = vmatmul.mubr.bf16.gmra.mrb[0].mxu0 %v3272
    %v3445 = vpop.f32.mrb[0].mxu0
    %v3446 = vadd.f32 0.0, %v3445
    %v3447 = vpop.f32.mrb[0].mxu0
    %v3448 = vpop.f32.mrb[0].mxu0
    %v3449 = vadd.f32 0.0, %v3448
    %v3450 = vpop.f32.mrb[0].mxu0
    %3451 = vmatprep.mubr.bf16.mxu0 0
    %3452 = vmatmul.mubr.bf16.gmra.mrb[0].mxu0 %v3275
    %v3453 = vpop.f32.mrb[0].mxu0
    %v3454 = vadd.f32 0.0, %v3453
    %v3455 = vpop.f32.mrb[0].mxu0
    %v3456 = vpop.f32.mrb[0].mxu0
    %v3457 = vadd.f32 0.0, %v3456
    %v3458 = vpop.f32.mrb[0].mxu0
    %3459 = vmatprep.mubr.bf16.mxu0 0
    %3460 = vmatmul.mubr.bf16.gmra.mrb[0].mxu0 %v3278
    %v3461 = vpop.f32.mrb[0].mxu0
    %v3462 = vadd.f32 0.0, %v3461
    %v3463 = vpop.f32.mrb[0].mxu0
    %v3464 = vpop.f32.mrb[0].mxu0
    %v3465 = vadd.f32 0.0, %v3464
    %v3466 = vpop.f32.mrb[0].mxu0
    %3467 = vmatprep.mubr.bf16.mxu0 0
    %3468 = vmatmul.mubr.bf16.gmra.mrb[0].mxu0 %v3281
    %v3469 = vpop.f32.mrb[0].mxu0
    %v3470 = vadd.f32 0.0, %v3469
    %v3471 = vpop.f32.mrb[0].mxu0
    %v3472 = vpop.f32.mrb[0].mxu0
    %v3473 = vadd.f32 0.0, %v3472
    %v3474 = vpop.f32.mrb[0].mxu0
    %3475 = vmatprep.mubr.bf16.mxu0 0
    %3476 = vmatmul.mubr.bf16.gmra.mrb[0].mxu0 %v3284
    %v3477 = vpop.f32.mrb[0].mxu0
    %v3478 = vadd.f32 0.0, %v3477
    %v3479 = vpop.f32.mrb[0].mxu0
    %v3480 = vpop.f32.mrb[0].mxu0
    %v3481 = vadd.f32 0.0, %v3480
    %v3482 = vpop.f32.mrb[0].mxu0
    %3483 = vmatprep.mubr.bf16.mxu0 0
    %3484 = vmatmul.mubr.bf16.gmra.mrb[0].mxu0 %v3287
    %v3485 = vpop.f32.mrb[0].mxu0
    %v3486 = vadd.f32 0.0, %v3485
    %v3487 = vpop.f32.mrb[0].mxu0
    %v3488 = vpop.f32.mrb[0].mxu0
    %v3489 = vadd.f32 0.0, %v3488
    %v3490 = vpop.f32.mrb[0].mxu0
    %3491 = vmatprep.mubr.bf16.mxu0 0
    %3492 = vmatmul.mubr.bf16.gmra.mrb[0].mxu0 %v3290
    %v3493 = vpop.f32.mrb[0].mxu0
    %v3494 = vadd.f32 0.0, %v3493
    %v3495 = vpop.f32.mrb[0].mxu0
    %v3496 = vpop.f32.mrb[0].mxu0
    %v3497 = vadd.f32 0.0, %v3496
    %v3498 = vpop.f32.mrb[0].mxu0
    %3499 = vmatprep.mubr.bf16.mxu0 0
    %3500 = vmatmul.mubr.bf16.gmra.mrb[0].mxu0 %v3293
    %v3501 = vpop.f32.mrb[0].mxu0
    %v3502 = vadd.f32 0.0, %v3501
    %v3503 = vpop.f32.mrb[0].mxu0
    %v3504 = vpop.f32.mrb[0].mxu0
    %v3505 = vadd.f32 0.0, %v3504
    %v3506 = vpop.f32.mrb[0].mxu0
    %3507 = vmatprep.mubr.bf16.mxu0 0
    %3508 = vmatmul.mubr.bf16.gmra.mrb[0].mxu0 %v3296
    %v3509 = vpop.f32.mrb[0].mxu0
    %v3510 = vadd.f32 0.0, %v3509
    %v3511 = vpop.f32.mrb[0].mxu0
    %v3512 = vpop.f32.mrb[0].mxu0
    %v3513 = vadd.f32 0.0, %v3512
    %v3514 = vpop.f32.mrb[0].mxu0
    %3515 = vmatprep.mubr.bf16.mxu0 0
    %3516 = vmatmul.mubr.bf16.gmra.mrb[0].mxu0 %v3299
    %v3517 = vpop.f32.mrb[0].mxu0
    %v3518 = vadd.f32 0.0, %v3517
    %v3519 = vpop.f32.mrb[0].mxu0
    %v3520 = vpop.f32.mrb[0].mxu0
    %v3521 = vadd.f32 0.0, %v3520
    %v3522 = vpop.f32.mrb[0].mxu0
    %3523 = vmatprep.mubr.bf16.mxu0 0
    %3524 = vmatmul.mubr.bf16.gmra.mrb[0].mxu0 %v3302
    %v3525 = vpop.f32.mrb[0].mxu0
    %v3526 = vadd.f32 0.0, %v3525
    %v3527 = vpop.f32.mrb[0].mxu0
    %v3528 = vpop.f32.mrb[0].mxu0
    %v3529 = vadd.f32 0.0, %v3528
    %v3530 = vpop.f32.mrb[0].mxu0
    %3531 = vmatprep.mubr.bf16.mxu0 0
    %3532 = vmatmul.mubr.bf16.gmra.mrb[0].mxu0 %v3305
    %v3533 = vpop.f32.mrb[0].mxu0
    %v3534 = vadd.f32 0.0, %v3533
    %v3535 = vpop.f32.mrb[0].mxu0
    %v3536 = vpop.f32.mrb[0].mxu0
    %v3537 = vpop.f32.mrb[0].mxu0
    %3538 = vdwg.mxu0
    %v3539 = vadd.f32 %v2950, %v3342
    %v3540 = vadd.f32 %v2951, %v3345
    %v3541 = vadd.f32 %v2952, %v3350
    %v3542 = vadd.f32 %v2953, %v3353
    %v3543 = vadd.f32 %v2954, %v3358
    %v3544 = vadd.f32 %v2955, %v3361
    %v3545 = vadd.f32 %v2956, %v3366
    %v3546 = vadd.f32 %v2957, %v3369
    %v3547 = vadd.f32 %v2958, %v3374
    %v3548 = vadd.f32 %v2959, %v3377
    %v3549 = vadd.f32 %v2960, %v3382
    %v3550 = vadd.f32 %v2961, %v3385
    %v3551 = vadd.f32 %v2962, %v3390
    %v3552 = vadd.f32 %v2963, %v3393
    %v3553 = vadd.f32 %v2964, %v3398
    %v3554 = vadd.f32 %v2965, %v3401
    %v3555 = vadd.f32 %v2966, %v3406
    %v3556 = vadd.f32 %v2967, %v3409
    %v3557 = vadd.f32 %v2968, %v3414
    %v3558 = vadd.f32 %v2969, %v3417
    %v3559 = vadd.f32 %v2970, %v3422
    %v3560 = vadd.f32 %v2971, %v3425
    %v3561 = vadd.f32 %v2972, %v3430
    %v3562 = vadd.f32 %v2973, %v3433
    %v3563 = vadd.f32 %v2974, %v3438
    %v3564 = vadd.f32 %v2975, %v3441
    %v3565 = vadd.f32 %v2976, %v3446
    %v3566 = vadd.f32 %v2977, %v3449
    %v3567 = vadd.f32 %v2978, %v3454
    %v3568 = vadd.f32 %v2979, %v3457
    %v3569 = vadd.f32 %v2980, %v3462
    %v3570 = vadd.f32 %v2981, %v3465
    %v3571 = vadd.f32 %v2982, %v3470
    %v3572 = vadd.f32 %v2983, %v3473
    %v3573 = vadd.f32 %v2984, %v3478
    %v3574 = vadd.f32 %v2985, %v3481
    %v3575 = vadd.f32 %v2986, %v3486
    %v3576 = vadd.f32 %v2987, %v3489
    %v3577 = vadd.f32 %v2988, %v3494
    %v3578 = vadd.f32 %v2989, %v3497
    %v3579 = vadd.f32 %v2990, %v3502
    %v3580 = vadd.f32 %v2991, %v3505
    %v3581 = vadd.f32 %v2992, %v3510
    %v3582 = vadd.f32 %v2993, %v3513
    %v3583 = vadd.f32 %v2994, %v3518
    %v3584 = vadd.f32 %v2995, %v3521
    %v3585 = vadd.f32 %v2996, %v3526
    %v3586 = vadd.f32 %v2997, %v3529
    %v3587 = vadd.f32 %v2998, %v3534
    %3588 = vst.msk [vmem:[#allocation3] sm:$0xff] %vm1376, %v3539
    %3589 = vst.msk [vmem:[#allocation3 + $0x8] sm:$0xff] %vm1376, %v3540
    %3590 = vst.msk [vmem:[#allocation3 + $0x10] sm:$0xff] %vm1376, %v3541
    %3591 = vst.msk [vmem:[#allocation3 + $0x18] sm:$0xff] %vm1376, %v3542
    %3592 = vst.msk [vmem:[#allocation3 + $0x20] sm:$0xff] %vm1376, %v3543
    %3593 = vst.msk [vmem:[#allocation3 + $0x28] sm:$0xff] %vm1376, %v3544
    %3594 = vst.msk [vmem:[#allocation3 + $0x30] sm:$0xff] %vm1376, %v3545
    %3595 = vst.msk [vmem:[#allocation3 + $0x38] sm:$0xff] %vm1376, %v3546
    %3596 = vst.msk [vmem:[#allocation3 + $0x40] sm:$0xff] %vm1376, %v3547
    %3597 = vst.msk [vmem:[#allocation3 + $0x48] sm:$0xff] %vm1376, %v3548
    %3598 = vst.msk [vmem:[#allocation3 + $0x50] sm:$0xff] %vm1376, %v3549
    %3599 = vst.msk [vmem:[#allocation3 + $0x58] sm:$0xff] %vm1376, %v3550
    %3600 = vst.msk [vmem:[#allocation3 + $0x60] sm:$0xff] %vm1376, %v3551
    %3601 = vst.msk [vmem:[#allocation3 + $0x68] sm:$0xff] %vm1376, %v3552
    %3602 = vst.msk [vmem:[#allocation3 + $0x70] sm:$0xff] %vm1376, %v3553
    %3603 = vst.msk [vmem:[#allocation3 + $0x78] sm:$0xff] %vm1376, %v3554
    %3604 = vst.msk [vmem:[#allocation3 + $0x80] sm:$0xff] %vm1376, %v3555
    %3605 = vst.msk [vmem:[#allocation3 + $0x88] sm:$0xff] %vm1376, %v3556
    %3606 = vst.msk [vmem:[#allocation3 + $0x90] sm:$0xff] %vm1376, %v3557
    %3607 = vst.msk [vmem:[#allocation3 + $0x98] sm:$0xff] %vm1376, %v3558
    %3608 = vst.msk [vmem:[#allocation3 + $0xa0] sm:$0xff] %vm1376, %v3559
    %3609 = vst.msk [vmem:[#allocation3 + $0xa8] sm:$0xff] %vm1376, %v3560
    %3610 = vst.msk [vmem:[#allocation3 + $0xb0] sm:$0xff] %vm1376, %v3561
    %3611 = vst.msk [vmem:[#allocation3 + $0xb8] sm:$0xff] %vm1376, %v3562
    %3612 = vst.msk [vmem:[#allocation3 + $0xc0] sm:$0xff] %vm1376, %v3563
    %3613 = vst.msk [vmem:[#allocation3 + $0xc8] sm:$0xff] %vm1376, %v3564
    %3614 = vst.msk [vmem:[#allocation3 + $0xd0] sm:$0xff] %vm1376, %v3565
    %3615 = vst.msk [vmem:[#allocation3 + $0xd8] sm:$0xff] %vm1376, %v3566
    %3616 = vst.msk [vmem:[#allocation3 + $0xe0] sm:$0xff] %vm1376, %v3567
    %3617 = vst.msk [vmem:[#allocation3 + $0xe8] sm:$0xff] %vm1376, %v3568
    %3618 = vst.msk [vmem:[#allocation3 + $0xf0] sm:$0xff] %vm1376, %v3569
    %3619 = vst.msk [vmem:[#allocation3 + $0xf8] sm:$0xff] %vm1376, %v3570
    %3620 = vst.msk [vmem:[#allocation3 + $0x100] sm:$0xff] %vm1376, %v3571
    %3621 = vst.msk [vmem:[#allocation3 + $0x108] sm:$0xff] %vm1376, %v3572
    %3622 = vst.msk [vmem:[#allocation3 + $0x110] sm:$0xff] %vm1376, %v3573
    %3623 = vst.msk [vmem:[#allocation3 + $0x118] sm:$0xff] %vm1376, %v3574
    %3624 = vst.msk [vmem:[#allocation3 + $0x120] sm:$0xff] %vm1376, %v3575
    %3625 = vst.msk [vmem:[#allocation3 + $0x128] sm:$0xff] %vm1376, %v3576
    %3626 = vst.msk [vmem:[#allocation3 + $0x130] sm:$0xff] %vm1376, %v3577
    %3627 = vst.msk [vmem:[#allocation3 + $0x138] sm:$0xff] %vm1376, %v3578
    %3628 = vst.msk [vmem:[#allocation3 + $0x140] sm:$0xff] %vm1376, %v3579
    %3629 = vst.msk [vmem:[#allocation3 + $0x148] sm:$0xff] %vm1376, %v3580
    %3630 = vst.msk [vmem:[#allocation3 + $0x150] sm:$0xff] %vm1376, %v3581
    %3631 = vst.msk [vmem:[#allocation3 + $0x158] sm:$0xff] %vm1376, %v3582
    %3632 = vst.msk [vmem:[#allocation3 + $0x160] sm:$0xff] %vm1376, %v3583
    %3633 = vst.msk [vmem:[#allocation3 + $0x168] sm:$0xff] %vm1376, %v3584
    %3634 = vst.msk [vmem:[#allocation3 + $0x170] sm:$0xff] %vm1376, %v3585
    %3635 = vst.msk [vmem:[#allocation3 + $0x178] sm:$0xff] %vm1376, %v3586
    %3636 = vst.msk [vmem:[#allocation3 + $0x180] sm:$0xff] %vm1376, %v3587
    %v3637 = vld [vmem:[#allocation3] sm:$0xff]
    %v3638 = vld [vmem:[#allocation3 + $0x8] sm:$0xff]
    %v3639 = vld [vmem:[#allocation3 + $0x10] sm:$0xff]
    %v3640 = vld [vmem:[#allocation3 + $0x18] sm:$0xff]
    %v3641 = vld [vmem:[#allocation3 + $0x20] sm:$0xff]
    %v3642 = vld [vmem:[#allocation3 + $0x28] sm:$0xff]
    %v3643 = vld [vmem:[#allocation3 + $0x30] sm:$0xff]
    %v3644 = vld [vmem:[#allocation3 + $0x38] sm:$0xff]
    %v3645 = vld [vmem:[#allocation3 + $0x40] sm:$0xff]
    %v3646 = vld [vmem:[#allocation3 + $0x48] sm:$0xff]
    %v3647 = vld [vmem:[#allocation3 + $0x50] sm:$0xff]
    %v3648 = vld [vmem:[#allocation3 + $0x58] sm:$0xff]
    %v3649 = vld [vmem:[#allocation3 + $0x60] sm:$0xff]
    %v3650 = vld [vmem:[#allocation3 + $0x68] sm:$0xff]
    %v3651 = vld [vmem:[#allocation3 + $0x70] sm:$0xff]
    %v3652 = vld [vmem:[#allocation3 + $0x78] sm:$0xff]
    %v3653 = vld [vmem:[#allocation3 + $0x80] sm:$0xff]
    %v3654 = vld [vmem:[#allocation3 + $0x88] sm:$0xff]
    %v3655 = vld [vmem:[#allocation3 + $0x90] sm:$0xff]
    %v3656 = vld [vmem:[#allocation3 + $0x98] sm:$0xff]
    %v3657 = vld [vmem:[#allocation3 + $0xa0] sm:$0xff]
    %v3658 = vld [vmem:[#allocation3 + $0xa8] sm:$0xff]
    %v3659 = vld [vmem:[#allocation3 + $0xb0] sm:$0xff]
    %v3660 = vld [vmem:[#allocation3 + $0xb8] sm:$0xff]
    %v3661 = vld [vmem:[#allocation3 + $0xc0] sm:$0xff]
    %v3662 = vld [vmem:[#allocation3 + $0xc8] sm:$0xff]
    %v3663 = vld [vmem:[#allocation3 + $0xd0] sm:$0xff]
    %v3664 = vld [vmem:[#allocation3 + $0xd8] sm:$0xff]
    %v3665 = vld [vmem:[#allocation3 + $0xe0] sm:$0xff]
    %v3666 = vld [vmem:[#allocation3 + $0xe8] sm:$0xff]
    %v3667 = vld [vmem:[#allocation3 + $0xf0] sm:$0xff]
    %v3668 = vld [vmem:[#allocation3 + $0xf8] sm:$0xff]
    %v3669 = vld [vmem:[#allocation3 + $0x100] sm:$0xff]
    %v3670 = vld [vmem:[#allocation3 + $0x108] sm:$0xff]
    %v3671 = vld [vmem:[#allocation3 + $0x110] sm:$0xff]
    %v3672 = vld [vmem:[#allocation3 + $0x118] sm:$0xff]
    %v3673 = vld [vmem:[#allocation3 + $0x120] sm:$0xff]
    %v3674 = vld [vmem:[#allocation3 + $0x128] sm:$0xff]
    %v3675 = vld [vmem:[#allocation3 + $0x130] sm:$0xff]
    %v3676 = vld [vmem:[#allocation3 + $0x138] sm:$0xff]
    %v3677 = vld [vmem:[#allocation3 + $0x140] sm:$0xff]
    %v3678 = vld [vmem:[#allocation3 + $0x148] sm:$0xff]
    %v3679 = vld [vmem:[#allocation3 + $0x150] sm:$0xff]
    %v3680 = vld [vmem:[#allocation3 + $0x158] sm:$0xff]
    %v3681 = vld [vmem:[#allocation3 + $0x160] sm:$0xff]
    %v3682 = vld [vmem:[#allocation3 + $0x168] sm:$0xff]
    %v3683 = vld [vmem:[#allocation3 + $0x170] sm:$0xff]
    %v3684 = vld [vmem:[#allocation3 + $0x178] sm:$0xff]
    %v3685 = vld [vmem:[#allocation3 + $0x180] sm:$0xff]
    %v3686 = vld [vmem:[#allocation2 + $0x4] sm:$0x8]
    %v3687 = vld [vmem:[#allocation2 + $0x8] sm:$0xf]
    %v3688 = vld [vmem:[#allocation2 + $0xc] sm:$0xf]
    %v3689 = vld [vmem:[#allocation2 + $0x10] sm:$0xf]
    %v3690 = vld [vmem:[#allocation2 + $0x14] sm:$0xf]
    %v3691 = vld [vmem:[#allocation2 + $0x18] sm:$0xf]
    %v3692 = vld [vmem:[#allocation2 + $0x1c] sm:$0xf]
    %v3693 = vld [vmem:[#allocation2 + $0x20] sm:$0xf]
    %v3694 = vld [vmem:[#allocation2 + $0x24] sm:$0xf]
    %v3695 = vld [vmem:[#allocation2 + $0x28] sm:$0xf]
    %v3696 = vld [vmem:[#allocation2 + $0x2c] sm:$0xf]
    %v3697 = vld [vmem:[#allocation2 + $0x30] sm:$0xf]
    %v3698 = vld [vmem:[#allocation2 + $0x34] sm:$0xf]
    %v3699 = vld [vmem:[#allocation2 + $0x38] sm:$0xf]
    %v3700 = vld [vmem:[#allocation2 + $0x3c] sm:$0xf]
    %v3701 = vld [vmem:[#allocation2 + $0x40] sm:$0xf]
    %v3702 = vld [vmem:[#allocation2 + $0x44] sm:$0xf]
    %v3703 = vld [vmem:[#allocation2 + $0x48] sm:$0xf]
    %v3704 = vld [vmem:[#allocation2 + $0x4c] sm:$0xf]
    %v3705 = vld [vmem:[#allocation2 + $0x50] sm:$0xf]
    %v3706 = vld [vmem:[#allocation2 + $0x54] sm:$0xf]
    %v3707 = vld [vmem:[#allocation2 + $0x58] sm:$0xf]
    %v3708 = vld [vmem:[#allocation2 + $0x5c] sm:$0xf]
    %v3709 = vld [vmem:[#allocation2 + $0x60] sm:$0xf]
    %v3710 = vld [vmem:[#allocation2 + $0x64] sm:$0xf]
    %v3711 = vld [vmem:[#allocation2 + $0x68] sm:$0xf]
    %v3712 = vld [vmem:[#allocation2 + $0x6c] sm:$0xf]
    %v3713 = vld [vmem:[#allocation2 + $0x70] sm:$0xf]
    %v3714 = vld [vmem:[#allocation2 + $0x74] sm:$0xf]
    %v3715 = vld [vmem:[#allocation2 + $0x78] sm:$0xf]
    %v3716 = vld [vmem:[#allocation2 + $0x7c] sm:$0xf]
    %v3717 = vld [vmem:[#allocation2 + $0x80] sm:$0xf]
    %v3718 = vld [vmem:[#allocation2 + $0x84] sm:$0xf]
    %v3719 = vld [vmem:[#allocation2 + $0x88] sm:$0xf]
    %v3720 = vld [vmem:[#allocation2 + $0x8c] sm:$0xf]
    %v3721 = vld [vmem:[#allocation2 + $0x90] sm:$0xf]
    %v3722 = vld [vmem:[#allocation2 + $0x94] sm:$0xf]
    %v3723 = vld [vmem:[#allocation2 + $0x98] sm:$0xf]
    %v3724 = vld [vmem:[#allocation2 + $0x9c] sm:$0xf]
    %v3725 = vld [vmem:[#allocation2 + $0xa0] sm:$0xf]
    %v3726 = vld [vmem:[#allocation2 + $0xa4] sm:$0xf]
    %v3727 = vld [vmem:[#allocation2 + $0xa8] sm:$0xf]
    %v3728 = vld [vmem:[#allocation2 + $0xac] sm:$0xf]
    %v3729 = vld [vmem:[#allocation2 + $0xb0] sm:$0xf]
    %v3730 = vld [vmem:[#allocation2 + $0xb4] sm:$0xf]
    %v3731 = vld [vmem:[#allocation2 + $0xb8] sm:$0xf]
    %v3732 = vld [vmem:[#allocation2 + $0xbc] sm:$0xf]
    %v3733 = vld [vmem:[#allocation2 + $0xc0] sm:$0xf]
    %v3734 = vld [vmem:[#allocation2 + $0xc4] sm:$0xf]
    %v3735 = vld [vmem:[#allocation2 + $0xc8] sm:$0xf]
    %v3736 = vld [vmem:[%s3 + $0x20] sm:$0xf]
    %v3737 = vld [vmem:[%s3 + $0x24] sm:$0xf]
    %v3788 = vunpack.c.l.b16 %v3686
    %v3789 = vunpack.c.l.b16 %v3687
    %v3790 = vunpack.c.l.b16 %v3688
    %v3791 = vunpack.c.l.b16 %v3689
    %v3792 = vunpack.c.l.b16 %v3690
    %v3793 = vunpack.c.l.b16 %v3691
    %v3794 = vunpack.c.l.b16 %v3692
    %v3795 = vunpack.c.l.b16 %v3693
    %v3796 = vunpack.c.l.b16 %v3694
    %v3797 = vunpack.c.l.b16 %v3695
    %v3798 = vunpack.c.l.b16 %v3696
    %v3799 = vunpack.c.l.b16 %v3697
    %v3800 = vunpack.c.l.b16 %v3698
    %v3801 = vunpack.c.l.b16 %v3699
    %v3802 = vunpack.c.l.b16 %v3700
    %v3803 = vunpack.c.l.b16 %v3701
    %v3804 = vunpack.c.l.b16 %v3702
    %v3805 = vunpack.c.l.b16 %v3703
    %v3806 = vunpack.c.l.b16 %v3704
    %v3807 = vunpack.c.l.b16 %v3705
    %v3808 = vunpack.c.l.b16 %v3706
    %v3809 = vunpack.c.l.b16 %v3707
    %v3810 = vunpack.c.l.b16 %v3708
    %v3811 = vunpack.c.l.b16 %v3709
    %v3812 = vunpack.c.l.b16 %v3710
    %v3813 = vunpack.c.l.b16 %v3711
    %v3814 = vunpack.c.l.b16 %v3712
    %v3815 = vunpack.c.l.b16 %v3713
    %v3816 = vunpack.c.l.b16 %v3714
    %v3817 = vunpack.c.l.b16 %v3715
    %v3818 = vunpack.c.l.b16 %v3716
    %v3819 = vunpack.c.l.b16 %v3717
    %v3820 = vunpack.c.l.b16 %v3718
    %v3821 = vunpack.c.l.b16 %v3719
    %v3822 = vunpack.c.l.b16 %v3720
    %v3823 = vunpack.c.l.b16 %v3721
    %v3824 = vunpack.c.l.b16 %v3722
    %v3825 = vunpack.c.l.b16 %v3723
    %v3826 = vunpack.c.l.b16 %v3724
    %v3827 = vunpack.c.l.b16 %v3725
    %v3828 = vunpack.c.l.b16 %v3726
    %v3829 = vunpack.c.l.b16 %v3727
    %v3830 = vunpack.c.l.b16 %v3728
    %v3831 = vunpack.c.l.b16 %v3729
    %v3832 = vunpack.c.l.b16 %v3730
    %v3833 = vunpack.c.l.b16 %v3731
    %v3834 = vunpack.c.l.b16 %v3732
    %v3835 = vunpack.c.l.b16 %v3733
    %v3836 = vunpack.c.l.b16 %v3734
    %v3837 = vunpack.c.l.b16 %v3735
    %v3838 = vpack.c.b16 %v3789, %v3788
    %v3839 = vpack.c.b16 %v3791, %v3790
    %v3840 = vpack.c.b16 %v3793, %v3792
    %v3841 = vpack.c.b16 %v3795, %v3794
    %v3842 = vpack.c.b16 %v3797, %v3796
    %v3843 = vpack.c.b16 %v3799, %v3798
    %v3844 = vpack.c.b16 %v3801, %v3800
    %v3845 = vpack.c.b16 %v3803, %v3802
    %v3846 = vpack.c.b16 %v3805, %v3804
    %v3847 = vpack.c.b16 %v3807, %v3806
    %v3848 = vpack.c.b16 %v3809, %v3808
    %v3849 = vpack.c.b16 %v3811, %v3810
    %v3850 = vpack.c.b16 %v3813, %v3812
    %v3851 = vpack.c.b16 %v3815, %v3814
    %v3852 = vpack.c.b16 %v3817, %v3816
    %v3853 = vpack.c.b16 %v3819, %v3818
    %v3854 = vpack.c.b16 %v3821, %v3820
    %v3855 = vpack.c.b16 %v3823, %v3822
    %v3856 = vpack.c.b16 %v3825, %v3824
    %v3857 = vpack.c.b16 %v3827, %v3826
    %v3858 = vpack.c.b16 %v3829, %v3828
    %v3859 = vpack.c.b16 %v3831, %v3830
    %v3860 = vpack.c.b16 %v3833, %v3832
    %v3861 = vpack.c.b16 %v3835, %v3834
    %v3862 = vpack.c.b16 %v3837, %v3836
    %vm3863 = vsmask.f32 4352
    %v3865 = vshrl.u32 %v3838, 16
    %v3867 = vrot.slane %v3865, 3
    %v3868 = vshll.u32 %v3838, 16
    %v3870 = vrot.slane %v3868, 4
    %v3871 = vor.u32 %v3867, %v3870
    %v3873 = vshrl.u32 %v3839, 16
    %v3875 = vrot.slane %v3873, 3
    %v3876 = vshll.u32 %v3839, 16
    %v3878 = vrot.slane %v3876, 4
    %v3879 = vor.u32 %v3875, %v3878
    %v3880 = vsel %vm3863, %v3871, %v3879
    %v3882 = vshrl.u32 %v3840, 16
    %v3884 = vrot.slane %v3882, 3
    %v3885 = vshll.u32 %v3840, 16
    %v3887 = vrot.slane %v3885, 4
    %v3888 = vor.u32 %v3884, %v3887
    %v3889 = vsel %vm3863, %v3879, %v3888
    %v3891 = vshrl.u32 %v3841, 16
    %v3893 = vrot.slane %v3891, 3
    %v3894 = vshll.u32 %v3841, 16
    %v3896 = vrot.slane %v3894, 4
    %v3897 = vor.u32 %v3893, %v3896
    %v3898 = vsel %vm3863, %v3888, %v3897
    %v3900 = vshrl.u32 %v3842, 16
    %v3902 = vrot.slane %v3900, 3
    %v3903 = vshll.u32 %v3842, 16
    %v3905 = vrot.slane %v3903, 4
    %v3906 = vor.u32 %v3902, %v3905
    %v3907 = vsel %vm3863, %v3897, %v3906
    %v3909 = vshrl.u32 %v3843, 16
    %v3911 = vrot.slane %v3909, 3
    %v3912 = vshll.u32 %v3843, 16
    %v3914 = vrot.slane %v3912, 4
    %v3915 = vor.u32 %v3911, %v3914
    %v3916 = vsel %vm3863, %v3906, %v3915
    %v3918 = vshrl.u32 %v3844, 16
    %v3920 = vrot.slane %v3918, 3
    %v3921 = vshll.u32 %v3844, 16
    %v3923 = vrot.slane %v3921, 4
    %v3924 = vor.u32 %v3920, %v3923
    %v3925 = vsel %vm3863, %v3915, %v3924
    %v3927 = vshrl.u32 %v3845, 16
    %v3929 = vrot.slane %v3927, 3
    %v3930 = vshll.u32 %v3845, 16
    %v3932 = vrot.slane %v3930, 4
    %v3933 = vor.u32 %v3929, %v3932
    %v3934 = vsel %vm3863, %v3924, %v3933
    %v3936 = vshrl.u32 %v3846, 16
    %v3938 = vrot.slane %v3936, 3
    %v3939 = vshll.u32 %v3846, 16
    %v3941 = vrot.slane %v3939, 4
    %v3942 = vor.u32 %v3938, %v3941
    %v3943 = vsel %vm3863, %v3933, %v3942
    %v3945 = vshrl.u32 %v3847, 16
    %v3947 = vrot.slane %v3945, 3
    %v3948 = vshll.u32 %v3847, 16
    %v3950 = vrot.slane %v3948, 4
    %v3951 = vor.u32 %v3947, %v3950
    %v3952 = vsel %vm3863, %v3942, %v3951
    %v3954 = vshrl.u32 %v3848, 16
    %v3956 = vrot.slane %v3954, 3
    %v3957 = vshll.u32 %v3848, 16
    %v3959 = vrot.slane %v3957, 4
    %v3960 = vor.u32 %v3956, %v3959
    %v3961 = vsel %vm3863, %v3951, %v3960
    %v3963 = vshrl.u32 %v3849, 16
    %v3965 = vrot.slane %v3963, 3
    %v3966 = vshll.u32 %v3849, 16
    %v3968 = vrot.slane %v3966, 4
    %v3969 = vor.u32 %v3965, %v3968
    %v3970 = vsel %vm3863, %v3960, %v3969
    %v3972 = vshrl.u32 %v3850, 16
    %v3974 = vrot.slane %v3972, 3
    %v3975 = vshll.u32 %v3850, 16
    %v3977 = vrot.slane %v3975, 4
    %v3978 = vor.u32 %v3974, %v3977
    %v3979 = vsel %vm3863, %v3969, %v3978
    %v3981 = vshrl.u32 %v3851, 16
    %v3983 = vrot.slane %v3981, 3
    %v3984 = vshll.u32 %v3851, 16
    %v3986 = vrot.slane %v3984, 4
    %v3987 = vor.u32 %v3983, %v3986
    %v3988 = vsel %vm3863, %v3978, %v3987
    %v3990 = vshrl.u32 %v3852, 16
    %v3992 = vrot.slane %v3990, 3
    %v3993 = vshll.u32 %v3852, 16
    %v3995 = vrot.slane %v3993, 4
    %v3996 = vor.u32 %v3992, %v3995
    %v3997 = vsel %vm3863, %v3987, %v3996
    %v3999 = vshrl.u32 %v3853, 16
    %v4001 = vrot.slane %v3999, 3
    %v4002 = vshll.u32 %v3853, 16
    %v4004 = vrot.slane %v4002, 4
    %v4005 = vor.u32 %v4001, %v4004
    %v4006 = vsel %vm3863, %v3996, %v4005
    %v4008 = vshrl.u32 %v3854, 16
    %v4010 = vrot.slane %v4008, 3
    %v4011 = vshll.u32 %v3854, 16
    %v4013 = vrot.slane %v4011, 4
    %v4014 = vor.u32 %v4010, %v4013
    %v4015 = vsel %vm3863, %v4005, %v4014
    %v4017 = vshrl.u32 %v3855, 16
    %v4019 = vrot.slane %v4017, 3
    %v4020 = vshll.u32 %v3855, 16
    %v4022 = vrot.slane %v4020, 4
    %v4023 = vor.u32 %v4019, %v4022
    %v4024 = vsel %vm3863, %v4014, %v4023
    %v4026 = vshrl.u32 %v3856, 16
    %v4028 = vrot.slane %v4026, 3
    %v4029 = vshll.u32 %v3856, 16
    %v4031 = vrot.slane %v4029, 4
    %v4032 = vor.u32 %v4028, %v4031
    %v4033 = vsel %vm3863, %v4023, %v4032
    %v4035 = vshrl.u32 %v3857, 16
    %v4037 = vrot.slane %v4035, 3
    %v4038 = vshll.u32 %v3857, 16
    %v4040 = vrot.slane %v4038, 4
    %v4041 = vor.u32 %v4037, %v4040
    %v4042 = vsel %vm3863, %v4032, %v4041
    %v4044 = vshrl.u32 %v3858, 16
    %v4046 = vrot.slane %v4044, 3
    %v4047 = vshll.u32 %v3858, 16
    %v4049 = vrot.slane %v4047, 4
    %v4050 = vor.u32 %v4046, %v4049
    %v4051 = vsel %vm3863, %v4041, %v4050
    %v4053 = vshrl.u32 %v3859, 16
    %v4055 = vrot.slane %v4053, 3
    %v4056 = vshll.u32 %v3859, 16
    %v4058 = vrot.slane %v4056, 4
    %v4059 = vor.u32 %v4055, %v4058
    %v4060 = vsel %vm3863, %v4050, %v4059
    %v4062 = vshrl.u32 %v3860, 16
    %v4064 = vrot.slane %v4062, 3
    %v4065 = vshll.u32 %v3860, 16
    %v4067 = vrot.slane %v4065, 4
    %v4068 = vor.u32 %v4064, %v4067
    %v4069 = vsel %vm3863, %v4059, %v4068
    %v4071 = vshrl.u32 %v3861, 16
    %v4073 = vrot.slane %v4071, 3
    %v4074 = vshll.u32 %v3861, 16
    %v4076 = vrot.slane %v4074, 4
    %v4077 = vor.u32 %v4073, %v4076
    %v4078 = vsel %vm3863, %v4068, %v4077
    %v4080 = vshrl.u32 %v3862, 16
    %v4082 = vrot.slane %v4080, 3
    %v4083 = vshll.u32 %v3862, 16
    %v4085 = vrot.slane %v4083, 4
    %v4086 = vor.u32 %v4082, %v4085
    %v4087 = vsel %vm3863, %v4077, %v4086
    %v4090 = vunpack.c.l.b16 %v3736
    %v4091 = vunpack.c.l.b16 %v3737
    %v4092 = vpack.c.b16 %v4091, %v4090
    %v4095 = vsel %vm232, %v3880, 0
    %v4098 = vsel %vm232, %v3889, 0
    %v4101 = vsel %vm232, %v3898, 0
    %v4104 = vsel %vm232, %v3907, 0
    %v4107 = vsel %vm232, %v3916, 0
    %v4110 = vsel %vm232, %v3925, 0
    %v4113 = vsel %vm232, %v3934, 0
    %v4116 = vsel %vm232, %v3943, 0
    %v4119 = vsel %vm232, %v3952, 0
    %v4122 = vsel %vm232, %v3961, 0
    %v4125 = vsel %vm232, %v3970, 0
    %v4128 = vsel %vm232, %v3979, 0
    %v4131 = vsel %vm232, %v3988, 0
    %v4134 = vsel %vm232, %v3997, 0
    %v4137 = vsel %vm232, %v4006, 0
    %v4140 = vsel %vm232, %v4015, 0
    %v4143 = vsel %vm232, %v4024, 0
    %v4146 = vsel %vm232, %v4033, 0
    %v4149 = vsel %vm232, %v4042, 0
    %v4152 = vsel %vm232, %v4051, 0
    %v4155 = vsel %vm232, %v4060, 0
    %v4158 = vsel %vm232, %v4069, 0
    %v4161 = vsel %vm232, %v4078, 0
    %v4164 = vsel %vm232, %v4087, 0
    %v4167 = vsel %vm232, %v4086, 0
    %4169 = vmatprep.subr.bf16.mxu0 0
    %4170 = vmatpush1.bf16.msra.mxu0 %v4092
    %4171 = vmatprep.subr.bf16.mxu0 0
    %4172 = vmatpush1.bf16.msra.mxu0 0
    %4173 = vmatprep.subr.bf16.mxu0 0
    %4174 = vmatpush1.bf16.msra.mxu0 0
    %4175 = vmatprep.subr.bf16.mxu0 0
    %4176 = vmatpush1.bf16.msra.mxu0 0
    %4177 = vmatprep.subr.bf16.mxu0 0
    %4178 = vmatpush1.bf16.msra.mxu0 0
    %4179 = vmatprep.subr.bf16.mxu0 0
    %4180 = vmatpush1.bf16.msra.mxu0 0
    %4181 = vmatprep.subr.bf16.mxu0 0
    %4182 = vmatpush1.bf16.msra.mxu0 0
    %4183 = vmatprep.subr.bf16.mxu0 0
    %4184 = vmatpush1.bf16.msra.mxu0 0
    %4185 = vmatprep.subr.bf16.mxu0 0
    %4186 = vmatpush1.bf16.msra.mxu0 0
    %4187 = vmatprep.subr.bf16.mxu0 0
    %4188 = vmatpush1.bf16.msra.mxu0 0
    %4189 = vmatprep.subr.bf16.mxu0 0
    %4190 = vmatpush1.bf16.msra.mxu0 0
    %4191 = vmatprep.subr.bf16.mxu0 0
    %4192 = vmatpush1.bf16.msra.mxu0 0
    %4193 = vmatprep.subr.bf16.mxu0 0
    %4194 = vmatpush1.bf16.msra.mxu0 0
    %4195 = vmatprep.subr.bf16.mxu0 0
    %4196 = vmatpush1.bf16.msra.mxu0 0
    %4197 = vmatprep.subr.bf16.mxu0 0
    %4198 = vmatpush1.bf16.msra.mxu0 0
    %4199 = vmatprep.subr.bf16.mxu0 0
    %4200 = vmatpush1.bf16.msra.mxu0 0
    %4201 = vmatprep.mubr.bf16.mxu0 0
    %4202 = vmatmul.mubr.bf16.gmra.mrb[0].mxu0 %v4095
    %v4203 = vpop.f32.mrb[0].mxu0
    %v4204 = vadd.f32 0.0, %v4203
    %v4205 = vpop.f32.mrb[0].mxu0
    %v4206 = vpop.f32.mrb[0].mxu0
    %v4207 = vadd.f32 0.0, %v4206
    %v4208 = vpop.f32.mrb[0].mxu0
    %4209 = vmatprep.mubr.bf16.mxu0 0
    %4210 = vmatmul.mubr.bf16.gmra.mrb[0].mxu0 %v4098
    %v4211 = vpop.f32.mrb[0].mxu0
    %v4212 = vadd.f32 0.0, %v4211
    %v4213 = vpop.f32.mrb[0].mxu0
    %v4214 = vpop.f32.mrb[0].mxu0
    %v4215 = vadd.f32 0.0, %v4214
    %v4216 = vpop.f32.mrb[0].mxu0
    %4217 = vmatprep.mubr.bf16.mxu0 0
    %4218 = vmatmul.mubr.bf16.gmra.mrb[0].mxu0 %v4101
    %v4219 = vpop.f32.mrb[0].mxu0
    %v4220 = vadd.f32 0.0, %v4219
    %v4221 = vpop.f32.mrb[0].mxu0
    %v4222 = vpop.f32.mrb[0].mxu0
    %v4223 = vadd.f32 0.0, %v4222
    %v4224 = vpop.f32.mrb[0].mxu0
    %4225 = vmatprep.mubr.bf16.mxu0 0
    %4226 = vmatmul.mubr.bf16.gmra.mrb[0].mxu0 %v4104
    %v4227 = vpop.f32.mrb[0].mxu0
    %v4228 = vadd.f32 0.0, %v4227
    %v4229 = vpop.f32.mrb[0].mxu0
    %v4230 = vpop.f32.mrb[0].mxu0
    %v4231 = vadd.f32 0.0, %v4230
    %v4232 = vpop.f32.mrb[0].mxu0
    %4233 = vmatprep.mubr.bf16.mxu0 0
    %4234 = vmatmul.mubr.bf16.gmra.mrb[0].mxu0 %v4107
    %v4235 = vpop.f32.mrb[0].mxu0
    %v4236 = vadd.f32 0.0, %v4235
    %v4237 = vpop.f32.mrb[0].mxu0
    %v4238 = vpop.f32.mrb[0].mxu0
    %v4239 = vadd.f32 0.0, %v4238
    %v4240 = vpop.f32.mrb[0].mxu0
    %4241 = vmatprep.mubr.bf16.mxu0 0
    %4242 = vmatmul.mubr.bf16.gmra.mrb[0].mxu0 %v4110
    %v4243 = vpop.f32.mrb[0].mxu0
    %v4244 = vadd.f32 0.0, %v4243
    %v4245 = vpop.f32.mrb[0].mxu0
    %v4246 = vpop.f32.mrb[0].mxu0
    %v4247 = vadd.f32 0.0, %v4246
    %v4248 = vpop.f32.mrb[0].mxu0
    %4249 = vmatprep.mubr.bf16.mxu0 0
    %4250 = vmatmul.mubr.bf16.gmra.mrb[0].mxu0 %v4113
    %v4251 = vpop.f32.mrb[0].mxu0
    %v4252 = vadd.f32 0.0, %v4251
    %v4253 = vpop.f32.mrb[0].mxu0
    %v4254 = vpop.f32.mrb[0].mxu0
    %v4255 = vadd.f32 0.0, %v4254
    %v4256 = vpop.f32.mrb[0].mxu0
    %4257 = vmatprep.mubr.bf16.mxu0 0
    %4258 = vmatmul.mubr.bf16.gmra.mrb[0].mxu0 %v4116
    %v4259 = vpop.f32.mrb[0].mxu0
    %v4260 = vadd.f32 0.0, %v4259
    %v4261 = vpop.f32.mrb[0].mxu0
    %v4262 = vpop.f32.mrb[0].mxu0
    %v4263 = vadd.f32 0.0, %v4262
    %v4264 = vpop.f32.mrb[0].mxu0
    %4265 = vmatprep.mubr.bf16.mxu0 0
    %4266 = vmatmul.mubr.bf16.gmra.mrb[0].mxu0 %v4119
    %v4267 = vpop.f32.mrb[0].mxu0
    %v4268 = vadd.f32 0.0, %v4267
    %v4269 = vpop.f32.mrb[0].mxu0
    %v4270 = vpop.f32.mrb[0].mxu0
    %v4271 = vadd.f32 0.0, %v4270
    %v4272 = vpop.f32.mrb[0].mxu0
    %4273 = vmatprep.mubr.bf16.mxu0 0
    %4274 = vmatmul.mubr.bf16.gmra.mrb[0].mxu0 %v4122
    %v4275 = vpop.f32.mrb[0].mxu0
    %v4276 = vadd.f32 0.0, %v4275
    %v4277 = vpop.f32.mrb[0].mxu0
    %v4278 = vpop.f32.mrb[0].mxu0
    %v4279 = vadd.f32 0.0, %v4278
    %v4280 = vpop.f32.mrb[0].mxu0
    %4281 = vmatprep.mubr.bf16.mxu0 0
    %4282 = vmatmul.mubr.bf16.gmra.mrb[0].mxu0 %v4125
    %v4283 = vpop.f32.mrb[0].mxu0
    %v4284 = vadd.f32 0.0, %v4283
    %v4285 = vpop.f32.mrb[0].mxu0
    %v4286 = vpop.f32.mrb[0].mxu0
    %v4287 = vadd.f32 0.0, %v4286
    %v4288 = vpop.f32.mrb[0].mxu0
    %4289 = vmatprep.mubr.bf16.mxu0 0
    %4290 = vmatmul.mubr.bf16.gmra.mrb[0].mxu0 %v4128
    %v4291 = vpop.f32.mrb[0].mxu0
    %v4292 = vadd.f32 0.0, %v4291
    %v4293 = vpop.f32.mrb[0].mxu0
    %v4294 = vpop.f32.mrb[0].mxu0
    %v4295 = vadd.f32 0.0, %v4294
    %v4296 = vpop.f32.mrb[0].mxu0
    %4297 = vmatprep.mubr.bf16.mxu0 0
    %4298 = vmatmul.mubr.bf16.gmra.mrb[0].mxu0 %v4131
    %v4299 = vpop.f32.mrb[0].mxu0
    %v4300 = vadd.f32 0.0, %v4299
    %v4301 = vpop.f32.mrb[0].mxu0
    %v4302 = vpop.f32.mrb[0].mxu0
    %v4303 = vadd.f32 0.0, %v4302
    %v4304 = vpop.f32.mrb[0].mxu0
    %4305 = vmatprep.mubr.bf16.mxu0 0
    %4306 = vmatmul.mubr.bf16.gmra.mrb[0].mxu0 %v4134
    %v4307 = vpop.f32.mrb[0].mxu0
    %v4308 = vadd.f32 0.0, %v4307
    %v4309 = vpop.f32.mrb[0].mxu0
    %v4310 = vpop.f32.mrb[0].mxu0
    %v4311 = vadd.f32 0.0, %v4310
    %v4312 = vpop.f32.mrb[0].mxu0
    %4313 = vmatprep.mubr.bf16.mxu0 0
    %4314 = vmatmul.mubr.bf16.gmra.mrb[0].mxu0 %v4137
    %v4315 = vpop.f32.mrb[0].mxu0
    %v4316 = vadd.f32 0.0, %v4315
    %v4317 = vpop.f32.mrb[0].mxu0
    %v4318 = vpop.f32.mrb[0].mxu0
    %v4319 = vadd.f32 0.0, %v4318
    %v4320 = vpop.f32.mrb[0].mxu0
    %4321 = vmatprep.mubr.bf16.mxu0 0
    %4322 = vmatmul.mubr.bf16.gmra.mrb[0].mxu0 %v4140
    %v4323 = vpop.f32.mrb[0].mxu0
    %v4324 = vadd.f32 0.0, %v4323
    %v4325 = vpop.f32.mrb[0].mxu0
    %v4326 = vpop.f32.mrb[0].mxu0
    %v4327 = vadd.f32 0.0, %v4326
    %v4328 = vpop.f32.mrb[0].mxu0
    %4329 = vmatprep.mubr.bf16.mxu0 0
    %4330 = vmatmul.mubr.bf16.gmra.mrb[0].mxu0 %v4143
    %v4331 = vpop.f32.mrb[0].mxu0
    %v4332 = vadd.f32 0.0, %v4331
    %v4333 = vpop.f32.mrb[0].mxu0
    %v4334 = vpop.f32.mrb[0].mxu0
    %v4335 = vadd.f32 0.0, %v4334
    %v4336 = vpop.f32.mrb[0].mxu0
    %4337 = vmatprep.mubr.bf16.mxu0 0
    %4338 = vmatmul.mubr.bf16.gmra.mrb[0].mxu0 %v4146
    %v4339 = vpop.f32.mrb[0].mxu0
    %v4340 = vadd.f32 0.0, %v4339
    %v4341 = vpop.f32.mrb[0].mxu0
    %v4342 = vpop.f32.mrb[0].mxu0
    %v4343 = vadd.f32 0.0, %v4342
    %v4344 = vpop.f32.mrb[0].mxu0
    %4345 = vmatprep.mubr.bf16.mxu0 0
    %4346 = vmatmul.mubr.bf16.gmra.mrb[0].mxu0 %v4149
    %v4347 = vpop.f32.mrb[0].mxu0
    %v4348 = vadd.f32 0.0, %v4347
    %v4349 = vpop.f32.mrb[0].mxu0
    %v4350 = vpop.f32.mrb[0].mxu0
    %v4351 = vadd.f32 0.0, %v4350
    %v4352 = vpop.f32.mrb[0].mxu0
    %4353 = vmatprep.mubr.bf16.mxu0 0
    %4354 = vmatmul.mubr.bf16.gmra.mrb[0].mxu0 %v4152
    %v4355 = vpop.f32.mrb[0].mxu0
    %v4356 = vadd.f32 0.0, %v4355
    %v4357 = vpop.f32.mrb[0].mxu0
    %v4358 = vpop.f32.mrb[0].mxu0
    %v4359 = vadd.f32 0.0, %v4358
    %v4360 = vpop.f32.mrb[0].mxu0
    %4361 = vmatprep.mubr.bf16.mxu0 0
    %4362 = vmatmul.mubr.bf16.gmra.mrb[0].mxu0 %v4155
    %v4363 = vpop.f32.mrb[0].mxu0
    %v4364 = vadd.f32 0.0, %v4363
    %v4365 = vpop.f32.mrb[0].mxu0
    %v4366 = vpop.f32.mrb[0].mxu0
    %v4367 = vadd.f32 0.0, %v4366
    %v4368 = vpop.f32.mrb[0].mxu0
    %4369 = vmatprep.mubr.bf16.mxu0 0
    %4370 = vmatmul.mubr.bf16.gmra.mrb[0].mxu0 %v4158
    %v4371 = vpop.f32.mrb[0].mxu0
    %v4372 = vadd.f32 0.0, %v4371
    %v4373 = vpop.f32.mrb[0].mxu0
    %v4374 = vpop.f32.mrb[0].mxu0
    %v4375 = vadd.f32 0.0, %v4374
    %v4376 = vpop.f32.mrb[0].mxu0
    %4377 = vmatprep.mubr.bf16.mxu0 0
    %4378 = vmatmul.mubr.bf16.gmra.mrb[0].mxu0 %v4161
    %v4379 = vpop.f32.mrb[0].mxu0
    %v4380 = vadd.f32 0.0, %v4379
    %v4381 = vpop.f32.mrb[0].mxu0
    %v4382 = vpop.f32.mrb[0].mxu0
    %v4383 = vadd.f32 0.0, %v4382
    %v4384 = vpop.f32.mrb[0].mxu0
    %4385 = vmatprep.mubr.bf16.mxu0 0
    %4386 = vmatmul.mubr.bf16.gmra.mrb[0].mxu0 %v4164
    %v4387 = vpop.f32.mrb[0].mxu0
    %v4388 = vadd.f32 0.0, %v4387
    %v4389 = vpop.f32.mrb[0].mxu0
    %v4390 = vpop.f32.mrb[0].mxu0
    %v4391 = vadd.f32 0.0, %v4390
    %v4392 = vpop.f32.mrb[0].mxu0
    %4393 = vmatprep.mubr.bf16.mxu0 0
    %4394 = vmatmul.mubr.bf16.gmra.mrb[0].mxu0 %v4167
    %v4395 = vpop.f32.mrb[0].mxu0
    %v4396 = vadd.f32 0.0, %v4395
    %v4397 = vpop.f32.mrb[0].mxu0
    %v4398 = vpop.f32.mrb[0].mxu0
    %v4399 = vpop.f32.mrb[0].mxu0
    %4400 = vdwg.mxu0
    %v4401 = vadd.f32 %v3637, %v4204
    %v4402 = vadd.f32 %v3638, %v4207
    %v4403 = vadd.f32 %v3639, %v4212
    %v4404 = vadd.f32 %v3640, %v4215
    %v4405 = vadd.f32 %v3641, %v4220
    %v4406 = vadd.f32 %v3642, %v4223
    %v4407 = vadd.f32 %v3643, %v4228
    %v4408 = vadd.f32 %v3644, %v4231
    %v4409 = vadd.f32 %v3645, %v4236
    %v4410 = vadd.f32 %v3646, %v4239
    %v4411 = vadd.f32 %v3647, %v4244
    %v4412 = vadd.f32 %v3648, %v4247
    %v4413 = vadd.f32 %v3649, %v4252
    %v4414 = vadd.f32 %v3650, %v4255
    %v4415 = vadd.f32 %v3651, %v4260
    %v4416 = vadd.f32 %v3652, %v4263
    %v4417 = vadd.f32 %v3653, %v4268
    %v4418 = vadd.f32 %v3654, %v4271
    %v4419 = vadd.f32 %v3655, %v4276
    %v4420 = vadd.f32 %v3656, %v4279
    %v4421 = vadd.f32 %v3657, %v4284
    %v4422 = vadd.f32 %v3658, %v4287
    %v4423 = vadd.f32 %v3659, %v4292
    %v4424 = vadd.f32 %v3660, %v4295
    %v4425 = vadd.f32 %v3661, %v4300
    %v4426 = vadd.f32 %v3662, %v4303
    %v4427 = vadd.f32 %v3663, %v4308
    %v4428 = vadd.f32 %v3664, %v4311
    %v4429 = vadd.f32 %v3665, %v4316
    %v4430 = vadd.f32 %v3666, %v4319
    %v4431 = vadd.f32 %v3667, %v4324
    %v4432 = vadd.f32 %v3668, %v4327
    %v4433 = vadd.f32 %v3669, %v4332
    %v4434 = vadd.f32 %v3670, %v4335
    %v4435 = vadd.f32 %v3671, %v4340
    %v4436 = vadd.f32 %v3672, %v4343
    %v4437 = vadd.f32 %v3673, %v4348
    %v4438 = vadd.f32 %v3674, %v4351
    %v4439 = vadd.f32 %v3675, %v4356
    %v4440 = vadd.f32 %v3676, %v4359
    %v4441 = vadd.f32 %v3677, %v4364
    %v4442 = vadd.f32 %v3678, %v4367
    %v4443 = vadd.f32 %v3679, %v4372
    %v4444 = vadd.f32 %v3680, %v4375
    %v4445 = vadd.f32 %v3681, %v4380
    %v4446 = vadd.f32 %v3682, %v4383
    %v4447 = vadd.f32 %v3683, %v4388
    %v4448 = vadd.f32 %v3684, %v4391
    %v4449 = vadd.f32 %v3685, %v4396
    %4450 = vst.msk [vmem:[#allocation3] sm:$0xff] %vm1376, %v4401
    %4451 = vst.msk [vmem:[#allocation3 + $0x8] sm:$0xff] %vm1376, %v4402
    %4452 = vst.msk [vmem:[#allocation3 + $0x10] sm:$0xff] %vm1376, %v4403
    %4453 = vst.msk [vmem:[#allocation3 + $0x18] sm:$0xff] %vm1376, %v4404
    %4454 = vst.msk [vmem:[#allocation3 + $0x20] sm:$0xff] %vm1376, %v4405
    %4455 = vst.msk [vmem:[#allocation3 + $0x28] sm:$0xff] %vm1376, %v4406
    %4456 = vst.msk [vmem:[#allocation3 + $0x30] sm:$0xff] %vm1376, %v4407
    %4457 = vst.msk [vmem:[#allocation3 + $0x38] sm:$0xff] %vm1376, %v4408
    %4458 = vst.msk [vmem:[#allocation3 + $0x40] sm:$0xff] %vm1376, %v4409
    %4459 = vst.msk [vmem:[#allocation3 + $0x48] sm:$0xff] %vm1376, %v4410
    %4460 = vst.msk [vmem:[#allocation3 + $0x50] sm:$0xff] %vm1376, %v4411
    %4461 = vst.msk [vmem:[#allocation3 + $0x58] sm:$0xff] %vm1376, %v4412
    %4462 = vst.msk [vmem:[#allocation3 + $0x60] sm:$0xff] %vm1376, %v4413
    %4463 = vst.msk [vmem:[#allocation3 + $0x68] sm:$0xff] %vm1376, %v4414
    %4464 = vst.msk [vmem:[#allocation3 + $0x70] sm:$0xff] %vm1376, %v4415
    %4465 = vst.msk [vmem:[#allocation3 + $0x78] sm:$0xff] %vm1376, %v4416
    %4466 = vst.msk [vmem:[#allocation3 + $0x80] sm:$0xff] %vm1376, %v4417
    %4467 = vst.msk [vmem:[#allocation3 + $0x88] sm:$0xff] %vm1376, %v4418
    %4468 = vst.msk [vmem:[#allocation3 + $0x90] sm:$0xff] %vm1376, %v4419
    %4469 = vst.msk [vmem:[#allocation3 + $0x98] sm:$0xff] %vm1376, %v4420
    %4470 = vst.msk [vmem:[#allocation3 + $0xa0] sm:$0xff] %vm1376, %v4421
    %4471 = vst.msk [vmem:[#allocation3 + $0xa8] sm:$0xff] %vm1376, %v4422
    %4472 = vst.msk [vmem:[#allocation3 + $0xb0] sm:$0xff] %vm1376, %v4423
    %4473 = vst.msk [vmem:[#allocation3 + $0xb8] sm:$0xff] %vm1376, %v4424
    %4474 = vst.msk [vmem:[#allocation3 + $0xc0] sm:$0xff] %vm1376, %v4425
    %4475 = vst.msk [vmem:[#allocation3 + $0xc8] sm:$0xff] %vm1376, %v4426
    %4476 = vst.msk [vmem:[#allocation3 + $0xd0] sm:$0xff] %vm1376, %v4427
    %4477 = vst.msk [vmem:[#allocation3 + $0xd8] sm:$0xff] %vm1376, %v4428
    %4478 = vst.msk [vmem:[#allocation3 + $0xe0] sm:$0xff] %vm1376, %v4429
    %4479 = vst.msk [vmem:[#allocation3 + $0xe8] sm:$0xff] %vm1376, %v4430
    %4480 = vst.msk [vmem:[#allocation3 + $0xf0] sm:$0xff] %vm1376, %v4431
    %4481 = vst.msk [vmem:[#allocation3 + $0xf8] sm:$0xff] %vm1376, %v4432
    %4482 = vst.msk [vmem:[#allocation3 + $0x100] sm:$0xff] %vm1376, %v4433
    %4483 = vst.msk [vmem:[#allocation3 + $0x108] sm:$0xff] %vm1376, %v4434
    %4484 = vst.msk [vmem:[#allocation3 + $0x110] sm:$0xff] %vm1376, %v4435
    %4485 = vst.msk [vmem:[#allocation3 + $0x118] sm:$0xff] %vm1376, %v4436
    %4486 = vst.msk [vmem:[#allocation3 + $0x120] sm:$0xff] %vm1376, %v4437
    %4487 = vst.msk [vmem:[#allocation3 + $0x128] sm:$0xff] %vm1376, %v4438
    %4488 = vst.msk [vmem:[#allocation3 + $0x130] sm:$0xff] %vm1376, %v4439
    %4489 = vst.msk [vmem:[#allocation3 + $0x138] sm:$0xff] %vm1376, %v4440
    %4490 = vst.msk [vmem:[#allocation3 + $0x140] sm:$0xff] %vm1376, %v4441
    %4491 = vst.msk [vmem:[#allocation3 + $0x148] sm:$0xff] %vm1376, %v4442
    %4492 = vst.msk [vmem:[#allocation3 + $0x150] sm:$0xff] %vm1376, %v4443
    %4493 = vst.msk [vmem:[#allocation3 + $0x158] sm:$0xff] %vm1376, %v4444
    %4494 = vst.msk [vmem:[#allocation3 + $0x160] sm:$0xff] %vm1376, %v4445
    %4495 = vst.msk [vmem:[#allocation3 + $0x168] sm:$0xff] %vm1376, %v4446
    %4496 = vst.msk [vmem:[#allocation3 + $0x170] sm:$0xff] %vm1376, %v4447
    %4497 = vst.msk [vmem:[#allocation3 + $0x178] sm:$0xff] %vm1376, %v4448
    %4498 = vst.msk [vmem:[#allocation3 + $0x180] sm:$0xff] %vm1376, %v4449
    %v4499 = vld [vmem:[#allocation3] sm:$0xff]
    %v4500 = vld [vmem:[#allocation3 + $0x8] sm:$0xff]
    %v4501 = vld [vmem:[#allocation3 + $0x10] sm:$0xff]
    %v4502 = vld [vmem:[#allocation3 + $0x18] sm:$0xff]
    %v4503 = vld [vmem:[#allocation3 + $0x20] sm:$0xff]
    %v4504 = vld [vmem:[#allocation3 + $0x28] sm:$0xff]
    %v4505 = vld [vmem:[#allocation3 + $0x30] sm:$0xff]
    %v4506 = vld [vmem:[#allocation3 + $0x38] sm:$0xff]
    %v4507 = vld [vmem:[#allocation3 + $0x40] sm:$0xff]
    %v4508 = vld [vmem:[#allocation3 + $0x48] sm:$0xff]
    %v4509 = vld [vmem:[#allocation3 + $0x50] sm:$0xff]
    %v4510 = vld [vmem:[#allocation3 + $0x58] sm:$0xff]
    %v4511 = vld [vmem:[#allocation3 + $0x60] sm:$0xff]
    %v4512 = vld [vmem:[#allocation3 + $0x68] sm:$0xff]
    %v4513 = vld [vmem:[#allocation3 + $0x70] sm:$0xff]
    %v4514 = vld [vmem:[#allocation3 + $0x78] sm:$0xff]
    %v4515 = vld [vmem:[#allocation3 + $0x80] sm:$0xff]
    %v4516 = vld [vmem:[#allocation3 + $0x88] sm:$0xff]
    %v4517 = vld [vmem:[#allocation3 + $0x90] sm:$0xff]
    %v4518 = vld [vmem:[#allocation3 + $0x98] sm:$0xff]
    %v4519 = vld [vmem:[#allocation3 + $0xa0] sm:$0xff]
    %v4520 = vld [vmem:[#allocation3 + $0xa8] sm:$0xff]
    %v4521 = vld [vmem:[#allocation3 + $0xb0] sm:$0xff]
    %v4522 = vld [vmem:[#allocation3 + $0xb8] sm:$0xff]
    %v4523 = vld [vmem:[#allocation3 + $0xc0] sm:$0xff]
    %v4524 = vld [vmem:[#allocation3 + $0xc8] sm:$0xff]
    %v4525 = vld [vmem:[#allocation3 + $0xd0] sm:$0xff]
    %v4526 = vld [vmem:[#allocation3 + $0xd8] sm:$0xff]
    %v4527 = vld [vmem:[#allocation3 + $0xe0] sm:$0xff]
    %v4528 = vld [vmem:[#allocation3 + $0xe8] sm:$0xff]
    %v4529 = vld [vmem:[#allocation3 + $0xf0] sm:$0xff]
    %v4530 = vld [vmem:[#allocation3 + $0xf8] sm:$0xff]
    %v4531 = vld [vmem:[#allocation3 + $0x100] sm:$0xff]
    %v4532 = vld [vmem:[#allocation3 + $0x108] sm:$0xff]
    %v4533 = vld [vmem:[#allocation3 + $0x110] sm:$0xff]
    %v4534 = vld [vmem:[#allocation3 + $0x118] sm:$0xff]
    %v4535 = vld [vmem:[#allocation3 + $0x120] sm:$0xff]
    %v4536 = vld [vmem:[#allocation3 + $0x128] sm:$0xff]
    %v4537 = vld [vmem:[#allocation3 + $0x130] sm:$0xff]
    %v4538 = vld [vmem:[#allocation3 + $0x138] sm:$0xff]
    %v4539 = vld [vmem:[#allocation3 + $0x140] sm:$0xff]
    %v4540 = vld [vmem:[#allocation3 + $0x148] sm:$0xff]
    %v4541 = vld [vmem:[#allocation3 + $0x150] sm:$0xff]
    %v4542 = vld [vmem:[#allocation3 + $0x158] sm:$0xff]
    %v4543 = vld [vmem:[#allocation3 + $0x160] sm:$0xff]
    %v4544 = vld [vmem:[#allocation3 + $0x168] sm:$0xff]
    %v4545 = vld [vmem:[#allocation3 + $0x170] sm:$0xff]
    %v4546 = vld [vmem:[#allocation3 + $0x178] sm:$0xff]
    %v4547 = vld [vmem:[#allocation3 + $0x180] sm:$0xff]
    %v4548 = vld [vmem:[#allocation2 + $0x8] sm:$0xf]
    %v4549 = vld [vmem:[#allocation2 + $0xc] sm:$0xf]
    %v4550 = vld [vmem:[#allocation2 + $0x10] sm:$0xf]
    %v4551 = vld [vmem:[#allocation2 + $0x14] sm:$0xf]
    %v4552 = vld [vmem:[#allocation2 + $0x18] sm:$0xf]
    %v4553 = vld [vmem:[#allocation2 + $0x1c] sm:$0xf]
    %v4554 = vld [vmem:[#allocation2 + $0x20] sm:$0xf]
    %v4555 = vld [vmem:[#allocation2 + $0x24] sm:$0xf]
    %v4556 = vld [vmem:[#allocation2 + $0x28] sm:$0xf]
    %v4557 = vld [vmem:[#allocation2 + $0x2c] sm:$0xf]
    %v4558 = vld [vmem:[#allocation2 + $0x30] sm:$0xf]
    %v4559 = vld [vmem:[#allocation2 + $0x34] sm:$0xf]
    %v4560 = vld [vmem:[#allocation2 + $0x38] sm:$0xf]
    %v4561 = vld [vmem:[#allocation2 + $0x3c] sm:$0xf]
    %v4562 = vld [vmem:[#allocation2 + $0x40] sm:$0xf]
    %v4563 = vld [vmem:[#allocation2 + $0x44] sm:$0xf]
    %v4564 = vld [vmem:[#allocation2 + $0x48] sm:$0xf]
    %v4565 = vld [vmem:[#allocation2 + $0x4c] sm:$0xf]
    %v4566 = vld [vmem:[#allocation2 + $0x50] sm:$0xf]
    %v4567 = vld [vmem:[#allocation2 + $0x54] sm:$0xf]
    %v4568 = vld [vmem:[#allocation2 + $0x58] sm:$0xf]
    %v4569 = vld [vmem:[#allocation2 + $0x5c] sm:$0xf]
    %v4570 = vld [vmem:[#allocation2 + $0x60] sm:$0xf]
    %v4571 = vld [vmem:[#allocation2 + $0x64] sm:$0xf]
    %v4572 = vld [vmem:[#allocation2 + $0x68] sm:$0xf]
    %v4573 = vld [vmem:[#allocation2 + $0x6c] sm:$0xf]
    %v4574 = vld [vmem:[#allocation2 + $0x70] sm:$0xf]
    %v4575 = vld [vmem:[#allocation2 + $0x74] sm:$0xf]
    %v4576 = vld [vmem:[#allocation2 + $0x78] sm:$0xf]
    %v4577 = vld [vmem:[#allocation2 + $0x7c] sm:$0xf]
    %v4578 = vld [vmem:[#allocation2 + $0x80] sm:$0xf]
    %v4579 = vld [vmem:[#allocation2 + $0x84] sm:$0xf]
    %v4580 = vld [vmem:[#allocation2 + $0x88] sm:$0xf]
    %v4581 = vld [vmem:[#allocation2 + $0x8c] sm:$0xf]
    %v4582 = vld [vmem:[#allocation2 + $0x90] sm:$0xf]
    %v4583 = vld [vmem:[#allocation2 + $0x94] sm:$0xf]
    %v4584 = vld [vmem:[#allocation2 + $0x98] sm:$0xf]
    %v4585 = vld [vmem:[#allocation2 + $0x9c] sm:$0xf]
    %v4586 = vld [vmem:[#allocation2 + $0xa0] sm:$0xf]
    %v4587 = vld [vmem:[#allocation2 + $0xa4] sm:$0xf]
    %v4588 = vld [vmem:[#allocation2 + $0xa8] sm:$0xf]
    %v4589 = vld [vmem:[#allocation2 + $0xac] sm:$0xf]
    %v4590 = vld [vmem:[#allocation2 + $0xb0] sm:$0xf]
    %v4591 = vld [vmem:[#allocation2 + $0xb4] sm:$0xf]
    %v4592 = vld [vmem:[#allocation2 + $0xb8] sm:$0xf]
    %v4593 = vld [vmem:[#allocation2 + $0xbc] sm:$0xf]
    %v4594 = vld [vmem:[#allocation2 + $0xc0] sm:$0xf]
    %v4595 = vld [vmem:[#allocation2 + $0xc4] sm:$0xf]
    %v4596 = vld [vmem:[#allocation2 + $0xc8] sm:$0xf]
    %v4597 = vld [vmem:[%s3 + $0x28] sm:$0xf]
    %v4598 = vld [vmem:[%s3 + $0x2c] sm:$0xf]
    %v4648 = vunpack.c.l.b16 %v4548
    %v4649 = vunpack.c.l.b16 %v4549
    %v4650 = vunpack.c.l.b16 %v4550
    %v4651 = vunpack.c.l.b16 %v4551
    %v4652 = vunpack.c.l.b16 %v4552
    %v4653 = vunpack.c.l.b16 %v4553
    %v4654 = vunpack.c.l.b16 %v4554
    %v4655 = vunpack.c.l.b16 %v4555
    %v4656 = vunpack.c.l.b16 %v4556
    %v4657 = vunpack.c.l.b16 %v4557
    %v4658 = vunpack.c.l.b16 %v4558
    %v4659 = vunpack.c.l.b16 %v4559
    %v4660 = vunpack.c.l.b16 %v4560
    %v4661 = vunpack.c.l.b16 %v4561
    %v4662 = vunpack.c.l.b16 %v4562
    %v4663 = vunpack.c.l.b16 %v4563
    %v4664 = vunpack.c.l.b16 %v4564
    %v4665 = vunpack.c.l.b16 %v4565
    %v4666 = vunpack.c.l.b16 %v4566
    %v4667 = vunpack.c.l.b16 %v4567
    %v4668 = vunpack.c.l.b16 %v4568
    %v4669 = vunpack.c.l.b16 %v4569
    %v4670 = vunpack.c.l.b16 %v4570
    %v4671 = vunpack.c.l.b16 %v4571
    %v4672 = vunpack.c.l.b16 %v4572
    %v4673 = vunpack.c.l.b16 %v4573
    %v4674 = vunpack.c.l.b16 %v4574
    %v4675 = vunpack.c.l.b16 %v4575
    %v4676 = vunpack.c.l.b16 %v4576
    %v4677 = vunpack.c.l.b16 %v4577
    %v4678 = vunpack.c.l.b16 %v4578
    %v4679 = vunpack.c.l.b16 %v4579
    %v4680 = vunpack.c.l.b16 %v4580
    %v4681 = vunpack.c.l.b16 %v4581
    %v4682 = vunpack.c.l.b16 %v4582
    %v4683 = vunpack.c.l.b16 %v4583
    %v4684 = vunpack.c.l.b16 %v4584
    %v4685 = vunpack.c.l.b16 %v4585
    %v4686 = vunpack.c.l.b16 %v4586
    %v4687 = vunpack.c.l.b16 %v4587
    %v4688 = vunpack.c.l.b16 %v4588
    %v4689 = vunpack.c.l.b16 %v4589
    %v4690 = vunpack.c.l.b16 %v4590
    %v4691 = vunpack.c.l.b16 %v4591
    %v4692 = vunpack.c.l.b16 %v4592
    %v4693 = vunpack.c.l.b16 %v4593
    %v4694 = vunpack.c.l.b16 %v4594
    %v4695 = vunpack.c.l.b16 %v4595
    %v4696 = vunpack.c.l.b16 %v4596
    %v4697 = vpack.c.b16 %v4649, %v4648
    %v4698 = vpack.c.b16 %v4651, %v4650
    %v4699 = vpack.c.b16 %v4653, %v4652
    %v4700 = vpack.c.b16 %v4655, %v4654
    %v4701 = vpack.c.b16 %v4657, %v4656
    %v4702 = vpack.c.b16 %v4659, %v4658
    %v4703 = vpack.c.b16 %v4661, %v4660
    %v4704 = vpack.c.b16 %v4663, %v4662
    %v4705 = vpack.c.b16 %v4665, %v4664
    %v4706 = vpack.c.b16 %v4667, %v4666
    %v4707 = vpack.c.b16 %v4669, %v4668
    %v4708 = vpack.c.b16 %v4671, %v4670
    %v4709 = vpack.c.b16 %v4673, %v4672
    %v4710 = vpack.c.b16 %v4675, %v4674
    %v4711 = vpack.c.b16 %v4677, %v4676
    %v4712 = vpack.c.b16 %v4679, %v4678
    %v4713 = vpack.c.b16 %v4681, %v4680
    %v4714 = vpack.c.b16 %v4683, %v4682
    %v4715 = vpack.c.b16 %v4685, %v4684
    %v4716 = vpack.c.b16 %v4687, %v4686
    %v4717 = vpack.c.b16 %v4689, %v4688
    %v4718 = vpack.c.b16 %v4691, %v4690
    %v4719 = vpack.c.b16 %v4693, %v4692
    %v4720 = vpack.c.b16 %v4695, %v4694
    %v4721 = vpack.c.b16 %v4696, %v4696
    %v4724 = vunpack.c.l.b16 %v4597
    %v4725 = vunpack.c.l.b16 %v4598
    %v4726 = vpack.c.b16 %v4725, %v4724
    %v4729 = vsel %vm232, %v4697, 0
    %v4732 = vsel %vm232, %v4698, 0
    %v4735 = vsel %vm232, %v4699, 0
    %v4738 = vsel %vm232, %v4700, 0
    %v4741 = vsel %vm232, %v4701, 0
    %v4744 = vsel %vm232, %v4702, 0
    %v4747 = vsel %vm232, %v4703, 0
    %v4750 = vsel %vm232, %v4704, 0
    %v4753 = vsel %vm232, %v4705, 0
    %v4756 = vsel %vm232, %v4706, 0
    %v4759 = vsel %vm232, %v4707, 0
    %v4762 = vsel %vm232, %v4708, 0
    %v4765 = vsel %vm232, %v4709, 0
    %v4768 = vsel %vm232, %v4710, 0
    %v4771 = vsel %vm232, %v4711, 0
    %v4774 = vsel %vm232, %v4712, 0
    %v4777 = vsel %vm232, %v4713, 0
    %v4780 = vsel %vm232, %v4714, 0
    %v4783 = vsel %vm232, %v4715, 0
    %v4786 = vsel %vm232, %v4716, 0
    %v4789 = vsel %vm232, %v4717, 0
    %v4792 = vsel %vm232, %v4718, 0
    %v4795 = vsel %vm232, %v4719, 0
    %v4798 = vsel %vm232, %v4720, 0
    %v4801 = vsel %vm232, %v4721, 0
    %4803 = vmatprep.subr.bf16.mxu0 0
    %4804 = vmatpush1.bf16.msra.mxu0 %v4726
    %4805 = vmatprep.subr.bf16.mxu0 0
    %4806 = vmatpush1.bf16.msra.mxu0 0
    %4807 = vmatprep.subr.bf16.mxu0 0
    %4808 = vmatpush1.bf16.msra.mxu0 0
    %4809 = vmatprep.subr.bf16.mxu0 0
    %4810 = vmatpush1.bf16.msra.mxu0 0
    %4811 = vmatprep.subr.bf16.mxu0 0
    %4812 = vmatpush1.bf16.msra.mxu0 0
    %4813 = vmatprep.subr.bf16.mxu0 0
    %4814 = vmatpush1.bf16.msra.mxu0 0
    %4815 = vmatprep.subr.bf16.mxu0 0
    %4816 = vmatpush1.bf16.msra.mxu0 0
    %4817 = vmatprep.subr.bf16.mxu0 0
    %4818 = vmatpush1.bf16.msra.mxu0 0
    %4819 = vmatprep.subr.bf16.mxu0 0
    %4820 = vmatpush1.bf16.msra.mxu0 0
    %4821 = vmatprep.subr.bf16.mxu0 0
    %4822 = vmatpush1.bf16.msra.mxu0 0
    %4823 = vmatprep.subr.bf16.mxu0 0
    %4824 = vmatpush1.bf16.msra.mxu0 0
    %4825 = vmatprep.subr.bf16.mxu0 0
    %4826 = vmatpush1.bf16.msra.mxu0 0
    %4827 = vmatprep.subr.bf16.mxu0 0
    %4828 = vmatpush1.bf16.msra.mxu0 0
    %4829 = vmatprep.subr.bf16.mxu0 0
    %4830 = vmatpush1.bf16.msra.mxu0 0
    %4831 = vmatprep.subr.bf16.mxu0 0
    %4832 = vmatpush1.bf16.msra.mxu0 0
    %4833 = vmatprep.subr.bf16.mxu0 0
    %4834 = vmatpush1.bf16.msra.mxu0 0
    %4835 = vmatprep.mubr.bf16.mxu0 0
    %4836 = vmatmul.mubr.bf16.gmra.mrb[0].mxu0 %v4729
    %v4837 = vpop.f32.mrb[0].mxu0
    %v4838 = vadd.f32 0.0, %v4837
    %v4839 = vpop.f32.mrb[0].mxu0
    %v4840 = vpop.f32.mrb[0].mxu0
    %v4841 = vadd.f32 0.0, %v4840
    %v4842 = vpop.f32.mrb[0].mxu0
    %4843 = vmatprep.mubr.bf16.mxu0 0
    %4844 = vmatmul.mubr.bf16.gmra.mrb[0].mxu0 %v4732
    %v4845 = vpop.f32.mrb[0].mxu0
    %v4846 = vadd.f32 0.0, %v4845
    %v4847 = vpop.f32.mrb[0].mxu0
    %v4848 = vpop.f32.mrb[0].mxu0
    %v4849 = vadd.f32 0.0, %v4848
    %v4850 = vpop.f32.mrb[0].mxu0
    %4851 = vmatprep.mubr.bf16.mxu0 0
    %4852 = vmatmul.mubr.bf16.gmra.mrb[0].mxu0 %v4735
    %v4853 = vpop.f32.mrb[0].mxu0
    %v4854 = vadd.f32 0.0, %v4853
    %v4855 = vpop.f32.mrb[0].mxu0
    %v4856 = vpop.f32.mrb[0].mxu0
    %v4857 = vadd.f32 0.0, %v4856
    %v4858 = vpop.f32.mrb[0].mxu0
    %4859 = vmatprep.mubr.bf16.mxu0 0
    %4860 = vmatmul.mubr.bf16.gmra.mrb[0].mxu0 %v4738
    %v4861 = vpop.f32.mrb[0].mxu0
    %v4862 = vadd.f32 0.0, %v4861
    %v4863 = vpop.f32.mrb[0].mxu0
    %v4864 = vpop.f32.mrb[0].mxu0
    %v4865 = vadd.f32 0.0, %v4864
    %v4866 = vpop.f32.mrb[0].mxu0
    %4867 = vmatprep.mubr.bf16.mxu0 0
    %4868 = vmatmul.mubr.bf16.gmra.mrb[0].mxu0 %v4741
    %v4869 = vpop.f32.mrb[0].mxu0
    %v4870 = vadd.f32 0.0, %v4869
    %v4871 = vpop.f32.mrb[0].mxu0
    %v4872 = vpop.f32.mrb[0].mxu0
    %v4873 = vadd.f32 0.0, %v4872
    %v4874 = vpop.f32.mrb[0].mxu0
    %4875 = vmatprep.mubr.bf16.mxu0 0
    %4876 = vmatmul.mubr.bf16.gmra.mrb[0].mxu0 %v4744
    %v4877 = vpop.f32.mrb[0].mxu0
    %v4878 = vadd.f32 0.0, %v4877
    %v4879 = vpop.f32.mrb[0].mxu0
    %v4880 = vpop.f32.mrb[0].mxu0
    %v4881 = vadd.f32 0.0, %v4880
    %v4882 = vpop.f32.mrb[0].mxu0
    %4883 = vmatprep.mubr.bf16.mxu0 0
    %4884 = vmatmul.mubr.bf16.gmra.mrb[0].mxu0 %v4747
    %v4885 = vpop.f32.mrb[0].mxu0
    %v4886 = vadd.f32 0.0, %v4885
    %v4887 = vpop.f32.mrb[0].mxu0
    %v4888 = vpop.f32.mrb[0].mxu0
    %v4889 = vadd.f32 0.0, %v4888
    %v4890 = vpop.f32.mrb[0].mxu0
    %4891 = vmatprep.mubr.bf16.mxu0 0
    %4892 = vmatmul.mubr.bf16.gmra.mrb[0].mxu0 %v4750
    %v4893 = vpop.f32.mrb[0].mxu0
    %v4894 = vadd.f32 0.0, %v4893
    %v4895 = vpop.f32.mrb[0].mxu0
    %v4896 = vpop.f32.mrb[0].mxu0
    %v4897 = vadd.f32 0.0, %v4896
    %v4898 = vpop.f32.mrb[0].mxu0
    %4899 = vmatprep.mubr.bf16.mxu0 0
    %4900 = vmatmul.mubr.bf16.gmra.mrb[0].mxu0 %v4753
    %v4901 = vpop.f32.mrb[0].mxu0
    %v4902 = vadd.f32 0.0, %v4901
    %v4903 = vpop.f32.mrb[0].mxu0
    %v4904 = vpop.f32.mrb[0].mxu0
    %v4905 = vadd.f32 0.0, %v4904
    %v4906 = vpop.f32.mrb[0].mxu0
    %4907 = vmatprep.mubr.bf16.mxu0 0
    %4908 = vmatmul.mubr.bf16.gmra.mrb[0].mxu0 %v4756
    %v4909 = vpop.f32.mrb[0].mxu0
    %v4910 = vadd.f32 0.0, %v4909
    %v4911 = vpop.f32.mrb[0].mxu0
    %v4912 = vpop.f32.mrb[0].mxu0
    %v4913 = vadd.f32 0.0, %v4912
    %v4914 = vpop.f32.mrb[0].mxu0
    %4915 = vmatprep.mubr.bf16.mxu0 0
    %4916 = vmatmul.mubr.bf16.gmra.mrb[0].mxu0 %v4759
    %v4917 = vpop.f32.mrb[0].mxu0
    %v4918 = vadd.f32 0.0, %v4917
    %v4919 = vpop.f32.mrb[0].mxu0
    %v4920 = vpop.f32.mrb[0].mxu0
    %v4921 = vadd.f32 0.0, %v4920
    %v4922 = vpop.f32.mrb[0].mxu0
    %4923 = vmatprep.mubr.bf16.mxu0 0
    %4924 = vmatmul.mubr.bf16.gmra.mrb[0].mxu0 %v4762
    %v4925 = vpop.f32.mrb[0].mxu0
    %v4926 = vadd.f32 0.0, %v4925
    %v4927 = vpop.f32.mrb[0].mxu0
    %v4928 = vpop.f32.mrb[0].mxu0
    %v4929 = vadd.f32 0.0, %v4928
    %v4930 = vpop.f32.mrb[0].mxu0
    %4931 = vmatprep.mubr.bf16.mxu0 0
    %4932 = vmatmul.mubr.bf16.gmra.mrb[0].mxu0 %v4765
    %v4933 = vpop.f32.mrb[0].mxu0
    %v4934 = vadd.f32 0.0, %v4933
    %v4935 = vpop.f32.mrb[0].mxu0
    %v4936 = vpop.f32.mrb[0].mxu0
    %v4937 = vadd.f32 0.0, %v4936
    %v4938 = vpop.f32.mrb[0].mxu0
    %4939 = vmatprep.mubr.bf16.mxu0 0
    %4940 = vmatmul.mubr.bf16.gmra.mrb[0].mxu0 %v4768
    %v4941 = vpop.f32.mrb[0].mxu0
    %v4942 = vadd.f32 0.0, %v4941
    %v4943 = vpop.f32.mrb[0].mxu0
    %v4944 = vpop.f32.mrb[0].mxu0
    %v4945 = vadd.f32 0.0, %v4944
    %v4946 = vpop.f32.mrb[0].mxu0
    %4947 = vmatprep.mubr.bf16.mxu0 0
    %4948 = vmatmul.mubr.bf16.gmra.mrb[0].mxu0 %v4771
    %v4949 = vpop.f32.mrb[0].mxu0
    %v4950 = vadd.f32 0.0, %v4949
    %v4951 = vpop.f32.mrb[0].mxu0
    %v4952 = vpop.f32.mrb[0].mxu0
    %v4953 = vadd.f32 0.0, %v4952
    %v4954 = vpop.f32.mrb[0].mxu0
    %4955 = vmatprep.mubr.bf16.mxu0 0
    %4956 = vmatmul.mubr.bf16.gmra.mrb[0].mxu0 %v4774
    %v4957 = vpop.f32.mrb[0].mxu0
    %v4958 = vadd.f32 0.0, %v4957
    %v4959 = vpop.f32.mrb[0].mxu0
    %v4960 = vpop.f32.mrb[0].mxu0
    %v4961 = vadd.f32 0.0, %v4960
    %v4962 = vpop.f32.mrb[0].mxu0
    %4963 = vmatprep.mubr.bf16.mxu0 0
    %4964 = vmatmul.mubr.bf16.gmra.mrb[0].mxu0 %v4777
    %v4965 = vpop.f32.mrb[0].mxu0
    %v4966 = vadd.f32 0.0, %v4965
    %v4967 = vpop.f32.mrb[0].mxu0
    %v4968 = vpop.f32.mrb[0].mxu0
    %v4969 = vadd.f32 0.0, %v4968
    %v4970 = vpop.f32.mrb[0].mxu0
    %4971 = vmatprep.mubr.bf16.mxu0 0
    %4972 = vmatmul.mubr.bf16.gmra.mrb[0].mxu0 %v4780
    %v4973 = vpop.f32.mrb[0].mxu0
    %v4974 = vadd.f32 0.0, %v4973
    %v4975 = vpop.f32.mrb[0].mxu0
    %v4976 = vpop.f32.mrb[0].mxu0
    %v4977 = vadd.f32 0.0, %v4976
    %v4978 = vpop.f32.mrb[0].mxu0
    %4979 = vmatprep.mubr.bf16.mxu0 0
    %4980 = vmatmul.mubr.bf16.gmra.mrb[0].mxu0 %v4783
    %v4981 = vpop.f32.mrb[0].mxu0
    %v4982 = vadd.f32 0.0, %v4981
    %v4983 = vpop.f32.mrb[0].mxu0
    %v4984 = vpop.f32.mrb[0].mxu0
    %v4985 = vadd.f32 0.0, %v4984
    %v4986 = vpop.f32.mrb[0].mxu0
    %4987 = vmatprep.mubr.bf16.mxu0 0
    %4988 = vmatmul.mubr.bf16.gmra.mrb[0].mxu0 %v4786
    %v4989 = vpop.f32.mrb[0].mxu0
    %v4990 = vadd.f32 0.0, %v4989
    %v4991 = vpop.f32.mrb[0].mxu0
    %v4992 = vpop.f32.mrb[0].mxu0
    %v4993 = vadd.f32 0.0, %v4992
    %v4994 = vpop.f32.mrb[0].mxu0
    %4995 = vmatprep.mubr.bf16.mxu0 0
    %4996 = vmatmul.mubr.bf16.gmra.mrb[0].mxu0 %v4789
    %v4997 = vpop.f32.mrb[0].mxu0
    %v4998 = vadd.f32 0.0, %v4997
    %v4999 = vpop.f32.mrb[0].mxu0
    %v5000 = vpop.f32.mrb[0].mxu0
    %v5001 = vadd.f32 0.0, %v5000
    %v5002 = vpop.f32.mrb[0].mxu0
    %5003 = vmatprep.mubr.bf16.mxu0 0
    %5004 = vmatmul.mubr.bf16.gmra.mrb[0].mxu0 %v4792
    %v5005 = vpop.f32.mrb[0].mxu0
    %v5006 = vadd.f32 0.0, %v5005
    %v5007 = vpop.f32.mrb[0].mxu0
    %v5008 = vpop.f32.mrb[0].mxu0
    %v5009 = vadd.f32 0.0, %v5008
    %v5010 = vpop.f32.mrb[0].mxu0
    %5011 = vmatprep.mubr.bf16.mxu0 0
    %5012 = vmatmul.mubr.bf16.gmra.mrb[0].mxu0 %v4795
    %v5013 = vpop.f32.mrb[0].mxu0
    %v5014 = vadd.f32 0.0, %v5013
    %v5015 = vpop.f32.mrb[0].mxu0
    %v5016 = vpop.f32.mrb[0].mxu0
    %v5017 = vadd.f32 0.0, %v5016
    %v5018 = vpop.f32.mrb[0].mxu0
    %5019 = vmatprep.mubr.bf16.mxu0 0
    %5020 = vmatmul.mubr.bf16.gmra.mrb[0].mxu0 %v4798
    %v5021 = vpop.f32.mrb[0].mxu0
    %v5022 = vadd.f32 0.0, %v5021
    %v5023 = vpop.f32.mrb[0].mxu0
    %v5024 = vpop.f32.mrb[0].mxu0
    %v5025 = vadd.f32 0.0, %v5024
    %v5026 = vpop.f32.mrb[0].mxu0
    %5027 = vmatprep.mubr.bf16.mxu0 0
    %5028 = vmatmul.mubr.bf16.gmra.mrb[0].mxu0 %v4801
    %v5029 = vpop.f32.mrb[0].mxu0
    %v5030 = vadd.f32 0.0, %v5029
    %v5031 = vpop.f32.mrb[0].mxu0
    %v5032 = vpop.f32.mrb[0].mxu0
    %v5033 = vpop.f32.mrb[0].mxu0
    %5034 = vdwg.mxu0
    %v5035 = vadd.f32 %v4499, %v4838
    %v5036 = vadd.f32 %v4500, %v4841
    %v5037 = vadd.f32 %v4501, %v4846
    %v5038 = vadd.f32 %v4502, %v4849
    %v5039 = vadd.f32 %v4503, %v4854
    %v5040 = vadd.f32 %v4504, %v4857
    %v5041 = vadd.f32 %v4505, %v4862
    %v5042 = vadd.f32 %v4506, %v4865
    %v5043 = vadd.f32 %v4507, %v4870
    %v5044 = vadd.f32 %v4508, %v4873
    %v5045 = vadd.f32 %v4509, %v4878
    %v5046 = vadd.f32 %v4510, %v4881
    %v5047 = vadd.f32 %v4511, %v4886
    %v5048 = vadd.f32 %v4512, %v4889
    %v5049 = vadd.f32 %v4513, %v4894
    %v5050 = vadd.f32 %v4514, %v4897
    %v5051 = vadd.f32 %v4515, %v4902
    %v5052 = vadd.f32 %v4516, %v4905
    %v5053 = vadd.f32 %v4517, %v4910
    %v5054 = vadd.f32 %v4518, %v4913
    %v5055 = vadd.f32 %v4519, %v4918
    %v5056 = vadd.f32 %v4520, %v4921
    %v5057 = vadd.f32 %v4521, %v4926
    %v5058 = vadd.f32 %v4522, %v4929
    %v5059 = vadd.f32 %v4523, %v4934
    %v5060 = vadd.f32 %v4524, %v4937
    %v5061 = vadd.f32 %v4525, %v4942
    %v5062 = vadd.f32 %v4526, %v4945
    %v5063 = vadd.f32 %v4527, %v4950
    %v5064 = vadd.f32 %v4528, %v4953
    %v5065 = vadd.f32 %v4529, %v4958
    %v5066 = vadd.f32 %v4530, %v4961
    %v5067 = vadd.f32 %v4531, %v4966
    %v5068 = vadd.f32 %v4532, %v4969
    %v5069 = vadd.f32 %v4533, %v4974
    %v5070 = vadd.f32 %v4534, %v4977
    %v5071 = vadd.f32 %v4535, %v4982
    %v5072 = vadd.f32 %v4536, %v4985
    %v5073 = vadd.f32 %v4537, %v4990
    %v5074 = vadd.f32 %v4538, %v4993
    %v5075 = vadd.f32 %v4539, %v4998
    %v5076 = vadd.f32 %v4540, %v5001
    %v5077 = vadd.f32 %v4541, %v5006
    %v5078 = vadd.f32 %v4542, %v5009
    %v5079 = vadd.f32 %v4543, %v5014
    %v5080 = vadd.f32 %v4544, %v5017
    %v5081 = vadd.f32 %v4545, %v5022
    %v5082 = vadd.f32 %v4546, %v5025
    %v5083 = vadd.f32 %v4547, %v5030
    %5084 = vst.msk [vmem:[#allocation3] sm:$0xff] %vm1376, %v5035
    %5085 = vst.msk [vmem:[#allocation3 + $0x8] sm:$0xff] %vm1376, %v5036
    %5086 = vst.msk [vmem:[#allocation3 + $0x10] sm:$0xff] %vm1376, %v5037
    %5087 = vst.msk [vmem:[#allocation3 + $0x18] sm:$0xff] %vm1376, %v5038
    %5088 = vst.msk [vmem:[#allocation3 + $0x20] sm:$0xff] %vm1376, %v5039
    %5089 = vst.msk [vmem:[#allocation3 + $0x28] sm:$0xff] %vm1376, %v5040
    %5090 = vst.msk [vmem:[#allocation3 + $0x30] sm:$0xff] %vm1376, %v5041
    %5091 = vst.msk [vmem:[#allocation3 + $0x38] sm:$0xff] %vm1376, %v5042
    %5092 = vst.msk [vmem:[#allocation3 + $0x40] sm:$0xff] %vm1376, %v5043
    %5093 = vst.msk [vmem:[#allocation3 + $0x48] sm:$0xff] %vm1376, %v5044
    %5094 = vst.msk [vmem:[#allocation3 + $0x50] sm:$0xff] %vm1376, %v5045
    %5095 = vst.msk [vmem:[#allocation3 + $0x58] sm:$0xff] %vm1376, %v5046
    %5096 = vst.msk [vmem:[#allocation3 + $0x60] sm:$0xff] %vm1376, %v5047
    %5097 = vst.msk [vmem:[#allocation3 + $0x68] sm:$0xff] %vm1376, %v5048
    %5098 = vst.msk [vmem:[#allocation3 + $0x70] sm:$0xff] %vm1376, %v5049
    %5099 = vst.msk [vmem:[#allocation3 + $0x78] sm:$0xff] %vm1376, %v5050
    %5100 = vst.msk [vmem:[#allocation3 + $0x80] sm:$0xff] %vm1376, %v5051
    %5101 = vst.msk [vmem:[#allocation3 + $0x88] sm:$0xff] %vm1376, %v5052
    %5102 = vst.msk [vmem:[#allocation3 + $0x90] sm:$0xff] %vm1376, %v5053
    %5103 = vst.msk [vmem:[#allocation3 + $0x98] sm:$0xff] %vm1376, %v5054
    %5104 = vst.msk [vmem:[#allocation3 + $0xa0] sm:$0xff] %vm1376, %v5055
    %5105 = vst.msk [vmem:[#allocation3 + $0xa8] sm:$0xff] %vm1376, %v5056
    %5106 = vst.msk [vmem:[#allocation3 + $0xb0] sm:$0xff] %vm1376, %v5057
    %5107 = vst.msk [vmem:[#allocation3 + $0xb8] sm:$0xff] %vm1376, %v5058
    %5108 = vst.msk [vmem:[#allocation3 + $0xc0] sm:$0xff] %vm1376, %v5059
    %5109 = vst.msk [vmem:[#allocation3 + $0xc8] sm:$0xff] %vm1376, %v5060
    %5110 = vst.msk [vmem:[#allocation3 + $0xd0] sm:$0xff] %vm1376, %v5061
    %5111 = vst.msk [vmem:[#allocation3 + $0xd8] sm:$0xff] %vm1376, %v5062
    %5112 = vst.msk [vmem:[#allocation3 + $0xe0] sm:$0xff] %vm1376, %v5063
    %5113 = vst.msk [vmem:[#allocation3 + $0xe8] sm:$0xff] %vm1376, %v5064
    %5114 = vst.msk [vmem:[#allocation3 + $0xf0] sm:$0xff] %vm1376, %v5065
    %5115 = vst.msk [vmem:[#allocation3 + $0xf8] sm:$0xff] %vm1376, %v5066
    %5116 = vst.msk [vmem:[#allocation3 + $0x100] sm:$0xff] %vm1376, %v5067
    %5117 = vst.msk [vmem:[#allocation3 + $0x108] sm:$0xff] %vm1376, %v5068
    %5118 = vst.msk [vmem:[#allocation3 + $0x110] sm:$0xff] %vm1376, %v5069
    %5119 = vst.msk [vmem:[#allocation3 + $0x118] sm:$0xff] %vm1376, %v5070
    %5120 = vst.msk [vmem:[#allocation3 + $0x120] sm:$0xff] %vm1376, %v5071
    %5121 = vst.msk [vmem:[#allocation3 + $0x128] sm:$0xff] %vm1376, %v5072
    %5122 = vst.msk [vmem:[#allocation3 + $0x130] sm:$0xff] %vm1376, %v5073
    %5123 = vst.msk [vmem:[#allocation3 + $0x138] sm:$0xff] %vm1376, %v5074
    %5124 = vst.msk [vmem:[#allocation3 + $0x140] sm:$0xff] %vm1376, %v5075
    %5125 = vst.msk [vmem:[#allocation3 + $0x148] sm:$0xff] %vm1376, %v5076
    %5126 = vst.msk [vmem:[#allocation3 + $0x150] sm:$0xff] %vm1376, %v5077
    %5127 = vst.msk [vmem:[#allocation3 + $0x158] sm:$0xff] %vm1376, %v5078
    %5128 = vst.msk [vmem:[#allocation3 + $0x160] sm:$0xff] %vm1376, %v5079
    %5129 = vst.msk [vmem:[#allocation3 + $0x168] sm:$0xff] %vm1376, %v5080
    %5130 = vst.msk [vmem:[#allocation3 + $0x170] sm:$0xff] %vm1376, %v5081
    %5131 = vst.msk [vmem:[#allocation3 + $0x178] sm:$0xff] %vm1376, %v5082
    %5132 = vst.msk [vmem:[#allocation3 + $0x180] sm:$0xff] %vm1376, %v5083
    %v5133 = vld [vmem:[#allocation3] sm:$0xff]
    %v5134 = vld [vmem:[#allocation3 + $0x8] sm:$0xff]
    %v5135 = vld [vmem:[#allocation3 + $0x10] sm:$0xff]
    %v5136 = vld [vmem:[#allocation3 + $0x18] sm:$0xff]
    %v5137 = vld [vmem:[#allocation3 + $0x20] sm:$0xff]
    %v5138 = vld [vmem:[#allocation3 + $0x28] sm:$0xff]
    %v5139 = vld [vmem:[#allocation3 + $0x30] sm:$0xff]
    %v5140 = vld [vmem:[#allocation3 + $0x38] sm:$0xff]
    %v5141 = vld [vmem:[#allocation3 + $0x40] sm:$0xff]
    %v5142 = vld [vmem:[#allocation3 + $0x48] sm:$0xff]
    %v5143 = vld [vmem:[#allocation3 + $0x50] sm:$0xff]
    %v5144 = vld [vmem:[#allocation3 + $0x58] sm:$0xff]
    %v5145 = vld [vmem:[#allocation3 + $0x60] sm:$0xff]
    %v5146 = vld [vmem:[#allocation3 + $0x68] sm:$0xff]
    %v5147 = vld [vmem:[#allocation3 + $0x70] sm:$0xff]
    %v5148 = vld [vmem:[#allocation3 + $0x78] sm:$0xff]
    %v5149 = vld [vmem:[#allocation3 + $0x80] sm:$0xff]
    %v5150 = vld [vmem:[#allocation3 + $0x88] sm:$0xff]
    %v5151 = vld [vmem:[#allocation3 + $0x90] sm:$0xff]
    %v5152 = vld [vmem:[#allocation3 + $0x98] sm:$0xff]
    %v5153 = vld [vmem:[#allocation3 + $0xa0] sm:$0xff]
    %v5154 = vld [vmem:[#allocation3 + $0xa8] sm:$0xff]
    %v5155 = vld [vmem:[#allocation3 + $0xb0] sm:$0xff]
    %v5156 = vld [vmem:[#allocation3 + $0xb8] sm:$0xff]
    %v5157 = vld [vmem:[#allocation3 + $0xc0] sm:$0xff]
    %v5158 = vld [vmem:[#allocation3 + $0xc8] sm:$0xff]
    %v5159 = vld [vmem:[#allocation3 + $0xd0] sm:$0xff]
    %v5160 = vld [vmem:[#allocation3 + $0xd8] sm:$0xff]
    %v5161 = vld [vmem:[#allocation3 + $0xe0] sm:$0xff]
    %v5162 = vld [vmem:[#allocation3 + $0xe8] sm:$0xff]
    %v5163 = vld [vmem:[#allocation3 + $0xf0] sm:$0xff]
    %v5164 = vld [vmem:[#allocation3 + $0xf8] sm:$0xff]
    %v5165 = vld [vmem:[#allocation3 + $0x100] sm:$0xff]
    %v5166 = vld [vmem:[#allocation3 + $0x108] sm:$0xff]
    %v5167 = vld [vmem:[#allocation3 + $0x110] sm:$0xff]
    %v5168 = vld [vmem:[#allocation3 + $0x118] sm:$0xff]
    %v5169 = vld [vmem:[#allocation3 + $0x120] sm:$0xff]
    %v5170 = vld [vmem:[#allocation3 + $0x128] sm:$0xff]
    %v5171 = vld [vmem:[#allocation3 + $0x130] sm:$0xff]
    %v5172 = vld [vmem:[#allocation3 + $0x138] sm:$0xff]
    %v5173 = vld [vmem:[#allocation3 + $0x140] sm:$0xff]
    %v5174 = vld [vmem:[#allocation3 + $0x148] sm:$0xff]
    %v5175 = vld [vmem:[#allocation3 + $0x150] sm:$0xff]
    %v5176 = vld [vmem:[#allocation3 + $0x158] sm:$0xff]
    %v5177 = vld [vmem:[#allocation3 + $0x160] sm:$0xff]
    %v5178 = vld [vmem:[#allocation3 + $0x168] sm:$0xff]
    %v5179 = vld [vmem:[#allocation3 + $0x170] sm:$0xff]
    %v5180 = vld [vmem:[#allocation3 + $0x178] sm:$0xff]
    %v5181 = vld [vmem:[#allocation3 + $0x180] sm:$0xff]
    %v5182 = vld [vmem:[#allocation2 + $0xc] sm:$0xc]
    %v5183 = vld [vmem:[#allocation2 + $0x10] sm:$0xf]
    %v5184 = vld [vmem:[#allocation2 + $0x14] sm:$0xf]
    %v5185 = vld [vmem:[#allocation2 + $0x18] sm:$0xf]
    %v5186 = vld [vmem:[#allocation2 + $0x1c] sm:$0xf]
    %v5187 = vld [vmem:[#allocation2 + $0x20] sm:$0xf]
    %v5188 = vld [vmem:[#allocation2 + $0x24] sm:$0xf]
    %v5189 = vld [vmem:[#allocation2 + $0x28] sm:$0xf]
    %v5190 = vld [vmem:[#allocation2 + $0x2c] sm:$0xf]
    %v5191 = vld [vmem:[#allocation2 + $0x30] sm:$0xf]
    %v5192 = vld [vmem:[#allocation2 + $0x34] sm:$0xf]
    %v5193 = vld [vmem:[#allocation2 + $0x38] sm:$0xf]
    %v5194 = vld [vmem:[#allocation2 + $0x3c] sm:$0xf]
    %v5195 = vld [vmem:[#allocation2 + $0x40] sm:$0xf]
    %v5196 = vld [vmem:[#allocation2 + $0x44] sm:$0xf]
    %v5197 = vld [vmem:[#allocation2 + $0x48] sm:$0xf]
    %v5198 = vld [vmem:[#allocation2 + $0x4c] sm:$0xf]
    %v5199 = vld [vmem:[#allocation2 + $0x50] sm:$0xf]
    %v5200 = vld [vmem:[#allocation2 + $0x54] sm:$0xf]
    %v5201 = vld [vmem:[#allocation2 + $0x58] sm:$0xf]
    %v5202 = vld [vmem:[#allocation2 + $0x5c] sm:$0xf]
    %v5203 = vld [vmem:[#allocation2 + $0x60] sm:$0xf]
    %v5204 = vld [vmem:[#allocation2 + $0x64] sm:$0xf]
    %v5205 = vld [vmem:[#allocation2 + $0x68] sm:$0xf]
    %v5206 = vld [vmem:[#allocation2 + $0x6c] sm:$0xf]
    %v5207 = vld [vmem:[#allocation2 + $0x70] sm:$0xf]
    %v5208 = vld [vmem:[#allocation2 + $0x74] sm:$0xf]
    %v5209 = vld [vmem:[#allocation2 + $0x78] sm:$0xf]
    %v5210 = vld [vmem:[#allocation2 + $0x7c] sm:$0xf]
    %v5211 = vld [vmem:[#allocation2 + $0x80] sm:$0xf]
    %v5212 = vld [vmem:[#allocation2 + $0x84] sm:$0xf]
    %v5213 = vld [vmem:[#allocation2 + $0x88] sm:$0xf]
    %v5214 = vld [vmem:[#allocation2 + $0x8c] sm:$0xf]
    %v5215 = vld [vmem:[#allocation2 + $0x90] sm:$0xf]
    %v5216 = vld [vmem:[#allocation2 + $0x94] sm:$0xf]
    %v5217 = vld [vmem:[#allocation2 + $0x98] sm:$0xf]
    %v5218 = vld [vmem:[#allocation2 + $0x9c] sm:$0xf]
    %v5219 = vld [vmem:[#allocation2 + $0xa0] sm:$0xf]
    %v5220 = vld [vmem:[#allocation2 + $0xa4] sm:$0xf]
    %v5221 = vld [vmem:[#allocation2 + $0xa8] sm:$0xf]
    %v5222 = vld [vmem:[#allocation2 + $0xac] sm:$0xf]
    %v5223 = vld [vmem:[#allocation2 + $0xb0] sm:$0xf]
    %v5224 = vld [vmem:[#allocation2 + $0xb4] sm:$0xf]
    %v5225 = vld [vmem:[#allocation2 + $0xb8] sm:$0xf]
    %v5226 = vld [vmem:[#allocation2 + $0xbc] sm:$0xf]
    %v5227 = vld [vmem:[#allocation2 + $0xc0] sm:$0xf]
    %v5228 = vld [vmem:[#allocation2 + $0xc4] sm:$0xf]
    %v5229 = vld [vmem:[#allocation2 + $0xc8] sm:$0xf]
    %v5230 = vld [vmem:[#allocation2 + $0xcc] sm:$0xf]
    %v5231 = vld [vmem:[#allocation2 + $0xd0] sm:$0x3]
    %v5232 = vld [vmem:[%s3 + $0x30] sm:$0xf]
    %v5233 = vld [vmem:[%s3 + $0x34] sm:$0xf]
    %v5284 = vunpack.c.l.b16 %v5182
    %v5285 = vunpack.c.l.b16 %v5183
    %v5286 = vunpack.c.l.b16 %v5184
    %v5287 = vunpack.c.l.b16 %v5185
    %v5288 = vunpack.c.l.b16 %v5186
    %v5289 = vunpack.c.l.b16 %v5187
    %v5290 = vunpack.c.l.b16 %v5188
    %v5291 = vunpack.c.l.b16 %v5189
    %v5292 = vunpack.c.l.b16 %v5190
    %v5293 = vunpack.c.l.b16 %v5191
    %v5294 = vunpack.c.l.b16 %v5192
    %v5295 = vunpack.c.l.b16 %v5193
    %v5296 = vunpack.c.l.b16 %v5194
    %v5297 = vunpack.c.l.b16 %v5195
    %v5298 = vunpack.c.l.b16 %v5196
    %v5299 = vunpack.c.l.b16 %v5197
    %v5300 = vunpack.c.l.b16 %v5198
    %v5301 = vunpack.c.l.b16 %v5199
    %v5302 = vunpack.c.l.b16 %v5200
    %v5303 = vunpack.c.l.b16 %v5201
    %v5304 = vunpack.c.l.b16 %v5202
    %v5305 = vunpack.c.l.b16 %v5203
    %v5306 = vunpack.c.l.b16 %v5204
    %v5307 = vunpack.c.l.b16 %v5205
    %v5308 = vunpack.c.l.b16 %v5206
    %v5309 = vunpack.c.l.b16 %v5207
    %v5310 = vunpack.c.l.b16 %v5208
    %v5311 = vunpack.c.l.b16 %v5209
    %v5312 = vunpack.c.l.b16 %v5210
    %v5313 = vunpack.c.l.b16 %v5211
    %v5314 = vunpack.c.l.b16 %v5212
    %v5315 = vunpack.c.l.b16 %v5213
    %v5316 = vunpack.c.l.b16 %v5214
    %v5317 = vunpack.c.l.b16 %v5215
    %v5318 = vunpack.c.l.b16 %v5216
    %v5319 = vunpack.c.l.b16 %v5217
    %v5320 = vunpack.c.l.b16 %v5218
    %v5321 = vunpack.c.l.b16 %v5219
    %v5322 = vunpack.c.l.b16 %v5220
    %v5323 = vunpack.c.l.b16 %v5221
    %v5324 = vunpack.c.l.b16 %v5222
    %v5325 = vunpack.c.l.b16 %v5223
    %v5326 = vunpack.c.l.b16 %v5224
    %v5327 = vunpack.c.l.b16 %v5225
    %v5328 = vunpack.c.l.b16 %v5226
    %v5329 = vunpack.c.l.b16 %v5227
    %v5330 = vunpack.c.l.b16 %v5228
    %v5331 = vunpack.c.l.b16 %v5229
    %v5332 = vunpack.c.l.b16 %v5230
    %v5333 = vunpack.c.l.b16 %v5231
    %v5334 = vpack.c.b16 %v5285, %v5284
    %v5335 = vpack.c.b16 %v5287, %v5286
    %v5336 = vpack.c.b16 %v5289, %v5288
    %v5337 = vpack.c.b16 %v5291, %v5290
    %v5338 = vpack.c.b16 %v5293, %v5292
    %v5339 = vpack.c.b16 %v5295, %v5294
    %v5340 = vpack.c.b16 %v5297, %v5296
    %v5341 = vpack.c.b16 %v5299, %v5298
    %v5342 = vpack.c.b16 %v5301, %v5300
    %v5343 = vpack.c.b16 %v5303, %v5302
    %v5344 = vpack.c.b16 %v5305, %v5304
    %v5345 = vpack.c.b16 %v5307, %v5306
    %v5346 = vpack.c.b16 %v5309, %v5308
    %v5347 = vpack.c.b16 %v5311, %v5310
    %v5348 = vpack.c.b16 %v5313, %v5312
    %v5349 = vpack.c.b16 %v5315, %v5314
    %v5350 = vpack.c.b16 %v5317, %v5316
    %v5351 = vpack.c.b16 %v5319, %v5318
    %v5352 = vpack.c.b16 %v5321, %v5320
    %v5353 = vpack.c.b16 %v5323, %v5322
    %v5354 = vpack.c.b16 %v5325, %v5324
    %v5355 = vpack.c.b16 %v5327, %v5326
    %v5356 = vpack.c.b16 %v5329, %v5328
    %v5357 = vpack.c.b16 %v5331, %v5330
    %v5358 = vpack.c.b16 %v5333, %v5332
    %vm5359 = vcmask 1045504
    %v5360 = vrot.slane %v5334, 2
    %v5361 = vrot.slane %v5335, 2
    %v5362 = vsel %vm5359, %v5360, %v5361
    %v5363 = vrot.slane %v5336, 2
    %v5364 = vsel %vm5359, %v5361, %v5363
    %v5365 = vrot.slane %v5337, 2
    %v5366 = vsel %vm5359, %v5363, %v5365
    %v5367 = vrot.slane %v5338, 2
    %v5368 = vsel %vm5359, %v5365, %v5367
    %v5369 = vrot.slane %v5339, 2
    %v5370 = vsel %vm5359, %v5367, %v5369
    %v5371 = vrot.slane %v5340, 2
    %v5372 = vsel %vm5359, %v5369, %v5371
    %v5373 = vrot.slane %v5341, 2
    %v5374 = vsel %vm5359, %v5371, %v5373
    %v5375 = vrot.slane %v5342, 2
    %v5376 = vsel %vm5359, %v5373, %v5375
    %v5377 = vrot.slane %v5343, 2
    %v5378 = vsel %vm5359, %v5375, %v5377
    %v5379 = vrot.slane %v5344, 2
    %v5380 = vsel %vm5359, %v5377, %v5379
    %v5381 = vrot.slane %v5345, 2
    %v5382 = vsel %vm5359, %v5379, %v5381
    %v5383 = vrot.slane %v5346, 2
    %v5384 = vsel %vm5359, %v5381, %v5383
    %v5385 = vrot.slane %v5347, 2
    %v5386 = vsel %vm5359, %v5383, %v5385
    %v5387 = vrot.slane %v5348, 2
    %v5388 = vsel %vm5359, %v5385, %v5387
    %v5389 = vrot.slane %v5349, 2
    %v5390 = vsel %vm5359, %v5387, %v5389
    %v5391 = vrot.slane %v5350, 2
    %v5392 = vsel %vm5359, %v5389, %v5391
    %v5393 = vrot.slane %v5351, 2
    %v5394 = vsel %vm5359, %v5391, %v5393
    %v5395 = vrot.slane %v5352, 2
    %v5396 = vsel %vm5359, %v5393, %v5395
    %v5397 = vrot.slane %v5353, 2
    %v5398 = vsel %vm5359, %v5395, %v5397
    %v5399 = vrot.slane %v5354, 2
    %v5400 = vsel %vm5359, %v5397, %v5399
    %v5401 = vrot.slane %v5355, 2
    %v5402 = vsel %vm5359, %v5399, %v5401
    %v5403 = vrot.slane %v5356, 2
    %v5404 = vsel %vm5359, %v5401, %v5403
    %v5405 = vrot.slane %v5357, 2
    %v5406 = vsel %vm5359, %v5403, %v5405
    %v5407 = vrot.slane %v5358, 2
    %v5408 = vsel %vm5359, %v5405, %v5407
    %v5411 = vunpack.c.l.b16 %v5232
    %v5412 = vunpack.c.l.b16 %v5233
    %v5413 = vpack.c.b16 %v5412, %v5411
    %v5416 = vsel %vm232, %v5362, 0
    %v5419 = vsel %vm232, %v5364, 0
    %v5422 = vsel %vm232, %v5366, 0
    %v5425 = vsel %vm232, %v5368, 0
    %v5428 = vsel %vm232, %v5370, 0
    %v5431 = vsel %vm232, %v5372, 0
    %v5434 = vsel %vm232, %v5374, 0
    %v5437 = vsel %vm232, %v5376, 0
    %v5440 = vsel %vm232, %v5378, 0
    %v5443 = vsel %vm232, %v5380, 0
    %v5446 = vsel %vm232, %v5382, 0
    %v5449 = vsel %vm232, %v5384, 0
    %v5452 = vsel %vm232, %v5386, 0
    %v5455 = vsel %vm232, %v5388, 0
    %v5458 = vsel %vm232, %v5390, 0
    %v5461 = vsel %vm232, %v5392, 0
    %v5464 = vsel %vm232, %v5394, 0
    %v5467 = vsel %vm232, %v5396, 0
    %v5470 = vsel %vm232, %v5398, 0
    %v5473 = vsel %vm232, %v5400, 0
    %v5476 = vsel %vm232, %v5402, 0
    %v5479 = vsel %vm232, %v5404, 0
    %v5482 = vsel %vm232, %v5406, 0
    %v5485 = vsel %vm232, %v5408, 0
    %v5488 = vsel %vm232, %v5407, 0
    %5490 = vmatprep.subr.bf16.mxu0 0
    %5491 = vmatpush1.bf16.msra.mxu0 %v5413
    %5492 = vmatprep.subr.bf16.mxu0 0
    %5493 = vmatpush1.bf16.msra.mxu0 0
    %5494 = vmatprep.subr.bf16.mxu0 0
    %5495 = vmatpush1.bf16.msra.mxu0 0
    %5496 = vmatprep.subr.bf16.mxu0 0
    %5497 = vmatpush1.bf16.msra.mxu0 0
    %5498 = vmatprep.subr.bf16.mxu0 0
    %5499 = vmatpush1.bf16.msra.mxu0 0
    %5500 = vmatprep.subr.bf16.mxu0 0
    %5501 = vmatpush1.bf16.msra.mxu0 0
    %5502 = vmatprep.subr.bf16.mxu0 0
    %5503 = vmatpush1.bf16.msra.mxu0 0
    %5504 = vmatprep.subr.bf16.mxu0 0
    %5505 = vmatpush1.bf16.msra.mxu0 0
    %5506 = vmatprep.subr.bf16.mxu0 0
    %5507 = vmatpush1.bf16.msra.mxu0 0
    %5508 = vmatprep.subr.bf16.mxu0 0
    %5509 = vmatpush1.bf16.msra.mxu0 0
    %5510 = vmatprep.subr.bf16.mxu0 0
    %5511 = vmatpush1.bf16.msra.mxu0 0
    %5512 = vmatprep.subr.bf16.mxu0 0
    %5513 = vmatpush1.bf16.msra.mxu0 0
    %5514 = vmatprep.subr.bf16.mxu0 0
    %5515 = vmatpush1.bf16.msra.mxu0 0
    %5516 = vmatprep.subr.bf16.mxu0 0
    %5517 = vmatpush1.bf16.msra.mxu0 0
    %5518 = vmatprep.subr.bf16.mxu0 0
    %5519 = vmatpush1.bf16.msra.mxu0 0
    %5520 = vmatprep.subr.bf16.mxu0 0
    %5521 = vmatpush1.bf16.msra.mxu0 0
    %5522 = vmatprep.mubr.bf16.mxu0 0
    %5523 = vmatmul.mubr.bf16.gmra.mrb[0].mxu0 %v5416
    %v5524 = vpop.f32.mrb[0].mxu0
    %v5525 = vadd.f32 0.0, %v5524
    %v5526 = vpop.f32.mrb[0].mxu0
    %v5527 = vpop.f32.mrb[0].mxu0
    %v5528 = vadd.f32 0.0, %v5527
    %v5529 = vpop.f32.mrb[0].mxu0
    %5530 = vmatprep.mubr.bf16.mxu0 0
    %5531 = vmatmul.mubr.bf16.gmra.mrb[0].mxu0 %v5419
    %v5532 = vpop.f32.mrb[0].mxu0
    %v5533 = vadd.f32 0.0, %v5532
    %v5534 = vpop.f32.mrb[0].mxu0
    %v5535 = vpop.f32.mrb[0].mxu0
    %v5536 = vadd.f32 0.0, %v5535
    %v5537 = vpop.f32.mrb[0].mxu0
    %5538 = vmatprep.mubr.bf16.mxu0 0
    %5539 = vmatmul.mubr.bf16.gmra.mrb[0].mxu0 %v5422
    %v5540 = vpop.f32.mrb[0].mxu0
    %v5541 = vadd.f32 0.0, %v5540
    %v5542 = vpop.f32.mrb[0].mxu0
    %v5543 = vpop.f32.mrb[0].mxu0
    %v5544 = vadd.f32 0.0, %v5543
    %v5545 = vpop.f32.mrb[0].mxu0
    %5546 = vmatprep.mubr.bf16.mxu0 0
    %5547 = vmatmul.mubr.bf16.gmra.mrb[0].mxu0 %v5425
    %v5548 = vpop.f32.mrb[0].mxu0
    %v5549 = vadd.f32 0.0, %v5548
    %v5550 = vpop.f32.mrb[0].mxu0
    %v5551 = vpop.f32.mrb[0].mxu0
    %v5552 = vadd.f32 0.0, %v5551
    %v5553 = vpop.f32.mrb[0].mxu0
    %5554 = vmatprep.mubr.bf16.mxu0 0
    %5555 = vmatmul.mubr.bf16.gmra.mrb[0].mxu0 %v5428
    %v5556 = vpop.f32.mrb[0].mxu0
    %v5557 = vadd.f32 0.0, %v5556
    %v5558 = vpop.f32.mrb[0].mxu0
    %v5559 = vpop.f32.mrb[0].mxu0
    %v5560 = vadd.f32 0.0, %v5559
    %v5561 = vpop.f32.mrb[0].mxu0
    %5562 = vmatprep.mubr.bf16.mxu0 0
    %5563 = vmatmul.mubr.bf16.gmra.mrb[0].mxu0 %v5431
    %v5564 = vpop.f32.mrb[0].mxu0
    %v5565 = vadd.f32 0.0, %v5564
    %v5566 = vpop.f32.mrb[0].mxu0
    %v5567 = vpop.f32.mrb[0].mxu0
    %v5568 = vadd.f32 0.0, %v5567
    %v5569 = vpop.f32.mrb[0].mxu0
    %5570 = vmatprep.mubr.bf16.mxu0 0
    %5571 = vmatmul.mubr.bf16.gmra.mrb[0].mxu0 %v5434
    %v5572 = vpop.f32.mrb[0].mxu0
    %v5573 = vadd.f32 0.0, %v5572
    %v5574 = vpop.f32.mrb[0].mxu0
    %v5575 = vpop.f32.mrb[0].mxu0
    %v5576 = vadd.f32 0.0, %v5575
    %v5577 = vpop.f32.mrb[0].mxu0
    %5578 = vmatprep.mubr.bf16.mxu0 0
    %5579 = vmatmul.mubr.bf16.gmra.mrb[0].mxu0 %v5437
    %v5580 = vpop.f32.mrb[0].mxu0
    %v5581 = vadd.f32 0.0, %v5580
    %v5582 = vpop.f32.mrb[0].mxu0
    %v5583 = vpop.f32.mrb[0].mxu0
    %v5584 = vadd.f32 0.0, %v5583
    %v5585 = vpop.f32.mrb[0].mxu0
    %5586 = vmatprep.mubr.bf16.mxu0 0
    %5587 = vmatmul.mubr.bf16.gmra.mrb[0].mxu0 %v5440
    %v5588 = vpop.f32.mrb[0].mxu0
    %v5589 = vadd.f32 0.0, %v5588
    %v5590 = vpop.f32.mrb[0].mxu0
    %v5591 = vpop.f32.mrb[0].mxu0
    %v5592 = vadd.f32 0.0, %v5591
    %v5593 = vpop.f32.mrb[0].mxu0
    %5594 = vmatprep.mubr.bf16.mxu0 0
    %5595 = vmatmul.mubr.bf16.gmra.mrb[0].mxu0 %v5443
    %v5596 = vpop.f32.mrb[0].mxu0
    %v5597 = vadd.f32 0.0, %v5596
    %v5598 = vpop.f32.mrb[0].mxu0
    %v5599 = vpop.f32.mrb[0].mxu0
    %v5600 = vadd.f32 0.0, %v5599
    %v5601 = vpop.f32.mrb[0].mxu0
    %5602 = vmatprep.mubr.bf16.mxu0 0
    %5603 = vmatmul.mubr.bf16.gmra.mrb[0].mxu0 %v5446
    %v5604 = vpop.f32.mrb[0].mxu0
    %v5605 = vadd.f32 0.0, %v5604
    %v5606 = vpop.f32.mrb[0].mxu0
    %v5607 = vpop.f32.mrb[0].mxu0
    %v5608 = vadd.f32 0.0, %v5607
    %v5609 = vpop.f32.mrb[0].mxu0
    %5610 = vmatprep.mubr.bf16.mxu0 0
    %5611 = vmatmul.mubr.bf16.gmra.mrb[0].mxu0 %v5449
    %v5612 = vpop.f32.mrb[0].mxu0
    %v5613 = vadd.f32 0.0, %v5612
    %v5614 = vpop.f32.mrb[0].mxu0
    %v5615 = vpop.f32.mrb[0].mxu0
    %v5616 = vadd.f32 0.0, %v5615
    %v5617 = vpop.f32.mrb[0].mxu0
    %5618 = vmatprep.mubr.bf16.mxu0 0
    %5619 = vmatmul.mubr.bf16.gmra.mrb[0].mxu0 %v5452
    %v5620 = vpop.f32.mrb[0].mxu0
    %v5621 = vadd.f32 0.0, %v5620
    %v5622 = vpop.f32.mrb[0].mxu0
    %v5623 = vpop.f32.mrb[0].mxu0
    %v5624 = vadd.f32 0.0, %v5623
    %v5625 = vpop.f32.mrb[0].mxu0
    %5626 = vmatprep.mubr.bf16.mxu0 0
    %5627 = vmatmul.mubr.bf16.gmra.mrb[0].mxu0 %v5455
    %v5628 = vpop.f32.mrb[0].mxu0
    %v5629 = vadd.f32 0.0, %v5628
    %v5630 = vpop.f32.mrb[0].mxu0
    %v5631 = vpop.f32.mrb[0].mxu0
    %v5632 = vadd.f32 0.0, %v5631
    %v5633 = vpop.f32.mrb[0].mxu0
    %5634 = vmatprep.mubr.bf16.mxu0 0
    %5635 = vmatmul.mubr.bf16.gmra.mrb[0].mxu0 %v5458
    %v5636 = vpop.f32.mrb[0].mxu0
    %v5637 = vadd.f32 0.0, %v5636
    %v5638 = vpop.f32.mrb[0].mxu0
    %v5639 = vpop.f32.mrb[0].mxu0
    %v5640 = vadd.f32 0.0, %v5639
    %v5641 = vpop.f32.mrb[0].mxu0
    %5642 = vmatprep.mubr.bf16.mxu0 0
    %5643 = vmatmul.mubr.bf16.gmra.mrb[0].mxu0 %v5461
    %v5644 = vpop.f32.mrb[0].mxu0
    %v5645 = vadd.f32 0.0, %v5644
    %v5646 = vpop.f32.mrb[0].mxu0
    %v5647 = vpop.f32.mrb[0].mxu0
    %v5648 = vadd.f32 0.0, %v5647
    %v5649 = vpop.f32.mrb[0].mxu0
    %5650 = vmatprep.mubr.bf16.mxu0 0
    %5651 = vmatmul.mubr.bf16.gmra.mrb[0].mxu0 %v5464
    %v5652 = vpop.f32.mrb[0].mxu0
    %v5653 = vadd.f32 0.0, %v5652
    %v5654 = vpop.f32.mrb[0].mxu0
    %v5655 = vpop.f32.mrb[0].mxu0
    %v5656 = vadd.f32 0.0, %v5655
    %v5657 = vpop.f32.mrb[0].mxu0
    %5658 = vmatprep.mubr.bf16.mxu0 0
    %5659 = vmatmul.mubr.bf16.gmra.mrb[0].mxu0 %v5467
    %v5660 = vpop.f32.mrb[0].mxu0
    %v5661 = vadd.f32 0.0, %v5660
    %v5662 = vpop.f32.mrb[0].mxu0
    %v5663 = vpop.f32.mrb[0].mxu0
    %v5664 = vadd.f32 0.0, %v5663
    %v5665 = vpop.f32.mrb[0].mxu0
    %5666 = vmatprep.mubr.bf16.mxu0 0
    %5667 = vmatmul.mubr.bf16.gmra.mrb[0].mxu0 %v5470
    %v5668 = vpop.f32.mrb[0].mxu0
    %v5669 = vadd.f32 0.0, %v5668
    %v5670 = vpop.f32.mrb[0].mxu0
    %v5671 = vpop.f32.mrb[0].mxu0
    %v5672 = vadd.f32 0.0, %v5671
    %v5673 = vpop.f32.mrb[0].mxu0
    %5674 = vmatprep.mubr.bf16.mxu0 0
    %5675 = vmatmul.mubr.bf16.gmra.mrb[0].mxu0 %v5473
    %v5676 = vpop.f32.mrb[0].mxu0
    %v5677 = vadd.f32 0.0, %v5676
    %v5678 = vpop.f32.mrb[0].mxu0
    %v5679 = vpop.f32.mrb[0].mxu0
    %v5680 = vadd.f32 0.0, %v5679
    %v5681 = vpop.f32.mrb[0].mxu0
    %5682 = vmatprep.mubr.bf16.mxu0 0
    %5683 = vmatmul.mubr.bf16.gmra.mrb[0].mxu0 %v5476
    %v5684 = vpop.f32.mrb[0].mxu0
    %v5685 = vadd.f32 0.0, %v5684
    %v5686 = vpop.f32.mrb[0].mxu0
    %v5687 = vpop.f32.mrb[0].mxu0
    %v5688 = vadd.f32 0.0, %v5687
    %v5689 = vpop.f32.mrb[0].mxu0
    %5690 = vmatprep.mubr.bf16.mxu0 0
    %5691 = vmatmul.mubr.bf16.gmra.mrb[0].mxu0 %v5479
    %v5692 = vpop.f32.mrb[0].mxu0
    %v5693 = vadd.f32 0.0, %v5692
    %v5694 = vpop.f32.mrb[0].mxu0
    %v5695 = vpop.f32.mrb[0].mxu0
    %v5696 = vadd.f32 0.0, %v5695
    %v5697 = vpop.f32.mrb[0].mxu0
    %5698 = vmatprep.mubr.bf16.mxu0 0
    %5699 = vmatmul.mubr.bf16.gmra.mrb[0].mxu0 %v5482
    %v5700 = vpop.f32.mrb[0].mxu0
    %v5701 = vadd.f32 0.0, %v5700
    %v5702 = vpop.f32.mrb[0].mxu0
    %v5703 = vpop.f32.mrb[0].mxu0
    %v5704 = vadd.f32 0.0, %v5703
    %v5705 = vpop.f32.mrb[0].mxu0
    %5706 = vmatprep.mubr.bf16.mxu0 0
    %5707 = vmatmul.mubr.bf16.gmra.mrb[0].mxu0 %v5485
    %v5708 = vpop.f32.mrb[0].mxu0
    %v5709 = vadd.f32 0.0, %v5708
    %v5710 = vpop.f32.mrb[0].mxu0
    %v5711 = vpop.f32.mrb[0].mxu0
    %v5712 = vadd.f32 0.0, %v5711
    %v5713 = vpop.f32.mrb[0].mxu0
    %5714 = vmatprep.mubr.bf16.mxu0 0
    %5715 = vmatmul.mubr.bf16.gmra.mrb[0].mxu0 %v5488
    %v5716 = vpop.f32.mrb[0].mxu0
    %v5717 = vadd.f32 0.0, %v5716
    %v5718 = vpop.f32.mrb[0].mxu0
    %v5719 = vpop.f32.mrb[0].mxu0
    %v5720 = vpop.f32.mrb[0].mxu0
    %5721 = vdwg.mxu0
    %v5722 = vadd.f32 %v5133, %v5525
    %v5723 = vadd.f32 %v5134, %v5528
    %v5724 = vadd.f32 %v5135, %v5533
    %v5725 = vadd.f32 %v5136, %v5536
    %v5726 = vadd.f32 %v5137, %v5541
    %v5727 = vadd.f32 %v5138, %v5544
    %v5728 = vadd.f32 %v5139, %v5549
    %v5729 = vadd.f32 %v5140, %v5552
    %v5730 = vadd.f32 %v5141, %v5557
    %v5731 = vadd.f32 %v5142, %v5560
    %v5732 = vadd.f32 %v5143, %v5565
    %v5733 = vadd.f32 %v5144, %v5568
    %v5734 = vadd.f32 %v5145, %v5573
    %v5735 = vadd.f32 %v5146, %v5576
    %v5736 = vadd.f32 %v5147, %v5581
    %v5737 = vadd.f32 %v5148, %v5584
    %v5738 = vadd.f32 %v5149, %v5589
    %v5739 = vadd.f32 %v5150, %v5592
    %v5740 = vadd.f32 %v5151, %v5597
    %v5741 = vadd.f32 %v5152, %v5600
    %v5742 = vadd.f32 %v5153, %v5605
    %v5743 = vadd.f32 %v5154, %v5608
    %v5744 = vadd.f32 %v5155, %v5613
    %v5745 = vadd.f32 %v5156, %v5616
    %v5746 = vadd.f32 %v5157, %v5621
    %v5747 = vadd.f32 %v5158, %v5624
    %v5748 = vadd.f32 %v5159, %v5629
    %v5749 = vadd.f32 %v5160, %v5632
    %v5750 = vadd.f32 %v5161, %v5637
    %v5751 = vadd.f32 %v5162, %v5640
    %v5752 = vadd.f32 %v5163, %v5645
    %v5753 = vadd.f32 %v5164, %v5648
    %v5754 = vadd.f32 %v5165, %v5653
    %v5755 = vadd.f32 %v5166, %v5656
    %v5756 = vadd.f32 %v5167, %v5661
    %v5757 = vadd.f32 %v5168, %v5664
    %v5758 = vadd.f32 %v5169, %v5669
    %v5759 = vadd.f32 %v5170, %v5672
    %v5760 = vadd.f32 %v5171, %v5677
    %v5761 = vadd.f32 %v5172, %v5680
    %v5762 = vadd.f32 %v5173, %v5685
    %v5763 = vadd.f32 %v5174, %v5688
    %v5764 = vadd.f32 %v5175, %v5693
    %v5765 = vadd.f32 %v5176, %v5696
    %v5766 = vadd.f32 %v5177, %v5701
    %v5767 = vadd.f32 %v5178, %v5704
    %v5768 = vadd.f32 %v5179, %v5709
    %v5769 = vadd.f32 %v5180, %v5712
    %v5770 = vadd.f32 %v5181, %v5717
    %5771 = vst.msk [vmem:[#allocation3] sm:$0xff] %vm1376, %v5722
    %5772 = vst.msk [vmem:[#allocation3 + $0x8] sm:$0xff] %vm1376, %v5723
    %5773 = vst.msk [vmem:[#allocation3 + $0x10] sm:$0xff] %vm1376, %v5724
    %5774 = vst.msk [vmem:[#allocation3 + $0x18] sm:$0xff] %vm1376, %v5725
    %5775 = vst.msk [vmem:[#allocation3 + $0x20] sm:$0xff] %vm1376, %v5726
    %5776 = vst.msk [vmem:[#allocation3 + $0x28] sm:$0xff] %vm1376, %v5727
    %5777 = vst.msk [vmem:[#allocation3 + $0x30] sm:$0xff] %vm1376, %v5728
    %5778 = vst.msk [vmem:[#allocation3 + $0x38] sm:$0xff] %vm1376, %v5729
    %5779 = vst.msk [vmem:[#allocation3 + $0x40] sm:$0xff] %vm1376, %v5730
    %5780 = vst.msk [vmem:[#allocation3 + $0x48] sm:$0xff] %vm1376, %v5731
    %5781 = vst.msk [vmem:[#allocation3 + $0x50] sm:$0xff] %vm1376, %v5732
    %5782 = vst.msk [vmem:[#allocation3 + $0x58] sm:$0xff] %vm1376, %v5733
    %5783 = vst.msk [vmem:[#allocation3 + $0x60] sm:$0xff] %vm1376, %v5734
    %5784 = vst.msk [vmem:[#allocation3 + $0x68] sm:$0xff] %vm1376, %v5735
    %5785 = vst.msk [vmem:[#allocation3 + $0x70] sm:$0xff] %vm1376, %v5736
    %5786 = vst.msk [vmem:[#allocation3 + $0x78] sm:$0xff] %vm1376, %v5737
    %5787 = vst.msk [vmem:[#allocation3 + $0x80] sm:$0xff] %vm1376, %v5738
    %5788 = vst.msk [vmem:[#allocation3 + $0x88] sm:$0xff] %vm1376, %v5739
    %5789 = vst.msk [vmem:[#allocation3 + $0x90] sm:$0xff] %vm1376, %v5740
    %5790 = vst.msk [vmem:[#allocation3 + $0x98] sm:$0xff] %vm1376, %v5741
    %5791 = vst.msk [vmem:[#allocation3 + $0xa0] sm:$0xff] %vm1376, %v5742
    %5792 = vst.msk [vmem:[#allocation3 + $0xa8] sm:$0xff] %vm1376, %v5743
    %5793 = vst.msk [vmem:[#allocation3 + $0xb0] sm:$0xff] %vm1376, %v5744
    %5794 = vst.msk [vmem:[#allocation3 + $0xb8] sm:$0xff] %vm1376, %v5745
    %5795 = vst.msk [vmem:[#allocation3 + $0xc0] sm:$0xff] %vm1376, %v5746
    %5796 = vst.msk [vmem:[#allocation3 + $0xc8] sm:$0xff] %vm1376, %v5747
    %5797 = vst.msk [vmem:[#allocation3 + $0xd0] sm:$0xff] %vm1376, %v5748
    %5798 = vst.msk [vmem:[#allocation3 + $0xd8] sm:$0xff] %vm1376, %v5749
    %5799 = vst.msk [vmem:[#allocation3 + $0xe0] sm:$0xff] %vm1376, %v5750
    %5800 = vst.msk [vmem:[#allocation3 + $0xe8] sm:$0xff] %vm1376, %v5751
    %5801 = vst.msk [vmem:[#allocation3 + $0xf0] sm:$0xff] %vm1376, %v5752
    %5802 = vst.msk [vmem:[#allocation3 + $0xf8] sm:$0xff] %vm1376, %v5753
    %5803 = vst.msk [vmem:[#allocation3 + $0x100] sm:$0xff] %vm1376, %v5754
    %5804 = vst.msk [vmem:[#allocation3 + $0x108] sm:$0xff] %vm1376, %v5755
    %5805 = vst.msk [vmem:[#allocation3 + $0x110] sm:$0xff] %vm1376, %v5756
    %5806 = vst.msk [vmem:[#allocation3 + $0x118] sm:$0xff] %vm1376, %v5757
    %5807 = vst.msk [vmem:[#allocation3 + $0x120] sm:$0xff] %vm1376, %v5758
    %5808 = vst.msk [vmem:[#allocation3 + $0x128] sm:$0xff] %vm1376, %v5759
    %5809 = vst.msk [vmem:[#allocation3 + $0x130] sm:$0xff] %vm1376, %v5760
    %5810 = vst.msk [vmem:[#allocation3 + $0x138] sm:$0xff] %vm1376, %v5761
    %5811 = vst.msk [vmem:[#allocation3 + $0x140] sm:$0xff] %vm1376, %v5762
    %5812 = vst.msk [vmem:[#allocation3 + $0x148] sm:$0xff] %vm1376, %v5763
    %5813 = vst.msk [vmem:[#allocation3 + $0x150] sm:$0xff] %vm1376, %v5764
    %5814 = vst.msk [vmem:[#allocation3 + $0x158] sm:$0xff] %vm1376, %v5765
    %5815 = vst.msk [vmem:[#allocation3 + $0x160] sm:$0xff] %vm1376, %v5766
    %5816 = vst.msk [vmem:[#allocation3 + $0x168] sm:$0xff] %vm1376, %v5767
    %5817 = vst.msk [vmem:[#allocation3 + $0x170] sm:$0xff] %vm1376, %v5768
    %5818 = vst.msk [vmem:[#allocation3 + $0x178] sm:$0xff] %vm1376, %v5769
    %5819 = vst.msk [vmem:[#allocation3 + $0x180] sm:$0xff] %vm1376, %v5770
    %v5820 = vld [vmem:[#allocation3] sm:$0xff]
    %v5821 = vld [vmem:[#allocation3 + $0x8] sm:$0xff]
    %v5822 = vld [vmem:[#allocation3 + $0x10] sm:$0xff]
    %v5823 = vld [vmem:[#allocation3 + $0x18] sm:$0xff]
    %v5824 = vld [vmem:[#allocation3 + $0x20] sm:$0xff]
    %v5825 = vld [vmem:[#allocation3 + $0x28] sm:$0xff]
    %v5826 = vld [vmem:[#allocation3 + $0x30] sm:$0xff]
    %v5827 = vld [vmem:[#allocation3 + $0x38] sm:$0xff]
    %v5828 = vld [vmem:[#allocation3 + $0x40] sm:$0xff]
    %v5829 = vld [vmem:[#allocation3 + $0x48] sm:$0xff]
    %v5830 = vld [vmem:[#allocation3 + $0x50] sm:$0xff]
    %v5831 = vld [vmem:[#allocation3 + $0x58] sm:$0xff]
    %v5832 = vld [vmem:[#allocation3 + $0x60] sm:$0xff]
    %v5833 = vld [vmem:[#allocation3 + $0x68] sm:$0xff]
    %v5834 = vld [vmem:[#allocation3 + $0x70] sm:$0xff]
    %v5835 = vld [vmem:[#allocation3 + $0x78] sm:$0xff]
    %v5836 = vld [vmem:[#allocation3 + $0x80] sm:$0xff]
    %v5837 = vld [vmem:[#allocation3 + $0x88] sm:$0xff]
    %v5838 = vld [vmem:[#allocation3 + $0x90] sm:$0xff]
    %v5839 = vld [vmem:[#allocation3 + $0x98] sm:$0xff]
    %v5840 = vld [vmem:[#allocation3 + $0xa0] sm:$0xff]
    %v5841 = vld [vmem:[#allocation3 + $0xa8] sm:$0xff]
    %v5842 = vld [vmem:[#allocation3 + $0xb0] sm:$0xff]
    %v5843 = vld [vmem:[#allocation3 + $0xb8] sm:$0xff]
    %v5844 = vld [vmem:[#allocation3 + $0xc0] sm:$0xff]
    %v5845 = vld [vmem:[#allocation3 + $0xc8] sm:$0xff]
    %v5846 = vld [vmem:[#allocation3 + $0xd0] sm:$0xff]
    %v5847 = vld [vmem:[#allocation3 + $0xd8] sm:$0xff]
    %v5848 = vld [vmem:[#allocation3 + $0xe0] sm:$0xff]
    %v5849 = vld [vmem:[#allocation3 + $0xe8] sm:$0xff]
    %v5850 = vld [vmem:[#allocation3 + $0xf0] sm:$0xff]
    %v5851 = vld [vmem:[#allocation3 + $0xf8] sm:$0xff]
    %v5852 = vld [vmem:[#allocation3 + $0x100] sm:$0xff]
    %v5853 = vld [vmem:[#allocation3 + $0x108] sm:$0xff]
    %v5854 = vld [vmem:[#allocation3 + $0x110] sm:$0xff]
    %v5855 = vld [vmem:[#allocation3 + $0x118] sm:$0xff]
    %v5856 = vld [vmem:[#allocation3 + $0x120] sm:$0xff]
    %v5857 = vld [vmem:[#allocation3 + $0x128] sm:$0xff]
    %v5858 = vld [vmem:[#allocation3 + $0x130] sm:$0xff]
    %v5859 = vld [vmem:[#allocation3 + $0x138] sm:$0xff]
    %v5860 = vld [vmem:[#allocation3 + $0x140] sm:$0xff]
    %v5861 = vld [vmem:[#allocation3 + $0x148] sm:$0xff]
    %v5862 = vld [vmem:[#allocation3 + $0x150] sm:$0xff]
    %v5863 = vld [vmem:[#allocation3 + $0x158] sm:$0xff]
    %v5864 = vld [vmem:[#allocation3 + $0x160] sm:$0xff]
    %v5865 = vld [vmem:[#allocation3 + $0x168] sm:$0xff]
    %v5866 = vld [vmem:[#allocation3 + $0x170] sm:$0xff]
    %v5867 = vld [vmem:[#allocation3 + $0x178] sm:$0xff]
    %v5868 = vld [vmem:[#allocation3 + $0x180] sm:$0xff]
    %v5869 = vld [vmem:[#allocation2 + $0xc] sm:$0xc]
    %v5870 = vld [vmem:[#allocation2 + $0x10] sm:$0xf]
    %v5871 = vld [vmem:[#allocation2 + $0x14] sm:$0xf]
    %v5872 = vld [vmem:[#allocation2 + $0x18] sm:$0xf]
    %v5873 = vld [vmem:[#allocation2 + $0x1c] sm:$0xf]
    %v5874 = vld [vmem:[#allocation2 + $0x20] sm:$0xf]
    %v5875 = vld [vmem:[#allocation2 + $0x24] sm:$0xf]
    %v5876 = vld [vmem:[#allocation2 + $0x28] sm:$0xf]
    %v5877 = vld [vmem:[#allocation2 + $0x2c] sm:$0xf]
    %v5878 = vld [vmem:[#allocation2 + $0x30] sm:$0xf]
    %v5879 = vld [vmem:[#allocation2 + $0x34] sm:$0xf]
    %v5880 = vld [vmem:[#allocation2 + $0x38] sm:$0xf]
    %v5881 = vld [vmem:[#allocation2 + $0x3c] sm:$0xf]
    %v5882 = vld [vmem:[#allocation2 + $0x40] sm:$0xf]
    %v5883 = vld [vmem:[#allocation2 + $0x44] sm:$0xf]
    %v5884 = vld [vmem:[#allocation2 + $0x48] sm:$0xf]
    %v5885 = vld [vmem:[#allocation2 + $0x4c] sm:$0xf]
    %v5886 = vld [vmem:[#allocation2 + $0x50] sm:$0xf]
    %v5887 = vld [vmem:[#allocation2 + $0x54] sm:$0xf]
    %v5888 = vld [vmem:[#allocation2 + $0x58] sm:$0xf]
    %v5889 = vld [vmem:[#allocation2 + $0x5c] sm:$0xf]
    %v5890 = vld [vmem:[#allocation2 + $0x60] sm:$0xf]
    %v5891 = vld [vmem:[#allocation2 + $0x64] sm:$0xf]
    %v5892 = vld [vmem:[#allocation2 + $0x68] sm:$0xf]
    %v5893 = vld [vmem:[#allocation2 + $0x6c] sm:$0xf]
    %v5894 = vld [vmem:[#allocation2 + $0x70] sm:$0xf]
    %v5895 = vld [vmem:[#allocation2 + $0x74] sm:$0xf]
    %v5896 = vld [vmem:[#allocation2 + $0x78] sm:$0xf]
    %v5897 = vld [vmem:[#allocation2 + $0x7c] sm:$0xf]
    %v5898 = vld [vmem:[#allocation2 + $0x80] sm:$0xf]
    %v5899 = vld [vmem:[#allocation2 + $0x84] sm:$0xf]
    %v5900 = vld [vmem:[#allocation2 + $0x88] sm:$0xf]
    %v5901 = vld [vmem:[#allocation2 + $0x8c] sm:$0xf]
    %v5902 = vld [vmem:[#allocation2 + $0x90] sm:$0xf]
    %v5903 = vld [vmem:[#allocation2 + $0x94] sm:$0xf]
    %v5904 = vld [vmem:[#allocation2 + $0x98] sm:$0xf]
    %v5905 = vld [vmem:[#allocation2 + $0x9c] sm:$0xf]
    %v5906 = vld [vmem:[#allocation2 + $0xa0] sm:$0xf]
    %v5907 = vld [vmem:[#allocation2 + $0xa4] sm:$0xf]
    %v5908 = vld [vmem:[#allocation2 + $0xa8] sm:$0xf]
    %v5909 = vld [vmem:[#allocation2 + $0xac] sm:$0xf]
    %v5910 = vld [vmem:[#allocation2 + $0xb0] sm:$0xf]
    %v5911 = vld [vmem:[#allocation2 + $0xb4] sm:$0xf]
    %v5912 = vld [vmem:[#allocation2 + $0xb8] sm:$0xf]
    %v5913 = vld [vmem:[#allocation2 + $0xbc] sm:$0xf]
    %v5914 = vld [vmem:[#allocation2 + $0xc0] sm:$0xf]
    %v5915 = vld [vmem:[#allocation2 + $0xc4] sm:$0xf]
    %v5916 = vld [vmem:[#allocation2 + $0xc8] sm:$0xf]
    %v5917 = vld [vmem:[#allocation2 + $0xcc] sm:$0xf]
    %v5918 = vld [vmem:[#allocation2 + $0xd0] sm:$0x7]
    %v5919 = vld [vmem:[%s3 + $0x38] sm:$0xf]
    %v5920 = vld [vmem:[%s3 + $0x3c] sm:$0xf]
    %v5971 = vunpack.c.l.b16 %v5869
    %v5972 = vunpack.c.l.b16 %v5870
    %v5973 = vunpack.c.l.b16 %v5871
    %v5974 = vunpack.c.l.b16 %v5872
    %v5975 = vunpack.c.l.b16 %v5873
    %v5976 = vunpack.c.l.b16 %v5874
    %v5977 = vunpack.c.l.b16 %v5875
    %v5978 = vunpack.c.l.b16 %v5876
    %v5979 = vunpack.c.l.b16 %v5877
    %v5980 = vunpack.c.l.b16 %v5878
    %v5981 = vunpack.c.l.b16 %v5879
    %v5982 = vunpack.c.l.b16 %v5880
    %v5983 = vunpack.c.l.b16 %v5881
    %v5984 = vunpack.c.l.b16 %v5882
    %v5985 = vunpack.c.l.b16 %v5883
    %v5986 = vunpack.c.l.b16 %v5884
    %v5987 = vunpack.c.l.b16 %v5885
    %v5988 = vunpack.c.l.b16 %v5886
    %v5989 = vunpack.c.l.b16 %v5887
    %v5990 = vunpack.c.l.b16 %v5888
    %v5991 = vunpack.c.l.b16 %v5889
    %v5992 = vunpack.c.l.b16 %v5890
    %v5993 = vunpack.c.l.b16 %v5891
    %v5994 = vunpack.c.l.b16 %v5892
    %v5995 = vunpack.c.l.b16 %v5893
    %v5996 = vunpack.c.l.b16 %v5894
    %v5997 = vunpack.c.l.b16 %v5895
    %v5998 = vunpack.c.l.b16 %v5896
    %v5999 = vunpack.c.l.b16 %v5897
    %v6000 = vunpack.c.l.b16 %v5898
    %v6001 = vunpack.c.l.b16 %v5899
    %v6002 = vunpack.c.l.b16 %v5900
    %v6003 = vunpack.c.l.b16 %v5901
    %v6004 = vunpack.c.l.b16 %v5902
    %v6005 = vunpack.c.l.b16 %v5903
    %v6006 = vunpack.c.l.b16 %v5904
    %v6007 = vunpack.c.l.b16 %v5905
    %v6008 = vunpack.c.l.b16 %v5906
    %v6009 = vunpack.c.l.b16 %v5907
    %v6010 = vunpack.c.l.b16 %v5908
    %v6011 = vunpack.c.l.b16 %v5909
    %v6012 = vunpack.c.l.b16 %v5910
    %v6013 = vunpack.c.l.b16 %v5911
    %v6014 = vunpack.c.l.b16 %v5912
    %v6015 = vunpack.c.l.b16 %v5913
    %v6016 = vunpack.c.l.b16 %v5914
    %v6017 = vunpack.c.l.b16 %v5915
    %v6018 = vunpack.c.l.b16 %v5916
    %v6019 = vunpack.c.l.b16 %v5917
    %v6020 = vunpack.c.l.b16 %v5918
    %v6021 = vpack.c.b16 %v5972, %v5971
    %v6022 = vpack.c.b16 %v5974, %v5973
    %v6023 = vpack.c.b16 %v5976, %v5975
    %v6024 = vpack.c.b16 %v5978, %v5977
    %v6025 = vpack.c.b16 %v5980, %v5979
    %v6026 = vpack.c.b16 %v5982, %v5981
    %v6027 = vpack.c.b16 %v5984, %v5983
    %v6028 = vpack.c.b16 %v5986, %v5985
    %v6029 = vpack.c.b16 %v5988, %v5987
    %v6030 = vpack.c.b16 %v5990, %v5989
    %v6031 = vpack.c.b16 %v5992, %v5991
    %v6032 = vpack.c.b16 %v5994, %v5993
    %v6033 = vpack.c.b16 %v5996, %v5995
    %v6034 = vpack.c.b16 %v5998, %v5997
    %v6035 = vpack.c.b16 %v6000, %v5999
    %v6036 = vpack.c.b16 %v6002, %v6001
    %v6037 = vpack.c.b16 %v6004, %v6003
    %v6038 = vpack.c.b16 %v6006, %v6005
    %v6039 = vpack.c.b16 %v6008, %v6007
    %v6040 = vpack.c.b16 %v6010, %v6009
    %v6041 = vpack.c.b16 %v6012, %v6011
    %v6042 = vpack.c.b16 %v6014, %v6013
    %v6043 = vpack.c.b16 %v6016, %v6015
    %v6044 = vpack.c.b16 %v6018, %v6017
    %v6045 = vpack.c.b16 %v6020, %v6019
    %vm6046 = vsmask.f32 5376
    %v6048 = vshrl.u32 %v6021, 16
    %v6050 = vrot.slane %v6048, 2
    %v6051 = vshll.u32 %v6021, 16
    %v6053 = vrot.slane %v6051, 3
    %v6054 = vor.u32 %v6050, %v6053
    %v6056 = vshrl.u32 %v6022, 16
    %v6058 = vrot.slane %v6056, 2
    %v6059 = vshll.u32 %v6022, 16
    %v6061 = vrot.slane %v6059, 3
    %v6062 = vor.u32 %v6058, %v6061
    %v6063 = vsel %vm6046, %v6054, %v6062
    %v6065 = vshrl.u32 %v6023, 16
    %v6067 = vrot.slane %v6065, 2
    %v6068 = vshll.u32 %v6023, 16
    %v6070 = vrot.slane %v6068, 3
    %v6071 = vor.u32 %v6067, %v6070
    %v6072 = vsel %vm6046, %v6062, %v6071
    %v6074 = vshrl.u32 %v6024, 16
    %v6076 = vrot.slane %v6074, 2
    %v6077 = vshll.u32 %v6024, 16
    %v6079 = vrot.slane %v6077, 3
    %v6080 = vor.u32 %v6076, %v6079
    %v6081 = vsel %vm6046, %v6071, %v6080
    %v6083 = vshrl.u32 %v6025, 16
    %v6085 = vrot.slane %v6083, 2
    %v6086 = vshll.u32 %v6025, 16
    %v6088 = vrot.slane %v6086, 3
    %v6089 = vor.u32 %v6085, %v6088
    %v6090 = vsel %vm6046, %v6080, %v6089
    %v6092 = vshrl.u32 %v6026, 16
    %v6094 = vrot.slane %v6092, 2
    %v6095 = vshll.u32 %v6026, 16
    %v6097 = vrot.slane %v6095, 3
    %v6098 = vor.u32 %v6094, %v6097
    %v6099 = vsel %vm6046, %v6089, %v6098
    %v6101 = vshrl.u32 %v6027, 16
    %v6103 = vrot.slane %v6101, 2
    %v6104 = vshll.u32 %v6027, 16
    %v6106 = vrot.slane %v6104, 3
    %v6107 = vor.u32 %v6103, %v6106
    %v6108 = vsel %vm6046, %v6098, %v6107
    %v6110 = vshrl.u32 %v6028, 16
    %v6112 = vrot.slane %v6110, 2
    %v6113 = vshll.u32 %v6028, 16
    %v6115 = vrot.slane %v6113, 3
    %v6116 = vor.u32 %v6112, %v6115
    %v6117 = vsel %vm6046, %v6107, %v6116
    %v6119 = vshrl.u32 %v6029, 16
    %v6121 = vrot.slane %v6119, 2
    %v6122 = vshll.u32 %v6029, 16
    %v6124 = vrot.slane %v6122, 3
    %v6125 = vor.u32 %v6121, %v6124
    %v6126 = vsel %vm6046, %v6116, %v6125
    %v6128 = vshrl.u32 %v6030, 16
    %v6130 = vrot.slane %v6128, 2
    %v6131 = vshll.u32 %v6030, 16
    %v6133 = vrot.slane %v6131, 3
    %v6134 = vor.u32 %v6130, %v6133
    %v6135 = vsel %vm6046, %v6125, %v6134
    %v6137 = vshrl.u32 %v6031, 16
    %v6139 = vrot.slane %v6137, 2
    %v6140 = vshll.u32 %v6031, 16
    %v6142 = vrot.slane %v6140, 3
    %v6143 = vor.u32 %v6139, %v6142
    %v6144 = vsel %vm6046, %v6134, %v6143
    %v6146 = vshrl.u32 %v6032, 16
    %v6148 = vrot.slane %v6146, 2
    %v6149 = vshll.u32 %v6032, 16
    %v6151 = vrot.slane %v6149, 3
    %v6152 = vor.u32 %v6148, %v6151
    %v6153 = vsel %vm6046, %v6143, %v6152
    %v6155 = vshrl.u32 %v6033, 16
    %v6157 = vrot.slane %v6155, 2
    %v6158 = vshll.u32 %v6033, 16
    %v6160 = vrot.slane %v6158, 3
    %v6161 = vor.u32 %v6157, %v6160
    %v6162 = vsel %vm6046, %v6152, %v6161
    %v6164 = vshrl.u32 %v6034, 16
    %v6166 = vrot.slane %v6164, 2
    %v6167 = vshll.u32 %v6034, 16
    %v6169 = vrot.slane %v6167, 3
    %v6170 = vor.u32 %v6166, %v6169
    %v6171 = vsel %vm6046, %v6161, %v6170
    %v6173 = vshrl.u32 %v6035, 16
    %v6175 = vrot.slane %v6173, 2
    %v6176 = vshll.u32 %v6035, 16
    %v6178 = vrot.slane %v6176, 3
    %v6179 = vor.u32 %v6175, %v6178
    %v6180 = vsel %vm6046, %v6170, %v6179
    %v6182 = vshrl.u32 %v6036, 16
    %v6184 = vrot.slane %v6182, 2
    %v6185 = vshll.u32 %v6036, 16
    %v6187 = vrot.slane %v6185, 3
    %v6188 = vor.u32 %v6184, %v6187
    %v6189 = vsel %vm6046, %v6179, %v6188
    %v6191 = vshrl.u32 %v6037, 16
    %v6193 = vrot.slane %v6191, 2
    %v6194 = vshll.u32 %v6037, 16
    %v6196 = vrot.slane %v6194, 3
    %v6197 = vor.u32 %v6193, %v6196
    %v6198 = vsel %vm6046, %v6188, %v6197
    %v6200 = vshrl.u32 %v6038, 16
    %v6202 = vrot.slane %v6200, 2
    %v6203 = vshll.u32 %v6038, 16
    %v6205 = vrot.slane %v6203, 3
    %v6206 = vor.u32 %v6202, %v6205
    %v6207 = vsel %vm6046, %v6197, %v6206
    %v6209 = vshrl.u32 %v6039, 16
    %v6211 = vrot.slane %v6209, 2
    %v6212 = vshll.u32 %v6039, 16
    %v6214 = vrot.slane %v6212, 3
    %v6215 = vor.u32 %v6211, %v6214
    %v6216 = vsel %vm6046, %v6206, %v6215
    %v6218 = vshrl.u32 %v6040, 16
    %v6220 = vrot.slane %v6218, 2
    %v6221 = vshll.u32 %v6040, 16
    %v6223 = vrot.slane %v6221, 3
    %v6224 = vor.u32 %v6220, %v6223
    %v6225 = vsel %vm6046, %v6215, %v6224
    %v6227 = vshrl.u32 %v6041, 16
    %v6229 = vrot.slane %v6227, 2
    %v6230 = vshll.u32 %v6041, 16
    %v6232 = vrot.slane %v6230, 3
    %v6233 = vor.u32 %v6229, %v6232
    %v6234 = vsel %vm6046, %v6224, %v6233
    %v6236 = vshrl.u32 %v6042, 16
    %v6238 = vrot.slane %v6236, 2
    %v6239 = vshll.u32 %v6042, 16
    %v6241 = vrot.slane %v6239, 3
    %v6242 = vor.u32 %v6238, %v6241
    %v6243 = vsel %vm6046, %v6233, %v6242
    %v6245 = vshrl.u32 %v6043, 16
    %v6247 = vrot.slane %v6245, 2
    %v6248 = vshll.u32 %v6043, 16
    %v6250 = vrot.slane %v6248, 3
    %v6251 = vor.u32 %v6247, %v6250
    %v6252 = vsel %vm6046, %v6242, %v6251
    %v6254 = vshrl.u32 %v6044, 16
    %v6256 = vrot.slane %v6254, 2
    %v6257 = vshll.u32 %v6044, 16
    %v6259 = vrot.slane %v6257, 3
    %v6260 = vor.u32 %v6256, %v6259
    %v6261 = vsel %vm6046, %v6251, %v6260
    %v6263 = vshrl.u32 %v6045, 16
    %v6265 = vrot.slane %v6263, 2
    %v6266 = vshll.u32 %v6045, 16
    %v6268 = vrot.slane %v6266, 3
    %v6269 = vor.u32 %v6265, %v6268
    %v6270 = vsel %vm6046, %v6260, %v6269
    %v6273 = vunpack.c.l.b16 %v5919
    %v6274 = vunpack.c.l.b16 %v5920
    %v6275 = vpack.c.b16 %v6274, %v6273
    %v6278 = vsel %vm232, %v6063, 0
    %v6281 = vsel %vm232, %v6072, 0
    %v6284 = vsel %vm232, %v6081, 0
    %v6287 = vsel %vm232, %v6090, 0
    %v6290 = vsel %vm232, %v6099, 0
    %v6293 = vsel %vm232, %v6108, 0
    %v6296 = vsel %vm232, %v6117, 0
    %v6299 = vsel %vm232, %v6126, 0
    %v6302 = vsel %vm232, %v6135, 0
    %v6305 = vsel %vm232, %v6144, 0
    %v6308 = vsel %vm232, %v6153, 0
    %v6311 = vsel %vm232, %v6162, 0
    %v6314 = vsel %vm232, %v6171, 0
    %v6317 = vsel %vm232, %v6180, 0
    %v6320 = vsel %vm232, %v6189, 0
    %v6323 = vsel %vm232, %v6198, 0
    %v6326 = vsel %vm232, %v6207, 0
    %v6329 = vsel %vm232, %v6216, 0
    %v6332 = vsel %vm232, %v6225, 0
    %v6335 = vsel %vm232, %v6234, 0
    %v6338 = vsel %vm232, %v6243, 0
    %v6341 = vsel %vm232, %v6252, 0
    %v6344 = vsel %vm232, %v6261, 0
    %v6347 = vsel %vm232, %v6270, 0
    %v6350 = vsel %vm232, %v6269, 0
    %6352 = vmatprep.subr.bf16.mxu0 0
    %6353 = vmatpush1.bf16.msra.mxu0 %v6275
    %6354 = vmatprep.subr.bf16.mxu0 0
    %6355 = vmatpush1.bf16.msra.mxu0 0
    %6356 = vmatprep.subr.bf16.mxu0 0
    %6357 = vmatpush1.bf16.msra.mxu0 0
    %6358 = vmatprep.subr.bf16.mxu0 0
    %6359 = vmatpush1.bf16.msra.mxu0 0
    %6360 = vmatprep.subr.bf16.mxu0 0
    %6361 = vmatpush1.bf16.msra.mxu0 0
    %6362 = vmatprep.subr.bf16.mxu0 0
    %6363 = vmatpush1.bf16.msra.mxu0 0
    %6364 = vmatprep.subr.bf16.mxu0 0
    %6365 = vmatpush1.bf16.msra.mxu0 0
    %6366 = vmatprep.subr.bf16.mxu0 0
    %6367 = vmatpush1.bf16.msra.mxu0 0
    %6368 = vmatprep.subr.bf16.mxu0 0
    %6369 = vmatpush1.bf16.msra.mxu0 0
    %6370 = vmatprep.subr.bf16.mxu0 0
    %6371 = vmatpush1.bf16.msra.mxu0 0
    %6372 = vmatprep.subr.bf16.mxu0 0
    %6373 = vmatpush1.bf16.msra.mxu0 0
    %6374 = vmatprep.subr.bf16.mxu0 0
    %6375 = vmatpush1.bf16.msra.mxu0 0
    %6376 = vmatprep.subr.bf16.mxu0 0
    %6377 = vmatpush1.bf16.msra.mxu0 0
    %6378 = vmatprep.subr.bf16.mxu0 0
    %6379 = vmatpush1.bf16.msra.mxu0 0
    %6380 = vmatprep.subr.bf16.mxu0 0
    %6381 = vmatpush1.bf16.msra.mxu0 0
    %6382 = vmatprep.subr.bf16.mxu0 0
    %6383 = vmatpush1.bf16.msra.mxu0 0
    %6384 = vmatprep.mubr.bf16.mxu0 0
    %6385 = vmatmul.mubr.bf16.gmra.mrb[0].mxu0 %v6278
    %v6386 = vpop.f32.mrb[0].mxu0
    %v6387 = vadd.f32 0.0, %v6386
    %v6388 = vpop.f32.mrb[0].mxu0
    %v6389 = vpop.f32.mrb[0].mxu0
    %v6390 = vadd.f32 0.0, %v6389
    %v6391 = vpop.f32.mrb[0].mxu0
    %6392 = vmatprep.mubr.bf16.mxu0 0
    %6393 = vmatmul.mubr.bf16.gmra.mrb[0].mxu0 %v6281
    %v6394 = vpop.f32.mrb[0].mxu0
    %v6395 = vadd.f32 0.0, %v6394
    %v6396 = vpop.f32.mrb[0].mxu0
    %v6397 = vpop.f32.mrb[0].mxu0
    %v6398 = vadd.f32 0.0, %v6397
    %v6399 = vpop.f32.mrb[0].mxu0
    %6400 = vmatprep.mubr.bf16.mxu0 0
    %6401 = vmatmul.mubr.bf16.gmra.mrb[0].mxu0 %v6284
    %v6402 = vpop.f32.mrb[0].mxu0
    %v6403 = vadd.f32 0.0, %v6402
    %v6404 = vpop.f32.mrb[0].mxu0
    %v6405 = vpop.f32.mrb[0].mxu0
    %v6406 = vadd.f32 0.0, %v6405
    %v6407 = vpop.f32.mrb[0].mxu0
    %6408 = vmatprep.mubr.bf16.mxu0 0
    %6409 = vmatmul.mubr.bf16.gmra.mrb[0].mxu0 %v6287
    %v6410 = vpop.f32.mrb[0].mxu0
    %v6411 = vadd.f32 0.0, %v6410
    %v6412 = vpop.f32.mrb[0].mxu0
    %v6413 = vpop.f32.mrb[0].mxu0
    %v6414 = vadd.f32 0.0, %v6413
    %v6415 = vpop.f32.mrb[0].mxu0
    %6416 = vmatprep.mubr.bf16.mxu0 0
    %6417 = vmatmul.mubr.bf16.gmra.mrb[0].mxu0 %v6290
    %v6418 = vpop.f32.mrb[0].mxu0
    %v6419 = vadd.f32 0.0, %v6418
    %v6420 = vpop.f32.mrb[0].mxu0
    %v6421 = vpop.f32.mrb[0].mxu0
    %v6422 = vadd.f32 0.0, %v6421
    %v6423 = vpop.f32.mrb[0].mxu0
    %6424 = vmatprep.mubr.bf16.mxu0 0
    %6425 = vmatmul.mubr.bf16.gmra.mrb[0].mxu0 %v6293
    %v6426 = vpop.f32.mrb[0].mxu0
    %v6427 = vadd.f32 0.0, %v6426
    %v6428 = vpop.f32.mrb[0].mxu0
    %v6429 = vpop.f32.mrb[0].mxu0
    %v6430 = vadd.f32 0.0, %v6429
    %v6431 = vpop.f32.mrb[0].mxu0
    %6432 = vmatprep.mubr.bf16.mxu0 0
    %6433 = vmatmul.mubr.bf16.gmra.mrb[0].mxu0 %v6296
    %v6434 = vpop.f32.mrb[0].mxu0
    %v6435 = vadd.f32 0.0, %v6434
    %v6436 = vpop.f32.mrb[0].mxu0
    %v6437 = vpop.f32.mrb[0].mxu0
    %v6438 = vadd.f32 0.0, %v6437
    %v6439 = vpop.f32.mrb[0].mxu0
    %6440 = vmatprep.mubr.bf16.mxu0 0
    %6441 = vmatmul.mubr.bf16.gmra.mrb[0].mxu0 %v6299
    %v6442 = vpop.f32.mrb[0].mxu0
    %v6443 = vadd.f32 0.0, %v6442
    %v6444 = vpop.f32.mrb[0].mxu0
    %v6445 = vpop.f32.mrb[0].mxu0
    %v6446 = vadd.f32 0.0, %v6445
    %v6447 = vpop.f32.mrb[0].mxu0
    %6448 = vmatprep.mubr.bf16.mxu0 0
    %6449 = vmatmul.mubr.bf16.gmra.mrb[0].mxu0 %v6302
    %v6450 = vpop.f32.mrb[0].mxu0
    %v6451 = vadd.f32 0.0, %v6450
    %v6452 = vpop.f32.mrb[0].mxu0
    %v6453 = vpop.f32.mrb[0].mxu0
    %v6454 = vadd.f32 0.0, %v6453
    %v6455 = vpop.f32.mrb[0].mxu0
    %6456 = vmatprep.mubr.bf16.mxu0 0
    %6457 = vmatmul.mubr.bf16.gmra.mrb[0].mxu0 %v6305
    %v6458 = vpop.f32.mrb[0].mxu0
    %v6459 = vadd.f32 0.0, %v6458
    %v6460 = vpop.f32.mrb[0].mxu0
    %v6461 = vpop.f32.mrb[0].mxu0
    %v6462 = vadd.f32 0.0, %v6461
    %v6463 = vpop.f32.mrb[0].mxu0
    %6464 = vmatprep.mubr.bf16.mxu0 0
    %6465 = vmatmul.mubr.bf16.gmra.mrb[0].mxu0 %v6308
    %v6466 = vpop.f32.mrb[0].mxu0
    %v6467 = vadd.f32 0.0, %v6466
    %v6468 = vpop.f32.mrb[0].mxu0
    %v6469 = vpop.f32.mrb[0].mxu0
    %v6470 = vadd.f32 0.0, %v6469
    %v6471 = vpop.f32.mrb[0].mxu0
    %6472 = vmatprep.mubr.bf16.mxu0 0
    %6473 = vmatmul.mubr.bf16.gmra.mrb[0].mxu0 %v6311
    %v6474 = vpop.f32.mrb[0].mxu0
    %v6475 = vadd.f32 0.0, %v6474
    %v6476 = vpop.f32.mrb[0].mxu0
    %v6477 = vpop.f32.mrb[0].mxu0
    %v6478 = vadd.f32 0.0, %v6477
    %v6479 = vpop.f32.mrb[0].mxu0
    %6480 = vmatprep.mubr.bf16.mxu0 0
    %6481 = vmatmul.mubr.bf16.gmra.mrb[0].mxu0 %v6314
    %v6482 = vpop.f32.mrb[0].mxu0
    %v6483 = vadd.f32 0.0, %v6482
    %v6484 = vpop.f32.mrb[0].mxu0
    %v6485 = vpop.f32.mrb[0].mxu0
    %v6486 = vadd.f32 0.0, %v6485
    %v6487 = vpop.f32.mrb[0].mxu0
    %6488 = vmatprep.mubr.bf16.mxu0 0
    %6489 = vmatmul.mubr.bf16.gmra.mrb[0].mxu0 %v6317
    %v6490 = vpop.f32.mrb[0].mxu0
    %v6491 = vadd.f32 0.0, %v6490
    %v6492 = vpop.f32.mrb[0].mxu0
    %v6493 = vpop.f32.mrb[0].mxu0
    %v6494 = vadd.f32 0.0, %v6493
    %v6495 = vpop.f32.mrb[0].mxu0
    %6496 = vmatprep.mubr.bf16.mxu0 0
    %6497 = vmatmul.mubr.bf16.gmra.mrb[0].mxu0 %v6320
    %v6498 = vpop.f32.mrb[0].mxu0
    %v6499 = vadd.f32 0.0, %v6498
    %v6500 = vpop.f32.mrb[0].mxu0
    %v6501 = vpop.f32.mrb[0].mxu0
    %v6502 = vadd.f32 0.0, %v6501
    %v6503 = vpop.f32.mrb[0].mxu0
    %6504 = vmatprep.mubr.bf16.mxu0 0
    %6505 = vmatmul.mubr.bf16.gmra.mrb[0].mxu0 %v6323
    %v6506 = vpop.f32.mrb[0].mxu0
    %v6507 = vadd.f32 0.0, %v6506
    %v6508 = vpop.f32.mrb[0].mxu0
    %v6509 = vpop.f32.mrb[0].mxu0
    %v6510 = vadd.f32 0.0, %v6509
    %v6511 = vpop.f32.mrb[0].mxu0
    %6512 = vmatprep.mubr.bf16.mxu0 0
    %6513 = vmatmul.mubr.bf16.gmra.mrb[0].mxu0 %v6326
    %v6514 = vpop.f32.mrb[0].mxu0
    %v6515 = vadd.f32 0.0, %v6514
    %v6516 = vpop.f32.mrb[0].mxu0
    %v6517 = vpop.f32.mrb[0].mxu0
    %v6518 = vadd.f32 0.0, %v6517
    %v6519 = vpop.f32.mrb[0].mxu0
    %6520 = vmatprep.mubr.bf16.mxu0 0
    %6521 = vmatmul.mubr.bf16.gmra.mrb[0].mxu0 %v6329
    %v6522 = vpop.f32.mrb[0].mxu0
    %v6523 = vadd.f32 0.0, %v6522
    %v6524 = vpop.f32.mrb[0].mxu0
    %v6525 = vpop.f32.mrb[0].mxu0
    %v6526 = vadd.f32 0.0, %v6525
    %v6527 = vpop.f32.mrb[0].mxu0
    %6528 = vmatprep.mubr.bf16.mxu0 0
    %6529 = vmatmul.mubr.bf16.gmra.mrb[0].mxu0 %v6332
    %v6530 = vpop.f32.mrb[0].mxu0
    %v6531 = vadd.f32 0.0, %v6530
    %v6532 = vpop.f32.mrb[0].mxu0
    %v6533 = vpop.f32.mrb[0].mxu0
    %v6534 = vadd.f32 0.0, %v6533
    %v6535 = vpop.f32.mrb[0].mxu0
    %6536 = vmatprep.mubr.bf16.mxu0 0
    %6537 = vmatmul.mubr.bf16.gmra.mrb[0].mxu0 %v6335
    %v6538 = vpop.f32.mrb[0].mxu0
    %v6539 = vadd.f32 0.0, %v6538
    %v6540 = vpop.f32.mrb[0].mxu0
    %v6541 = vpop.f32.mrb[0].mxu0
    %v6542 = vadd.f32 0.0, %v6541
    %v6543 = vpop.f32.mrb[0].mxu0
    %6544 = vmatprep.mubr.bf16.mxu0 0
    %6545 = vmatmul.mubr.bf16.gmra.mrb[0].mxu0 %v6338
    %v6546 = vpop.f32.mrb[0].mxu0
    %v6547 = vadd.f32 0.0, %v6546
    %v6548 = vpop.f32.mrb[0].mxu0
    %v6549 = vpop.f32.mrb[0].mxu0
    %v6550 = vadd.f32 0.0, %v6549
    %v6551 = vpop.f32.mrb[0].mxu0
    %6552 = vmatprep.mubr.bf16.mxu0 0
    %6553 = vmatmul.mubr.bf16.gmra.mrb[0].mxu0 %v6341
    %v6554 = vpop.f32.mrb[0].mxu0
    %v6555 = vadd.f32 0.0, %v6554
    %v6556 = vpop.f32.mrb[0].mxu0
    %v6557 = vpop.f32.mrb[0].mxu0
    %v6558 = vadd.f32 0.0, %v6557
    %v6559 = vpop.f32.mrb[0].mxu0
    %6560 = vmatprep.mubr.bf16.mxu0 0
    %6561 = vmatmul.mubr.bf16.gmra.mrb[0].mxu0 %v6344
    %v6562 = vpop.f32.mrb[0].mxu0
    %v6563 = vadd.f32 0.0, %v6562
    %v6564 = vpop.f32.mrb[0].mxu0
    %v6565 = vpop.f32.mrb[0].mxu0
    %v6566 = vadd.f32 0.0, %v6565
    %v6567 = vpop.f32.mrb[0].mxu0
    %6568 = vmatprep.mubr.bf16.mxu0 0
    %6569 = vmatmul.mubr.bf16.gmra.mrb[0].mxu0 %v6347
    %v6570 = vpop.f32.mrb[0].mxu0
    %v6571 = vadd.f32 0.0, %v6570
    %v6572 = vpop.f32.mrb[0].mxu0
    %v6573 = vpop.f32.mrb[0].mxu0
    %v6574 = vadd.f32 0.0, %v6573
    %v6575 = vpop.f32.mrb[0].mxu0
    %6576 = vmatprep.mubr.bf16.mxu0 0
    %6577 = vmatmul.mubr.bf16.gmra.mrb[0].mxu0 %v6350
    %v6578 = vpop.f32.mrb[0].mxu0
    %v6579 = vadd.f32 0.0, %v6578
    %v6580 = vpop.f32.mrb[0].mxu0
    %v6581 = vpop.f32.mrb[0].mxu0
    %v6582 = vpop.f32.mrb[0].mxu0
    %6583 = vdwg.mxu0
    %v6584 = vadd.f32 %v5820, %v6387
    %v6585 = vadd.f32 %v5821, %v6390
    %v6586 = vadd.f32 %v5822, %v6395
    %v6587 = vadd.f32 %v5823, %v6398
    %v6588 = vadd.f32 %v5824, %v6403
    %v6589 = vadd.f32 %v5825, %v6406
    %v6590 = vadd.f32 %v5826, %v6411
    %v6591 = vadd.f32 %v5827, %v6414
    %v6592 = vadd.f32 %v5828, %v6419
    %v6593 = vadd.f32 %v5829, %v6422
    %v6594 = vadd.f32 %v5830, %v6427
    %v6595 = vadd.f32 %v5831, %v6430
    %v6596 = vadd.f32 %v5832, %v6435
    %v6597 = vadd.f32 %v5833, %v6438
    %v6598 = vadd.f32 %v5834, %v6443
    %v6599 = vadd.f32 %v5835, %v6446
    %v6600 = vadd.f32 %v5836, %v6451
    %v6601 = vadd.f32 %v5837, %v6454
    %v6602 = vadd.f32 %v5838, %v6459
    %v6603 = vadd.f32 %v5839, %v6462
    %v6604 = vadd.f32 %v5840, %v6467
    %v6605 = vadd.f32 %v5841, %v6470
    %v6606 = vadd.f32 %v5842, %v6475
    %v6607 = vadd.f32 %v5843, %v6478
    %v6608 = vadd.f32 %v5844, %v6483
    %v6609 = vadd.f32 %v5845, %v6486
    %v6610 = vadd.f32 %v5846, %v6491
    %v6611 = vadd.f32 %v5847, %v6494
    %v6612 = vadd.f32 %v5848, %v6499
    %v6613 = vadd.f32 %v5849, %v6502
    %v6614 = vadd.f32 %v5850, %v6507
    %v6615 = vadd.f32 %v5851, %v6510
    %v6616 = vadd.f32 %v5852, %v6515
    %v6617 = vadd.f32 %v5853, %v6518
    %v6618 = vadd.f32 %v5854, %v6523
    %v6619 = vadd.f32 %v5855, %v6526
    %v6620 = vadd.f32 %v5856, %v6531
    %v6621 = vadd.f32 %v5857, %v6534
    %v6622 = vadd.f32 %v5858, %v6539
    %v6623 = vadd.f32 %v5859, %v6542
    %v6624 = vadd.f32 %v5860, %v6547
    %v6625 = vadd.f32 %v5861, %v6550
    %v6626 = vadd.f32 %v5862, %v6555
    %v6627 = vadd.f32 %v5863, %v6558
    %v6628 = vadd.f32 %v5864, %v6563
    %v6629 = vadd.f32 %v5865, %v6566
    %v6630 = vadd.f32 %v5866, %v6571
    %v6631 = vadd.f32 %v5867, %v6574
    %v6632 = vadd.f32 %v5868, %v6579
    %6633 = vst.msk [vmem:[#allocation3] sm:$0xff] %vm1376, %v6584
    %6634 = vst.msk [vmem:[#allocation3 + $0x8] sm:$0xff] %vm1376, %v6585
    %6635 = vst.msk [vmem:[#allocation3 + $0x10] sm:$0xff] %vm1376, %v6586
    %6636 = vst.msk [vmem:[#allocation3 + $0x18] sm:$0xff] %vm1376, %v6587
    %6637 = vst.msk [vmem:[#allocation3 + $0x20] sm:$0xff] %vm1376, %v6588
    %6638 = vst.msk [vmem:[#allocation3 + $0x28] sm:$0xff] %vm1376, %v6589
    %6639 = vst.msk [vmem:[#allocation3 + $0x30] sm:$0xff] %vm1376, %v6590
    %6640 = vst.msk [vmem:[#allocation3 + $0x38] sm:$0xff] %vm1376, %v6591
    %6641 = vst.msk [vmem:[#allocation3 + $0x40] sm:$0xff] %vm1376, %v6592
    %6642 = vst.msk [vmem:[#allocation3 + $0x48] sm:$0xff] %vm1376, %v6593
    %6643 = vst.msk [vmem:[#allocation3 + $0x50] sm:$0xff] %vm1376, %v6594
    %6644 = vst.msk [vmem:[#allocation3 + $0x58] sm:$0xff] %vm1376, %v6595
    %6645 = vst.msk [vmem:[#allocation3 + $0x60] sm:$0xff] %vm1376, %v6596
    %6646 = vst.msk [vmem:[#allocation3 + $0x68] sm:$0xff] %vm1376, %v6597
    %6647 = vst.msk [vmem:[#allocation3 + $0x70] sm:$0xff] %vm1376, %v6598
    %6648 = vst.msk [vmem:[#allocation3 + $0x78] sm:$0xff] %vm1376, %v6599
    %6649 = vst.msk [vmem:[#allocation3 + $0x80] sm:$0xff] %vm1376, %v6600
    %6650 = vst.msk [vmem:[#allocation3 + $0x88] sm:$0xff] %vm1376, %v6601
    %6651 = vst.msk [vmem:[#allocation3 + $0x90] sm:$0xff] %vm1376, %v6602
    %6652 = vst.msk [vmem:[#allocation3 + $0x98] sm:$0xff] %vm1376, %v6603
    %6653 = vst.msk [vmem:[#allocation3 + $0xa0] sm:$0xff] %vm1376, %v6604
    %6654 = vst.msk [vmem:[#allocation3 + $0xa8] sm:$0xff] %vm1376, %v6605
    %6655 = vst.msk [vmem:[#allocation3 + $0xb0] sm:$0xff] %vm1376, %v6606
    %6656 = vst.msk [vmem:[#allocation3 + $0xb8] sm:$0xff] %vm1376, %v6607
    %6657 = vst.msk [vmem:[#allocation3 + $0xc0] sm:$0xff] %vm1376, %v6608
    %6658 = vst.msk [vmem:[#allocation3 + $0xc8] sm:$0xff] %vm1376, %v6609
    %6659 = vst.msk [vmem:[#allocation3 + $0xd0] sm:$0xff] %vm1376, %v6610
    %6660 = vst.msk [vmem:[#allocation3 + $0xd8] sm:$0xff] %vm1376, %v6611
    %6661 = vst.msk [vmem:[#allocation3 + $0xe0] sm:$0xff] %vm1376, %v6612
    %6662 = vst.msk [vmem:[#allocation3 + $0xe8] sm:$0xff] %vm1376, %v6613
    %6663 = vst.msk [vmem:[#allocation3 + $0xf0] sm:$0xff] %vm1376, %v6614
    %6664 = vst.msk [vmem:[#allocation3 + $0xf8] sm:$0xff] %vm1376, %v6615
    %6665 = vst.msk [vmem:[#allocation3 + $0x100] sm:$0xff] %vm1376, %v6616
    %6666 = vst.msk [vmem:[#allocation3 + $0x108] sm:$0xff] %vm1376, %v6617
    %6667 = vst.msk [vmem:[#allocation3 + $0x110] sm:$0xff] %vm1376, %v6618
    %6668 = vst.msk [vmem:[#allocation3 + $0x118] sm:$0xff] %vm1376, %v6619
    %6669 = vst.msk [vmem:[#allocation3 + $0x120] sm:$0xff] %vm1376, %v6620
    %6670 = vst.msk [vmem:[#allocation3 + $0x128] sm:$0xff] %vm1376, %v6621
    %6671 = vst.msk [vmem:[#allocation3 + $0x130] sm:$0xff] %vm1376, %v6622
    %6672 = vst.msk [vmem:[#allocation3 + $0x138] sm:$0xff] %vm1376, %v6623
    %6673 = vst.msk [vmem:[#allocation3 + $0x140] sm:$0xff] %vm1376, %v6624
    %6674 = vst.msk [vmem:[#allocation3 + $0x148] sm:$0xff] %vm1376, %v6625
    %6675 = vst.msk [vmem:[#allocation3 + $0x150] sm:$0xff] %vm1376, %v6626
    %6676 = vst.msk [vmem:[#allocation3 + $0x158] sm:$0xff] %vm1376, %v6627
    %6677 = vst.msk [vmem:[#allocation3 + $0x160] sm:$0xff] %vm1376, %v6628
    %6678 = vst.msk [vmem:[#allocation3 + $0x168] sm:$0xff] %vm1376, %v6629
    %6679 = vst.msk [vmem:[#allocation3 + $0x170] sm:$0xff] %vm1376, %v6630
    %6680 = vst.msk [vmem:[#allocation3 + $0x178] sm:$0xff] %vm1376, %v6631
    %6681 = vst.msk [vmem:[#allocation3 + $0x180] sm:$0xff] %vm1376, %v6632
    %v6682 = vld [vmem:[#allocation3] sm:$0xff]
    %v6683 = vld [vmem:[#allocation3 + $0x8] sm:$0xff]
    %v6684 = vld [vmem:[#allocation3 + $0x10] sm:$0xff]
    %v6685 = vld [vmem:[#allocation3 + $0x18] sm:$0xff]
    %v6686 = vld [vmem:[#allocation3 + $0x20] sm:$0xff]
    %v6687 = vld [vmem:[#allocation3 + $0x28] sm:$0xff]
    %v6688 = vld [vmem:[#allocation3 + $0x30] sm:$0xff]
    %v6689 = vld [vmem:[#allocation3 + $0x38] sm:$0xff]
    %v6690 = vld [vmem:[#allocation3 + $0x40] sm:$0xff]
    %v6691 = vld [vmem:[#allocation3 + $0x48] sm:$0xff]
    %v6692 = vld [vmem:[#allocation3 + $0x50] sm:$0xff]
    %v6693 = vld [vmem:[#allocation3 + $0x58] sm:$0xff]
    %v6694 = vld [vmem:[#allocation3 + $0x60] sm:$0xff]
    %v6695 = vld [vmem:[#allocation3 + $0x68] sm:$0xff]
    %v6696 = vld [vmem:[#allocation3 + $0x70] sm:$0xff]
    %v6697 = vld [vmem:[#allocation3 + $0x78] sm:$0xff]
    %v6698 = vld [vmem:[#allocation3 + $0x80] sm:$0xff]
    %v6699 = vld [vmem:[#allocation3 + $0x88] sm:$0xff]
    %v6700 = vld [vmem:[#allocation3 + $0x90] sm:$0xff]
    %v6701 = vld [vmem:[#allocation3 + $0x98] sm:$0xff]
    %v6702 = vld [vmem:[#allocation3 + $0xa0] sm:$0xff]
    %v6703 = vld [vmem:[#allocation3 + $0xa8] sm:$0xff]
    %v6704 = vld [vmem:[#allocation3 + $0xb0] sm:$0xff]
    %v6705 = vld [vmem:[#allocation3 + $0xb8] sm:$0xff]
    %v6706 = vld [vmem:[#allocation3 + $0xc0] sm:$0xff]
    %v6707 = vld [vmem:[#allocation3 + $0xc8] sm:$0xff]
    %v6708 = vld [vmem:[#allocation3 + $0xd0] sm:$0xff]
    %v6709 = vld [vmem:[#allocation3 + $0xd8] sm:$0xff]
    %v6710 = vld [vmem:[#allocation3 + $0xe0] sm:$0xff]
    %v6711 = vld [vmem:[#allocation3 + $0xe8] sm:$0xff]
    %v6712 = vld [vmem:[#allocation3 + $0xf0] sm:$0xff]
    %v6713 = vld [vmem:[#allocation3 + $0xf8] sm:$0xff]
    %v6714 = vld [vmem:[#allocation3 + $0x100] sm:$0xff]
    %v6715 = vld [vmem:[#allocation3 + $0x108] sm:$0xff]
    %v6716 = vld [vmem:[#allocation3 + $0x110] sm:$0xff]
    %v6717 = vld [vmem:[#allocation3 + $0x118] sm:$0xff]
    %v6718 = vld [vmem:[#allocation3 + $0x120] sm:$0xff]
    %v6719 = vld [vmem:[#allocation3 + $0x128] sm:$0xff]
    %v6720 = vld [vmem:[#allocation3 + $0x130] sm:$0xff]
    %v6721 = vld [vmem:[#allocation3 + $0x138] sm:$0xff]
    %v6722 = vld [vmem:[#allocation3 + $0x140] sm:$0xff]
    %v6723 = vld [vmem:[#allocation3 + $0x148] sm:$0xff]
    %v6724 = vld [vmem:[#allocation3 + $0x150] sm:$0xff]
    %v6725 = vld [vmem:[#allocation3 + $0x158] sm:$0xff]
    %v6726 = vld [vmem:[#allocation3 + $0x160] sm:$0xff]
    %v6727 = vld [vmem:[#allocation3 + $0x168] sm:$0xff]
    %v6728 = vld [vmem:[#allocation3 + $0x170] sm:$0xff]
    %v6729 = vld [vmem:[#allocation3 + $0x178] sm:$0xff]
    %v6730 = vld [vmem:[#allocation3 + $0x180] sm:$0xff]
    %v6731 = vld [vmem:[#allocation2 + $0xc] sm:$0x8]
    %v6732 = vld [vmem:[#allocation2 + $0x10] sm:$0xf]
    %v6733 = vld [vmem:[#allocation2 + $0x14] sm:$0xf]
    %v6734 = vld [vmem:[#allocation2 + $0x18] sm:$0xf]
    %v6735 = vld [vmem:[#allocation2 + $0x1c] sm:$0xf]
    %v6736 = vld [vmem:[#allocation2 + $0x20] sm:$0xf]
    %v6737 = vld [vmem:[#allocation2 + $0x24] sm:$0xf]
    %v6738 = vld [vmem:[#allocation2 + $0x28] sm:$0xf]
    %v6739 = vld [vmem:[#allocation2 + $0x2c] sm:$0xf]
    %v6740 = vld [vmem:[#allocation2 + $0x30] sm:$0xf]
    %v6741 = vld [vmem:[#allocation2 + $0x34] sm:$0xf]
    %v6742 = vld [vmem:[#allocation2 + $0x38] sm:$0xf]
    %v6743 = vld [vmem:[#allocation2 + $0x3c] sm:$0xf]
    %v6744 = vld [vmem:[#allocation2 + $0x40] sm:$0xf]
    %v6745 = vld [vmem:[#allocation2 + $0x44] sm:$0xf]
    %v6746 = vld [vmem:[#allocation2 + $0x48] sm:$0xf]
    %v6747 = vld [vmem:[#allocation2 + $0x4c] sm:$0xf]
    %v6748 = vld [vmem:[#allocation2 + $0x50] sm:$0xf]
    %v6749 = vld [vmem:[#allocation2 + $0x54] sm:$0xf]
    %v6750 = vld [vmem:[#allocation2 + $0x58] sm:$0xf]
    %v6751 = vld [vmem:[#allocation2 + $0x5c] sm:$0xf]
    %v6752 = vld [vmem:[#allocation2 + $0x60] sm:$0xf]
    %v6753 = vld [vmem:[#allocation2 + $0x64] sm:$0xf]
    %v6754 = vld [vmem:[#allocation2 + $0x68] sm:$0xf]
    %v6755 = vld [vmem:[#allocation2 + $0x6c] sm:$0xf]
    %v6756 = vld [vmem:[#allocation2 + $0x70] sm:$0xf]
    %v6757 = vld [vmem:[#allocation2 + $0x74] sm:$0xf]
    %v6758 = vld [vmem:[#allocation2 + $0x78] sm:$0xf]
    %v6759 = vld [vmem:[#allocation2 + $0x7c] sm:$0xf]
    %v6760 = vld [vmem:[#allocation2 + $0x80] sm:$0xf]
    %v6761 = vld [vmem:[#allocation2 + $0x84] sm:$0xf]
    %v6762 = vld [vmem:[#allocation2 + $0x88] sm:$0xf]
    %v6763 = vld [vmem:[#allocation2 + $0x8c] sm:$0xf]
    %v6764 = vld [vmem:[#allocation2 + $0x90] sm:$0xf]
    %v6765 = vld [vmem:[#allocation2 + $0x94] sm:$0xf]
    %v6766 = vld [vmem:[#allocation2 + $0x98] sm:$0xf]
    %v6767 = vld [vmem:[#allocation2 + $0x9c] sm:$0xf]
    %v6768 = vld [vmem:[#allocation2 + $0xa0] sm:$0xf]
    %v6769 = vld [vmem:[#allocation2 + $0xa4] sm:$0xf]
    %v6770 = vld [vmem:[#allocation2 + $0xa8] sm:$0xf]
    %v6771 = vld [vmem:[#allocation2 + $0xac] sm:$0xf]
    %v6772 = vld [vmem:[#allocation2 + $0xb0] sm:$0xf]
    %v6773 = vld [vmem:[#allocation2 + $0xb4] sm:$0xf]
    %v6774 = vld [vmem:[#allocation2 + $0xb8] sm:$0xf]
    %v6775 = vld [vmem:[#allocation2 + $0xbc] sm:$0xf]
    %v6776 = vld [vmem:[#allocation2 + $0xc0] sm:$0xf]
    %v6777 = vld [vmem:[#allocation2 + $0xc4] sm:$0xf]
    %v6778 = vld [vmem:[#allocation2 + $0xc8] sm:$0xf]
    %v6779 = vld [vmem:[#allocation2 + $0xcc] sm:$0xf]
    %v6780 = vld [vmem:[#allocation2 + $0xd0] sm:$0x7]
    %v6781 = vld [vmem:[%s3 + $0x40] sm:$0xf]
    %v6782 = vld [vmem:[%s3 + $0x44] sm:$0xf]
    %v6833 = vunpack.c.l.b16 %v6731
    %v6834 = vunpack.c.l.b16 %v6732
    %v6835 = vunpack.c.l.b16 %v6733
    %v6836 = vunpack.c.l.b16 %v6734
    %v6837 = vunpack.c.l.b16 %v6735
    %v6838 = vunpack.c.l.b16 %v6736
    %v6839 = vunpack.c.l.b16 %v6737
    %v6840 = vunpack.c.l.b16 %v6738
    %v6841 = vunpack.c.l.b16 %v6739
    %v6842 = vunpack.c.l.b16 %v6740
    %v6843 = vunpack.c.l.b16 %v6741
    %v6844 = vunpack.c.l.b16 %v6742
    %v6845 = vunpack.c.l.b16 %v6743
    %v6846 = vunpack.c.l.b16 %v6744
    %v6847 = vunpack.c.l.b16 %v6745
    %v6848 = vunpack.c.l.b16 %v6746
    %v6849 = vunpack.c.l.b16 %v6747
    %v6850 = vunpack.c.l.b16 %v6748
    %v6851 = vunpack.c.l.b16 %v6749
    %v6852 = vunpack.c.l.b16 %v6750
    %v6853 = vunpack.c.l.b16 %v6751
    %v6854 = vunpack.c.l.b16 %v6752
    %v6855 = vunpack.c.l.b16 %v6753
    %v6856 = vunpack.c.l.b16 %v6754
    %v6857 = vunpack.c.l.b16 %v6755
    %v6858 = vunpack.c.l.b16 %v6756
    %v6859 = vunpack.c.l.b16 %v6757
    %v6860 = vunpack.c.l.b16 %v6758
    %v6861 = vunpack.c.l.b16 %v6759
    %v6862 = vunpack.c.l.b16 %v6760
    %v6863 = vunpack.c.l.b16 %v6761
    %v6864 = vunpack.c.l.b16 %v6762
    %v6865 = vunpack.c.l.b16 %v6763
    %v6866 = vunpack.c.l.b16 %v6764
    %v6867 = vunpack.c.l.b16 %v6765
    %v6868 = vunpack.c.l.b16 %v6766
    %v6869 = vunpack.c.l.b16 %v6767
    %v6870 = vunpack.c.l.b16 %v6768
    %v6871 = vunpack.c.l.b16 %v6769
    %v6872 = vunpack.c.l.b16 %v6770
    %v6873 = vunpack.c.l.b16 %v6771
    %v6874 = vunpack.c.l.b16 %v6772
    %v6875 = vunpack.c.l.b16 %v6773
    %v6876 = vunpack.c.l.b16 %v6774
    %v6877 = vunpack.c.l.b16 %v6775
    %v6878 = vunpack.c.l.b16 %v6776
    %v6879 = vunpack.c.l.b16 %v6777
    %v6880 = vunpack.c.l.b16 %v6778
    %v6881 = vunpack.c.l.b16 %v6779
    %v6882 = vunpack.c.l.b16 %v6780
    %v6883 = vpack.c.b16 %v6834, %v6833
    %v6884 = vpack.c.b16 %v6836, %v6835
    %v6885 = vpack.c.b16 %v6838, %v6837
    %v6886 = vpack.c.b16 %v6840, %v6839
    %v6887 = vpack.c.b16 %v6842, %v6841
    %v6888 = vpack.c.b16 %v6844, %v6843
    %v6889 = vpack.c.b16 %v6846, %v6845
    %v6890 = vpack.c.b16 %v6848, %v6847
    %v6891 = vpack.c.b16 %v6850, %v6849
    %v6892 = vpack.c.b16 %v6852, %v6851
    %v6893 = vpack.c.b16 %v6854, %v6853
    %v6894 = vpack.c.b16 %v6856, %v6855
    %v6895 = vpack.c.b16 %v6858, %v6857
    %v6896 = vpack.c.b16 %v6860, %v6859
    %v6897 = vpack.c.b16 %v6862, %v6861
    %v6898 = vpack.c.b16 %v6864, %v6863
    %v6899 = vpack.c.b16 %v6866, %v6865
    %v6900 = vpack.c.b16 %v6868, %v6867
    %v6901 = vpack.c.b16 %v6870, %v6869
    %v6902 = vpack.c.b16 %v6872, %v6871
    %v6903 = vpack.c.b16 %v6874, %v6873
    %v6904 = vpack.c.b16 %v6876, %v6875
    %v6905 = vpack.c.b16 %v6878, %v6877
    %v6906 = vpack.c.b16 %v6880, %v6879
    %v6907 = vpack.c.b16 %v6882, %v6881
    %v6908 = vrot.slane %v6883, 3
    %v6909 = vrot.slane %v6884, 3
    %v6910 = vsel %vm3176, %v6908, %v6909
    %v6911 = vrot.slane %v6885, 3
    %v6912 = vsel %vm3176, %v6909, %v6911
    %v6913 = vrot.slane %v6886, 3
    %v6914 = vsel %vm3176, %v6911, %v6913
    %v6915 = vrot.slane %v6887, 3
    %v6916 = vsel %vm3176, %v6913, %v6915
    %v6917 = vrot.slane %v6888, 3
    %v6918 = vsel %vm3176, %v6915, %v6917
    %v6919 = vrot.slane %v6889, 3
    %v6920 = vsel %vm3176, %v6917, %v6919
    %v6921 = vrot.slane %v6890, 3
    %v6922 = vsel %vm3176, %v6919, %v6921
    %v6923 = vrot.slane %v6891, 3
    %v6924 = vsel %vm3176, %v6921, %v6923
    %v6925 = vrot.slane %v6892, 3
    %v6926 = vsel %vm3176, %v6923, %v6925
    %v6927 = vrot.slane %v6893, 3
    %v6928 = vsel %vm3176, %v6925, %v6927
    %v6929 = vrot.slane %v6894, 3
    %v6930 = vsel %vm3176, %v6927, %v6929
    %v6931 = vrot.slane %v6895, 3
    %v6932 = vsel %vm3176, %v6929, %v6931
    %v6933 = vrot.slane %v6896, 3
    %v6934 = vsel %vm3176, %v6931, %v6933
    %v6935 = vrot.slane %v6897, 3
    %v6936 = vsel %vm3176, %v6933, %v6935
    %v6937 = vrot.slane %v6898, 3
    %v6938 = vsel %vm3176, %v6935, %v6937
    %v6939 = vrot.slane %v6899, 3
    %v6940 = vsel %vm3176, %v6937, %v6939
    %v6941 = vrot.slane %v6900, 3
    %v6942 = vsel %vm3176, %v6939, %v6941
    %v6943 = vrot.slane %v6901, 3
    %v6944 = vsel %vm3176, %v6941, %v6943
    %v6945 = vrot.slane %v6902, 3
    %v6946 = vsel %vm3176, %v6943, %v6945
    %v6947 = vrot.slane %v6903, 3
    %v6948 = vsel %vm3176, %v6945, %v6947
    %v6949 = vrot.slane %v6904, 3
    %v6950 = vsel %vm3176, %v6947, %v6949
    %v6951 = vrot.slane %v6905, 3
    %v6952 = vsel %vm3176, %v6949, %v6951
    %v6953 = vrot.slane %v6906, 3
    %v6954 = vsel %vm3176, %v6951, %v6953
    %v6955 = vrot.slane %v6907, 3
    %v6956 = vsel %vm3176, %v6953, %v6955
    %v6959 = vunpack.c.l.b16 %v6781
    %v6960 = vunpack.c.l.b16 %v6782
    %v6961 = vpack.c.b16 %v6960, %v6959
    %v6964 = vsel %vm232, %v6910, 0
    %v6967 = vsel %vm232, %v6912, 0
    %v6970 = vsel %vm232, %v6914, 0
    %v6973 = vsel %vm232, %v6916, 0
    %v6976 = vsel %vm232, %v6918, 0
    %v6979 = vsel %vm232, %v6920, 0
    %v6982 = vsel %vm232, %v6922, 0
    %v6985 = vsel %vm232, %v6924, 0
    %v6988 = vsel %vm232, %v6926, 0
    %v6991 = vsel %vm232, %v6928, 0
    %v6994 = vsel %vm232, %v6930, 0
    %v6997 = vsel %vm232, %v6932, 0
    %v7000 = vsel %vm232, %v6934, 0
    %v7003 = vsel %vm232, %v6936, 0
    %v7006 = vsel %vm232, %v6938, 0
    %v7009 = vsel %vm232, %v6940, 0
    %v7012 = vsel %vm232, %v6942, 0
    %v7015 = vsel %vm232, %v6944, 0
    %v7018 = vsel %vm232, %v6946, 0
    %v7021 = vsel %vm232, %v6948, 0
    %v7024 = vsel %vm232, %v6950, 0
    %v7027 = vsel %vm232, %v6952, 0
    %v7030 = vsel %vm232, %v6954, 0
    %v7033 = vsel %vm232, %v6956, 0
    %v7036 = vsel %vm232, %v6955, 0
    %7038 = vmatprep.subr.bf16.mxu0 0
    %7039 = vmatpush1.bf16.msra.mxu0 %v6961
    %7040 = vmatprep.subr.bf16.mxu0 0
    %7041 = vmatpush1.bf16.msra.mxu0 0
    %7042 = vmatprep.subr.bf16.mxu0 0
    %7043 = vmatpush1.bf16.msra.mxu0 0
    %7044 = vmatprep.subr.bf16.mxu0 0
    %7045 = vmatpush1.bf16.msra.mxu0 0
    %7046 = vmatprep.subr.bf16.mxu0 0
    %7047 = vmatpush1.bf16.msra.mxu0 0
    %7048 = vmatprep.subr.bf16.mxu0 0
    %7049 = vmatpush1.bf16.msra.mxu0 0
    %7050 = vmatprep.subr.bf16.mxu0 0
    %7051 = vmatpush1.bf16.msra.mxu0 0
    %7052 = vmatprep.subr.bf16.mxu0 0
    %7053 = vmatpush1.bf16.msra.mxu0 0
    %7054 = vmatprep.subr.bf16.mxu0 0
    %7055 = vmatpush1.bf16.msra.mxu0 0
    %7056 = vmatprep.subr.bf16.mxu0 0
    %7057 = vmatpush1.bf16.msra.mxu0 0
    %7058 = vmatprep.subr.bf16.mxu0 0
    %7059 = vmatpush1.bf16.msra.mxu0 0
    %7060 = vmatprep.subr.bf16.mxu0 0
    %7061 = vmatpush1.bf16.msra.mxu0 0
    %7062 = vmatprep.subr.bf16.mxu0 0
    %7063 = vmatpush1.bf16.msra.mxu0 0
    %7064 = vmatprep.subr.bf16.mxu0 0
    %7065 = vmatpush1.bf16.msra.mxu0 0
    %7066 = vmatprep.subr.bf16.mxu0 0
    %7067 = vmatpush1.bf16.msra.mxu0 0
    %7068 = vmatprep.subr.bf16.mxu0 0
    %7069 = vmatpush1.bf16.msra.mxu0 0
    %7070 = vmatprep.mubr.bf16.mxu0 0
    %7071 = vmatmul.mubr.bf16.gmra.mrb[0].mxu0 %v6964
    %v7072 = vpop.f32.mrb[0].mxu0
    %v7073 = vadd.f32 0.0, %v7072
    %v7074 = vpop.f32.mrb[0].mxu0
    %v7075 = vpop.f32.mrb[0].mxu0
    %v7076 = vadd.f32 0.0, %v7075
    %v7077 = vpop.f32.mrb[0].mxu0
    %7078 = vmatprep.mubr.bf16.mxu0 0
    %7079 = vmatmul.mubr.bf16.gmra.mrb[0].mxu0 %v6967
    %v7080 = vpop.f32.mrb[0].mxu0
    %v7081 = vadd.f32 0.0, %v7080
    %v7082 = vpop.f32.mrb[0].mxu0
    %v7083 = vpop.f32.mrb[0].mxu0
    %v7084 = vadd.f32 0.0, %v7083
    %v7085 = vpop.f32.mrb[0].mxu0
    %7086 = vmatprep.mubr.bf16.mxu0 0
    %7087 = vmatmul.mubr.bf16.gmra.mrb[0].mxu0 %v6970
    %v7088 = vpop.f32.mrb[0].mxu0
    %v7089 = vadd.f32 0.0, %v7088
    %v7090 = vpop.f32.mrb[0].mxu0
    %v7091 = vpop.f32.mrb[0].mxu0
    %v7092 = vadd.f32 0.0, %v7091
    %v7093 = vpop.f32.mrb[0].mxu0
    %7094 = vmatprep.mubr.bf16.mxu0 0
    %7095 = vmatmul.mubr.bf16.gmra.mrb[0].mxu0 %v6973
    %v7096 = vpop.f32.mrb[0].mxu0
    %v7097 = vadd.f32 0.0, %v7096
    %v7098 = vpop.f32.mrb[0].mxu0
    %v7099 = vpop.f32.mrb[0].mxu0
    %v7100 = vadd.f32 0.0, %v7099
    %v7101 = vpop.f32.mrb[0].mxu0
    %7102 = vmatprep.mubr.bf16.mxu0 0
    %7103 = vmatmul.mubr.bf16.gmra.mrb[0].mxu0 %v6976
    %v7104 = vpop.f32.mrb[0].mxu0
    %v7105 = vadd.f32 0.0, %v7104
    %v7106 = vpop.f32.mrb[0].mxu0
    %v7107 = vpop.f32.mrb[0].mxu0
    %v7108 = vadd.f32 0.0, %v7107
    %v7109 = vpop.f32.mrb[0].mxu0
    %7110 = vmatprep.mubr.bf16.mxu0 0
    %7111 = vmatmul.mubr.bf16.gmra.mrb[0].mxu0 %v6979
    %v7112 = vpop.f32.mrb[0].mxu0
    %v7113 = vadd.f32 0.0, %v7112
    %v7114 = vpop.f32.mrb[0].mxu0
    %v7115 = vpop.f32.mrb[0].mxu0
    %v7116 = vadd.f32 0.0, %v7115
    %v7117 = vpop.f32.mrb[0].mxu0
    %7118 = vmatprep.mubr.bf16.mxu0 0
    %7119 = vmatmul.mubr.bf16.gmra.mrb[0].mxu0 %v6982
    %v7120 = vpop.f32.mrb[0].mxu0
    %v7121 = vadd.f32 0.0, %v7120
    %v7122 = vpop.f32.mrb[0].mxu0
    %v7123 = vpop.f32.mrb[0].mxu0
    %v7124 = vadd.f32 0.0, %v7123
    %v7125 = vpop.f32.mrb[0].mxu0
    %7126 = vmatprep.mubr.bf16.mxu0 0
    %7127 = vmatmul.mubr.bf16.gmra.mrb[0].mxu0 %v6985
    %v7128 = vpop.f32.mrb[0].mxu0
    %v7129 = vadd.f32 0.0, %v7128
    %v7130 = vpop.f32.mrb[0].mxu0
    %v7131 = vpop.f32.mrb[0].mxu0
    %v7132 = vadd.f32 0.0, %v7131
    %v7133 = vpop.f32.mrb[0].mxu0
    %7134 = vmatprep.mubr.bf16.mxu0 0
    %7135 = vmatmul.mubr.bf16.gmra.mrb[0].mxu0 %v6988
    %v7136 = vpop.f32.mrb[0].mxu0
    %v7137 = vadd.f32 0.0, %v7136
    %v7138 = vpop.f32.mrb[0].mxu0
    %v7139 = vpop.f32.mrb[0].mxu0
    %v7140 = vadd.f32 0.0, %v7139
    %v7141 = vpop.f32.mrb[0].mxu0
    %7142 = vmatprep.mubr.bf16.mxu0 0
    %7143 = vmatmul.mubr.bf16.gmra.mrb[0].mxu0 %v6991
    %v7144 = vpop.f32.mrb[0].mxu0
    %v7145 = vadd.f32 0.0, %v7144
    %v7146 = vpop.f32.mrb[0].mxu0
    %v7147 = vpop.f32.mrb[0].mxu0
    %v7148 = vadd.f32 0.0, %v7147
    %v7149 = vpop.f32.mrb[0].mxu0
    %7150 = vmatprep.mubr.bf16.mxu0 0
    %7151 = vmatmul.mubr.bf16.gmra.mrb[0].mxu0 %v6994
    %v7152 = vpop.f32.mrb[0].mxu0
    %v7153 = vadd.f32 0.0, %v7152
    %v7154 = vpop.f32.mrb[0].mxu0
    %v7155 = vpop.f32.mrb[0].mxu0
    %v7156 = vadd.f32 0.0, %v7155
    %v7157 = vpop.f32.mrb[0].mxu0
    %7158 = vmatprep.mubr.bf16.mxu0 0
    %7159 = vmatmul.mubr.bf16.gmra.mrb[0].mxu0 %v6997
    %v7160 = vpop.f32.mrb[0].mxu0
    %v7161 = vadd.f32 0.0, %v7160
    %v7162 = vpop.f32.mrb[0].mxu0
    %v7163 = vpop.f32.mrb[0].mxu0
    %v7164 = vadd.f32 0.0, %v7163
    %v7165 = vpop.f32.mrb[0].mxu0
    %7166 = vmatprep.mubr.bf16.mxu0 0
    %7167 = vmatmul.mubr.bf16.gmra.mrb[0].mxu0 %v7000
    %v7168 = vpop.f32.mrb[0].mxu0
    %v7169 = vadd.f32 0.0, %v7168
    %v7170 = vpop.f32.mrb[0].mxu0
    %v7171 = vpop.f32.mrb[0].mxu0
    %v7172 = vadd.f32 0.0, %v7171
    %v7173 = vpop.f32.mrb[0].mxu0
    %7174 = vmatprep.mubr.bf16.mxu0 0
    %7175 = vmatmul.mubr.bf16.gmra.mrb[0].mxu0 %v7003
    %v7176 = vpop.f32.mrb[0].mxu0
    %v7177 = vadd.f32 0.0, %v7176
    %v7178 = vpop.f32.mrb[0].mxu0
    %v7179 = vpop.f32.mrb[0].mxu0
    %v7180 = vadd.f32 0.0, %v7179
    %v7181 = vpop.f32.mrb[0].mxu0
    %7182 = vmatprep.mubr.bf16.mxu0 0
    %7183 = vmatmul.mubr.bf16.gmra.mrb[0].mxu0 %v7006
    %v7184 = vpop.f32.mrb[0].mxu0
    %v7185 = vadd.f32 0.0, %v7184
    %v7186 = vpop.f32.mrb[0].mxu0
    %v7187 = vpop.f32.mrb[0].mxu0
    %v7188 = vadd.f32 0.0, %v7187
    %v7189 = vpop.f32.mrb[0].mxu0
    %7190 = vmatprep.mubr.bf16.mxu0 0
    %7191 = vmatmul.mubr.bf16.gmra.mrb[0].mxu0 %v7009
    %v7192 = vpop.f32.mrb[0].mxu0
    %v7193 = vadd.f32 0.0, %v7192
    %v7194 = vpop.f32.mrb[0].mxu0
    %v7195 = vpop.f32.mrb[0].mxu0
    %v7196 = vadd.f32 0.0, %v7195
    %v7197 = vpop.f32.mrb[0].mxu0
    %7198 = vmatprep.mubr.bf16.mxu0 0
    %7199 = vmatmul.mubr.bf16.gmra.mrb[0].mxu0 %v7012
    %v7200 = vpop.f32.mrb[0].mxu0
    %v7201 = vadd.f32 0.0, %v7200
    %v7202 = vpop.f32.mrb[0].mxu0
    %v7203 = vpop.f32.mrb[0].mxu0
    %v7204 = vadd.f32 0.0, %v7203
    %v7205 = vpop.f32.mrb[0].mxu0
    %7206 = vmatprep.mubr.bf16.mxu0 0
    %7207 = vmatmul.mubr.bf16.gmra.mrb[0].mxu0 %v7015
    %v7208 = vpop.f32.mrb[0].mxu0
    %v7209 = vadd.f32 0.0, %v7208
    %v7210 = vpop.f32.mrb[0].mxu0
    %v7211 = vpop.f32.mrb[0].mxu0
    %v7212 = vadd.f32 0.0, %v7211
    %v7213 = vpop.f32.mrb[0].mxu0
    %7214 = vmatprep.mubr.bf16.mxu0 0
    %7215 = vmatmul.mubr.bf16.gmra.mrb[0].mxu0 %v7018
    %v7216 = vpop.f32.mrb[0].mxu0
    %v7217 = vadd.f32 0.0, %v7216
    %v7218 = vpop.f32.mrb[0].mxu0
    %v7219 = vpop.f32.mrb[0].mxu0
    %v7220 = vadd.f32 0.0, %v7219
    %v7221 = vpop.f32.mrb[0].mxu0
    %7222 = vmatprep.mubr.bf16.mxu0 0
    %7223 = vmatmul.mubr.bf16.gmra.mrb[0].mxu0 %v7021
    %v7224 = vpop.f32.mrb[0].mxu0
    %v7225 = vadd.f32 0.0, %v7224
    %v7226 = vpop.f32.mrb[0].mxu0
    %v7227 = vpop.f32.mrb[0].mxu0
    %v7228 = vadd.f32 0.0, %v7227
    %v7229 = vpop.f32.mrb[0].mxu0
    %7230 = vmatprep.mubr.bf16.mxu0 0
    %7231 = vmatmul.mubr.bf16.gmra.mrb[0].mxu0 %v7024
    %v7232 = vpop.f32.mrb[0].mxu0
    %v7233 = vadd.f32 0.0, %v7232
    %v7234 = vpop.f32.mrb[0].mxu0
    %v7235 = vpop.f32.mrb[0].mxu0
    %v7236 = vadd.f32 0.0, %v7235
    %v7237 = vpop.f32.mrb[0].mxu0
    %7238 = vmatprep.mubr.bf16.mxu0 0
    %7239 = vmatmul.mubr.bf16.gmra.mrb[0].mxu0 %v7027
    %v7240 = vpop.f32.mrb[0].mxu0
    %v7241 = vadd.f32 0.0, %v7240
    %v7242 = vpop.f32.mrb[0].mxu0
    %v7243 = vpop.f32.mrb[0].mxu0
    %v7244 = vadd.f32 0.0, %v7243
    %v7245 = vpop.f32.mrb[0].mxu0
    %7246 = vmatprep.mubr.bf16.mxu0 0
    %7247 = vmatmul.mubr.bf16.gmra.mrb[0].mxu0 %v7030
    %v7248 = vpop.f32.mrb[0].mxu0
    %v7249 = vadd.f32 0.0, %v7248
    %v7250 = vpop.f32.mrb[0].mxu0
    %v7251 = vpop.f32.mrb[0].mxu0
    %v7252 = vadd.f32 0.0, %v7251
    %v7253 = vpop.f32.mrb[0].mxu0
    %7254 = vmatprep.mubr.bf16.mxu0 0
    %7255 = vmatmul.mubr.bf16.gmra.mrb[0].mxu0 %v7033
    %v7256 = vpop.f32.mrb[0].mxu0
    %v7257 = vadd.f32 0.0, %v7256
    %v7258 = vpop.f32.mrb[0].mxu0
    %v7259 = vpop.f32.mrb[0].mxu0
    %v7260 = vadd.f32 0.0, %v7259
    %v7261 = vpop.f32.mrb[0].mxu0
    %7262 = vmatprep.mubr.bf16.mxu0 0
    %7263 = vmatmul.mubr.bf16.gmra.mrb[0].mxu0 %v7036
    %v7264 = vpop.f32.mrb[0].mxu0
    %v7265 = vadd.f32 0.0, %v7264
    %v7266 = vpop.f32.mrb[0].mxu0
    %v7267 = vpop.f32.mrb[0].mxu0
    %v7268 = vpop.f32.mrb[0].mxu0
    %7269 = vdwg.mxu0
    %v7270 = vadd.f32 %v6682, %v7073
    %v7271 = vadd.f32 %v6683, %v7076
    %v7272 = vadd.f32 %v6684, %v7081
    %v7273 = vadd.f32 %v6685, %v7084
    %v7274 = vadd.f32 %v6686, %v7089
    %v7275 = vadd.f32 %v6687, %v7092
    %v7276 = vadd.f32 %v6688, %v7097
    %v7277 = vadd.f32 %v6689, %v7100
    %v7278 = vadd.f32 %v6690, %v7105
    %v7279 = vadd.f32 %v6691, %v7108
    %v7280 = vadd.f32 %v6692, %v7113
    %v7281 = vadd.f32 %v6693, %v7116
    %v7282 = vadd.f32 %v6694, %v7121
    %v7283 = vadd.f32 %v6695, %v7124
    %v7284 = vadd.f32 %v6696, %v7129
    %v7285 = vadd.f32 %v6697, %v7132
    %v7286 = vadd.f32 %v6698, %v7137
    %v7287 = vadd.f32 %v6699, %v7140
    %v7288 = vadd.f32 %v6700, %v7145
    %v7289 = vadd.f32 %v6701, %v7148
    %v7290 = vadd.f32 %v6702, %v7153
    %v7291 = vadd.f32 %v6703, %v7156
    %v7292 = vadd.f32 %v6704, %v7161
    %v7293 = vadd.f32 %v6705, %v7164
    %v7294 = vadd.f32 %v6706, %v7169
    %v7295 = vadd.f32 %v6707, %v7172
    %v7296 = vadd.f32 %v6708, %v7177
    %v7297 = vadd.f32 %v6709, %v7180
    %v7298 = vadd.f32 %v6710, %v7185
    %v7299 = vadd.f32 %v6711, %v7188
    %v7300 = vadd.f32 %v6712, %v7193
    %v7301 = vadd.f32 %v6713, %v7196
    %v7302 = vadd.f32 %v6714, %v7201
    %v7303 = vadd.f32 %v6715, %v7204
    %v7304 = vadd.f32 %v6716, %v7209
    %v7305 = vadd.f32 %v6717, %v7212
    %v7306 = vadd.f32 %v6718, %v7217
    %v7307 = vadd.f32 %v6719, %v7220
    %v7308 = vadd.f32 %v6720, %v7225
    %v7309 = vadd.f32 %v6721, %v7228
    %v7310 = vadd.f32 %v6722, %v7233
    %v7311 = vadd.f32 %v6723, %v7236
    %v7312 = vadd.f32 %v6724, %v7241
    %v7313 = vadd.f32 %v6725, %v7244
    %v7314 = vadd.f32 %v6726, %v7249
    %v7315 = vadd.f32 %v6727, %v7252
    %v7316 = vadd.f32 %v6728, %v7257
    %v7317 = vadd.f32 %v6729, %v7260
    %v7318 = vadd.f32 %v6730, %v7265
    %7319 = vst.msk [vmem:[#allocation3] sm:$0xff] %vm1376, %v7270
    %7320 = vst.msk [vmem:[#allocation3 + $0x8] sm:$0xff] %vm1376, %v7271
    %7321 = vst.msk [vmem:[#allocation3 + $0x10] sm:$0xff] %vm1376, %v7272
    %7322 = vst.msk [vmem:[#allocation3 + $0x18] sm:$0xff] %vm1376, %v7273
    %7323 = vst.msk [vmem:[#allocation3 + $0x20] sm:$0xff] %vm1376, %v7274
    %7324 = vst.msk [vmem:[#allocation3 + $0x28] sm:$0xff] %vm1376, %v7275
    %7325 = vst.msk [vmem:[#allocation3 + $0x30] sm:$0xff] %vm1376, %v7276
    %7326 = vst.msk [vmem:[#allocation3 + $0x38] sm:$0xff] %vm1376, %v7277
    %7327 = vst.msk [vmem:[#allocation3 + $0x40] sm:$0xff] %vm1376, %v7278
    %7328 = vst.msk [vmem:[#allocation3 + $0x48] sm:$0xff] %vm1376, %v7279
    %7329 = vst.msk [vmem:[#allocation3 + $0x50] sm:$0xff] %vm1376, %v7280
    %7330 = vst.msk [vmem:[#allocation3 + $0x58] sm:$0xff] %vm1376, %v7281
    %7331 = vst.msk [vmem:[#allocation3 + $0x60] sm:$0xff] %vm1376, %v7282
    %7332 = vst.msk [vmem:[#allocation3 + $0x68] sm:$0xff] %vm1376, %v7283
    %7333 = vst.msk [vmem:[#allocation3 + $0x70] sm:$0xff] %vm1376, %v7284
    %7334 = vst.msk [vmem:[#allocation3 + $0x78] sm:$0xff] %vm1376, %v7285
    %7335 = vst.msk [vmem:[#allocation3 + $0x80] sm:$0xff] %vm1376, %v7286
    %7336 = vst.msk [vmem:[#allocation3 + $0x88] sm:$0xff] %vm1376, %v7287
    %7337 = vst.msk [vmem:[#allocation3 + $0x90] sm:$0xff] %vm1376, %v7288
    %7338 = vst.msk [vmem:[#allocation3 + $0x98] sm:$0xff] %vm1376, %v7289
    %7339 = vst.msk [vmem:[#allocation3 + $0xa0] sm:$0xff] %vm1376, %v7290
    %7340 = vst.msk [vmem:[#allocation3 + $0xa8] sm:$0xff] %vm1376, %v7291
    %7341 = vst.msk [vmem:[#allocation3 + $0xb0] sm:$0xff] %vm1376, %v7292
    %7342 = vst.msk [vmem:[#allocation3 + $0xb8] sm:$0xff] %vm1376, %v7293
    %7343 = vst.msk [vmem:[#allocation3 + $0xc0] sm:$0xff] %vm1376, %v7294
    %7344 = vst.msk [vmem:[#allocation3 + $0xc8] sm:$0xff] %vm1376, %v7295
    %7345 = vst.msk [vmem:[#allocation3 + $0xd0] sm:$0xff] %vm1376, %v7296
    %7346 = vst.msk [vmem:[#allocation3 + $0xd8] sm:$0xff] %vm1376, %v7297
    %7347 = vst.msk [vmem:[#allocation3 + $0xe0] sm:$0xff] %vm1376, %v7298
    %7348 = vst.msk [vmem:[#allocation3 + $0xe8] sm:$0xff] %vm1376, %v7299
    %7349 = vst.msk [vmem:[#allocation3 + $0xf0] sm:$0xff] %vm1376, %v7300
    %7350 = vst.msk [vmem:[#allocation3 + $0xf8] sm:$0xff] %vm1376, %v7301
    %7351 = vst.msk [vmem:[#allocation3 + $0x100] sm:$0xff] %vm1376, %v7302
    %7352 = vst.msk [vmem:[#allocation3 + $0x108] sm:$0xff] %vm1376, %v7303
    %7353 = vst.msk [vmem:[#allocation3 + $0x110] sm:$0xff] %vm1376, %v7304
    %7354 = vst.msk [vmem:[#allocation3 + $0x118] sm:$0xff] %vm1376, %v7305
    %7355 = vst.msk [vmem:[#allocation3 + $0x120] sm:$0xff] %vm1376, %v7306
    %7356 = vst.msk [vmem:[#allocation3 + $0x128] sm:$0xff] %vm1376, %v7307
    %7357 = vst.msk [vmem:[#allocation3 + $0x130] sm:$0xff] %vm1376, %v7308
    %7358 = vst.msk [vmem:[#allocation3 + $0x138] sm:$0xff] %vm1376, %v7309
    %7359 = vst.msk [vmem:[#allocation3 + $0x140] sm:$0xff] %vm1376, %v7310
    %7360 = vst.msk [vmem:[#allocation3 + $0x148] sm:$0xff] %vm1376, %v7311
    %7361 = vst.msk [vmem:[#allocation3 + $0x150] sm:$0xff] %vm1376, %v7312
    %7362 = vst.msk [vmem:[#allocation3 + $0x158] sm:$0xff] %vm1376, %v7313
    %7363 = vst.msk [vmem:[#allocation3 + $0x160] sm:$0xff] %vm1376, %v7314
    %7364 = vst.msk [vmem:[#allocation3 + $0x168] sm:$0xff] %vm1376, %v7315
    %7365 = vst.msk [vmem:[#allocation3 + $0x170] sm:$0xff] %vm1376, %v7316
    %7366 = vst.msk [vmem:[#allocation3 + $0x178] sm:$0xff] %vm1376, %v7317
    %7367 = vst.msk [vmem:[#allocation3 + $0x180] sm:$0xff] %vm1376, %v7318
    %v7368 = vld [vmem:[%s7 + $0x1] sm:$0x1]
    %v7369 = vld [vmem:[#allocation3] ss:$28 sm:$0xff]
    %s7370 = scalar_lea.vmem [#allocation3], 224
    %v7371 = vld [vmem:[%s7370] ss:$28 sm:$0x3f]
    %s7372 = scalar_lea.vmem [#allocation3], 1
    %v7373 = vld [vmem:[%s7372] ss:$28 sm:$0xff]
    %s7374 = scalar_lea.vmem [#allocation3], 225
    %v7375 = vld [vmem:[%s7374] ss:$28 sm:$0x3f]
    %v7376 = vmax.f32 %v7369, %v7373
    %v7377 = vmax.f32 %v7371, %v7375
    %s7378 = scalar_lea.vmem [#allocation3], 14
    %v7379 = vld [vmem:[%s7378] ss:$28 sm:$0xff]
    %s7380 = scalar_lea.vmem [#allocation3], 238
    %v7381 = vld [vmem:[%s7380] ss:$28 sm:$0x3f]
    %v7382 = vmax.f32 %v7376, %v7379
    %v7383 = vmax.f32 %v7377, %v7381
    %s7384 = scalar_lea.vmem [#allocation3], 15
    %v7385 = vld [vmem:[%s7384] ss:$28 sm:$0xff]
    %s7386 = scalar_lea.vmem [#allocation3], 239
    %v7387 = vld [vmem:[%s7386] ss:$28 sm:$0x3f]
    %v7388 = vmax.f32 %v7382, %v7385
    %v7389 = vmax.f32 %v7383, %v7387
    %v7391 = vlaneseq
    %v7392 = vshrl.u32 %v7391, 7
    %v7393 = vsub.s32 0, %v7392
    %v7394 = vrot.slane %v7368, %v7393
    %v7396 = vadd.f32 %v7388, %v7394
    %v7397 = vadd.f32 %v7389, %v7394
    %v7398 = vmul.f32 %v7396, 0.01
    %v7399 = vmul.f32 %v7397, 0.01
    %v7400 = vmax.f32 %v7396, %v7398
    %v7401 = vmax.f32 %v7397, %v7399
    %v7402 = vpack.c.bf16 %v7401, %v7400
    %v7404 = vunpack.c.l.b16 %v7402
    %v7405 = vunpack.c.h.b16 %v7402
    %v7406 = vpack.c.b16 %v7404, %v7404
    %v7407 = vpack.c.b16 %v7405, %v7405
    %vm7410 = vcmask 257024
    %7411 = vst.msk [vmem:[#allocation4] sm:$0xf] %vm7410, %v7406
    %vm7412 = vcmask 256000
    %7413 = vst.msk [vmem:[#allocation4 + $0x8] sm:$0x7] %vm7412, %v7407
    %s7414 = scalar_lea.vmem [#allocation3], 2
    %v7415 = vld [vmem:[%s7414] ss:$28 sm:$0xff]
    %s7416 = scalar_lea.vmem [#allocation3], 226
    %v7417 = vld [vmem:[%s7416] ss:$28 sm:$0x3f]
    %s7418 = scalar_lea.vmem [#allocation3], 3
    %v7419 = vld [vmem:[%s7418] ss:$28 sm:$0xff]
    %s7420 = scalar_lea.vmem [#allocation3], 227
    %v7421 = vld [vmem:[%s7420] ss:$28 sm:$0x3f]
    %v7422 = vmax.f32 %v7415, %v7419
    %v7423 = vmax.f32 %v7417, %v7421
    %s7424 = scalar_lea.vmem [#allocation3], 16
    %v7425 = vld [vmem:[%s7424] ss:$28 sm:$0xff]
    %s7426 = scalar_lea.vmem [#allocation3], 240
    %v7427 = vld [vmem:[%s7426] ss:$28 sm:$0x3f]
    %v7428 = vmax.f32 %v7422, %v7425
    %v7429 = vmax.f32 %v7423, %v7427
    %s7430 = scalar_lea.vmem [#allocation3], 17
    %v7431 = vld [vmem:[%s7430] ss:$28 sm:$0xff]
    %s7432 = scalar_lea.vmem [#allocation3], 241
    %v7433 = vld [vmem:[%s7432] ss:$28 sm:$0x3f]
    %v7434 = vmax.f32 %v7428, %v7431
    %v7435 = vmax.f32 %v7429, %v7433
    %v7436 = vadd.f32 %v7434, %v7394
    %v7437 = vadd.f32 %v7435, %v7394
    %v7438 = vmul.f32 %v7436, 0.01
    %v7439 = vmul.f32 %v7437, 0.01
    %v7440 = vmax.f32 %v7436, %v7438
    %v7441 = vmax.f32 %v7437, %v7439
    %v7442 = vpack.c.bf16 %v7441, %v7440
    %v7444 = vunpack.c.l.b16 %v7442
    %v7445 = vunpack.c.h.b16 %v7442
    %v7446 = vpack.c.b16 %v7444, %v7444
    %v7447 = vpack.c.b16 %v7445, %v7445
    %7448 = vrot.lane.b32.xlu0 %v7446, 32
    %v7449 = vpop.permute.xlu0 %7448
    %7450 = vrot.lane.b32.xlu0 %v7447, 32
    %v7451 = vpop.permute.xlu0 %7450
    %vm7454 = vcmask 519424
    %7455 = vst.msk [vmem:[#allocation4] sm:$0xf] %vm7454, %v7449
    %vm7456 = vcmask 518400
    %7457 = vst.msk [vmem:[#allocation4 + $0x8] sm:$0x7] %vm7456, %v7451
    %s7458 = scalar_lea.vmem [#allocation3], 4
    %v7459 = vld [vmem:[%s7458] ss:$28 sm:$0xff]
    %s7460 = scalar_lea.vmem [#allocation3], 228
    %v7461 = vld [vmem:[%s7460] ss:$28 sm:$0x3f]
    %s7462 = scalar_lea.vmem [#allocation3], 5
    %v7463 = vld [vmem:[%s7462] ss:$28 sm:$0xff]
    %s7464 = scalar_lea.vmem [#allocation3], 229
    %v7465 = vld [vmem:[%s7464] ss:$28 sm:$0x3f]
    %v7466 = vmax.f32 %v7459, %v7463
    %v7467 = vmax.f32 %v7461, %v7465
    %s7468 = scalar_lea.vmem [#allocation3], 18
    %v7469 = vld [vmem:[%s7468] ss:$28 sm:$0xff]
    %s7470 = scalar_lea.vmem [#allocation3], 242
    %v7471 = vld [vmem:[%s7470] ss:$28 sm:$0x3f]
    %v7472 = vmax.f32 %v7466, %v7469
    %v7473 = vmax.f32 %v7467, %v7471
    %s7474 = scalar_lea.vmem [#allocation3], 19
    %v7475 = vld [vmem:[%s7474] ss:$28 sm:$0xff]
    %s7476 = scalar_lea.vmem [#allocation3], 243
    %v7477 = vld [vmem:[%s7476] ss:$28 sm:$0x3f]
    %v7478 = vmax.f32 %v7472, %v7475
    %v7479 = vmax.f32 %v7473, %v7477
    %v7480 = vadd.f32 %v7478, %v7394
    %v7481 = vadd.f32 %v7479, %v7394
    %v7482 = vmul.f32 %v7480, 0.01
    %v7483 = vmul.f32 %v7481, 0.01
    %v7484 = vmax.f32 %v7480, %v7482
    %v7485 = vmax.f32 %v7481, %v7483
    %v7486 = vpack.c.bf16 %v7485, %v7484
    %v7488 = vunpack.c.l.b16 %v7486
    %v7489 = vunpack.c.h.b16 %v7486
    %v7490 = vpack.c.b16 %v7488, %v7488
    %v7491 = vpack.c.b16 %v7489, %v7489
    %7492 = vrot.lane.b32.xlu0 %v7490, 64
    %v7493 = vpop.permute.xlu0 %7492
    %7494 = vrot.lane.b32.xlu0 %v7491, 64
    %v7495 = vpop.permute.xlu0 %7494
    %vm7498 = vcmask 781824
    %7499 = vst.msk [vmem:[#allocation4] sm:$0xf] %vm7498, %v7493
    %vm7500 = vcmask 780800
    %7501 = vst.msk [vmem:[#allocation4 + $0x8] sm:$0x7] %vm7500, %v7495
    %s7502 = scalar_lea.vmem [#allocation3], 6
    %v7503 = vld [vmem:[%s7502] ss:$28 sm:$0xff]
    %s7504 = scalar_lea.vmem [#allocation3], 230
    %v7505 = vld [vmem:[%s7504] ss:$28 sm:$0x3f]
    %s7506 = scalar_lea.vmem [#allocation3], 7
    %v7507 = vld [vmem:[%s7506] ss:$28 sm:$0xff]
    %s7508 = scalar_lea.vmem [#allocation3], 231
    %v7509 = vld [vmem:[%s7508] ss:$28 sm:$0x3f]
    %v7510 = vmax.f32 %v7503, %v7507
    %v7511 = vmax.f32 %v7505, %v7509
    %s7512 = scalar_lea.vmem [#allocation3], 20
    %v7513 = vld [vmem:[%s7512] ss:$28 sm:$0xff]
    %s7514 = scalar_lea.vmem [#allocation3], 244
    %v7515 = vld [vmem:[%s7514] ss:$28 sm:$0x3f]
    %v7516 = vmax.f32 %v7510, %v7513
    %v7517 = vmax.f32 %v7511, %v7515
    %s7518 = scalar_lea.vmem [#allocation3], 21
    %v7519 = vld [vmem:[%s7518] ss:$28 sm:$0xff]
    %s7520 = scalar_lea.vmem [#allocation3], 245
    %v7521 = vld [vmem:[%s7520] ss:$28 sm:$0x3f]
    %v7522 = vmax.f32 %v7516, %v7519
    %v7523 = vmax.f32 %v7517, %v7521
    %v7524 = vadd.f32 %v7522, %v7394
    %v7525 = vadd.f32 %v7523, %v7394
    %v7526 = vmul.f32 %v7524, 0.01
    %v7527 = vmul.f32 %v7525, 0.01
    %v7528 = vmax.f32 %v7524, %v7526
    %v7529 = vmax.f32 %v7525, %v7527
    %v7530 = vpack.c.bf16 %v7529, %v7528
    %v7532 = vunpack.c.l.b16 %v7530
    %v7533 = vunpack.c.h.b16 %v7530
    %v7534 = vpack.c.b16 %v7532, %v7532
    %v7535 = vpack.c.b16 %v7533, %v7533
    %7536 = vrot.lane.b32.xlu0 %v7534, 96
    %v7537 = vpop.permute.xlu0 %7536
    %7538 = vrot.lane.b32.xlu0 %v7535, 96
    %v7539 = vpop.permute.xlu0 %7538
    %vm7542 = vcmask 1044224
    %7543 = vst.msk [vmem:[#allocation4] sm:$0xf] %vm7542, %v7537
    %vm7544 = vcmask 1043200
    %7545 = vst.msk [vmem:[#allocation4 + $0x8] sm:$0x7] %vm7544, %v7539
    %s7546 = scalar_lea.vmem [#allocation3], 8
    %v7547 = vld [vmem:[%s7546] ss:$28 sm:$0xff]
    %s7548 = scalar_lea.vmem [#allocation3], 232
    %v7549 = vld [vmem:[%s7548] ss:$28 sm:$0x3f]
    %s7550 = scalar_lea.vmem [#allocation3], 9
    %v7551 = vld [vmem:[%s7550] ss:$28 sm:$0xff]
    %s7552 = scalar_lea.vmem [#allocation3], 233
    %v7553 = vld [vmem:[%s7552] ss:$28 sm:$0x3f]
    %v7554 = vmax.f32 %v7547, %v7551
    %v7555 = vmax.f32 %v7549, %v7553
    %s7556 = scalar_lea.vmem [#allocation3], 22
    %v7557 = vld [vmem:[%s7556] ss:$28 sm:$0xff]
    %s7558 = scalar_lea.vmem [#allocation3], 246
    %v7559 = vld [vmem:[%s7558] ss:$28 sm:$0x3f]
    %v7560 = vmax.f32 %v7554, %v7557
    %v7561 = vmax.f32 %v7555, %v7559
    %s7562 = scalar_lea.vmem [#allocation3], 23
    %v7563 = vld [vmem:[%s7562] ss:$28 sm:$0xff]
    %s7564 = scalar_lea.vmem [#allocation3], 247
    %v7565 = vld [vmem:[%s7564] ss:$28 sm:$0x3f]
    %v7566 = vmax.f32 %v7560, %v7563
    %v7567 = vmax.f32 %v7561, %v7565
    %v7568 = vadd.f32 %v7566, %v7394
    %v7569 = vadd.f32 %v7567, %v7394
    %v7570 = vmul.f32 %v7568, 0.01
    %v7571 = vmul.f32 %v7569, 0.01
    %v7572 = vmax.f32 %v7568, %v7570
    %v7573 = vmax.f32 %v7569, %v7571
    %v7574 = vpack.c.bf16 %v7573, %v7572
    %v7576 = vunpack.c.l.b16 %v7574
    %v7577 = vunpack.c.h.b16 %v7574
    %v7578 = vpack.c.b16 %v7576, %v7576
    %v7579 = vpack.c.b16 %v7577, %v7577
    %7582 = vst.msk [vmem:[#allocation4 + $0x4] sm:$0xf] %vm7410, %v7578
    %7583 = vst.msk [vmem:[#allocation4 + $0xc] sm:$0x7] %vm7412, %v7579
    %s7584 = scalar_lea.vmem [#allocation3], 10
    %v7585 = vld [vmem:[%s7584] ss:$28 sm:$0xff]
    %s7586 = scalar_lea.vmem [#allocation3], 234
    %v7587 = vld [vmem:[%s7586] ss:$28 sm:$0x3f]
    %s7588 = scalar_lea.vmem [#allocation3], 11
    %v7589 = vld [vmem:[%s7588] ss:$28 sm:$0xff]
    %s7590 = scalar_lea.vmem [#allocation3], 235
    %v7591 = vld [vmem:[%s7590] ss:$28 sm:$0x3f]
    %v7592 = vmax.f32 %v7585, %v7589
    %v7593 = vmax.f32 %v7587, %v7591
    %s7594 = scalar_lea.vmem [#allocation3], 24
    %v7595 = vld [vmem:[%s7594] ss:$28 sm:$0xff]
    %s7596 = scalar_lea.vmem [#allocation3], 248
    %v7597 = vld [vmem:[%s7596] ss:$28 sm:$0x3f]
    %v7598 = vmax.f32 %v7592, %v7595
    %v7599 = vmax.f32 %v7593, %v7597
    %s7600 = scalar_lea.vmem [#allocation3], 25
    %v7601 = vld [vmem:[%s7600] ss:$28 sm:$0xff]
    %s7602 = scalar_lea.vmem [#allocation3], 249
    %v7603 = vld [vmem:[%s7602] ss:$28 sm:$0x3f]
    %v7604 = vmax.f32 %v7598, %v7601
    %v7605 = vmax.f32 %v7599, %v7603
    %v7606 = vadd.f32 %v7604, %v7394
    %v7607 = vadd.f32 %v7605, %v7394
    %v7608 = vmul.f32 %v7606, 0.01
    %v7609 = vmul.f32 %v7607, 0.01
    %v7610 = vmax.f32 %v7606, %v7608
    %v7611 = vmax.f32 %v7607, %v7609
    %v7612 = vpack.c.bf16 %v7611, %v7610
    %v7614 = vunpack.c.l.b16 %v7612
    %v7615 = vunpack.c.h.b16 %v7612
    %v7616 = vpack.c.b16 %v7614, %v7614
    %v7617 = vpack.c.b16 %v7615, %v7615
    %7618 = vrot.lane.b32.xlu0 %v7616, 32
    %v7619 = vpop.permute.xlu0 %7618
    %7620 = vrot.lane.b32.xlu0 %v7617, 32
    %v7621 = vpop.permute.xlu0 %7620
    %7624 = vst.msk [vmem:[#allocation4 + $0x4] sm:$0xf] %vm7454, %v7619
    %7625 = vst.msk [vmem:[#allocation4 + $0xc] sm:$0x7] %vm7456, %v7621
    %v7626 = vld [vmem:[#allocation4] sm:$0xff]
    %v7627 = vld [vmem:[#allocation4 + $0x8] sm:$0x11]
    %v7628 = vld [vmem:[%s4] sm:$0xf]
    %v7629 = vld [vmem:[%s4 + $0x4] sm:$0xf]
    %v7630 = vld [vmem:[%s4 + $0x8] sm:$0xf]
    %v7631 = vld [vmem:[%s4 + $0xc] sm:$0xf]
    %v7632 = vld [vmem:[%s4 + $0x10] sm:$0xf]
    %v7633 = vld [vmem:[%s4 + $0x14] sm:$0xf]
    %v7634 = vld [vmem:[%s4 + $0x18] sm:$0xf]
    %v7635 = vld [vmem:[%s4 + $0x1c] sm:$0xf]
    %v7636 = vld [vmem:[%s4 + $0x20] sm:$0xf]
    %v7637 = vld [vmem:[%s4 + $0x24] sm:$0xf]
    %v7638 = vld [vmem:[%s4 + $0x28] sm:$0xf]
    %v7639 = vld [vmem:[%s4 + $0x2c] sm:$0xf]
    %v7640 = vld [vmem:[%s4 + $0x30] sm:$0xf]
    %v7641 = vld [vmem:[%s4 + $0x34] sm:$0xf]
    %v7642 = vld [vmem:[%s4 + $0x38] sm:$0xf]
    %v7643 = vld [vmem:[%s4 + $0x3c] sm:$0xf]
    %v7644 = vld [vmem:[%s4 + $0x40] sm:$0xf]
    %v7645 = vld [vmem:[%s4 + $0x44] sm:$0xf]
    %v7646 = vld [vmem:[%s4 + $0x48] sm:$0xf]
    %v7647 = vld [vmem:[%s4 + $0x4c] sm:$0xf]
    %v7648 = vld [vmem:[%s4 + $0x50] sm:$0xf]
    %v7649 = vld [vmem:[%s4 + $0x54] sm:$0xf]
    %v7650 = vld [vmem:[%s4 + $0x58] sm:$0xf]
    %v7651 = vld [vmem:[%s4 + $0x5c] sm:$0xf]
    %v7652 = vld [vmem:[%s4 + $0x60] sm:$0xf]
    %v7653 = vld [vmem:[%s4 + $0x64] sm:$0xf]
    %v7654 = vld [vmem:[%s4 + $0x68] sm:$0xf]
    %v7655 = vld [vmem:[%s4 + $0x6c] sm:$0xf]
    %v7656 = vld [vmem:[%s4 + $0x70] sm:$0xf]
    %v7657 = vld [vmem:[%s4 + $0x74] sm:$0xf]
    %v7658 = vld [vmem:[%s4 + $0x78] sm:$0xf]
    %v7659 = vld [vmem:[%s4 + $0x7c] sm:$0xf]
    %v7660 = vld [vmem:[%s4 + $0x80] sm:$0xf]
    %v7661 = vld [vmem:[%s4 + $0x84] sm:$0xf]
    %v7662 = vld [vmem:[%s4 + $0x88] sm:$0xf]
    %v7663 = vld [vmem:[%s4 + $0x8c] sm:$0xf]
    %v7664 = vld [vmem:[%s4 + $0x90] sm:$0xf]
    %v7665 = vld [vmem:[%s4 + $0x94] sm:$0xf]
    %v7666 = vld [vmem:[%s4 + $0x98] sm:$0xf]
    %v7667 = vld [vmem:[%s4 + $0x9c] sm:$0xf]
    %v7670 = vunpack.c.l.b16 %v7626
    %v7671 = vunpack.c.h.b16 %v7626
    %v7672 = vunpack.c.l.b16 %v7627
    %v7673 = vunpack.c.h.b16 %v7627
    %v7674 = vpack.c.b16 %v7672, %v7670
    %v7675 = vpack.c.b16 %v7673, %v7671
    %v7677 = vshrl.u32 %v7674, 16
    %v7679 = vshll.u32 %v7674, 16
    %v7681 = vrot.slane %v7679, 1
    %v7682 = vor.u32 %v7677, %v7681
    %v7684 = vshrl.u32 %v7675, 16
    %v7686 = vshll.u32 %v7675, 16
    %v7688 = vrot.slane %v7686, 1
    %v7689 = vor.u32 %v7684, %v7688
    %v7711 = vunpack.c.l.b16 %v7648
    %v7712 = vunpack.c.l.b16 %v7649
    %v7713 = vunpack.c.l.b16 %v7650
    %v7714 = vunpack.c.l.b16 %v7651
    %v7715 = vunpack.c.l.b16 %v7652
    %v7716 = vunpack.c.l.b16 %v7653
    %v7717 = vunpack.c.l.b16 %v7654
    %v7718 = vunpack.c.l.b16 %v7655
    %v7719 = vunpack.c.l.b16 %v7656
    %v7720 = vunpack.c.l.b16 %v7657
    %v7721 = vunpack.c.l.b16 %v7658
    %v7722 = vunpack.c.l.b16 %v7659
    %v7723 = vunpack.c.l.b16 %v7660
    %v7724 = vunpack.c.l.b16 %v7661
    %v7725 = vunpack.c.l.b16 %v7662
    %v7726 = vunpack.c.l.b16 %v7663
    %v7727 = vunpack.c.l.b16 %v7664
    %v7728 = vunpack.c.l.b16 %v7665
    %v7729 = vunpack.c.l.b16 %v7666
    %v7730 = vunpack.c.l.b16 %v7667
    %v7731 = vpack.c.b16 %v7712, %v7711
    %v7732 = vpack.c.b16 %v7714, %v7713
    %v7733 = vpack.c.b16 %v7716, %v7715
    %v7734 = vpack.c.b16 %v7718, %v7717
    %v7735 = vpack.c.b16 %v7720, %v7719
    %v7736 = vpack.c.b16 %v7722, %v7721
    %v7737 = vpack.c.b16 %v7724, %v7723
    %v7738 = vpack.c.b16 %v7726, %v7725
    %v7739 = vpack.c.b16 %v7728, %v7727
    %v7740 = vpack.c.b16 %v7730, %v7729
    %v7752 = vsel %vm1376, %v7689, 0
    %7754 = vmatprep.subr.bf16.mxu0 0
    %7755 = vmatpush1.bf16.msra.mxu0 %v7731
    %7756 = vmatprep.subr.bf16.mxu0 0
    %7757 = vmatpush1.bf16.msra.mxu0 %v7732
    %7758 = vmatprep.subr.bf16.mxu0 0
    %7759 = vmatpush1.bf16.msra.mxu0 %v7733
    %7760 = vmatprep.subr.bf16.mxu0 0
    %7761 = vmatpush1.bf16.msra.mxu0 %v7734
    %7762 = vmatprep.subr.bf16.mxu0 0
    %7763 = vmatpush1.bf16.msra.mxu0 %v7735
    %7764 = vmatprep.subr.bf16.mxu0 0
    %7765 = vmatpush1.bf16.msra.mxu0 %v7736
    %7766 = vmatprep.subr.bf16.mxu0 0
    %7767 = vmatpush1.bf16.msra.mxu0 %v7737
    %7768 = vmatprep.subr.bf16.mxu0 0
    %7769 = vmatpush1.bf16.msra.mxu0 %v7738
    %7770 = vmatprep.subr.bf16.mxu0 0
    %7771 = vmatpush1.bf16.msra.mxu0 %v7739
    %7772 = vmatprep.subr.bf16.mxu0 0
    %7773 = vmatpush1.bf16.msra.mxu0 %v7740
    %7774 = vmatprep.subr.bf16.mxu0 0
    %7775 = vmatpush1.bf16.msra.mxu0 0
    %7776 = vmatprep.subr.bf16.mxu0 0
    %7777 = vmatpush1.bf16.msra.mxu0 0
    %7778 = vmatprep.subr.bf16.mxu0 0
    %7779 = vmatpush1.bf16.msra.mxu0 0
    %7780 = vmatprep.subr.bf16.mxu0 0
    %7781 = vmatpush1.bf16.msra.mxu0 0
    %7782 = vmatprep.subr.bf16.mxu0 0
    %7783 = vmatpush1.bf16.msra.mxu0 0
    %7784 = vmatprep.subr.bf16.mxu0 0
    %7785 = vmatpush1.bf16.msra.mxu0 0
    %7786 = vmatprep.mubr.bf16.mxu0 %v7752
    %7787 = vmatmul.mubr.bf16.gmra.mrb[0].mxu0 %v7682
    %v7788 = vpop.f32.mrb[0].mxu0
    %v7789 = vadd.f32 0.0, %v7788
    %v7790 = vpop.f32.mrb[0].mxu0
    %v7791 = vpop.f32.mrb[0].mxu0
    %v7792 = vadd.f32 0.0, %v7791
    %v7793 = vpop.f32.mrb[0].mxu0
    %7794 = vdwg.mxu0
    %v7816 = vunpack.c.l.b16 %v7628
    %v7817 = vunpack.c.l.b16 %v7629
    %v7818 = vunpack.c.l.b16 %v7630
    %v7819 = vunpack.c.l.b16 %v7631
    %v7820 = vunpack.c.l.b16 %v7632
    %v7821 = vunpack.c.l.b16 %v7633
    %v7822 = vunpack.c.l.b16 %v7634
    %v7823 = vunpack.c.l.b16 %v7635
    %v7824 = vunpack.c.l.b16 %v7636
    %v7825 = vunpack.c.l.b16 %v7637
    %v7826 = vunpack.c.l.b16 %v7638
    %v7827 = vunpack.c.l.b16 %v7639
    %v7828 = vunpack.c.l.b16 %v7640
    %v7829 = vunpack.c.l.b16 %v7641
    %v7830 = vunpack.c.l.b16 %v7642
    %v7831 = vunpack.c.l.b16 %v7643
    %v7832 = vunpack.c.l.b16 %v7644
    %v7833 = vunpack.c.l.b16 %v7645
    %v7834 = vunpack.c.l.b16 %v7646
    %v7835 = vunpack.c.l.b16 %v7647
    %v7836 = vpack.c.b16 %v7817, %v7816
    %v7837 = vpack.c.b16 %v7819, %v7818
    %v7838 = vpack.c.b16 %v7821, %v7820
    %v7839 = vpack.c.b16 %v7823, %v7822
    %v7840 = vpack.c.b16 %v7825, %v7824
    %v7841 = vpack.c.b16 %v7827, %v7826
    %v7842 = vpack.c.b16 %v7829, %v7828
    %v7843 = vpack.c.b16 %v7831, %v7830
    %v7844 = vpack.c.b16 %v7833, %v7832
    %v7845 = vpack.c.b16 %v7835, %v7834
    %v7856 = vsel %vm1376, %v7675, 0
    %7858 = vmatprep.subr.bf16.mxu0 0
    %7859 = vmatpush1.bf16.msra.mxu0 %v7836
    %7860 = vmatprep.subr.bf16.mxu0 0
    %7861 = vmatpush1.bf16.msra.mxu0 %v7837
    %7862 = vmatprep.subr.bf16.mxu0 0
    %7863 = vmatpush1.bf16.msra.mxu0 %v7838
    %7864 = vmatprep.subr.bf16.mxu0 0
    %7865 = vmatpush1.bf16.msra.mxu0 %v7839
    %7866 = vmatprep.subr.bf16.mxu0 0
    %7867 = vmatpush1.bf16.msra.mxu0 %v7840
    %7868 = vmatprep.subr.bf16.mxu0 0
    %7869 = vmatpush1.bf16.msra.mxu0 %v7841
    %7870 = vmatprep.subr.bf16.mxu0 0
    %7871 = vmatpush1.bf16.msra.mxu0 %v7842
    %7872 = vmatprep.subr.bf16.mxu0 0
    %7873 = vmatpush1.bf16.msra.mxu0 %v7843
    %7874 = vmatprep.subr.bf16.mxu0 0
    %7875 = vmatpush1.bf16.msra.mxu0 %v7844
    %7876 = vmatprep.subr.bf16.mxu0 0
    %7877 = vmatpush1.bf16.msra.mxu0 %v7845
    %7878 = vmatprep.subr.bf16.mxu0 0
    %7879 = vmatpush1.bf16.msra.mxu0 0
    %7880 = vmatprep.subr.bf16.mxu0 0
    %7881 = vmatpush1.bf16.msra.mxu0 0
    %7882 = vmatprep.subr.bf16.mxu0 0
    %7883 = vmatpush1.bf16.msra.mxu0 0
    %7884 = vmatprep.subr.bf16.mxu0 0
    %7885 = vmatpush1.bf16.msra.mxu0 0
    %7886 = vmatprep.subr.bf16.mxu0 0
    %7887 = vmatpush1.bf16.msra.mxu0 0
    %7888 = vmatprep.subr.bf16.mxu0 0
    %7889 = vmatpush1.bf16.msra.mxu0 0
    %7890 = vmatprep.mubr.bf16.mxu0 %v7856
    %7891 = vmatmul.mubr.bf16.gmra.mrb[0].mxu0 %v7674
    %v7892 = vpop.f32.mrb[0].mxu0
    %v7893 = vadd.f32 %v7789, %v7892
    %v7894 = vpop.f32.mrb[0].mxu0
    %v7895 = vpop.f32.mrb[0].mxu0
    %v7896 = vadd.f32 %v7792, %v7895
    %v7897 = vpop.f32.mrb[0].mxu0
    %7898 = vdwg.mxu0
    %7899 = vrot.lane.b32.xlu0 %v7682, 96
    %v7900 = vpop.permute.xlu0 %7899
    %7901 = vrot.lane.b32.xlu0 %v7689, 96
    %v7902 = vpop.permute.xlu0 %7901
    %vm7903 = vcmask 785408
    %v7904 = vsel %vm7903, %v7900, %v7902
    %v7907 = vsel %vm1376, %v7902, 0
    %7909 = vmatprep.subr.bf16.mxu0 0
    %7910 = vmatpush1.bf16.msra.mxu0 %v7731
    %7911 = vmatprep.subr.bf16.mxu0 0
    %7912 = vmatpush1.bf16.msra.mxu0 %v7732
    %7913 = vmatprep.subr.bf16.mxu0 0
    %7914 = vmatpush1.bf16.msra.mxu0 %v7733
    %7915 = vmatprep.subr.bf16.mxu0 0
    %7916 = vmatpush1.bf16.msra.mxu0 %v7734
    %7917 = vmatprep.subr.bf16.mxu0 0
    %7918 = vmatpush1.bf16.msra.mxu0 %v7735
    %7919 = vmatprep.subr.bf16.mxu0 0
    %7920 = vmatpush1.bf16.msra.mxu0 %v7736
    %7921 = vmatprep.subr.bf16.mxu0 0
    %7922 = vmatpush1.bf16.msra.mxu0 %v7737
    %7923 = vmatprep.subr.bf16.mxu0 0
    %7924 = vmatpush1.bf16.msra.mxu0 %v7738
    %7925 = vmatprep.subr.bf16.mxu0 0
    %7926 = vmatpush1.bf16.msra.mxu0 %v7739
    %7927 = vmatprep.subr.bf16.mxu0 0
    %7928 = vmatpush1.bf16.msra.mxu0 %v7740
    %7929 = vmatprep.subr.bf16.mxu0 0
    %7930 = vmatpush1.bf16.msra.mxu0 0
    %7931 = vmatprep.subr.bf16.mxu0 0
    %7932 = vmatpush1.bf16.msra.mxu0 0
    %7933 = vmatprep.subr.bf16.mxu0 0
    %7934 = vmatpush1.bf16.msra.mxu0 0
    %7935 = vmatprep.subr.bf16.mxu0 0
    %7936 = vmatpush1.bf16.msra.mxu0 0
    %7937 = vmatprep.subr.bf16.mxu0 0
    %7938 = vmatpush1.bf16.msra.mxu0 0
    %7939 = vmatprep.subr.bf16.mxu0 0
    %7940 = vmatpush1.bf16.msra.mxu0 0
    %7941 = vmatprep.mubr.bf16.mxu0 %v7907
    %7942 = vmatmul.mubr.bf16.gmra.mrb[0].mxu0 %v7904
    %v7943 = vpop.f32.mrb[0].mxu0
    %v7944 = vadd.f32 0.0, %v7943
    %v7945 = vpop.f32.mrb[0].mxu0
    %v7946 = vpop.f32.mrb[0].mxu0
    %v7947 = vadd.f32 0.0, %v7946
    %v7948 = vpop.f32.mrb[0].mxu0
    %7949 = vdwg.mxu0
    %7950 = vrot.lane.b32.xlu0 %v7674, 96
    %v7951 = vpop.permute.xlu0 %7950
    %7952 = vrot.lane.b32.xlu0 %v7675, 96
    %v7953 = vpop.permute.xlu0 %7952
    %v7954 = vsel %vm7903, %v7951, %v7953
    %v7957 = vsel %vm1376, %v7953, 0
    %7959 = vmatprep.subr.bf16.mxu0 0
    %7960 = vmatpush1.bf16.msra.mxu0 %v7836
    %7961 = vmatprep.subr.bf16.mxu0 0
    %7962 = vmatpush1.bf16.msra.mxu0 %v7837
    %7963 = vmatprep.subr.bf16.mxu0 0
    %7964 = vmatpush1.bf16.msra.mxu0 %v7838
    %7965 = vmatprep.subr.bf16.mxu0 0
    %7966 = vmatpush1.bf16.msra.mxu0 %v7839
    %7967 = vmatprep.subr.bf16.mxu0 0
    %7968 = vmatpush1.bf16.msra.mxu0 %v7840
    %7969 = vmatprep.subr.bf16.mxu0 0
    %7970 = vmatpush1.bf16.msra.mxu0 %v7841
    %7971 = vmatprep.subr.bf16.mxu0 0
    %7972 = vmatpush1.bf16.msra.mxu0 %v7842
    %7973 = vmatprep.subr.bf16.mxu0 0
    %7974 = vmatpush1.bf16.msra.mxu0 %v7843
    %7975 = vmatprep.subr.bf16.mxu0 0
    %7976 = vmatpush1.bf16.msra.mxu0 %v7844
    %7977 = vmatprep.subr.bf16.mxu0 0
    %7978 = vmatpush1.bf16.msra.mxu0 %v7845
    %7979 = vmatprep.subr.bf16.mxu0 0
    %7980 = vmatpush1.bf16.msra.mxu0 0
    %7981 = vmatprep.subr.bf16.mxu0 0
    %7982 = vmatpush1.bf16.msra.mxu0 0
    %7983 = vmatprep.subr.bf16.mxu0 0
    %7984 = vmatpush1.bf16.msra.mxu0 0
    %7985 = vmatprep.subr.bf16.mxu0 0
    %7986 = vmatpush1.bf16.msra.mxu0 0
    %7987 = vmatprep.subr.bf16.mxu0 0
    %7988 = vmatpush1.bf16.msra.mxu0 0
    %7989 = vmatprep.subr.bf16.mxu0 0
    %7990 = vmatpush1.bf16.msra.mxu0 0
    %7991 = vmatprep.mubr.bf16.mxu0 %v7957
    %7992 = vmatmul.mubr.bf16.gmra.mrb[0].mxu0 %v7954
    %v7993 = vpop.f32.mrb[0].mxu0
    %v7994 = vadd.f32 %v7944, %v7993
    %v7995 = vpop.f32.mrb[0].mxu0
    %v7996 = vpop.f32.mrb[0].mxu0
    %v7997 = vadd.f32 %v7947, %v7996
    %v7998 = vpop.f32.mrb[0].mxu0
    %7999 = vdwg.mxu0
    %v8000 = vld [vmem:[#allocation4] sm:$0xee]
    %v8001 = vld [vmem:[#allocation4 + $0x8] sm:$0x33]
    %v8002 = vld [vmem:[%s4 + $0xa0] sm:$0xf]
    %v8003 = vld [vmem:[%s4 + $0xa4] sm:$0xf]
    %v8004 = vld [vmem:[%s4 + $0xa8] sm:$0xf]
    %v8005 = vld [vmem:[%s4 + $0xac] sm:$0xf]
    %v8006 = vld [vmem:[%s4 + $0xb0] sm:$0xf]
    %v8007 = vld [vmem:[%s4 + $0xb4] sm:$0xf]
    %v8008 = vld [vmem:[%s4 + $0xb8] sm:$0xf]
    %v8009 = vld [vmem:[%s4 + $0xbc] sm:$0xf]
    %v8010 = vld [vmem:[%s4 + $0xc0] sm:$0xf]
    %v8011 = vld [vmem:[%s4 + $0xc4] sm:$0xf]
    %v8012 = vld [vmem:[%s4 + $0xc8] sm:$0xf]
    %v8013 = vld [vmem:[%s4 + $0xcc] sm:$0xf]
    %v8014 = vld [vmem:[%s4 + $0xd0] sm:$0xf]
    %v8015 = vld [vmem:[%s4 + $0xd4] sm:$0xf]
    %v8016 = vld [vmem:[%s4 + $0xd8] sm:$0xf]
    %v8017 = vld [vmem:[%s4 + $0xdc] sm:$0xf]
    %v8018 = vld [vmem:[%s4 + $0xe0] sm:$0xf]
    %v8019 = vld [vmem:[%s4 + $0xe4] sm:$0xf]
    %v8020 = vld [vmem:[%s4 + $0xe8] sm:$0xf]
    %v8021 = vld [vmem:[%s4 + $0xec] sm:$0xf]
    %v8024 = vunpack.c.l.b16 %v8000
    %v8025 = vunpack.c.h.b16 %v8000
    %v8026 = vunpack.c.l.b16 %v8001
    %v8027 = vunpack.c.h.b16 %v8001
    %v8028 = vpack.c.b16 %v8026, %v8024
    %v8029 = vpack.c.b16 %v8027, %v8025
    %v8030 = vrot.slane %v8028, 1
    %v8031 = vrot.slane %v8029, 1
    %v8053 = vunpack.c.l.b16 %v8002
    %v8054 = vunpack.c.l.b16 %v8003
    %v8055 = vunpack.c.l.b16 %v8004
    %v8056 = vunpack.c.l.b16 %v8005
    %v8057 = vunpack.c.l.b16 %v8006
    %v8058 = vunpack.c.l.b16 %v8007
    %v8059 = vunpack.c.l.b16 %v8008
    %v8060 = vunpack.c.l.b16 %v8009
    %v8061 = vunpack.c.l.b16 %v8010
    %v8062 = vunpack.c.l.b16 %v8011
    %v8063 = vunpack.c.l.b16 %v8012
    %v8064 = vunpack.c.l.b16 %v8013
    %v8065 = vunpack.c.l.b16 %v8014
    %v8066 = vunpack.c.l.b16 %v8015
    %v8067 = vunpack.c.l.b16 %v8016
    %v8068 = vunpack.c.l.b16 %v8017
    %v8069 = vunpack.c.l.b16 %v8018
    %v8070 = vunpack.c.l.b16 %v8019
    %v8071 = vunpack.c.l.b16 %v8020
    %v8072 = vunpack.c.l.b16 %v8021
    %v8073 = vpack.c.b16 %v8054, %v8053
    %v8074 = vpack.c.b16 %v8056, %v8055
    %v8075 = vpack.c.b16 %v8058, %v8057
    %v8076 = vpack.c.b16 %v8060, %v8059
    %v8077 = vpack.c.b16 %v8062, %v8061
    %v8078 = vpack.c.b16 %v8064, %v8063
    %v8079 = vpack.c.b16 %v8066, %v8065
    %v8080 = vpack.c.b16 %v8068, %v8067
    %v8081 = vpack.c.b16 %v8070, %v8069
    %v8082 = vpack.c.b16 %v8072, %v8071
    %v8094 = vsel %vm1376, %v8031, 0
    %8096 = vmatprep.subr.bf16.mxu0 0
    %8097 = vmatpush1.bf16.msra.mxu0 %v8073
    %8098 = vmatprep.subr.bf16.mxu0 0
    %8099 = vmatpush1.bf16.msra.mxu0 %v8074
    %8100 = vmatprep.subr.bf16.mxu0 0
    %8101 = vmatpush1.bf16.msra.mxu0 %v8075
    %8102 = vmatprep.subr.bf16.mxu0 0
    %8103 = vmatpush1.bf16.msra.mxu0 %v8076
    %8104 = vmatprep.subr.bf16.mxu0 0
    %8105 = vmatpush1.bf16.msra.mxu0 %v8077
    %8106 = vmatprep.subr.bf16.mxu0 0
    %8107 = vmatpush1.bf16.msra.mxu0 %v8078
    %8108 = vmatprep.subr.bf16.mxu0 0
    %8109 = vmatpush1.bf16.msra.mxu0 %v8079
    %8110 = vmatprep.subr.bf16.mxu0 0
    %8111 = vmatpush1.bf16.msra.mxu0 %v8080
    %8112 = vmatprep.subr.bf16.mxu0 0
    %8113 = vmatpush1.bf16.msra.mxu0 %v8081
    %8114 = vmatprep.subr.bf16.mxu0 0
    %8115 = vmatpush1.bf16.msra.mxu0 %v8082
    %8116 = vmatprep.subr.bf16.mxu0 0
    %8117 = vmatpush1.bf16.msra.mxu0 0
    %8118 = vmatprep.subr.bf16.mxu0 0
    %8119 = vmatpush1.bf16.msra.mxu0 0
    %8120 = vmatprep.subr.bf16.mxu0 0
    %8121 = vmatpush1.bf16.msra.mxu0 0
    %8122 = vmatprep.subr.bf16.mxu0 0
    %8123 = vmatpush1.bf16.msra.mxu0 0
    %8124 = vmatprep.subr.bf16.mxu0 0
    %8125 = vmatpush1.bf16.msra.mxu0 0
    %8126 = vmatprep.subr.bf16.mxu0 0
    %8127 = vmatpush1.bf16.msra.mxu0 0
    %8128 = vmatprep.mubr.bf16.mxu0 %v8094
    %8129 = vmatmul.mubr.bf16.gmra.mrb[0].mxu0 %v8030
    %v8130 = vpop.f32.mrb[0].mxu0
    %v8131 = vadd.f32 0.0, %v8130
    %v8132 = vpop.f32.mrb[0].mxu0
    %v8133 = vpop.f32.mrb[0].mxu0
    %v8134 = vadd.f32 0.0, %v8133
    %v8135 = vpop.f32.mrb[0].mxu0
    %8136 = vdwg.mxu0
    %v8137 = vadd.f32 %v7893, %v8131
    %v8138 = vadd.f32 %v7896, %v8134
    %8139 = vrot.lane.b32.xlu0 %v8030, 96
    %v8140 = vpop.permute.xlu0 %8139
    %8141 = vrot.lane.b32.xlu0 %v8031, 96
    %v8142 = vpop.permute.xlu0 %8141
    %v8143 = vsel %vm7903, %v8140, %v8142
    %v8146 = vsel %vm1376, %v8142, 0
    %8148 = vmatprep.subr.bf16.mxu0 0
    %8149 = vmatpush1.bf16.msra.mxu0 %v8073
    %8150 = vmatprep.subr.bf16.mxu0 0
    %8151 = vmatpush1.bf16.msra.mxu0 %v8074
    %8152 = vmatprep.subr.bf16.mxu0 0
    %8153 = vmatpush1.bf16.msra.mxu0 %v8075
    %8154 = vmatprep.subr.bf16.mxu0 0
    %8155 = vmatpush1.bf16.msra.mxu0 %v8076
    %8156 = vmatprep.subr.bf16.mxu0 0
    %8157 = vmatpush1.bf16.msra.mxu0 %v8077
    %8158 = vmatprep.subr.bf16.mxu0 0
    %8159 = vmatpush1.bf16.msra.mxu0 %v8078
    %8160 = vmatprep.subr.bf16.mxu0 0
    %8161 = vmatpush1.bf16.msra.mxu0 %v8079
    %8162 = vmatprep.subr.bf16.mxu0 0
    %8163 = vmatpush1.bf16.msra.mxu0 %v8080
    %8164 = vmatprep.subr.bf16.mxu0 0
    %8165 = vmatpush1.bf16.msra.mxu0 %v8081
    %8166 = vmatprep.subr.bf16.mxu0 0
    %8167 = vmatpush1.bf16.msra.mxu0 %v8082
    %8168 = vmatprep.subr.bf16.mxu0 0
    %8169 = vmatpush1.bf16.msra.mxu0 0
    %8170 = vmatprep.subr.bf16.mxu0 0
    %8171 = vmatpush1.bf16.msra.mxu0 0
    %8172 = vmatprep.subr.bf16.mxu0 0
    %8173 = vmatpush1.bf16.msra.mxu0 0
    %8174 = vmatprep.subr.bf16.mxu0 0
    %8175 = vmatpush1.bf16.msra.mxu0 0
    %8176 = vmatprep.subr.bf16.mxu0 0
    %8177 = vmatpush1.bf16.msra.mxu0 0
    %8178 = vmatprep.subr.bf16.mxu0 0
    %8179 = vmatpush1.bf16.msra.mxu0 0
    %8180 = vmatprep.mubr.bf16.mxu0 %v8146
    %8181 = vmatmul.mubr.bf16.gmra.mrb[0].mxu0 %v8143
    %v8182 = vpop.f32.mrb[0].mxu0
    %v8183 = vadd.f32 0.0, %v8182
    %v8184 = vpop.f32.mrb[0].mxu0
    %v8185 = vpop.f32.mrb[0].mxu0
    %v8186 = vadd.f32 0.0, %v8185
    %v8187 = vpop.f32.mrb[0].mxu0
    %8188 = vdwg.mxu0
    %v8189 = vadd.f32 %v7994, %v8183
    %v8190 = vadd.f32 %v7997, %v8186
    %v8191 = vld [vmem:[%s4 + $0xf0] sm:$0xf]
    %v8192 = vld [vmem:[%s4 + $0xf4] sm:$0xf]
    %v8193 = vld [vmem:[%s4 + $0xf8] sm:$0xf]
    %v8194 = vld [vmem:[%s4 + $0xfc] sm:$0xf]
    %v8195 = vld [vmem:[%s4 + $0x100] sm:$0xf]
    %v8196 = vld [vmem:[%s4 + $0x104] sm:$0xf]
    %v8197 = vld [vmem:[%s4 + $0x108] sm:$0xf]
    %v8198 = vld [vmem:[%s4 + $0x10c] sm:$0xf]
    %v8199 = vld [vmem:[%s4 + $0x110] sm:$0xf]
    %v8200 = vld [vmem:[%s4 + $0x114] sm:$0xf]
    %v8201 = vld [vmem:[%s4 + $0x118] sm:$0xf]
    %v8202 = vld [vmem:[%s4 + $0x11c] sm:$0xf]
    %v8203 = vld [vmem:[%s4 + $0x120] sm:$0xf]
    %v8204 = vld [vmem:[%s4 + $0x124] sm:$0xf]
    %v8205 = vld [vmem:[%s4 + $0x128] sm:$0xf]
    %v8206 = vld [vmem:[%s4 + $0x12c] sm:$0xf]
    %v8207 = vld [vmem:[%s4 + $0x130] sm:$0xf]
    %v8208 = vld [vmem:[%s4 + $0x134] sm:$0xf]
    %v8209 = vld [vmem:[%s4 + $0x138] sm:$0xf]
    %v8210 = vld [vmem:[%s4 + $0x13c] sm:$0xf]
    %v8212 = vshrl.u32 %v8028, 16
    %v8214 = vrot.slane %v8212, 1
    %v8215 = vshll.u32 %v8028, 16
    %v8217 = vrot.slane %v8215, 2
    %v8218 = vor.u32 %v8214, %v8217
    %v8220 = vshrl.u32 %v8029, 16
    %v8222 = vrot.slane %v8220, 1
    %v8223 = vshll.u32 %v8029, 16
    %v8225 = vrot.slane %v8223, 2
    %v8226 = vor.u32 %v8222, %v8225
    %v8248 = vunpack.c.l.b16 %v8191
    %v8249 = vunpack.c.l.b16 %v8192
    %v8250 = vunpack.c.l.b16 %v8193
    %v8251 = vunpack.c.l.b16 %v8194
    %v8252 = vunpack.c.l.b16 %v8195
    %v8253 = vunpack.c.l.b16 %v8196
    %v8254 = vunpack.c.l.b16 %v8197
    %v8255 = vunpack.c.l.b16 %v8198
    %v8256 = vunpack.c.l.b16 %v8199
    %v8257 = vunpack.c.l.b16 %v8200
    %v8258 = vunpack.c.l.b16 %v8201
    %v8259 = vunpack.c.l.b16 %v8202
    %v8260 = vunpack.c.l.b16 %v8203
    %v8261 = vunpack.c.l.b16 %v8204
    %v8262 = vunpack.c.l.b16 %v8205
    %v8263 = vunpack.c.l.b16 %v8206
    %v8264 = vunpack.c.l.b16 %v8207
    %v8265 = vunpack.c.l.b16 %v8208
    %v8266 = vunpack.c.l.b16 %v8209
    %v8267 = vunpack.c.l.b16 %v8210
    %v8268 = vpack.c.b16 %v8249, %v8248
    %v8269 = vpack.c.b16 %v8251, %v8250
    %v8270 = vpack.c.b16 %v8253, %v8252
    %v8271 = vpack.c.b16 %v8255, %v8254
    %v8272 = vpack.c.b16 %v8257, %v8256
    %v8273 = vpack.c.b16 %v8259, %v8258
    %v8274 = vpack.c.b16 %v8261, %v8260
    %v8275 = vpack.c.b16 %v8263, %v8262
    %v8276 = vpack.c.b16 %v8265, %v8264
    %v8277 = vpack.c.b16 %v8267, %v8266
    %v8289 = vsel %vm1376, %v8226, 0
    %8291 = vmatprep.subr.bf16.mxu0 0
    %8292 = vmatpush1.bf16.msra.mxu0 %v8268
    %8293 = vmatprep.subr.bf16.mxu0 0
    %8294 = vmatpush1.bf16.msra.mxu0 %v8269
    %8295 = vmatprep.subr.bf16.mxu0 0
    %8296 = vmatpush1.bf16.msra.mxu0 %v8270
    %8297 = vmatprep.subr.bf16.mxu0 0
    %8298 = vmatpush1.bf16.msra.mxu0 %v8271
    %8299 = vmatprep.subr.bf16.mxu0 0
    %8300 = vmatpush1.bf16.msra.mxu0 %v8272
    %8301 = vmatprep.subr.bf16.mxu0 0
    %8302 = vmatpush1.bf16.msra.mxu0 %v8273
    %8303 = vmatprep.subr.bf16.mxu0 0
    %8304 = vmatpush1.bf16.msra.mxu0 %v8274
    %8305 = vmatprep.subr.bf16.mxu0 0
    %8306 = vmatpush1.bf16.msra.mxu0 %v8275
    %8307 = vmatprep.subr.bf16.mxu0 0
    %8308 = vmatpush1.bf16.msra.mxu0 %v8276
    %8309 = vmatprep.subr.bf16.mxu0 0
    %8310 = vmatpush1.bf16.msra.mxu0 %v8277
    %8311 = vmatprep.subr.bf16.mxu0 0
    %8312 = vmatpush1.bf16.msra.mxu0 0
    %8313 = vmatprep.subr.bf16.mxu0 0
    %8314 = vmatpush1.bf16.msra.mxu0 0
    %8315 = vmatprep.subr.bf16.mxu0 0
    %8316 = vmatpush1.bf16.msra.mxu0 0
    %8317 = vmatprep.subr.bf16.mxu0 0
    %8318 = vmatpush1.bf16.msra.mxu0 0
    %8319 = vmatprep.subr.bf16.mxu0 0
    %8320 = vmatpush1.bf16.msra.mxu0 0
    %8321 = vmatprep.subr.bf16.mxu0 0
    %8322 = vmatpush1.bf16.msra.mxu0 0
    %8323 = vmatprep.mubr.bf16.mxu0 %v8289
    %8324 = vmatmul.mubr.bf16.gmra.mrb[0].mxu0 %v8218
    %v8325 = vpop.f32.mrb[0].mxu0
    %v8326 = vadd.f32 0.0, %v8325
    %v8327 = vpop.f32.mrb[0].mxu0
    %v8328 = vpop.f32.mrb[0].mxu0
    %v8329 = vadd.f32 0.0, %v8328
    %v8330 = vpop.f32.mrb[0].mxu0
    %8331 = vdwg.mxu0
    %v8332 = vadd.f32 %v8137, %v8326
    %v8333 = vadd.f32 %v8138, %v8329
    %8334 = vrot.lane.b32.xlu0 %v8218, 96
    %v8335 = vpop.permute.xlu0 %8334
    %8336 = vrot.lane.b32.xlu0 %v8226, 96
    %v8337 = vpop.permute.xlu0 %8336
    %v8338 = vsel %vm7903, %v8335, %v8337
    %v8341 = vsel %vm1376, %v8337, 0
    %8343 = vmatprep.subr.bf16.mxu0 0
    %8344 = vmatpush1.bf16.msra.mxu0 %v8268
    %8345 = vmatprep.subr.bf16.mxu0 0
    %8346 = vmatpush1.bf16.msra.mxu0 %v8269
    %8347 = vmatprep.subr.bf16.mxu0 0
    %8348 = vmatpush1.bf16.msra.mxu0 %v8270
    %8349 = vmatprep.subr.bf16.mxu0 0
    %8350 = vmatpush1.bf16.msra.mxu0 %v8271
    %8351 = vmatprep.subr.bf16.mxu0 0
    %8352 = vmatpush1.bf16.msra.mxu0 %v8272
    %8353 = vmatprep.subr.bf16.mxu0 0
    %8354 = vmatpush1.bf16.msra.mxu0 %v8273
    %8355 = vmatprep.subr.bf16.mxu0 0
    %8356 = vmatpush1.bf16.msra.mxu0 %v8274
    %8357 = vmatprep.subr.bf16.mxu0 0
    %8358 = vmatpush1.bf16.msra.mxu0 %v8275
    %8359 = vmatprep.subr.bf16.mxu0 0
    %8360 = vmatpush1.bf16.msra.mxu0 %v8276
    %8361 = vmatprep.subr.bf16.mxu0 0
    %8362 = vmatpush1.bf16.msra.mxu0 %v8277
    %8363 = vmatprep.subr.bf16.mxu0 0
    %8364 = vmatpush1.bf16.msra.mxu0 0
    %8365 = vmatprep.subr.bf16.mxu0 0
    %8366 = vmatpush1.bf16.msra.mxu0 0
    %8367 = vmatprep.subr.bf16.mxu0 0
    %8368 = vmatpush1.bf16.msra.mxu0 0
    %8369 = vmatprep.subr.bf16.mxu0 0
    %8370 = vmatpush1.bf16.msra.mxu0 0
    %8371 = vmatprep.subr.bf16.mxu0 0
    %8372 = vmatpush1.bf16.msra.mxu0 0
    %8373 = vmatprep.subr.bf16.mxu0 0
    %8374 = vmatpush1.bf16.msra.mxu0 0
    %8375 = vmatprep.mubr.bf16.mxu0 %v8341
    %8376 = vmatmul.mubr.bf16.gmra.mrb[0].mxu0 %v8338
    %v8377 = vpop.f32.mrb[0].mxu0
    %v8378 = vadd.f32 0.0, %v8377
    %v8379 = vpop.f32.mrb[0].mxu0
    %v8380 = vpop.f32.mrb[0].mxu0
    %v8381 = vadd.f32 0.0, %v8380
    %v8382 = vpop.f32.mrb[0].mxu0
    %8383 = vdwg.mxu0
    %v8384 = vadd.f32 %v8189, %v8378
    %v8385 = vadd.f32 %v8190, %v8381
    %v8386 = vld [vmem:[#allocation4] sm:$0xcc]
    %v8387 = vld [vmem:[#allocation4 + $0x8] sm:$0x77]
    %v8388 = vld [vmem:[%s4 + $0x140] sm:$0xf]
    %v8389 = vld [vmem:[%s4 + $0x144] sm:$0xf]
    %v8390 = vld [vmem:[%s4 + $0x148] sm:$0xf]
    %v8391 = vld [vmem:[%s4 + $0x14c] sm:$0xf]
    %v8392 = vld [vmem:[%s4 + $0x150] sm:$0xf]
    %v8393 = vld [vmem:[%s4 + $0x154] sm:$0xf]
    %v8394 = vld [vmem:[%s4 + $0x158] sm:$0xf]
    %v8395 = vld [vmem:[%s4 + $0x15c] sm:$0xf]
    %v8396 = vld [vmem:[%s4 + $0x160] sm:$0xf]
    %v8397 = vld [vmem:[%s4 + $0x164] sm:$0xf]
    %v8398 = vld [vmem:[%s4 + $0x168] sm:$0xf]
    %v8399 = vld [vmem:[%s4 + $0x16c] sm:$0xf]
    %v8400 = vld [vmem:[%s4 + $0x170] sm:$0xf]
    %v8401 = vld [vmem:[%s4 + $0x174] sm:$0xf]
    %v8402 = vld [vmem:[%s4 + $0x178] sm:$0xf]
    %v8403 = vld [vmem:[%s4 + $0x17c] sm:$0xf]
    %v8404 = vld [vmem:[%s4 + $0x180] sm:$0xf]
    %v8405 = vld [vmem:[%s4 + $0x184] sm:$0xf]
    %v8406 = vld [vmem:[%s4 + $0x188] sm:$0xf]
    %v8407 = vld [vmem:[%s4 + $0x18c] sm:$0xf]
    %v8410 = vunpack.c.l.b16 %v8386
    %v8411 = vunpack.c.h.b16 %v8386
    %v8412 = vunpack.c.l.b16 %v8387
    %v8413 = vunpack.c.h.b16 %v8387
    %v8414 = vpack.c.b16 %v8412, %v8410
    %v8415 = vpack.c.b16 %v8413, %v8411
    %v8416 = vrot.slane %v8414, 2
    %v8417 = vrot.slane %v8415, 2
    %v8439 = vunpack.c.l.b16 %v8388
    %v8440 = vunpack.c.l.b16 %v8389
    %v8441 = vunpack.c.l.b16 %v8390
    %v8442 = vunpack.c.l.b16 %v8391
    %v8443 = vunpack.c.l.b16 %v8392
    %v8444 = vunpack.c.l.b16 %v8393
    %v8445 = vunpack.c.l.b16 %v8394
    %v8446 = vunpack.c.l.b16 %v8395
    %v8447 = vunpack.c.l.b16 %v8396
    %v8448 = vunpack.c.l.b16 %v8397
    %v8449 = vunpack.c.l.b16 %v8398
    %v8450 = vunpack.c.l.b16 %v8399
    %v8451 = vunpack.c.l.b16 %v8400
    %v8452 = vunpack.c.l.b16 %v8401
    %v8453 = vunpack.c.l.b16 %v8402
    %v8454 = vunpack.c.l.b16 %v8403
    %v8455 = vunpack.c.l.b16 %v8404
    %v8456 = vunpack.c.l.b16 %v8405
    %v8457 = vunpack.c.l.b16 %v8406
    %v8458 = vunpack.c.l.b16 %v8407
    %v8459 = vpack.c.b16 %v8440, %v8439
    %v8460 = vpack.c.b16 %v8442, %v8441
    %v8461 = vpack.c.b16 %v8444, %v8443
    %v8462 = vpack.c.b16 %v8446, %v8445
    %v8463 = vpack.c.b16 %v8448, %v8447
    %v8464 = vpack.c.b16 %v8450, %v8449
    %v8465 = vpack.c.b16 %v8452, %v8451
    %v8466 = vpack.c.b16 %v8454, %v8453
    %v8467 = vpack.c.b16 %v8456, %v8455
    %v8468 = vpack.c.b16 %v8458, %v8457
    %v8480 = vsel %vm1376, %v8417, 0
    %8482 = vmatprep.subr.bf16.mxu0 0
    %8483 = vmatpush1.bf16.msra.mxu0 %v8459
    %8484 = vmatprep.subr.bf16.mxu0 0
    %8485 = vmatpush1.bf16.msra.mxu0 %v8460
    %8486 = vmatprep.subr.bf16.mxu0 0
    %8487 = vmatpush1.bf16.msra.mxu0 %v8461
    %8488 = vmatprep.subr.bf16.mxu0 0
    %8489 = vmatpush1.bf16.msra.mxu0 %v8462
    %8490 = vmatprep.subr.bf16.mxu0 0
    %8491 = vmatpush1.bf16.msra.mxu0 %v8463
    %8492 = vmatprep.subr.bf16.mxu0 0
    %8493 = vmatpush1.bf16.msra.mxu0 %v8464
    %8494 = vmatprep.subr.bf16.mxu0 0
    %8495 = vmatpush1.bf16.msra.mxu0 %v8465
    %8496 = vmatprep.subr.bf16.mxu0 0
    %8497 = vmatpush1.bf16.msra.mxu0 %v8466
    %8498 = vmatprep.subr.bf16.mxu0 0
    %8499 = vmatpush1.bf16.msra.mxu0 %v8467
    %8500 = vmatprep.subr.bf16.mxu0 0
    %8501 = vmatpush1.bf16.msra.mxu0 %v8468
    %8502 = vmatprep.subr.bf16.mxu0 0
    %8503 = vmatpush1.bf16.msra.mxu0 0
    %8504 = vmatprep.subr.bf16.mxu0 0
    %8505 = vmatpush1.bf16.msra.mxu0 0
    %8506 = vmatprep.subr.bf16.mxu0 0
    %8507 = vmatpush1.bf16.msra.mxu0 0
    %8508 = vmatprep.subr.bf16.mxu0 0
    %8509 = vmatpush1.bf16.msra.mxu0 0
    %8510 = vmatprep.subr.bf16.mxu0 0
    %8511 = vmatpush1.bf16.msra.mxu0 0
    %8512 = vmatprep.subr.bf16.mxu0 0
    %8513 = vmatpush1.bf16.msra.mxu0 0
    %8514 = vmatprep.mubr.bf16.mxu0 %v8480
    %8515 = vmatmul.mubr.bf16.gmra.mrb[0].mxu0 %v8416
    %v8516 = vpop.f32.mrb[0].mxu0
    %v8517 = vadd.f32 0.0, %v8516
    %v8518 = vpop.f32.mrb[0].mxu0
    %v8519 = vpop.f32.mrb[0].mxu0
    %v8520 = vadd.f32 0.0, %v8519
    %v8521 = vpop.f32.mrb[0].mxu0
    %8522 = vdwg.mxu0
    %v8523 = vadd.f32 %v8332, %v8517
    %v8524 = vadd.f32 %v8333, %v8520
    %8525 = vrot.lane.b32.xlu0 %v8416, 96
    %v8526 = vpop.permute.xlu0 %8525
    %8527 = vrot.lane.b32.xlu0 %v8417, 96
    %v8528 = vpop.permute.xlu0 %8527
    %v8529 = vsel %vm7903, %v8526, %v8528
    %v8532 = vsel %vm1376, %v8528, 0
    %8534 = vmatprep.subr.bf16.mxu0 0
    %8535 = vmatpush1.bf16.msra.mxu0 %v8459
    %8536 = vmatprep.subr.bf16.mxu0 0
    %8537 = vmatpush1.bf16.msra.mxu0 %v8460
    %8538 = vmatprep.subr.bf16.mxu0 0
    %8539 = vmatpush1.bf16.msra.mxu0 %v8461
    %8540 = vmatprep.subr.bf16.mxu0 0
    %8541 = vmatpush1.bf16.msra.mxu0 %v8462
    %8542 = vmatprep.subr.bf16.mxu0 0
    %8543 = vmatpush1.bf16.msra.mxu0 %v8463
    %8544 = vmatprep.subr.bf16.mxu0 0
    %8545 = vmatpush1.bf16.msra.mxu0 %v8464
    %8546 = vmatprep.subr.bf16.mxu0 0
    %8547 = vmatpush1.bf16.msra.mxu0 %v8465
    %8548 = vmatprep.subr.bf16.mxu0 0
    %8549 = vmatpush1.bf16.msra.mxu0 %v8466
    %8550 = vmatprep.subr.bf16.mxu0 0
    %8551 = vmatpush1.bf16.msra.mxu0 %v8467
    %8552 = vmatprep.subr.bf16.mxu0 0
    %8553 = vmatpush1.bf16.msra.mxu0 %v8468
    %8554 = vmatprep.subr.bf16.mxu0 0
    %8555 = vmatpush1.bf16.msra.mxu0 0
    %8556 = vmatprep.subr.bf16.mxu0 0
    %8557 = vmatpush1.bf16.msra.mxu0 0
    %8558 = vmatprep.subr.bf16.mxu0 0
    %8559 = vmatpush1.bf16.msra.mxu0 0
    %8560 = vmatprep.subr.bf16.mxu0 0
    %8561 = vmatpush1.bf16.msra.mxu0 0
    %8562 = vmatprep.subr.bf16.mxu0 0
    %8563 = vmatpush1.bf16.msra.mxu0 0
    %8564 = vmatprep.subr.bf16.mxu0 0
    %8565 = vmatpush1.bf16.msra.mxu0 0
    %8566 = vmatprep.mubr.bf16.mxu0 %v8532
    %8567 = vmatmul.mubr.bf16.gmra.mrb[0].mxu0 %v8529
    %v8568 = vpop.f32.mrb[0].mxu0
    %v8569 = vadd.f32 0.0, %v8568
    %v8570 = vpop.f32.mrb[0].mxu0
    %v8571 = vpop.f32.mrb[0].mxu0
    %v8572 = vadd.f32 0.0, %v8571
    %v8573 = vpop.f32.mrb[0].mxu0
    %8574 = vdwg.mxu0
    %v8575 = vadd.f32 %v8384, %v8569
    %v8576 = vadd.f32 %v8385, %v8572
    %v8577 = vmax.f32 %v8523, %v8575
    %v8578 = vmax.f32 %v8524, %v8576
    %v8580 = vrot.slane %v8577, 1
    %v8582 = vmax.f32 %v8577, %v8580
    %v8584 = vrot.slane %v8578, 1
    %v8586 = vmax.f32 %v8577, %v8584
    %v8588 = vrot.slane %v8586, 6
    %vm8590 = vcmask 1040384
    %v8591 = vsel %vm8590, %v8582, %v8588
    %v8592 = vld [vmem:[%s7 + $0x2] sm:$0x1]
    %v8594 = vlaneseq
    %v8595 = vshrl.u32 %v8594, 7
    %v8596 = vsub.s32 0, %v8595
    %v8597 = vrot.slane %v8592, %v8596
    %v8599 = vadd.f32 %v8591, %v8597
    %v8600 = vmul.f32 %v8599, 0.01
    %v8601 = vmax.f32 %v8599, %v8600
    %v8602 = vld [vmem:[%s1] sm:$0x3f]
    %v8603 = vld [vmem:[%s6] sm:$0xff]
    %v8604 = vld [vmem:[%s6 + $0x8] sm:$0xff]
    %v8605 = vld [vmem:[%s6 + $0x10] sm:$0xff]
    %v8606 = vld [vmem:[%s6 + $0x18] sm:$0xff]
    %v8607 = vld [vmem:[%s6 + $0x20] sm:$0xff]
    %v8608 = vld [vmem:[%s6 + $0x28] sm:$0xff]
    %v8609 = vld [vmem:[%s6 + $0x30] sm:$0xff]
    %v8610 = vld [vmem:[%s6 + $0x38] sm:$0xff]
    %v8611 = vld [vmem:[%s6 + $0x40] sm:$0xff]
    %v8612 = vld [vmem:[%s6 + $0x48] sm:$0xff]
    %v8613 = vld [vmem:[%s6 + $0x50] sm:$0xff]
    %v8614 = vld [vmem:[%s6 + $0x58] sm:$0xff]
    %v8615 = vld [vmem:[%s6 + $0x60] sm:$0xff]
    %v8616 = vld [vmem:[%s6 + $0x68] sm:$0xff]
    %v8617 = vld [vmem:[%s6 + $0x70] sm:$0xff]
    %v8618 = vld [vmem:[%s6 + $0x78] sm:$0xff]
    %v8619 = vld [vmem:[%s6 + $0x80] sm:$0xff]
    %v8620 = vld [vmem:[%s6 + $0x88] sm:$0xff]
    %v8621 = vld [vmem:[%s6 + $0x90] sm:$0xff]
    %v8622 = vld [vmem:[%s6 + $0x98] sm:$0xff]
    %v8623 = vld [vmem:[%s6 + $0xa0] sm:$0xff]
    %v8624 = vld [vmem:[%s6 + $0xa8] sm:$0xff]
    %v8625 = vld [vmem:[%s6 + $0xb0] sm:$0xff]
    %v8626 = vld [vmem:[%s6 + $0xb8] sm:$0xff]
    %v8627 = vld [vmem:[%s6 + $0xc0] sm:$0xff]
    %v8628 = vld [vmem:[%s6 + $0xc8] sm:$0xff]
    %v8629 = vld [vmem:[%s6 + $0xd0] sm:$0xff]
    %v8630 = vld [vmem:[%s6 + $0xd8] sm:$0xff]
    %v8631 = vld [vmem:[%s6 + $0xe0] sm:$0xff]
    %v8632 = vld [vmem:[%s6 + $0xe8] sm:$0xff]
    %v8633 = vld [vmem:[%s6 + $0xf0] sm:$0xff]
    %v8634 = vld [vmem:[%s6 + $0xf8] sm:$0xff]
    %v8635 = vld [vmem:[%s6 + $0x100] sm:$0xff]
    %v8636 = vld [vmem:[%s6 + $0x108] sm:$0xff]
    %v8637 = vld [vmem:[%s6 + $0x110] sm:$0xff]
    %v8638 = vld [vmem:[%s6 + $0x118] sm:$0xff]
    %v8639 = vld [vmem:[%s6 + $0x120] sm:$0xff]
    %v8640 = vld [vmem:[%s6 + $0x128] sm:$0xff]
    %v8641 = vld [vmem:[%s6 + $0x130] sm:$0xff]
    %v8642 = vld [vmem:[%s6 + $0x138] sm:$0xff]
    %v8643 = vld [vmem:[%s6 + $0x140] sm:$0xff]
    %v8644 = vld [vmem:[%s6 + $0x148] sm:$0xff]
    %v8645 = vld [vmem:[%s6 + $0x150] sm:$0xff]
    %v8646 = vld [vmem:[%s6 + $0x158] sm:$0xff]
    %v8647 = vld [vmem:[%s6 + $0x160] sm:$0xff]
    %v8648 = vld [vmem:[%s6 + $0x168] sm:$0xff]
    %v8649 = vld [vmem:[%s6 + $0x170] sm:$0xff]
    %v8650 = vld [vmem:[%s6 + $0x178] sm:$0xff]
    %v8651 = vld [vmem:[%s6 + $0x180] sm:$0xff]
    %v8652 = vld [vmem:[%s6 + $0x188] sm:$0xff]
    %v8653 = vld [vmem:[%s6 + $0x190] sm:$0xff]
    %v8654 = vld [vmem:[%s6 + $0x198] sm:$0xff]
    %v8655 = vld [vmem:[%s6 + $0x1a0] sm:$0xff]
    %v8656 = vld [vmem:[%s6 + $0x1a8] sm:$0xff]
    %v8657 = vld [vmem:[%s6 + $0x1b0] sm:$0xff]
    %v8658 = vld [vmem:[%s6 + $0x1b8] sm:$0xff]
    %v8659 = vld [vmem:[%s6 + $0x1c0] sm:$0xff]
    %v8660 = vld [vmem:[%s6 + $0x1c8] sm:$0xff]
    %v8661 = vld [vmem:[%s6 + $0x1d0] sm:$0xff]
    %v8662 = vld [vmem:[%s6 + $0x1d8] sm:$0xff]
    %v8663 = vld [vmem:[%s6 + $0x1e0] sm:$0xff]
    %v8664 = vld [vmem:[%s6 + $0x1e8] sm:$0xff]
    %v8665 = vld [vmem:[%s6 + $0x1f0] sm:$0xff]
    %v8666 = vld [vmem:[%s6 + $0x1f8] sm:$0xff]
    %v8667 = vld [vmem:[%s6 + $0x200] sm:$0xff]
    %v8668 = vld [vmem:[%s6 + $0x208] sm:$0xff]
    %v8669 = vld [vmem:[%s6 + $0x210] sm:$0xff]
    %v8670 = vld [vmem:[%s6 + $0x218] sm:$0xff]
    %v8671 = vld [vmem:[%s6 + $0x220] sm:$0xff]
    %v8672 = vld [vmem:[%s6 + $0x228] sm:$0xff]
    %v8673 = vld [vmem:[%s6 + $0x230] sm:$0xff]
    %v8674 = vld [vmem:[%s6 + $0x238] sm:$0xff]
    %v8675 = vld [vmem:[%s6 + $0x240] sm:$0xff]
    %v8676 = vld [vmem:[%s6 + $0x248] sm:$0xff]
    %v8677 = vld [vmem:[%s6 + $0x250] sm:$0xff]
    %v8678 = vld [vmem:[%s6 + $0x258] sm:$0xff]
    %v8679 = vld [vmem:[%s6 + $0x260] sm:$0xff]
    %v8680 = vld [vmem:[%s6 + $0x268] sm:$0xff]
    %v8681 = vld [vmem:[%s6 + $0x270] sm:$0xff]
    %v8682 = vld [vmem:[%s6 + $0x278] sm:$0xff]
    %v8683 = vld [vmem:[%s6 + $0x280] sm:$0xff]
    %v8684 = vld [vmem:[%s6 + $0x288] sm:$0xff]
    %v8685 = vld [vmem:[%s6 + $0x290] sm:$0xff]
    %v8686 = vld [vmem:[%s6 + $0x298] sm:$0xff]
    %v8687 = vld [vmem:[%s6 + $0x2a0] sm:$0xff]
    %v8688 = vld [vmem:[%s6 + $0x2a8] sm:$0xff]
    %v8689 = vld [vmem:[%s6 + $0x2b0] sm:$0xff]
    %v8690 = vld [vmem:[%s6 + $0x2b8] sm:$0xff]
    %v8691 = vld [vmem:[%s6 + $0x2c0] sm:$0xff]
    %v8692 = vld [vmem:[%s6 + $0x2c8] sm:$0xff]
    %v8693 = vld [vmem:[%s6 + $0x2d0] sm:$0xff]
    %v8694 = vld [vmem:[%s6 + $0x2d8] sm:$0xff]
    %v8695 = vld [vmem:[%s6 + $0x2e0] sm:$0xff]
    %v8696 = vld [vmem:[%s6 + $0x2e8] sm:$0xff]
    %v8697 = vld [vmem:[%s6 + $0x2f0] sm:$0xff]
    %v8698 = vld [vmem:[%s6 + $0x2f8] sm:$0xff]
    %v8699 = vld [vmem:[%s7 + $0x3] sm:$0x3]
    %v8701 = vlaneseq
    %v8702 = vshrl.u32 %v8701, 7
    %v8703 = vsub.s32 0, %v8702
    %v8704 = vrot.slane %v8699, %v8703
    %v8705 = vlaneseq
    %v8706 = vshrl.u32 %v8705, 7
    %v8707 = vsub.s32 1, %v8706
    %v8708 = vrot.slane %v8699, %v8707
    %v8712 = vcombine.high %v8602, %v8602
    %v8714 = vunpack.c.l.s4 1966171168
    %v8715 = vunpack.c.0.s8 %v8714
    %v8716 = vlaneseq
    %v8717 = vshrl.u32 %v8716, 7
    %v8718 = vsub.s32 %v8715, %v8717
    %v8719 = vrot.slane %v8602, %v8718
    %v8721 = vunpack.c.l.s4 1966171168
    %v8722 = vunpack.c.0.s8 %v8721
    %v8723 = vlaneseq
    %v8724 = vshrl.u32 %v8723, 7
    %v8725 = vsub.s32 %v8722, %v8724
    %v8726 = vrot.slane %v8712, %v8725
    %v8727 = vcombine.high %v8719, %v8719
    %v8728 = vcombine.high %v8726, %v8726
    %v8730 = vunpack.c.l.s4 1966171168
    %v8731 = vunpack.c.0.s8 %v8730
    %v8732 = vlaneseq
    %v8733 = vshrl.u32 %v8732, 7
    %v8734 = vsub.s32 %v8731, %v8733
    %v8735 = vrot.slane %v8719, %v8734
    %v8737 = vunpack.c.l.s4 1966171168
    %v8738 = vunpack.c.0.s8 %v8737
    %v8739 = vlaneseq
    %v8740 = vshrl.u32 %v8739, 7
    %v8741 = vsub.s32 %v8738, %v8740
    %v8742 = vrot.slane %v8726, %v8741
    %v8744 = vunpack.c.l.s4 1966171168
    %v8745 = vunpack.c.0.s8 %v8744
    %v8746 = vlaneseq
    %v8747 = vshrl.u32 %v8746, 7
    %v8748 = vsub.s32 %v8745, %v8747
    %v8749 = vrot.slane %v8727, %v8748
    %v8751 = vunpack.c.l.s4 1966171168
    %v8752 = vunpack.c.0.s8 %v8751
    %v8753 = vlaneseq
    %v8754 = vshrl.u32 %v8753, 7
    %v8755 = vsub.s32 %v8752, %v8754
    %v8756 = vrot.slane %v8728, %v8755
    %v8757 = vcombine.high %v8735, %v8735
    %v8758 = vcombine.high %v8749, %v8749
    %v8861 = vunpack.c.l.b16 %v8603
    %v8862 = vunpack.c.h.b16 %v8603
    %v8863 = vunpack.c.l.b16 %v8604
    %v8864 = vunpack.c.h.b16 %v8604
    %v8865 = vunpack.c.l.b16 %v8605
    %v8866 = vunpack.c.h.b16 %v8605
    %v8867 = vunpack.c.l.b16 %v8606
    %v8868 = vunpack.c.h.b16 %v8606
    %v8869 = vunpack.c.l.b16 %v8607
    %v8870 = vunpack.c.h.b16 %v8607
    %v8871 = vunpack.c.l.b16 %v8608
    %v8872 = vunpack.c.h.b16 %v8608
    %v8873 = vunpack.c.l.b16 %v8609
    %v8874 = vunpack.c.h.b16 %v8609
    %v8875 = vunpack.c.l.b16 %v8610
    %v8876 = vunpack.c.h.b16 %v8610
    %v8877 = vunpack.c.l.b16 %v8611
    %v8878 = vunpack.c.h.b16 %v8611
    %v8879 = vunpack.c.l.b16 %v8612
    %v8880 = vunpack.c.h.b16 %v8612
    %v8881 = vunpack.c.l.b16 %v8613
    %v8882 = vunpack.c.h.b16 %v8613
    %v8883 = vunpack.c.l.b16 %v8614
    %v8884 = vunpack.c.h.b16 %v8614
    %v8885 = vunpack.c.l.b16 %v8615
    %v8886 = vunpack.c.h.b16 %v8615
    %v8887 = vunpack.c.l.b16 %v8616
    %v8888 = vunpack.c.h.b16 %v8616
    %v8889 = vunpack.c.l.b16 %v8617
    %v8890 = vunpack.c.h.b16 %v8617
    %v8891 = vunpack.c.l.b16 %v8618
    %v8892 = vunpack.c.h.b16 %v8618
    %v8893 = vunpack.c.l.b16 %v8619
    %v8894 = vunpack.c.h.b16 %v8619
    %v8895 = vunpack.c.l.b16 %v8620
    %v8896 = vunpack.c.h.b16 %v8620
    %v8897 = vunpack.c.l.b16 %v8621
    %v8898 = vunpack.c.h.b16 %v8621
    %v8899 = vunpack.c.l.b16 %v8622
    %v8900 = vunpack.c.h.b16 %v8622
    %v8901 = vunpack.c.l.b16 %v8623
    %v8902 = vunpack.c.h.b16 %v8623
    %v8903 = vunpack.c.l.b16 %v8624
    %v8904 = vunpack.c.h.b16 %v8624
    %v8905 = vunpack.c.l.b16 %v8625
    %v8906 = vunpack.c.h.b16 %v8625
    %v8907 = vunpack.c.l.b16 %v8626
    %v8908 = vunpack.c.h.b16 %v8626
    %v8909 = vunpack.c.l.b16 %v8627
    %v8910 = vunpack.c.h.b16 %v8627
    %v8911 = vunpack.c.l.b16 %v8628
    %v8912 = vunpack.c.h.b16 %v8628
    %v8913 = vunpack.c.l.b16 %v8629
    %v8914 = vunpack.c.h.b16 %v8629
    %v8915 = vunpack.c.l.b16 %v8630
    %v8916 = vunpack.c.h.b16 %v8630
    %v8917 = vunpack.c.l.b16 %v8631
    %v8918 = vunpack.c.h.b16 %v8631
    %v8919 = vunpack.c.l.b16 %v8632
    %v8920 = vunpack.c.h.b16 %v8632
    %v8921 = vunpack.c.l.b16 %v8633
    %v8922 = vunpack.c.h.b16 %v8633
    %v8923 = vunpack.c.l.b16 %v8634
    %v8924 = vunpack.c.h.b16 %v8634
    %v8925 = vunpack.c.l.b16 %v8635
    %v8926 = vunpack.c.h.b16 %v8635
    %v8927 = vunpack.c.l.b16 %v8636
    %v8928 = vunpack.c.h.b16 %v8636
    %v8929 = vunpack.c.l.b16 %v8637
    %v8930 = vunpack.c.h.b16 %v8637
    %v8931 = vunpack.c.l.b16 %v8638
    %v8932 = vunpack.c.h.b16 %v8638
    %v8933 = vunpack.c.l.b16 %v8639
    %v8934 = vunpack.c.h.b16 %v8639
    %v8935 = vunpack.c.l.b16 %v8640
    %v8936 = vunpack.c.h.b16 %v8640
    %v8937 = vunpack.c.l.b16 %v8641
    %v8938 = vunpack.c.h.b16 %v8641
    %v8939 = vunpack.c.l.b16 %v8642
    %v8940 = vunpack.c.h.b16 %v8642
    %v8941 = vunpack.c.l.b16 %v8643
    %v8942 = vunpack.c.h.b16 %v8643
    %v8943 = vunpack.c.l.b16 %v8644
    %v8944 = vunpack.c.h.b16 %v8644
    %v8945 = vunpack.c.l.b16 %v8645
    %v8946 = vunpack.c.h.b16 %v8645
    %v8947 = vunpack.c.l.b16 %v8646
    %v8948 = vunpack.c.h.b16 %v8646
    %v8949 = vunpack.c.l.b16 %v8647
    %v8950 = vunpack.c.h.b16 %v8647
    %v8951 = vunpack.c.l.b16 %v8648
    %v8952 = vunpack.c.h.b16 %v8648
    %v8953 = vunpack.c.l.b16 %v8649
    %v8954 = vunpack.c.h.b16 %v8649
    %v8955 = vunpack.c.l.b16 %v8650
    %v8956 = vunpack.c.h.b16 %v8650
    %v8957 = vunpack.c.l.b16 %v8651
    %v8958 = vunpack.c.h.b16 %v8651
    %v8959 = vunpack.c.l.b16 %v8652
    %v8960 = vunpack.c.h.b16 %v8652
    %v8961 = vunpack.c.l.b16 %v8653
    %v8962 = vunpack.c.h.b16 %v8653
    %v8963 = vunpack.c.l.b16 %v8654
    %v8964 = vunpack.c.h.b16 %v8654
    %v8965 = vunpack.c.l.b16 %v8655
    %v8966 = vunpack.c.h.b16 %v8655
    %v8967 = vunpack.c.l.b16 %v8656
    %v8968 = vunpack.c.h.b16 %v8656
    %v8969 = vunpack.c.l.b16 %v8657
    %v8970 = vunpack.c.h.b16 %v8657
    %v8971 = vunpack.c.l.b16 %v8658
    %v8972 = vunpack.c.h.b16 %v8658
    %v8973 = vunpack.c.l.b16 %v8659
    %v8974 = vunpack.c.h.b16 %v8659
    %v8975 = vunpack.c.l.b16 %v8660
    %v8976 = vunpack.c.h.b16 %v8660
    %v8977 = vunpack.c.l.b16 %v8661
    %v8978 = vunpack.c.h.b16 %v8661
    %v8979 = vunpack.c.l.b16 %v8662
    %v8980 = vunpack.c.h.b16 %v8662
    %v8981 = vunpack.c.l.b16 %v8663
    %v8982 = vunpack.c.h.b16 %v8663
    %v8983 = vunpack.c.l.b16 %v8664
    %v8984 = vunpack.c.h.b16 %v8664
    %v8985 = vunpack.c.l.b16 %v8665
    %v8986 = vunpack.c.h.b16 %v8665
    %v8987 = vunpack.c.l.b16 %v8666
    %v8988 = vunpack.c.h.b16 %v8666
    %v8989 = vunpack.c.l.b16 %v8667
    %v8990 = vunpack.c.h.b16 %v8667
    %v8991 = vunpack.c.l.b16 %v8668
    %v8992 = vunpack.c.h.b16 %v8668
    %v8993 = vunpack.c.l.b16 %v8669
    %v8994 = vunpack.c.h.b16 %v8669
    %v8995 = vunpack.c.l.b16 %v8670
    %v8996 = vunpack.c.h.b16 %v8670
    %v8997 = vunpack.c.l.b16 %v8671
    %v8998 = vunpack.c.h.b16 %v8671
    %v8999 = vunpack.c.l.b16 %v8672
    %v9000 = vunpack.c.h.b16 %v8672
    %v9001 = vunpack.c.l.b16 %v8673
    %v9002 = vunpack.c.h.b16 %v8673
    %v9003 = vunpack.c.l.b16 %v8674
    %v9004 = vunpack.c.h.b16 %v8674
    %v9005 = vunpack.c.l.b16 %v8675
    %v9006 = vunpack.c.h.b16 %v8675
    %v9007 = vunpack.c.l.b16 %v8676
    %v9008 = vunpack.c.h.b16 %v8676
    %v9009 = vunpack.c.l.b16 %v8677
    %v9010 = vunpack.c.h.b16 %v8677
    %v9011 = vunpack.c.l.b16 %v8678
    %v9012 = vunpack.c.h.b16 %v8678
    %v9013 = vunpack.c.l.b16 %v8679
    %v9014 = vunpack.c.h.b16 %v8679
    %v9015 = vunpack.c.l.b16 %v8680
    %v9016 = vunpack.c.h.b16 %v8680
    %v9017 = vunpack.c.l.b16 %v8681
    %v9018 = vunpack.c.h.b16 %v8681
    %v9019 = vunpack.c.l.b16 %v8682
    %v9020 = vunpack.c.h.b16 %v8682
    %v9021 = vunpack.c.l.b16 %v8683
    %v9022 = vunpack.c.h.b16 %v8683
    %v9023 = vunpack.c.l.b16 %v8684
    %v9024 = vunpack.c.h.b16 %v8684
    %v9025 = vunpack.c.l.b16 %v8685
    %v9026 = vunpack.c.h.b16 %v8685
    %v9027 = vunpack.c.l.b16 %v8686
    %v9028 = vunpack.c.h.b16 %v8686
    %v9029 = vunpack.c.l.b16 %v8687
    %v9030 = vunpack.c.h.b16 %v8687
    %v9031 = vunpack.c.l.b16 %v8688
    %v9032 = vunpack.c.h.b16 %v8688
    %v9033 = vunpack.c.l.b16 %v8689
    %v9034 = vunpack.c.h.b16 %v8689
    %v9035 = vunpack.c.l.b16 %v8690
    %v9036 = vunpack.c.h.b16 %v8690
    %v9037 = vunpack.c.l.b16 %v8691
    %v9038 = vunpack.c.h.b16 %v8691
    %v9039 = vunpack.c.l.b16 %v8692
    %v9040 = vunpack.c.h.b16 %v8692
    %v9041 = vunpack.c.l.b16 %v8693
    %v9042 = vunpack.c.h.b16 %v8693
    %v9043 = vunpack.c.l.b16 %v8694
    %v9044 = vunpack.c.h.b16 %v8694
    %v9045 = vunpack.c.l.b16 %v8695
    %v9046 = vunpack.c.h.b16 %v8695
    %v9047 = vunpack.c.l.b16 %v8696
    %v9048 = vunpack.c.h.b16 %v8696
    %v9049 = vunpack.c.l.b16 %v8697
    %v9050 = vunpack.c.h.b16 %v8697
    %v9051 = vunpack.c.l.b16 %v8698
    %v9052 = vunpack.c.h.b16 %v8698
    %v9053 = vpack.c.b16 %v8863, %v8861
    %v9054 = vpack.c.b16 %v8864, %v8862
    %v9055 = vpack.c.b16 %v8867, %v8865
    %v9056 = vpack.c.b16 %v8868, %v8866
    %v9057 = vpack.c.b16 %v8871, %v8869
    %v9058 = vpack.c.b16 %v8872, %v8870
    %v9059 = vpack.c.b16 %v8875, %v8873
    %v9060 = vpack.c.b16 %v8876, %v8874
    %v9061 = vpack.c.b16 %v8879, %v8877
    %v9062 = vpack.c.b16 %v8880, %v8878
    %v9063 = vpack.c.b16 %v8883, %v8881
    %v9064 = vpack.c.b16 %v8884, %v8882
    %v9065 = vpack.c.b16 %v8887, %v8885
    %v9066 = vpack.c.b16 %v8888, %v8886
    %v9067 = vpack.c.b16 %v8891, %v8889
    %v9068 = vpack.c.b16 %v8892, %v8890
    %v9069 = vpack.c.b16 %v8895, %v8893
    %v9070 = vpack.c.b16 %v8896, %v8894
    %v9071 = vpack.c.b16 %v8899, %v8897
    %v9072 = vpack.c.b16 %v8900, %v8898
    %v9073 = vpack.c.b16 %v8903, %v8901
    %v9074 = vpack.c.b16 %v8904, %v8902
    %v9075 = vpack.c.b16 %v8907, %v8905
    %v9076 = vpack.c.b16 %v8908, %v8906
    %v9077 = vpack.c.b16 %v8911, %v8909
    %v9078 = vpack.c.b16 %v8912, %v8910
    %v9079 = vpack.c.b16 %v8915, %v8913
    %v9080 = vpack.c.b16 %v8916, %v8914
    %v9081 = vpack.c.b16 %v8919, %v8917
    %v9082 = vpack.c.b16 %v8920, %v8918
    %v9083 = vpack.c.b16 %v8923, %v8921
    %v9084 = vpack.c.b16 %v8924, %v8922
    %v9085 = vpack.c.b16 %v8927, %v8925
    %v9086 = vpack.c.b16 %v8928, %v8926
    %v9087 = vpack.c.b16 %v8931, %v8929
    %v9088 = vpack.c.b16 %v8932, %v8930
    %v9089 = vpack.c.b16 %v8935, %v8933
    %v9090 = vpack.c.b16 %v8936, %v8934
    %v9091 = vpack.c.b16 %v8939, %v8937
    %v9092 = vpack.c.b16 %v8940, %v8938
    %v9093 = vpack.c.b16 %v8943, %v8941
    %v9094 = vpack.c.b16 %v8944, %v8942
    %v9095 = vpack.c.b16 %v8947, %v8945
    %v9096 = vpack.c.b16 %v8948, %v8946
    %v9097 = vpack.c.b16 %v8951, %v8949
    %v9098 = vpack.c.b16 %v8952, %v8950
    %v9099 = vpack.c.b16 %v8955, %v8953
    %v9100 = vpack.c.b16 %v8956, %v8954
    %v9101 = vpack.c.b16 %v8959, %v8957
    %v9102 = vpack.c.b16 %v8960, %v8958
    %v9103 = vpack.c.b16 %v8963, %v8961
    %v9104 = vpack.c.b16 %v8964, %v8962
    %v9105 = vpack.c.b16 %v8967, %v8965
    %v9106 = vpack.c.b16 %v8968, %v8966
    %v9107 = vpack.c.b16 %v8971, %v8969
    %v9108 = vpack.c.b16 %v8972, %v8970
    %v9109 = vpack.c.b16 %v8975, %v8973
    %v9110 = vpack.c.b16 %v8976, %v8974
    %v9111 = vpack.c.b16 %v8979, %v8977
    %v9112 = vpack.c.b16 %v8980, %v8978
    %v9113 = vpack.c.b16 %v8983, %v8981
    %v9114 = vpack.c.b16 %v8984, %v8982
    %v9115 = vpack.c.b16 %v8987, %v8985
    %v9116 = vpack.c.b16 %v8988, %v8986
    %v9117 = vpack.c.b16 %v8991, %v8989
    %v9118 = vpack.c.b16 %v8992, %v8990
    %v9119 = vpack.c.b16 %v8995, %v8993
    %v9120 = vpack.c.b16 %v8996, %v8994
    %v9121 = vpack.c.b16 %v8999, %v8997
    %v9122 = vpack.c.b16 %v9000, %v8998
    %v9123 = vpack.c.b16 %v9003, %v9001
    %v9124 = vpack.c.b16 %v9004, %v9002
    %v9125 = vpack.c.b16 %v9007, %v9005
    %v9126 = vpack.c.b16 %v9008, %v9006
    %v9127 = vpack.c.b16 %v9011, %v9009
    %v9128 = vpack.c.b16 %v9012, %v9010
    %v9129 = vpack.c.b16 %v9015, %v9013
    %v9130 = vpack.c.b16 %v9016, %v9014
    %v9131 = vpack.c.b16 %v9019, %v9017
    %v9132 = vpack.c.b16 %v9020, %v9018
    %v9133 = vpack.c.b16 %v9023, %v9021
    %v9134 = vpack.c.b16 %v9024, %v9022
    %v9135 = vpack.c.b16 %v9027, %v9025
    %v9136 = vpack.c.b16 %v9028, %v9026
    %v9137 = vpack.c.b16 %v9031, %v9029
    %v9138 = vpack.c.b16 %v9032, %v9030
    %v9139 = vpack.c.b16 %v9035, %v9033
    %v9140 = vpack.c.b16 %v9036, %v9034
    %v9141 = vpack.c.b16 %v9039, %v9037
    %v9142 = vpack.c.b16 %v9040, %v9038
    %v9143 = vpack.c.b16 %v9043, %v9041
    %v9144 = vpack.c.b16 %v9044, %v9042
    %v9145 = vpack.c.b16 %v9047, %v9045
    %v9146 = vpack.c.b16 %v9048, %v9046
    %v9147 = vpack.c.b16 %v9051, %v9049
    %v9148 = vpack.c.b16 %v9052, %v9050
    %9245 = vmatprep.subr.bf16.mxu0 %v9054
    %9246 = vmatpush1.bf16.msra.mxu0 %v9053
    %9247 = vmatprep.subr.bf16.mxu0 %v9056
    %9248 = vmatpush1.bf16.msra.mxu0 %v9055
    %9249 = vmatprep.subr.bf16.mxu0 %v9058
    %9250 = vmatpush1.bf16.msra.mxu0 %v9057
    %9251 = vmatprep.subr.bf16.mxu0 %v9060
    %9252 = vmatpush1.bf16.msra.mxu0 %v9059
    %9253 = vmatprep.subr.bf16.mxu0 %v9062
    %9254 = vmatpush1.bf16.msra.mxu0 %v9061
    %9255 = vmatprep.subr.bf16.mxu0 %v9064
    %9256 = vmatpush1.bf16.msra.mxu0 %v9063
    %9257 = vmatprep.subr.bf16.mxu0 %v9066
    %9258 = vmatpush1.bf16.msra.mxu0 %v9065
    %9259 = vmatprep.subr.bf16.mxu0 %v9068
    %9260 = vmatpush1.bf16.msra.mxu0 %v9067
    %9261 = vmatprep.subr.bf16.mxu0 %v9070
    %9262 = vmatpush1.bf16.msra.mxu0 %v9069
    %9263 = vmatprep.subr.bf16.mxu0 %v9072
    %9264 = vmatpush1.bf16.msra.mxu0 %v9071
    %9265 = vmatprep.subr.bf16.mxu0 %v9074
    %9266 = vmatpush1.bf16.msra.mxu0 %v9073
    %9267 = vmatprep.subr.bf16.mxu0 %v9076
    %9268 = vmatpush1.bf16.msra.mxu0 %v9075
    %9269 = vmatprep.subr.bf16.mxu0 %v9078
    %9270 = vmatpush1.bf16.msra.mxu0 %v9077
    %9271 = vmatprep.subr.bf16.mxu0 %v9080
    %9272 = vmatpush1.bf16.msra.mxu0 %v9079
    %9273 = vmatprep.subr.bf16.mxu0 %v9082
    %9274 = vmatpush1.bf16.msra.mxu0 %v9081
    %9275 = vmatprep.subr.bf16.mxu0 %v9084
    %9276 = vmatpush1.bf16.msra.mxu0 %v9083
    %9277 = vmatprep.mubr.bf16.mxu0 %v8749
    %9278 = vmatmul.mubr.bf16.gmra.mrb[0].mxu0 %v8735
    %v9279 = vpop.f32.mrb[0].mxu0
    %v9280 = vadd.f32 %v8704, %v9279
    %v9281 = vpop.f32.mrb[0].mxu0
    %v9282 = vadd.f32 %v8708, %v9281
    %v9283 = vpop.f32.mrb[0].mxu0
    %v9284 = vpop.f32.mrb[0].mxu0
    %9285 = vdwg.mxu0
    %9286 = vmatprep.subr.bf16.mxu0 %v9086
    %9287 = vmatpush1.bf16.msra.mxu0 %v9085
    %9288 = vmatprep.subr.bf16.mxu0 %v9088
    %9289 = vmatpush1.bf16.msra.mxu0 %v9087
    %9290 = vmatprep.subr.bf16.mxu0 %v9090
    %9291 = vmatpush1.bf16.msra.mxu0 %v9089
    %9292 = vmatprep.subr.bf16.mxu0 %v9092
    %9293 = vmatpush1.bf16.msra.mxu0 %v9091
    %9294 = vmatprep.subr.bf16.mxu0 %v9094
    %9295 = vmatpush1.bf16.msra.mxu0 %v9093
    %9296 = vmatprep.subr.bf16.mxu0 %v9096
    %9297 = vmatpush1.bf16.msra.mxu0 %v9095
    %9298 = vmatprep.subr.bf16.mxu0 %v9098
    %9299 = vmatpush1.bf16.msra.mxu0 %v9097
    %9300 = vmatprep.subr.bf16.mxu0 %v9100
    %9301 = vmatpush1.bf16.msra.mxu0 %v9099
    %9302 = vmatprep.subr.bf16.mxu0 %v9102
    %9303 = vmatpush1.bf16.msra.mxu0 %v9101
    %9304 = vmatprep.subr.bf16.mxu0 %v9104
    %9305 = vmatpush1.bf16.msra.mxu0 %v9103
    %9306 = vmatprep.subr.bf16.mxu0 %v9106
    %9307 = vmatpush1.bf16.msra.mxu0 %v9105
    %9308 = vmatprep.subr.bf16.mxu0 %v9108
    %9309 = vmatpush1.bf16.msra.mxu0 %v9107
    %9310 = vmatprep.subr.bf16.mxu0 %v9110
    %9311 = vmatpush1.bf16.msra.mxu0 %v9109
    %9312 = vmatprep.subr.bf16.mxu0 %v9112
    %9313 = vmatpush1.bf16.msra.mxu0 %v9111
    %9314 = vmatprep.subr.bf16.mxu0 %v9114
    %9315 = vmatpush1.bf16.msra.mxu0 %v9113
    %9316 = vmatprep.subr.bf16.mxu0 %v9116
    %9317 = vmatpush1.bf16.msra.mxu0 %v9115
    %9318 = vmatprep.mubr.bf16.mxu0 %v8758
    %9319 = vmatmul.mubr.bf16.gmra.mrb[0].mxu0 %v8757
    %v9320 = vpop.f32.mrb[0].mxu0
    %v9321 = vadd.f32 %v9280, %v9320
    %v9322 = vpop.f32.mrb[0].mxu0
    %v9323 = vadd.f32 %v9282, %v9322
    %v9324 = vpop.f32.mrb[0].mxu0
    %v9325 = vpop.f32.mrb[0].mxu0
    %9326 = vdwg.mxu0
    %9327 = vmatprep.subr.bf16.mxu0 %v9118
    %9328 = vmatpush1.bf16.msra.mxu0 %v9117
    %9329 = vmatprep.subr.bf16.mxu0 %v9120
    %9330 = vmatpush1.bf16.msra.mxu0 %v9119
    %9331 = vmatprep.subr.bf16.mxu0 %v9122
    %9332 = vmatpush1.bf16.msra.mxu0 %v9121
    %9333 = vmatprep.subr.bf16.mxu0 %v9124
    %9334 = vmatpush1.bf16.msra.mxu0 %v9123
    %9335 = vmatprep.subr.bf16.mxu0 %v9126
    %9336 = vmatpush1.bf16.msra.mxu0 %v9125
    %9337 = vmatprep.subr.bf16.mxu0 %v9128
    %9338 = vmatpush1.bf16.msra.mxu0 %v9127
    %9339 = vmatprep.subr.bf16.mxu0 %v9130
    %9340 = vmatpush1.bf16.msra.mxu0 %v9129
    %9341 = vmatprep.subr.bf16.mxu0 %v9132
    %9342 = vmatpush1.bf16.msra.mxu0 %v9131
    %9343 = vmatprep.subr.bf16.mxu0 %v9134
    %9344 = vmatpush1.bf16.msra.mxu0 %v9133
    %9345 = vmatprep.subr.bf16.mxu0 %v9136
    %9346 = vmatpush1.bf16.msra.mxu0 %v9135
    %9347 = vmatprep.subr.bf16.mxu0 %v9138
    %9348 = vmatpush1.bf16.msra.mxu0 %v9137
    %9349 = vmatprep.subr.bf16.mxu0 %v9140
    %9350 = vmatpush1.bf16.msra.mxu0 %v9139
    %9351 = vmatprep.subr.bf16.mxu0 %v9142
    %9352 = vmatpush1.bf16.msra.mxu0 %v9141
    %9353 = vmatprep.subr.bf16.mxu0 %v9144
    %9354 = vmatpush1.bf16.msra.mxu0 %v9143
    %9355 = vmatprep.subr.bf16.mxu0 %v9146
    %9356 = vmatpush1.bf16.msra.mxu0 %v9145
    %9357 = vmatprep.subr.bf16.mxu0 %v9148
    %9358 = vmatpush1.bf16.msra.mxu0 %v9147
    %9359 = vmatprep.mubr.bf16.mxu0 %v8756
    %9360 = vmatmul.mubr.bf16.gmra.mrb[0].mxu0 %v8742
    %v9361 = vpop.f32.mrb[0].mxu0
    %v9362 = vadd.f32 %v9321, %v9361
    %v9363 = vpop.f32.mrb[0].mxu0
    %v9364 = vadd.f32 %v9323, %v9363
    %v9365 = vpop.f32.mrb[0].mxu0
    %v9366 = vpop.f32.mrb[0].mxu0
    %9367 = vdwg.mxu0
    %v9368 = vmul.f32 %v9362, 0.01
    %v9369 = vmul.f32 %v9364, 0.01
    %v9370 = vmax.f32 %v9362, %v9368
    %v9371 = vmax.f32 %v9364, %v9369
    %v9372 = vpack.c.bf16 %v9370, %v9370
    %v9373 = vpack.c.bf16 %v9371, %v9371
    %v9374 = vld [vmem:[%s5] sm:$0xf]
    %v9375 = vld [vmem:[%s5 + $0x4] sm:$0xf]
    %v9376 = vld [vmem:[%s5 + $0x8] sm:$0xf]
    %v9377 = vld [vmem:[%s5 + $0xc] sm:$0xf]
    %v9378 = vld [vmem:[%s5 + $0x10] sm:$0xf]
    %v9379 = vld [vmem:[%s5 + $0x14] sm:$0xf]
    %v9380 = vld [vmem:[%s5 + $0x18] sm:$0xf]
    %v9381 = vld [vmem:[%s5 + $0x1c] sm:$0xf]
    %v9382 = vld [vmem:[%s5 + $0x20] sm:$0xf]
    %v9383 = vld [vmem:[%s5 + $0x24] sm:$0xf]
    %v9384 = vld [vmem:[%s5 + $0x28] sm:$0xf]
    %v9385 = vld [vmem:[%s5 + $0x2c] sm:$0xf]
    %v9386 = vld [vmem:[%s5 + $0x30] sm:$0xf]
    %v9387 = vld [vmem:[%s5 + $0x34] sm:$0xf]
    %v9388 = vld [vmem:[%s5 + $0x38] sm:$0xf]
    %v9389 = vld [vmem:[%s5 + $0x3c] sm:$0xf]
    %v9390 = vld [vmem:[%s5 + $0x40] sm:$0xf]
    %v9391 = vld [vmem:[%s5 + $0x44] sm:$0xf]
    %v9392 = vld [vmem:[%s5 + $0x48] sm:$0xf]
    %v9393 = vld [vmem:[%s5 + $0x4c] sm:$0xf]
    %v9394 = vld [vmem:[%s5 + $0x50] sm:$0xf]
    %v9395 = vld [vmem:[%s5 + $0x54] sm:$0xf]
    %v9396 = vld [vmem:[%s5 + $0x58] sm:$0xf]
    %v9397 = vld [vmem:[%s5 + $0x5c] sm:$0xf]
    %v9398 = vld [vmem:[%s5 + $0x60] sm:$0xf]
    %v9399 = vld [vmem:[%s5 + $0x64] sm:$0xf]
    %v9400 = vld [vmem:[%s5 + $0x68] sm:$0xf]
    %v9401 = vld [vmem:[%s5 + $0x6c] sm:$0xf]
    %v9402 = vld [vmem:[%s5 + $0x70] sm:$0xf]
    %v9403 = vld [vmem:[%s5 + $0x74] sm:$0xf]
    %v9404 = vld [vmem:[%s5 + $0x78] sm:$0xf]
    %v9405 = vld [vmem:[%s5 + $0x7c] sm:$0xf]
    %v9406 = vld [vmem:[%s7 + $0x5] sm:$0x1]
    %v9408 = vlaneseq
    %v9409 = vshrl.u32 %v9408, 7
    %v9410 = vsub.s32 0, %v9409
    %v9411 = vrot.slane %v9406, %v9410
    %v9445 = vunpack.c.l.b16 %v9374
    %v9446 = vunpack.c.l.b16 %v9375
    %v9447 = vunpack.c.l.b16 %v9376
    %v9448 = vunpack.c.l.b16 %v9377
    %v9449 = vunpack.c.l.b16 %v9378
    %v9450 = vunpack.c.l.b16 %v9379
    %v9451 = vunpack.c.l.b16 %v9380
    %v9452 = vunpack.c.l.b16 %v9381
    %v9453 = vunpack.c.l.b16 %v9382
    %v9454 = vunpack.c.l.b16 %v9383
    %v9455 = vunpack.c.l.b16 %v9384
    %v9456 = vunpack.c.l.b16 %v9385
    %v9457 = vunpack.c.l.b16 %v9386
    %v9458 = vunpack.c.l.b16 %v9387
    %v9459 = vunpack.c.l.b16 %v9388
    %v9460 = vunpack.c.l.b16 %v9389
    %v9461 = vunpack.c.l.b16 %v9390
    %v9462 = vunpack.c.l.b16 %v9391
    %v9463 = vunpack.c.l.b16 %v9392
    %v9464 = vunpack.c.l.b16 %v9393
    %v9465 = vunpack.c.l.b16 %v9394
    %v9466 = vunpack.c.l.b16 %v9395
    %v9467 = vunpack.c.l.b16 %v9396
    %v9468 = vunpack.c.l.b16 %v9397
    %v9469 = vunpack.c.l.b16 %v9398
    %v9470 = vunpack.c.l.b16 %v9399
    %v9471 = vunpack.c.l.b16 %v9400
    %v9472 = vunpack.c.l.b16 %v9401
    %v9473 = vunpack.c.l.b16 %v9402
    %v9474 = vunpack.c.l.b16 %v9403
    %v9475 = vunpack.c.l.b16 %v9404
    %v9476 = vunpack.c.l.b16 %v9405
    %v9477 = vpack.c.b16 %v9446, %v9445
    %v9478 = vpack.c.b16 %v9448, %v9447
    %v9479 = vpack.c.b16 %v9450, %v9449
    %v9480 = vpack.c.b16 %v9452, %v9451
    %v9481 = vpack.c.b16 %v9454, %v9453
    %v9482 = vpack.c.b16 %v9456, %v9455
    %v9483 = vpack.c.b16 %v9458, %v9457
    %v9484 = vpack.c.b16 %v9460, %v9459
    %v9485 = vpack.c.b16 %v9462, %v9461
    %v9486 = vpack.c.b16 %v9464, %v9463
    %v9487 = vpack.c.b16 %v9466, %v9465
    %v9488 = vpack.c.b16 %v9468, %v9467
    %v9489 = vpack.c.b16 %v9470, %v9469
    %v9490 = vpack.c.b16 %v9472, %v9471
    %v9491 = vpack.c.b16 %v9474, %v9473
    %v9492 = vpack.c.b16 %v9476, %v9475
    %9509 = vmatprep.subr.bf16.mxu0 0
    %9510 = vmatpush1.bf16.msra.mxu0 %v9477
    %9511 = vmatprep.subr.bf16.mxu0 0
    %9512 = vmatpush1.bf16.msra.mxu0 %v9478
    %9513 = vmatprep.subr.bf16.mxu0 0
    %9514 = vmatpush1.bf16.msra.mxu0 %v9479
    %9515 = vmatprep.subr.bf16.mxu0 0
    %9516 = vmatpush1.bf16.msra.mxu0 %v9480
    %9517 = vmatprep.subr.bf16.mxu0 0
    %9518 = vmatpush1.bf16.msra.mxu0 %v9481
    %9519 = vmatprep.subr.bf16.mxu0 0
    %9520 = vmatpush1.bf16.msra.mxu0 %v9482
    %9521 = vmatprep.subr.bf16.mxu0 0
    %9522 = vmatpush1.bf16.msra.mxu0 %v9483
    %9523 = vmatprep.subr.bf16.mxu0 0
    %9524 = vmatpush1.bf16.msra.mxu0 %v9484
    %9525 = vmatprep.subr.bf16.mxu0 0
    %9526 = vmatpush1.bf16.msra.mxu0 %v9485
    %9527 = vmatprep.subr.bf16.mxu0 0
    %9528 = vmatpush1.bf16.msra.mxu0 %v9486
    %9529 = vmatprep.subr.bf16.mxu0 0
    %9530 = vmatpush1.bf16.msra.mxu0 %v9487
    %9531 = vmatprep.subr.bf16.mxu0 0
    %9532 = vmatpush1.bf16.msra.mxu0 %v9488
    %9533 = vmatprep.subr.bf16.mxu0 0
    %9534 = vmatpush1.bf16.msra.mxu0 %v9489
    %9535 = vmatprep.subr.bf16.mxu0 0
    %9536 = vmatpush1.bf16.msra.mxu0 %v9490
    %9537 = vmatprep.subr.bf16.mxu0 0
    %9538 = vmatpush1.bf16.msra.mxu0 %v9491
    %9539 = vmatprep.subr.bf16.mxu0 0
    %9540 = vmatpush1.bf16.msra.mxu0 %v9492
    %9541 = vmatprep.mubr.bf16.mxu0 %v9373
    %9542 = vmatmul.mubr.bf16.gmra.mrb[0].mxu0 %v9372
    %v9543 = vpop.f32.mrb[0].mxu0
    %v9544 = vadd.f32 %v9411, %v9543
    %v9545 = vpop.f32.mrb[0].mxu0
    %v9546 = vpop.f32.mrb[0].mxu0
    %v9547 = vpop.f32.mrb[0].mxu0
    %9548 = vdwg.mxu0
    %v9549 = vmul.f32 %v9544, 0.01
    %v9550 = vmax.f32 %v9544, %v9549
    %v9551 = vpack.c.bf16 %v9550, %v9550
    %v9552 = vld [vmem:[%s4 + $0x190] sm:$0xf]
    %v9553 = vld [vmem:[%s4 + $0x194] sm:$0xf]
    %v9554 = vld [vmem:[%s4 + $0x198] sm:$0xf]
    %v9555 = vld [vmem:[%s4 + $0x19c] sm:$0xf]
    %v9556 = vld [vmem:[%s4 + $0x1a0] sm:$0xf]
    %v9557 = vld [vmem:[%s4 + $0x1a4] sm:$0xf]
    %v9558 = vld [vmem:[%s4 + $0x1a8] sm:$0xf]
    %v9559 = vld [vmem:[%s4 + $0x1ac] sm:$0xf]
    %v9560 = vld [vmem:[%s7 + $0x6] sm:$0x1]
    %v9562 = vlaneseq
    %v9563 = vshrl.u32 %v9562, 7
    %v9564 = vsub.s32 0, %v9563
    %v9565 = vrot.slane %v9560, %v9564
    %v9575 = vunpack.c.l.b16 %v9552
    %v9576 = vunpack.c.l.b16 %v9553
    %v9577 = vunpack.c.l.b16 %v9554
    %v9578 = vunpack.c.l.b16 %v9555
    %v9579 = vunpack.c.l.b16 %v9556
    %v9580 = vunpack.c.l.b16 %v9557
    %v9581 = vunpack.c.l.b16 %v9558
    %v9582 = vunpack.c.l.b16 %v9559
    %v9583 = vpack.c.b16 %v9576, %v9575
    %v9584 = vpack.c.b16 %v9578, %v9577
    %v9585 = vpack.c.b16 %v9580, %v9579
    %v9586 = vpack.c.b16 %v9582, %v9581
    %vm9591 = vcmask 523264
    %v9593 = vsel %vm9591, %v9551, 0
    %9595 = vmatprep.subr.bf16.mxu0 0
    %9596 = vmatpush1.bf16.msra.mxu0 %v9583
    %9597 = vmatprep.subr.bf16.mxu0 0
    %9598 = vmatpush1.bf16.msra.mxu0 %v9584
    %9599 = vmatprep.subr.bf16.mxu0 0
    %9600 = vmatpush1.bf16.msra.mxu0 %v9585
    %9601 = vmatprep.subr.bf16.mxu0 0
    %9602 = vmatpush1.bf16.msra.mxu0 %v9586
    %9603 = vmatprep.subr.bf16.mxu0 0
    %9604 = vmatpush1.bf16.msra.mxu0 0
    %9605 = vmatprep.subr.bf16.mxu0 0
    %9606 = vmatpush1.bf16.msra.mxu0 0
    %9607 = vmatprep.subr.bf16.mxu0 0
    %9608 = vmatpush1.bf16.msra.mxu0 0
    %9609 = vmatprep.subr.bf16.mxu0 0
    %9610 = vmatpush1.bf16.msra.mxu0 0
    %9611 = vmatprep.subr.bf16.mxu0 0
    %9612 = vmatpush1.bf16.msra.mxu0 0
    %9613 = vmatprep.subr.bf16.mxu0 0
    %9614 = vmatpush1.bf16.msra.mxu0 0
    %9615 = vmatprep.subr.bf16.mxu0 0
    %9616 = vmatpush1.bf16.msra.mxu0 0
    %9617 = vmatprep.subr.bf16.mxu0 0
    %9618 = vmatpush1.bf16.msra.mxu0 0
    %9619 = vmatprep.subr.bf16.mxu0 0
    %9620 = vmatpush1.bf16.msra.mxu0 0
    %9621 = vmatprep.subr.bf16.mxu0 0
    %9622 = vmatpush1.bf16.msra.mxu0 0
    %9623 = vmatprep.subr.bf16.mxu0 0
    %9624 = vmatpush1.bf16.msra.mxu0 0
    %9625 = vmatprep.subr.bf16.mxu0 0
    %9626 = vmatpush1.bf16.msra.mxu0 0
    %9627 = vmatprep.mubr.bf16.mxu0 0
    %9628 = vmatmul.mubr.bf16.gmra.mrb[0].mxu0 %v9593
    %v9629 = vpop.f32.mrb[0].mxu0
    %v9630 = vadd.f32 %v9565, %v9629
    %v9631 = vpop.f32.mrb[0].mxu0
    %v9632 = vpop.f32.mrb[0].mxu0
    %v9633 = vpop.f32.mrb[0].mxu0
    %9634 = vdwg.mxu0
    %v9635 = vmul.f32 %v9630, 0.01
    %v9636 = vmax.f32 %v9630, %v9635
    %v9637 = vpack.c.bf16 %v8601, %v8601
    %v9638 = vld [vmem:[%s6 + $0x300] sm:$0xff]
    %v9639 = vld [vmem:[%s6 + $0x308] sm:$0xff]
    %v9640 = vld [vmem:[%s6 + $0x310] sm:$0xff]
    %v9641 = vld [vmem:[%s6 + $0x318] sm:$0xff]
    %v9642 = vld [vmem:[%s6 + $0x320] sm:$0xff]
    %v9643 = vld [vmem:[%s6 + $0x328] sm:$0xff]
    %v9644 = vld [vmem:[%s6 + $0x330] sm:$0xff]
    %v9645 = vld [vmem:[%s6 + $0x338] sm:$0xff]
    %v9646 = vld [vmem:[%s6 + $0x340] sm:$0xff]
    %v9647 = vld [vmem:[%s6 + $0x348] sm:$0xff]
    %v9648 = vld [vmem:[%s6 + $0x350] sm:$0xff]
    %v9649 = vld [vmem:[%s6 + $0x358] sm:$0xff]
    %v9650 = vld [vmem:[%s6 + $0x360] sm:$0xff]
    %v9651 = vld [vmem:[%s6 + $0x368] sm:$0xff]
    %v9652 = vld [vmem:[%s6 + $0x370] sm:$0xff]
    %v9653 = vld [vmem:[%s6 + $0x378] sm:$0xff]
    %v9654 = vpack.c.bf16 %v9636, %v9636
    %v9655 = vld [vmem:[%s6 + $0x380] sm:$0xff]
    %v9656 = vld [vmem:[%s6 + $0x388] sm:$0xff]
    %v9657 = vld [vmem:[%s6 + $0x390] sm:$0xff]
    %v9658 = vld [vmem:[%s6 + $0x398] sm:$0xff]
    %v9659 = vld [vmem:[%s6 + $0x3a0] sm:$0xff]
    %v9660 = vld [vmem:[%s6 + $0x3a8] sm:$0xff]
    %v9661 = vld [vmem:[%s6 + $0x3b0] sm:$0xff]
    %v9662 = vld [vmem:[%s6 + $0x3b8] sm:$0xff]
    %v9663 = vld [vmem:[%s6 + $0x3c0] sm:$0xff]
    %v9664 = vld [vmem:[%s6 + $0x3c8] sm:$0xff]
    %v9665 = vld [vmem:[%s6 + $0x3d0] sm:$0xff]
    %v9666 = vld [vmem:[%s6 + $0x3d8] sm:$0xff]
    %v9667 = vld [vmem:[%s6 + $0x3e0] sm:$0xff]
    %v9668 = vld [vmem:[%s6 + $0x3e8] sm:$0xff]
    %v9669 = vld [vmem:[%s6 + $0x3f0] sm:$0xff]
    %v9670 = vld [vmem:[%s6 + $0x3f8] sm:$0xff]
    %v9687 = vunpack.c.l.b16 %v9655
    %v9688 = vunpack.c.h.b16 %v9655
    %v9689 = vunpack.c.l.b16 %v9656
    %v9690 = vunpack.c.h.b16 %v9656
    %v9691 = vunpack.c.l.b16 %v9657
    %v9692 = vunpack.c.h.b16 %v9657
    %v9693 = vunpack.c.l.b16 %v9658
    %v9694 = vunpack.c.h.b16 %v9658
    %v9695 = vunpack.c.l.b16 %v9659
    %v9696 = vunpack.c.h.b16 %v9659
    %v9697 = vunpack.c.l.b16 %v9660
    %v9698 = vunpack.c.h.b16 %v9660
    %v9699 = vunpack.c.l.b16 %v9661
    %v9700 = vunpack.c.h.b16 %v9661
    %v9701 = vunpack.c.l.b16 %v9662
    %v9702 = vunpack.c.h.b16 %v9662
    %v9703 = vunpack.c.l.b16 %v9663
    %v9704 = vunpack.c.h.b16 %v9663
    %v9705 = vunpack.c.l.b16 %v9664
    %v9706 = vunpack.c.h.b16 %v9664
    %v9707 = vunpack.c.l.b16 %v9665
    %v9708 = vunpack.c.h.b16 %v9665
    %v9709 = vunpack.c.l.b16 %v9666
    %v9710 = vunpack.c.h.b16 %v9666
    %v9711 = vunpack.c.l.b16 %v9667
    %v9712 = vunpack.c.h.b16 %v9667
    %v9713 = vunpack.c.l.b16 %v9668
    %v9714 = vunpack.c.h.b16 %v9668
    %v9715 = vunpack.c.l.b16 %v9669
    %v9716 = vunpack.c.h.b16 %v9669
    %v9717 = vunpack.c.l.b16 %v9670
    %v9718 = vunpack.c.h.b16 %v9670
    %v9719 = vpack.c.b16 %v9689, %v9687
    %v9720 = vpack.c.b16 %v9690, %v9688
    %v9721 = vpack.c.b16 %v9693, %v9691
    %v9722 = vpack.c.b16 %v9694, %v9692
    %v9723 = vpack.c.b16 %v9697, %v9695
    %v9724 = vpack.c.b16 %v9698, %v9696
    %v9725 = vpack.c.b16 %v9701, %v9699
    %v9726 = vpack.c.b16 %v9702, %v9700
    %v9727 = vpack.c.b16 %v9705, %v9703
    %v9728 = vpack.c.b16 %v9706, %v9704
    %v9729 = vpack.c.b16 %v9709, %v9707
    %v9730 = vpack.c.b16 %v9710, %v9708
    %v9731 = vpack.c.b16 %v9713, %v9711
    %v9732 = vpack.c.b16 %v9714, %v9712
    %v9733 = vpack.c.b16 %v9717, %v9715
    %v9734 = vpack.c.b16 %v9718, %v9716
    %9751 = vmatprep.subr.bf16.mxu0 %v9720
    %9752 = vmatpush1.bf16.msra.mxu0 %v9719
    %9753 = vmatprep.subr.bf16.mxu0 %v9722
    %9754 = vmatpush1.bf16.msra.mxu0 %v9721
    %9755 = vmatprep.subr.bf16.mxu0 %v9724
    %9756 = vmatpush1.bf16.msra.mxu0 %v9723
    %9757 = vmatprep.subr.bf16.mxu0 %v9726
    %9758 = vmatpush1.bf16.msra.mxu0 %v9725
    %9759 = vmatprep.subr.bf16.mxu0 %v9728
    %9760 = vmatpush1.bf16.msra.mxu0 %v9727
    %9761 = vmatprep.subr.bf16.mxu0 %v9730
    %9762 = vmatpush1.bf16.msra.mxu0 %v9729
    %9763 = vmatprep.subr.bf16.mxu0 %v9732
    %9764 = vmatpush1.bf16.msra.mxu0 %v9731
    %9765 = vmatprep.subr.bf16.mxu0 %v9734
    %9766 = vmatpush1.bf16.msra.mxu0 %v9733
    %9767 = vmatprep.subr.bf16.mxu0 0
    %9768 = vmatpush1.bf16.msra.mxu0 0
    %9769 = vmatprep.subr.bf16.mxu0 0
    %9770 = vmatpush1.bf16.msra.mxu0 0
    %9771 = vmatprep.subr.bf16.mxu0 0
    %9772 = vmatpush1.bf16.msra.mxu0 0
    %9773 = vmatprep.subr.bf16.mxu0 0
    %9774 = vmatpush1.bf16.msra.mxu0 0
    %9775 = vmatprep.subr.bf16.mxu0 0
    %9776 = vmatpush1.bf16.msra.mxu0 0
    %9777 = vmatprep.subr.bf16.mxu0 0
    %9778 = vmatpush1.bf16.msra.mxu0 0
    %9779 = vmatprep.subr.bf16.mxu0 0
    %9780 = vmatpush1.bf16.msra.mxu0 0
    %9781 = vmatprep.subr.bf16.mxu0 0
    %9782 = vmatpush1.bf16.msra.mxu0 0
    %9783 = vmatprep.mubr.bf16.mxu0 0
    %9784 = vmatmul.mubr.bf16.gmra.mrb[0].mxu0 %v9654
    %v9785 = vpop.f32.mrb[0].mxu0
    %v9786 = vadd.f32 0.0, %v9785
    %v9787 = vpop.f32.mrb[0].mxu0
    %v9788 = vadd.f32 0.0, %v9787
    %v9789 = vpop.f32.mrb[0].mxu0
    %v9790 = vpop.f32.mrb[0].mxu0
    %9791 = vdwg.mxu0
    %v9808 = vunpack.c.l.b16 %v9638
    %v9809 = vunpack.c.h.b16 %v9638
    %v9810 = vunpack.c.l.b16 %v9639
    %v9811 = vunpack.c.h.b16 %v9639
    %v9812 = vunpack.c.l.b16 %v9640
    %v9813 = vunpack.c.h.b16 %v9640
    %v9814 = vunpack.c.l.b16 %v9641
    %v9815 = vunpack.c.h.b16 %v9641
    %v9816 = vunpack.c.l.b16 %v9642
    %v9817 = vunpack.c.h.b16 %v9642
    %v9818 = vunpack.c.l.b16 %v9643
    %v9819 = vunpack.c.h.b16 %v9643
    %v9820 = vunpack.c.l.b16 %v9644
    %v9821 = vunpack.c.h.b16 %v9644
    %v9822 = vunpack.c.l.b16 %v9645
    %v9823 = vunpack.c.h.b16 %v9645
    %v9824 = vunpack.c.l.b16 %v9646
    %v9825 = vunpack.c.h.b16 %v9646
    %v9826 = vunpack.c.l.b16 %v9647
    %v9827 = vunpack.c.h.b16 %v9647
    %v9828 = vunpack.c.l.b16 %v9648
    %v9829 = vunpack.c.h.b16 %v9648
    %v9830 = vunpack.c.l.b16 %v9649
    %v9831 = vunpack.c.h.b16 %v9649
    %v9832 = vunpack.c.l.b16 %v9650
    %v9833 = vunpack.c.h.b16 %v9650
    %v9834 = vunpack.c.l.b16 %v9651
    %v9835 = vunpack.c.h.b16 %v9651
    %v9836 = vunpack.c.l.b16 %v9652
    %v9837 = vunpack.c.h.b16 %v9652
    %v9838 = vunpack.c.l.b16 %v9653
    %v9839 = vunpack.c.h.b16 %v9653
    %v9840 = vpack.c.b16 %v9810, %v9808
    %v9841 = vpack.c.b16 %v9811, %v9809
    %v9842 = vpack.c.b16 %v9814, %v9812
    %v9843 = vpack.c.b16 %v9815, %v9813
    %v9844 = vpack.c.b16 %v9818, %v9816
    %v9845 = vpack.c.b16 %v9819, %v9817
    %v9846 = vpack.c.b16 %v9822, %v9820
    %v9847 = vpack.c.b16 %v9823, %v9821
    %v9848 = vpack.c.b16 %v9826, %v9824
    %v9849 = vpack.c.b16 %v9827, %v9825
    %v9850 = vpack.c.b16 %v9830, %v9828
    %v9851 = vpack.c.b16 %v9831, %v9829
    %v9852 = vpack.c.b16 %v9834, %v9832
    %v9853 = vpack.c.b16 %v9835, %v9833
    %v9854 = vpack.c.b16 %v9838, %v9836
    %v9855 = vpack.c.b16 %v9839, %v9837
    %9872 = vmatprep.subr.bf16.mxu0 %v9841
    %9873 = vmatpush1.bf16.msra.mxu0 %v9840
    %9874 = vmatprep.subr.bf16.mxu0 %v9843
    %9875 = vmatpush1.bf16.msra.mxu0 %v9842
    %9876 = vmatprep.subr.bf16.mxu0 %v9845
    %9877 = vmatpush1.bf16.msra.mxu0 %v9844
    %9878 = vmatprep.subr.bf16.mxu0 %v9847
    %9879 = vmatpush1.bf16.msra.mxu0 %v9846
    %9880 = vmatprep.subr.bf16.mxu0 %v9849
    %9881 = vmatpush1.bf16.msra.mxu0 %v9848
    %9882 = vmatprep.subr.bf16.mxu0 %v9851
    %9883 = vmatpush1.bf16.msra.mxu0 %v9850
    %9884 = vmatprep.subr.bf16.mxu0 %v9853
    %9885 = vmatpush1.bf16.msra.mxu0 %v9852
    %9886 = vmatprep.subr.bf16.mxu0 %v9855
    %9887 = vmatpush1.bf16.msra.mxu0 %v9854
    %9888 = vmatprep.subr.bf16.mxu0 0
    %9889 = vmatpush1.bf16.msra.mxu0 0
    %9890 = vmatprep.subr.bf16.mxu0 0
    %9891 = vmatpush1.bf16.msra.mxu0 0
    %9892 = vmatprep.subr.bf16.mxu0 0
    %9893 = vmatpush1.bf16.msra.mxu0 0
    %9894 = vmatprep.subr.bf16.mxu0 0
    %9895 = vmatpush1.bf16.msra.mxu0 0
    %9896 = vmatprep.subr.bf16.mxu0 0
    %9897 = vmatpush1.bf16.msra.mxu0 0
    %9898 = vmatprep.subr.bf16.mxu0 0
    %9899 = vmatpush1.bf16.msra.mxu0 0
    %9900 = vmatprep.subr.bf16.mxu0 0
    %9901 = vmatpush1.bf16.msra.mxu0 0
    %9902 = vmatprep.subr.bf16.mxu0 0
    %9903 = vmatpush1.bf16.msra.mxu0 0
    %9904 = vmatprep.mubr.bf16.mxu0 0
    %9905 = vmatmul.mubr.bf16.gmra.mrb[0].mxu0 %v9637
    %v9906 = vpop.f32.mrb[0].mxu0
    %v9907 = vadd.f32 %v9786, %v9906
    %v9908 = vpop.f32.mrb[0].mxu0
    %v9909 = vadd.f32 %v9788, %v9908
    %v9910 = vpop.f32.mrb[0].mxu0
    %v9911 = vpop.f32.mrb[0].mxu0
    %9912 = vdwg.mxu0
    %v9913 = vld [vmem:[%s7 + $0x7] sm:$0x3]
    %v9915 = vlaneseq
    %v9916 = vshrl.u32 %v9915, 7
    %v9917 = vsub.s32 0, %v9916
    %v9918 = vrot.slane %v9913, %v9917
    %v9919 = vlaneseq
    %v9920 = vshrl.u32 %v9919, 7
    %v9921 = vsub.s32 1, %v9920
    %v9922 = vrot.slane %v9913, %v9921
    %v9925 = vadd.f32 %v9907, %v9918
    %v9926 = vadd.f32 %v9909, %v9922
    %vm9927 = vcmask 1041408
    %v9928 = vsel %vm9927, %v9925, 0.0
    %v9929 = vrot.slane %v9928, 4
    %v9930 = vadd.f32 %v9928, %v9929
    %v9931 = vrot.slane %v9930, 2
    %v9932 = vadd.f32 %v9930, %v9931
    %v9933 = vrot.slane %v9932, 1
    %v9934 = vadd.f32 %v9932, %v9933
    %v9935 = vsel %vm9927, %v9926, 0.0
    %v9936 = vrot.slane %v9935, 4
    %v9937 = vadd.f32 %v9935, %v9936
    %v9938 = vrot.slane %v9937, 2
    %v9939 = vadd.f32 %v9937, %v9938
    %v9940 = vrot.slane %v9939, 1
    %v9941 = vadd.f32 %v9939, %v9940
    %v9942 = vrcp.pop 2.0
    %v9943 = vmul.f32 %v9934, %v9942
    %v9944 = vmul.f32 %v9941, %v9942
    %v9945 = vsub.f32 %v9925, %v9943
    %v9946 = vsub.f32 %v9926, %v9944
    %v9947 = vmul.f32 %v9945, %v9945
    %v9948 = vmul.f32 %v9946, %v9946
    %v9949 = vsel %vm9927, %v9947, 0.0
    %v9950 = vrot.slane %v9949, 4
    %v9951 = vadd.f32 %v9949, %v9950
    %v9952 = vrot.slane %v9951, 2
    %v9953 = vadd.f32 %v9951, %v9952
    %v9954 = vrot.slane %v9953, 1
    %v9955 = vadd.f32 %v9953, %v9954
    %v9956 = vsel %vm9927, %v9948, 0.0
    %v9957 = vrot.slane %v9956, 4
    %v9958 = vadd.f32 %v9956, %v9957
    %v9959 = vrot.slane %v9958, 2
    %v9960 = vadd.f32 %v9958, %v9959
    %v9961 = vrot.slane %v9960, 1
    %v9962 = vadd.f32 %v9960, %v9961
    %v9963 = vmul.f32 %v9955, %v9942
    %v9964 = vmul.f32 %v9962, %v9942
    %v9965 = vadd.f32 %v9963, 1e-05
    %v9966 = vadd.f32 %v9964, 1e-05
    %v9967 = vrsqrt.pop %v9965
    %v9968 = vrsqrt.pop %v9966
    %v9969 = vmul.f32 %v9945, %v9967
    %v9970 = vmul.f32 %v9946, %v9968
    %v9971 = vld [vmem:[%s7 + $0x9] sm:$0x3]
    %v9973 = vlaneseq
    %v9974 = vshrl.u32 %v9973, 7
    %v9975 = vsub.s32 0, %v9974
    %v9976 = vrot.slane %v9971, %v9975
    %v9977 = vlaneseq
    %v9978 = vshrl.u32 %v9977, 7
    %v9979 = vsub.s32 1, %v9978
    %v9980 = vrot.slane %v9971, %v9979
    %v9983 = vmul.f32 %v9969, %v9976
    %v9984 = vmul.f32 %v9970, %v9980
    %v9985 = vld [vmem:[%s7 + $0xb] sm:$0x3]
    %v9987 = vlaneseq
    %v9988 = vshrl.u32 %v9987, 7
    %v9989 = vsub.s32 0, %v9988
    %v9990 = vrot.slane %v9985, %v9989
    %v9991 = vlaneseq
    %v9992 = vshrl.u32 %v9991, 7
    %v9993 = vsub.s32 1, %v9992
    %v9994 = vrot.slane %v9985, %v9993
    %v9997 = vadd.f32 %v9983, %v9990
    %v9998 = vadd.f32 %v9984, %v9994
    %v9999 = vmul.f32 %v9997, 0.01
    %v10000 = vmul.f32 %v9998, 0.01
    %v10001 = vmax.f32 %v9997, %v9999
    %v10002 = vmax.f32 %v9998, %v10000
    %v10003 = vpack.c.bf16 %v10001, %v10001
    %v10004 = vpack.c.bf16 %v10002, %v10002
    %v10005 = vld [vmem:[%s4 + $0x1b0] sm:$0xf]
    %v10006 = vld [vmem:[%s4 + $0x1b4] sm:$0xf]
    %v10007 = vld [vmem:[%s4 + $0x1b8] sm:$0xf]
    %v10008 = vld [vmem:[%s4 + $0x1bc] sm:$0xf]
    %v10009 = vld [vmem:[%s4 + $0x1c0] sm:$0xf]
    %v10010 = vld [vmem:[%s4 + $0x1c4] sm:$0xf]
    %v10011 = vld [vmem:[%s4 + $0x1c8] sm:$0xf]
    %v10012 = vld [vmem:[%s4 + $0x1cc] sm:$0xf]
    %v10013 = vld [vmem:[%s4 + $0x1d0] sm:$0xf]
    %v10014 = vld [vmem:[%s4 + $0x1d4] sm:$0xf]
    %v10015 = vld [vmem:[%s4 + $0x1d8] sm:$0xf]
    %v10016 = vld [vmem:[%s4 + $0x1dc] sm:$0xf]
    %v10017 = vld [vmem:[%s4 + $0x1e0] sm:$0xf]
    %v10018 = vld [vmem:[%s4 + $0x1e4] sm:$0xf]
    %v10019 = vld [vmem:[%s4 + $0x1e8] sm:$0xf]
    %v10020 = vld [vmem:[%s4 + $0x1ec] sm:$0xf]
    %v10021 = vld [vmem:[%s4 + $0x1f0] sm:$0xf]
    %v10022 = vld [vmem:[%s4 + $0x1f4] sm:$0xf]
    %v10023 = vld [vmem:[%s4 + $0x1f8] sm:$0xf]
    %v10024 = vld [vmem:[%s4 + $0x1fc] sm:$0xf]
    %v10025 = vld [vmem:[%s4 + $0x200] sm:$0xf]
    %v10026 = vld [vmem:[%s4 + $0x204] sm:$0xf]
    %v10027 = vld [vmem:[%s4 + $0x208] sm:$0xf]
    %v10028 = vld [vmem:[%s4 + $0x20c] sm:$0xf]
    %v10029 = vld [vmem:[%s4 + $0x210] sm:$0xf]
    %v10030 = vld [vmem:[%s4 + $0x214] sm:$0xf]
    %v10031 = vld [vmem:[%s4 + $0x218] sm:$0xf]
    %v10032 = vld [vmem:[%s4 + $0x21c] sm:$0xf]
    %v10033 = vld [vmem:[%s4 + $0x220] sm:$0xf]
    %v10034 = vld [vmem:[%s4 + $0x224] sm:$0xf]
    %v10035 = vld [vmem:[%s4 + $0x228] sm:$0xf]
    %v10036 = vld [vmem:[%s4 + $0x22c] sm:$0xf]
    %v10037 = vld [vmem:[%s7 + $0xd] sm:$0x1]
    %v10039 = vlaneseq
    %v10040 = vshrl.u32 %v10039, 7
    %v10041 = vsub.s32 0, %v10040
    %v10042 = vrot.slane %v10037, %v10041
    %v10076 = vunpack.c.l.b16 %v10005
    %v10077 = vunpack.c.l.b16 %v10006
    %v10078 = vunpack.c.l.b16 %v10007
    %v10079 = vunpack.c.l.b16 %v10008
    %v10080 = vunpack.c.l.b16 %v10009
    %v10081 = vunpack.c.l.b16 %v10010
    %v10082 = vunpack.c.l.b16 %v10011
    %v10083 = vunpack.c.l.b16 %v10012
    %v10084 = vunpack.c.l.b16 %v10013
    %v10085 = vunpack.c.l.b16 %v10014
    %v10086 = vunpack.c.l.b16 %v10015
    %v10087 = vunpack.c.l.b16 %v10016
    %v10088 = vunpack.c.l.b16 %v10017
    %v10089 = vunpack.c.l.b16 %v10018
    %v10090 = vunpack.c.l.b16 %v10019
    %v10091 = vunpack.c.l.b16 %v10020
    %v10092 = vunpack.c.l.b16 %v10021
    %v10093 = vunpack.c.l.b16 %v10022
    %v10094 = vunpack.c.l.b16 %v10023
    %v10095 = vunpack.c.l.b16 %v10024
    %v10096 = vunpack.c.l.b16 %v10025
    %v10097 = vunpack.c.l.b16 %v10026
    %v10098 = vunpack.c.l.b16 %v10027
    %v10099 = vunpack.c.l.b16 %v10028
    %v10100 = vunpack.c.l.b16 %v10029
    %v10101 = vunpack.c.l.b16 %v10030
    %v10102 = vunpack.c.l.b16 %v10031
    %v10103 = vunpack.c.l.b16 %v10032
    %v10104 = vunpack.c.l.b16 %v10033
    %v10105 = vunpack.c.l.b16 %v10034
    %v10106 = vunpack.c.l.b16 %v10035
    %v10107 = vunpack.c.l.b16 %v10036
    %v10108 = vpack.c.b16 %v10077, %v10076
    %v10109 = vpack.c.b16 %v10079, %v10078
    %v10110 = vpack.c.b16 %v10081, %v10080
    %v10111 = vpack.c.b16 %v10083, %v10082
    %v10112 = vpack.c.b16 %v10085, %v10084
    %v10113 = vpack.c.b16 %v10087, %v10086
    %v10114 = vpack.c.b16 %v10089, %v10088
    %v10115 = vpack.c.b16 %v10091, %v10090
    %v10116 = vpack.c.b16 %v10093, %v10092
    %v10117 = vpack.c.b16 %v10095, %v10094
    %v10118 = vpack.c.b16 %v10097, %v10096
    %v10119 = vpack.c.b16 %v10099, %v10098
    %v10120 = vpack.c.b16 %v10101, %v10100
    %v10121 = vpack.c.b16 %v10103, %v10102
    %v10122 = vpack.c.b16 %v10105, %v10104
    %v10123 = vpack.c.b16 %v10107, %v10106
    %10140 = vmatprep.subr.bf16.mxu0 0
    %10141 = vmatpush1.bf16.msra.mxu0 %v10108
    %10142 = vmatprep.subr.bf16.mxu0 0
    %10143 = vmatpush1.bf16.msra.mxu0 %v10109
    %10144 = vmatprep.subr.bf16.mxu0 0
    %10145 = vmatpush1.bf16.msra.mxu0 %v10110
    %10146 = vmatprep.subr.bf16.mxu0 0
    %10147 = vmatpush1.bf16.msra.mxu0 %v10111
    %10148 = vmatprep.subr.bf16.mxu0 0
    %10149 = vmatpush1.bf16.msra.mxu0 %v10112
    %10150 = vmatprep.subr.bf16.mxu0 0
    %10151 = vmatpush1.bf16.msra.mxu0 %v10113
    %10152 = vmatprep.subr.bf16.mxu0 0
    %10153 = vmatpush1.bf16.msra.mxu0 %v10114
    %10154 = vmatprep.subr.bf16.mxu0 0
    %10155 = vmatpush1.bf16.msra.mxu0 %v10115
    %10156 = vmatprep.subr.bf16.mxu0 0
    %10157 = vmatpush1.bf16.msra.mxu0 %v10116
    %10158 = vmatprep.subr.bf16.mxu0 0
    %10159 = vmatpush1.bf16.msra.mxu0 %v10117
    %10160 = vmatprep.subr.bf16.mxu0 0
    %10161 = vmatpush1.bf16.msra.mxu0 %v10118
    %10162 = vmatprep.subr.bf16.mxu0 0
    %10163 = vmatpush1.bf16.msra.mxu0 %v10119
    %10164 = vmatprep.subr.bf16.mxu0 0
    %10165 = vmatpush1.bf16.msra.mxu0 %v10120
    %10166 = vmatprep.subr.bf16.mxu0 0
    %10167 = vmatpush1.bf16.msra.mxu0 %v10121
    %10168 = vmatprep.subr.bf16.mxu0 0
    %10169 = vmatpush1.bf16.msra.mxu0 %v10122
    %10170 = vmatprep.subr.bf16.mxu0 0
    %10171 = vmatpush1.bf16.msra.mxu0 %v10123
    %10172 = vmatprep.mubr.bf16.mxu0 %v10004
    %10173 = vmatmul.mubr.bf16.gmra.mrb[0].mxu0 %v10003
    %v10174 = vpop.f32.mrb[0].mxu0
    %v10175 = vadd.f32 %v10042, %v10174
    %v10176 = vpop.f32.mrb[0].mxu0
    %v10177 = vpop.f32.mrb[0].mxu0
    %v10178 = vpop.f32.mrb[0].mxu0
    %10179 = vdwg.mxu0
    %v10180 = vmul.f32 %v10175, 0.01
    %v10181 = vmax.f32 %v10175, %v10180
    %v10182 = vpack.c.bf16 %v10181, %v10181
    %v10183 = vld [vmem:[%s5 + $0x80] sm:$0xf]
    %v10184 = vld [vmem:[%s5 + $0x84] sm:$0xf]
    %v10185 = vld [vmem:[%s5 + $0x88] sm:$0xf]
    %v10186 = vld [vmem:[%s5 + $0x8c] sm:$0xf]
    %v10187 = vld [vmem:[%s5 + $0x90] sm:$0xf]
    %v10188 = vld [vmem:[%s5 + $0x94] sm:$0xf]
    %v10189 = vld [vmem:[%s5 + $0x98] sm:$0xf]
    %v10190 = vld [vmem:[%s5 + $0x9c] sm:$0xf]
    %v10191 = vld [vmem:[%s5 + $0xa0] sm:$0xf]
    %v10192 = vld [vmem:[%s5 + $0xa4] sm:$0xf]
    %v10193 = vld [vmem:[%s5 + $0xa8] sm:$0xf]
    %v10194 = vld [vmem:[%s5 + $0xac] sm:$0xf]
    %v10195 = vld [vmem:[%s5 + $0xb0] sm:$0xf]
    %v10196 = vld [vmem:[%s5 + $0xb4] sm:$0xf]
    %v10197 = vld [vmem:[%s5 + $0xb8] sm:$0xf]
    %v10198 = vld [vmem:[%s5 + $0xbc] sm:$0xf]
    %v10199 = vld [vmem:[%s7 + $0xe] sm:$0x1]
    %v10201 = vlaneseq
    %v10202 = vshrl.u32 %v10201, 7
    %v10203 = vsub.s32 0, %v10202
    %v10204 = vrot.slane %v10199, %v10203
    %v10222 = vunpack.c.l.b16 %v10183
    %v10223 = vunpack.c.l.b16 %v10184
    %v10224 = vunpack.c.l.b16 %v10185
    %v10225 = vunpack.c.l.b16 %v10186
    %v10226 = vunpack.c.l.b16 %v10187
    %v10227 = vunpack.c.l.b16 %v10188
    %v10228 = vunpack.c.l.b16 %v10189
    %v10229 = vunpack.c.l.b16 %v10190
    %v10230 = vunpack.c.l.b16 %v10191
    %v10231 = vunpack.c.l.b16 %v10192
    %v10232 = vunpack.c.l.b16 %v10193
    %v10233 = vunpack.c.l.b16 %v10194
    %v10234 = vunpack.c.l.b16 %v10195
    %v10235 = vunpack.c.l.b16 %v10196
    %v10236 = vunpack.c.l.b16 %v10197
    %v10237 = vunpack.c.l.b16 %v10198
    %v10238 = vpack.c.b16 %v10223, %v10222
    %v10239 = vpack.c.b16 %v10225, %v10224
    %v10240 = vpack.c.b16 %v10227, %v10226
    %v10241 = vpack.c.b16 %v10229, %v10228
    %v10242 = vpack.c.b16 %v10231, %v10230
    %v10243 = vpack.c.b16 %v10233, %v10232
    %v10244 = vpack.c.b16 %v10235, %v10234
    %v10245 = vpack.c.b16 %v10237, %v10236
    %10254 = vmatprep.subr.bf16.mxu0 0
    %10255 = vmatpush1.bf16.msra.mxu0 %v10238
    %10256 = vmatprep.subr.bf16.mxu0 0
    %10257 = vmatpush1.bf16.msra.mxu0 %v10239
    %10258 = vmatprep.subr.bf16.mxu0 0
    %10259 = vmatpush1.bf16.msra.mxu0 %v10240
    %10260 = vmatprep.subr.bf16.mxu0 0
    %10261 = vmatpush1.bf16.msra.mxu0 %v10241
    %10262 = vmatprep.subr.bf16.mxu0 0
    %10263 = vmatpush1.bf16.msra.mxu0 %v10242
    %10264 = vmatprep.subr.bf16.mxu0 0
    %10265 = vmatpush1.bf16.msra.mxu0 %v10243
    %10266 = vmatprep.subr.bf16.mxu0 0
    %10267 = vmatpush1.bf16.msra.mxu0 %v10244
    %10268 = vmatprep.subr.bf16.mxu0 0
    %10269 = vmatpush1.bf16.msra.mxu0 %v10245
    %10270 = vmatprep.subr.bf16.mxu0 0
    %10271 = vmatpush1.bf16.msra.mxu0 0
    %10272 = vmatprep.subr.bf16.mxu0 0
    %10273 = vmatpush1.bf16.msra.mxu0 0
    %10274 = vmatprep.subr.bf16.mxu0 0
    %10275 = vmatpush1.bf16.msra.mxu0 0
    %10276 = vmatprep.subr.bf16.mxu0 0
    %10277 = vmatpush1.bf16.msra.mxu0 0
    %10278 = vmatprep.subr.bf16.mxu0 0
    %10279 = vmatpush1.bf16.msra.mxu0 0
    %10280 = vmatprep.subr.bf16.mxu0 0
    %10281 = vmatpush1.bf16.msra.mxu0 0
    %10282 = vmatprep.subr.bf16.mxu0 0
    %10283 = vmatpush1.bf16.msra.mxu0 0
    %10284 = vmatprep.subr.bf16.mxu0 0
    %10285 = vmatpush1.bf16.msra.mxu0 0
    %10286 = vmatprep.mubr.bf16.mxu0 0
    %10287 = vmatmul.mubr.bf16.gmra.mrb[0].mxu0 %v10182
    %v10288 = vpop.f32.mrb[0].mxu0
    %v10289 = vadd.f32 %v10204, %v10288
    %v10290 = vpop.f32.mrb[0].mxu0
    %v10291 = vpop.f32.mrb[0].mxu0
    %v10292 = vpop.f32.mrb[0].mxu0
    %10293 = vdwg.mxu0
    %v10294 = vmul.f32 %v10289, 0.01
    %v10295 = vmax.f32 %v10289, %v10294
    %v10296 = vpack.c.bf16 %v10295, %v10295
    %v10297 = vld [vmem:[%s4 + $0x230] sm:$0xf]
    %v10298 = vld [vmem:[%s4 + $0x234] sm:$0xf]
    %v10299 = vld [vmem:[%s4 + $0x238] sm:$0xf]
    %v10300 = vld [vmem:[%s4 + $0x23c] sm:$0xf]
    %v10301 = vld [vmem:[%s4 + $0x240] sm:$0xf]
    %v10302 = vld [vmem:[%s4 + $0x244] sm:$0xf]
    %v10303 = vld [vmem:[%s4 + $0x248] sm:$0xf]
    %v10304 = vld [vmem:[%s4 + $0x24c] sm:$0xf]
    %v10305 = vld [vmem:[%s7 + $0xf] sm:$0x1]
    %v10307 = vlaneseq
    %v10308 = vshrl.u32 %v10307, 7
    %v10309 = vsub.s32 0, %v10308
    %v10310 = vrot.slane %v10305, %v10309
    %v10320 = vunpack.c.l.b16 %v10297
    %v10321 = vunpack.c.l.b16 %v10298
    %v10322 = vunpack.c.l.b16 %v10299
    %v10323 = vunpack.c.l.b16 %v10300
    %v10324 = vunpack.c.l.b16 %v10301
    %v10325 = vunpack.c.l.b16 %v10302
    %v10326 = vunpack.c.l.b16 %v10303
    %v10327 = vunpack.c.l.b16 %v10304
    %v10328 = vpack.c.b16 %v10321, %v10320
    %v10329 = vpack.c.b16 %v10323, %v10322
    %v10330 = vpack.c.b16 %v10325, %v10324
    %v10331 = vpack.c.b16 %v10327, %v10326
    %v10337 = vsel %vm9591, %v10296, 0
    %10339 = vmatprep.subr.bf16.mxu0 0
    %10340 = vmatpush1.bf16.msra.mxu0 %v10328
    %10341 = vmatprep.subr.bf16.mxu0 0
    %10342 = vmatpush1.bf16.msra.mxu0 %v10329
    %10343 = vmatprep.subr.bf16.mxu0 0
    %10344 = vmatpush1.bf16.msra.mxu0 %v10330
    %10345 = vmatprep.subr.bf16.mxu0 0
    %10346 = vmatpush1.bf16.msra.mxu0 %v10331
    %10347 = vmatprep.subr.bf16.mxu0 0
    %10348 = vmatpush1.bf16.msra.mxu0 0
    %10349 = vmatprep.subr.bf16.mxu0 0
    %10350 = vmatpush1.bf16.msra.mxu0 0
    %10351 = vmatprep.subr.bf16.mxu0 0
    %10352 = vmatpush1.bf16.msra.mxu0 0
    %10353 = vmatprep.subr.bf16.mxu0 0
    %10354 = vmatpush1.bf16.msra.mxu0 0
    %10355 = vmatprep.subr.bf16.mxu0 0
    %10356 = vmatpush1.bf16.msra.mxu0 0
    %10357 = vmatprep.subr.bf16.mxu0 0
    %10358 = vmatpush1.bf16.msra.mxu0 0
    %10359 = vmatprep.subr.bf16.mxu0 0
    %10360 = vmatpush1.bf16.msra.mxu0 0
    %10361 = vmatprep.subr.bf16.mxu0 0
    %10362 = vmatpush1.bf16.msra.mxu0 0
    %10363 = vmatprep.subr.bf16.mxu0 0
    %10364 = vmatpush1.bf16.msra.mxu0 0
    %10365 = vmatprep.subr.bf16.mxu0 0
    %10366 = vmatpush1.bf16.msra.mxu0 0
    %10367 = vmatprep.subr.bf16.mxu0 0
    %10368 = vmatpush1.bf16.msra.mxu0 0
    %10369 = vmatprep.subr.bf16.mxu0 0
    %10370 = vmatpush1.bf16.msra.mxu0 0
    %10371 = vmatprep.mubr.bf16.mxu0 0
    %10372 = vmatmul.mubr.bf16.gmra.mrb[0].mxu0 %v10337
    %v10373 = vpop.f32.mrb[0].mxu0
    %v10374 = vadd.f32 %v10310, %v10373
    %v10375 = vpop.f32.mrb[0].mxu0
    %v10376 = vpop.f32.mrb[0].mxu0
    %v10377 = vpop.f32.mrb[0].mxu0
    %10378 = vdwg.mxu0
    %v10379 = vmul.f32 %v10374, 512.0
    %10380 = vst [vmem:[#allocation8] sm:$0x3] %v10379
    // Predicated region
    $region38: #{bxfinder_forward.1} parent=1 // pred_check
      _
    $region39: #{bxfinder_forward.1} parent=1 // pred_check_branch
      %10382 = sbr.rel (0) target = $region41
    $region40: #{bxfinder_forward.1} parent=1 // pred_region
      %s10384 = ssub.s32 32, 32
      %10385 = vsyncadd [#allocation7], %s10384
      %s10387 = sshll.u32 [#allocation8], 4
      %s10388 = int_to_ptr.vmem [resolvable:$true] %s10387
      %10390 = dma.vmem_to_hbm [thread:$0]  %s10388, 32, %s8, [#allocation7]
    $region41: #{bxfinder_forward.1} parent=1 // pred_fallthru
      _
    // Predicated region
    $region42: #{bxfinder_forward.1} parent=1 // pred_check
      _
    $region43: #{bxfinder_forward.1} parent=1 // pred_check_branch
      %10392 = sbr.rel (0) target = $region45
    $region44: #{bxfinder_forward.1} parent=1 // pred_region
      %10393 = dma.done [#allocation7], 32
    $region45: #{bxfinder_forward.1} parent=1 // pred_fallthru
      _
    %10394 = vsyncpa [#allocation6], 1
    %10395 = vsyncpa [#allocation7], 1

</llo_original>
